<compile_context>
chip_gen: v5e
topology: v5e:2x2
jax: 0.10.0
libtpu: 0.0.40
codegen_flags: <defaults>
</compile_context>

<pallas_src>
from functools import partial

import numpy as np
import jax
import jax.numpy as jnp
from jax.experimental import pallas as pl
from jax.experimental.pallas import tpu as pltpu


def _round_up(x, m):
    return ((x + m - 1) // m) * m


# ----------------------------------------------------------------------------
# Pallas kernel 1: decode loc predictions against priors (CENTER_SIZE code).
#   loc : [4, Bp, Pp]  coordinate-major (rows: dx, dy, dw, dh)
#   pri : [4, 1,  Pp]  (rows: cx, cy, w, h)
#   var : [4, 1,  Pp]  (rows: vx, vy, vw, vh)
#   out : [4, Bp, Pp]  (rows: xmin, ymin, xmax, ymax)
# Every coordinate plane is a full [Bb, Pp] (8,128)-tiled slab -> unmasked vst.
# ----------------------------------------------------------------------------
def _decode_kernel(loc_ref, pri_ref, var_ref, box_ref):
    p_cx, p_cy, p_w, p_h = pri_ref[0], pri_ref[1], pri_ref[2], pri_ref[3]  # [1, Pp]
    v_cx, v_cy, v_w, v_h = var_ref[0], var_ref[1], var_ref[2], var_ref[3]  # [1, Pp]
    l_cx, l_cy, l_w, l_h = loc_ref[0], loc_ref[1], loc_ref[2], loc_ref[3]  # [Bb, Pp]

    cx = p_cx + l_cx * (v_cx * p_w)
    cy = p_cy + l_cy * (v_cy * p_h)
    w = p_w * jnp.exp(l_w * v_w)
    h = p_h * jnp.exp(l_h * v_h)

    box_ref[0] = cx - 0.5 * w          # xmin
    box_ref[1] = cy - 0.5 * h          # ymin
    box_ref[2] = cx + 0.5 * w          # xmax
    box_ref[3] = cy + 0.5 * h          # ymax


def decode_boxes_pallas(loc_t, pri_t, var_t):
    _, Bp, Pp = loc_t.shape
    Bb = 8                                   # 8 batch rows per grid step
    grid = (Bp // Bb,)
    return pl.pallas_call(
        _decode_kernel,
        out_shape=jax.ShapeDtypeStruct((4, Bp, Pp), jnp.float32),
        grid_spec=pltpu.PrefetchScalarGridSpec(
            num_scalar_prefetch=0,
            grid=grid,
            in_specs=[
                pl.BlockSpec((4, Bb, Pp), lambda b: (0, b, 0)),
                pl.BlockSpec((4, 1, Pp), lambda b: (0, 0, 0)),
                pl.BlockSpec((4, 1, Pp), lambda b: (0, 0, 0)),
            ],
            out_specs=pl.BlockSpec((4, Bb, Pp), lambda b: (0, b, 0)),
        ),
        compiler_params=pltpu.CompilerParams(dimension_semantics=("parallel",)),
    )(loc_t, pri_t, var_t)


# ----------------------------------------------------------------------------
# Pallas kernel 2: fused pairwise-IoU + greedy NMS for G (image, class) pairs
# per grid step.  Candidates are already score-descending (from top_k); padded
# slots are zero-area boxes with valid = 0.
#   rows  : [4, BCp, Kp]   target-axis operands (coord-major, candidates on lanes)
#   cols  : [Kp, BCp, 4]   suppressor-axis operands (candidates on leading dim)
#   valid : [BCp, Kp]      1.0 where the candidate passed the confidence threshold
#   keep  : [BCp, Kp]      output: 1.0 where the candidate survives NMS
#   iou   : VMEM scratch [Kp, G, Kp]  (iou[j, g, i] = IoU(box_j, box_i) of pair g)
# ----------------------------------------------------------------------------
def _iou_nms_kernel(rows_ref, cols_ref, valid_ref, keep_ref, iou_ref,
                    *, nms_threshold, n_valid):
    G, Kp = valid_ref.shape

    # Target (i) operands: [1, G, Kp]
    x1r = rows_ref[0][None]
    y1r = rows_ref[1][None]
    x2r = rows_ref[2][None]
    y2r = rows_ref[3][None]
    area_r = (x2r - x1r) * (y2r - y1r)

    # Suppressor (j) operands: [Kp, G, 1]
    cols = cols_ref[...]                      # [Kp, G, 4]
    x1c = cols[:, :, 0:1]
    y1c = cols[:, :, 1:2]
    x2c = cols[:, :, 2:3]
    y2c = cols[:, :, 3:4]
    area_c = (x2c - x1c) * (y2c - y1c)

    w = jnp.maximum(jnp.minimum(x2c, x2r) - jnp.maximum(x1c, x1r), 0.0)
    h = jnp.maximum(jnp.minimum(y2c, y2r) - jnp.maximum(y1c, y1r), 0.0)
    inter = w * h
    union = jnp.maximum(area_c + area_r - inter, 1e-12)   # eps: no Inf/NaN
    # Exact division (not approx reciprocal): keep/suppress decisions near the
    # nms_threshold must match the reference as closely as possible.
    iou_ref[...] = inter / union                           # [Kp, G, Kp]

    ids = jax.lax.broadcasted_iota(jnp.int32, (G, Kp), 1)

    def body(j, keep):
        row = iou_ref[j]                                   # [G, Kp]: IoU(box_j, box_i)
        # keep_j (was box j itself kept?) via a lane masked-max, avoids any
        # dynamic lane gather.
        keep_j = jnp.max(jnp.where(ids == j, keep, 0.0), axis=-1, keepdims=True)
        sup = (row > nms_threshold) & (ids > j) & (keep_j > 0.5)
        return jnp.where(sup, 0.0, keep)

    keep_ref[...] = jax.lax.fori_loop(0, n_valid, body, valid_ref[...])


def _pairs_per_step(kp):
    # Keep the [Kp, G, Kp] working set around <= 2 MiB per intermediate so the
    # whole step fits comfortably in the default scoped VMEM on v7x as well.
    g = max(1, (2 * 1024 * 1024) // (kp * kp * 4))
    return int(min(8, g))


def iou_nms_pallas(cand_rows, cand_cols, valid, *, nms_threshold, n_valid, pairs_per_step):
    _, BCp, Kp = cand_rows.shape
    G = pairs_per_step
    kernel = partial(_iou_nms_kernel,
                     nms_threshold=float(nms_threshold),
                     n_valid=int(n_valid))
    return pl.pallas_call(
        kernel,
        out_shape=jax.ShapeDtypeStruct((BCp, Kp), jnp.float32),
        grid_spec=pltpu.PrefetchScalarGridSpec(
            num_scalar_prefetch=0,
            grid=(BCp // G,),
            in_specs=[
                pl.BlockSpec((4, G, Kp), lambda s: (0, s, 0)),
                pl.BlockSpec((Kp, G, 4), lambda s: (0, s, 0)),
                pl.BlockSpec((G, Kp), lambda s: (s, 0)),
            ],
            out_specs=pl.BlockSpec((G, Kp), lambda s: (s, 0)),
            scratch_shapes=[pltpu.VMEM((Kp, G, Kp), jnp.float32)],
        ),
        compiler_params=pltpu.CompilerParams(dimension_semantics=("parallel",)),
    )(cand_rows, cand_cols, valid)


# ----------------------------------------------------------------------------
# Device stage: decode -> threshold -> per-class top_k -> fused IoU + NMS.
# (top_k / gather are XLA ops; the elementwise / NMS hot paths are Pallas.)
# ----------------------------------------------------------------------------
@partial(jax.jit, static_argnames=("k", "conf_thr", "nms_thr"))
def _device_stage(loc, conf, priors, variances, *, k, conf_thr, nms_thr):
    B, P, _ = loc.shape
    C = conf.shape[-1]
    K = k
    Bp = _round_up(B, 8)
    Pp = _round_up(P, 128)
    Kp = _round_up(K, 128)

    # ---- decode (Pallas, coordinate-major, padded to full (8,128) tiles) ----
    loc_t = jnp.transpose(loc, (2, 0, 1))                              # [4, B, P]
    loc_t = jnp.pad(loc_t, ((0, 0), (0, Bp - B), (0, Pp - P)))
    pri_t = jnp.pad(priors.T[:, None, :], ((0, 0), (0, 0), (0, Pp - P)))
    var_t = jnp.pad(variances.T[:, None, :], ((0, 0), (0, 0), (0, Pp - P)))
    boxes = decode_boxes_pallas(loc_t, pri_t, var_t)                   # [4, Bp, Pp]

    # ---- confidence threshold + per-class top_k candidates ----
    scores = jnp.transpose(conf, (0, 2, 1))                            # [B, C, P]
    masked = jnp.where(scores > conf_thr, scores, -jnp.inf)
    cand_scores, cand_idx = jax.lax.top_k(masked, K)                   # [B, C, K]
    valid = (cand_scores > conf_thr).astype(jnp.float32)               # [B, C, K]

    # ---- gather candidate boxes (no [B, C, 4, P] broadcast materialized) ----
    def gather_one(bx_4p, idx_ck):            # bx_4p: [4, Pp], idx_ck: [C, K]
        return bx_4p[:, idx_ck]                # [4, C, K]
    cand = jax.vmap(gather_one, in_axes=(1, 0), out_axes=1)(boxes[:, :B, :], cand_idx)
    cand = cand.reshape(4, B * C, K)                                   # [4, BC, K]

    # ---- pad + run the fused IoU + greedy-NMS kernel ----
    BC = B * C
    G = _pairs_per_step(Kp)
    BCp = _round_up(BC, G)
    cand_rows = jnp.pad(cand, ((0, 0), (0, BCp - BC), (0, Kp - K)))            # [4, BCp, Kp]
    cand_cols = jnp.pad(jnp.transpose(cand, (2, 1, 0)),
                        ((0, Kp - K), (0, BCp - BC), (0, 0)))                  # [Kp, BCp, 4]
    valid_p = jnp.pad(valid.reshape(BC, K), ((0, BCp - BC), (0, Kp - K)))      # [BCp, Kp]

    keep_p = iou_nms_pallas(cand_rows, cand_cols, valid_p,
                            nms_threshold=nms_thr, n_valid=K, pairs_per_step=G)
    keep = keep_p[:BC, :K].reshape(B, C, K)

    cand_boxes = jnp.transpose(cand, (1, 2, 0)).reshape(B, C, K, 4)
    return cand_scores, cand_boxes, keep


# ----------------------------------------------------------------------------
# Host glue: cross-class score-sorted keep_top_k aggregation with dict-ordered
# grouping — same semantics as the reference module.
# TODO(synk): the keep_top_k aggregation / dict-insertion-order grouping is
# inherently sequential bookkeeping and stays outside the Pallas kernels (the
# greedy NMS itself now runs on device).
# ----------------------------------------------------------------------------
def _postprocess_np(scores, boxes, keep, params):
    B, C, K = scores.shape
    output = np.zeros((B, 1, params.keep_top_k, 7), dtype=np.float32)
    for i in range(B):
        pairs = []
        for cl in range(C):
            if cl == params.background_label_id:
                continue
            for j in range(K):
                if keep[i, cl, j] > 0.5:
                    pairs.append((float(scores[i, cl, j]), cl, j))
        pairs.sort(key=lambda tup: tup[0], reverse=True)
        pairs = pairs[: params.keep_top_k]

        grouped = {}
        for _, label, j in pairs:
            grouped.setdefault(label, []).append(j)

        rows = []
        for label, idxs in grouped.items():
            for j in idxs:
                rows.append(
                    np.concatenate(
                        (
                            np.array([float(i), float(label), float(scores[i, label, j])],
                                     dtype=np.float32),
                            boxes[i, label, j].astype(np.float32),
                        )
                    )
                )
        if rows:
            out_img = np.stack(rows, axis=0)
            output[i, 0, : out_img.shape[0]] = out_img
    return output


# ----------------------------------------------------------------------------
# DetectionOutput module (JAX / Pallas version of the PyTorch nn.Module).
# ----------------------------------------------------------------------------
class DetectionOutput:
    def __init__(self, num_classes, background_label_id, top_k, keep_top_k,
                 confidence_threshold, nms_threshold, eta=1, share_location=1,
                 code_type="CENTER_SIZE", variance_encoded_in_target=0):
        self.num_classes = num_classes
        self.background_label_id = background_label_id
        self.top_k = top_k
        self.keep_top_k = keep_top_k
        self.confidence_threshold = confidence_threshold
        self.nms_threshold = nms_threshold
        self.eta = eta
        self.share_location = share_location
        self.code_type = code_type
        self.variance_encoded_in_target = variance_encoded_in_target

    def __call__(self, loc_data, conf_data, prior_data):
        if self.nms_threshold <= 0:
            raise ValueError("nms_threshold must be non negative.")
        # The decode kernel hardcodes CENTER_SIZE with external variances.
        if self.code_type != "CENTER_SIZE" or self.variance_encoded_in_target:
            raise NotImplementedError(
                "Only code_type='CENTER_SIZE' with external variances is supported.")

        loc_data = jnp.asarray(loc_data)
        conf_data = jnp.asarray(conf_data)
        prior_data = jnp.asarray(prior_data)

        B = loc_data.shape[0]
        P = loc_data.shape[1] // 4
        C = self.num_classes
        K = max(1, min(self.top_k, P))

        loc = loc_data.reshape(B, P, 4).astype(jnp.float32)
        conf = conf_data.reshape(B, P, C).astype(jnp.float32)
        prior = prior_data.reshape(1, 2, P, 4)[0].astype(jnp.float32)
        priors = prior[0]                     # [P, 4] cx, cy, w, h
        variances = prior[1]                  # [P, 4]

        cand_scores, cand_boxes, keep = _device_stage(
            loc, conf, priors, variances,
            k=K,
            conf_thr=float(self.confidence_threshold),
            nms_thr=float(self.nms_threshold))

        out_np = _postprocess_np(
            np.asarray(cand_scores), np.asarray(cand_boxes), np.asarray(keep), self)
        return jnp.asarray(out_np)


# ----------------------------------------------------------------------------
# Demo
# ----------------------------------------------------------------------------
if __name__ == "__main__":
    key = jax.random.PRNGKey(0)
    B = 2
    P = 128          # num_priors
    C = 4            # num_classes (class 0 = background)

    k1, k2, k3, k4 = jax.random.split(key, 4)

    # loc predictions: [B, P*4]
    loc_data = 0.5 * jax.random.normal(k1, (B, P * 4), dtype=jnp.float32)

    # conf predictions (already softmaxed, as SSD test-time conf): [B, P*C]
    conf_logits = jax.random.normal(k2, (B, P, C), dtype=jnp.float32)
    conf_data = jax.nn.softmax(conf_logits, axis=-1).reshape(B, P * C)

    # priors (center-size, normalized) + variances: [1, 2, P*4]
    centers = jax.random.uniform(k3, (P, 2), minval=0.1, maxval=0.9, dtype=jnp.float32)
    whs = jax.random.uniform(k4, (P, 2), minval=0.05, maxval=0.3, dtype=jnp.float32)
    priors = jnp.concatenate([centers, whs], axis=1)                      # [P, 4]
    variances = jnp.tile(jnp.array([[0.1, 0.1, 0.2, 0.2]], jnp.float32), (P, 1))
    prior_data = jnp.stack([priors.reshape(-1), variances.reshape(-1)], axis=0)[None]

    detector = DetectionOutput(
        num_classes=C,
        background_label_id=0,
        top_k=8,
        keep_top_k=8,
        confidence_threshold=0.3,
        nms_threshold=0.45,
    )

    out = detector(loc_data, conf_data, prior_data)   # [B, 1, keep_top_k, 7]
    jax.block_until_ready(out)
    assert out.shape == (B, 1, 8, 7)
    print("KERNEL_OK")
</pallas_src>

<mosaic_0001>
module attributes {stable_mosaic.version = 11 : i64} {
  func.func @_decode_kernel(%arg0: i32, %arg1: memref<4x8x128xf32, #tpu.memory_space<vmem>>, %arg2: memref<4x1x128xf32, #tpu.memory_space<vmem>>, %arg3: memref<4x1x128xf32, #tpu.memory_space<vmem>>, %arg4: memref<4x8x128xf32, #tpu.memory_space<vmem>>) attributes {dimension_semantics = [#tpu.dimension_semantics<parallel>], iteration_bounds = array<i64: 1>, scalar_prefetch = 0 : i64, scratch_operands = 0 : i64, tpu.core_type = #tpu.core_type<tc>, window_params = [{transform_indices = @transform_0, window_bounds = array<i64: 4, 8, 128>}, {pipeline_mode = #tpu.pipeline_mode<synchronous>, transform_indices = @transform_1, window_bounds = array<i64: 4, 1, 128>}, {pipeline_mode = #tpu.pipeline_mode<synchronous>, transform_indices = @transform_2, window_bounds = array<i64: 4, 1, 128>}, {transform_indices = @transform_3, window_bounds = array<i64: 4, 8, 128>}]} {
    %c0 = arith.constant 0 : index
    %c0_0 = arith.constant 0 : index
    %c0_1 = arith.constant 0 : index
    %0 = vector.load %arg2[%c0, %c0_0, %c0_1] : memref<4x1x128xf32, #tpu.memory_space<vmem>>, vector<1x1x128xf32>
    %1 = vector.shape_cast %0 : vector<1x1x128xf32> to vector<1x128xf32>
    %c1 = arith.constant 1 : index
    %c0_2 = arith.constant 0 : index
    %c0_3 = arith.constant 0 : index
    %2 = vector.load %arg2[%c1, %c0_2, %c0_3] : memref<4x1x128xf32, #tpu.memory_space<vmem>>, vector<1x1x128xf32>
    %3 = vector.shape_cast %2 : vector<1x1x128xf32> to vector<1x128xf32>
    %c2 = arith.constant 2 : index
    %c0_4 = arith.constant 0 : index
    %c0_5 = arith.constant 0 : index
    %4 = vector.load %arg2[%c2, %c0_4, %c0_5] : memref<4x1x128xf32, #tpu.memory_space<vmem>>, vector<1x1x128xf32>
    %5 = vector.shape_cast %4 : vector<1x1x128xf32> to vector<1x128xf32>
    %c3 = arith.constant 3 : index
    %c0_6 = arith.constant 0 : index
    %c0_7 = arith.constant 0 : index
    %6 = vector.load %arg2[%c3, %c0_6, %c0_7] : memref<4x1x128xf32, #tpu.memory_space<vmem>>, vector<1x1x128xf32>
    %7 = vector.shape_cast %6 : vector<1x1x128xf32> to vector<1x128xf32>
    %c0_8 = arith.constant 0 : index
    %c0_9 = arith.constant 0 : index
    %c0_10 = arith.constant 0 : index
    %8 = vector.load %arg3[%c0_8, %c0_9, %c0_10] : memref<4x1x128xf32, #tpu.memory_space<vmem>>, vector<1x1x128xf32>
    %9 = vector.shape_cast %8 : vector<1x1x128xf32> to vector<1x128xf32>
    %c1_11 = arith.constant 1 : index
    %c0_12 = arith.constant 0 : index
    %c0_13 = arith.constant 0 : index
    %10 = vector.load %arg3[%c1_11, %c0_12, %c0_13] : memref<4x1x128xf32, #tpu.memory_space<vmem>>, vector<1x1x128xf32>
    %11 = vector.shape_cast %10 : vector<1x1x128xf32> to vector<1x128xf32>
    %c2_14 = arith.constant 2 : index
    %c0_15 = arith.constant 0 : index
    %c0_16 = arith.constant 0 : index
    %12 = vector.load %arg3[%c2_14, %c0_15, %c0_16] : memref<4x1x128xf32, #tpu.memory_space<vmem>>, vector<1x1x128xf32>
    %13 = vector.shape_cast %12 : vector<1x1x128xf32> to vector<1x128xf32>
    %c3_17 = arith.constant 3 : index
    %c0_18 = arith.constant 0 : index
    %c0_19 = arith.constant 0 : index
    %14 = vector.load %arg3[%c3_17, %c0_18, %c0_19] : memref<4x1x128xf32, #tpu.memory_space<vmem>>, vector<1x1x128xf32>
    %15 = vector.shape_cast %14 : vector<1x1x128xf32> to vector<1x128xf32>
    %c0_20 = arith.constant 0 : index
    %c0_21 = arith.constant 0 : index
    %c0_22 = arith.constant 0 : index
    %16 = vector.load %arg1[%c0_20, %c0_21, %c0_22] : memref<4x8x128xf32, #tpu.memory_space<vmem>>, vector<1x8x128xf32>
    %17 = vector.shape_cast %16 : vector<1x8x128xf32> to vector<8x128xf32>
    %c1_23 = arith.constant 1 : index
    %c0_24 = arith.constant 0 : index
    %c0_25 = arith.constant 0 : index
    %18 = vector.load %arg1[%c1_23, %c0_24, %c0_25] : memref<4x8x128xf32, #tpu.memory_space<vmem>>, vector<1x8x128xf32>
    %19 = vector.shape_cast %18 : vector<1x8x128xf32> to vector<8x128xf32>
    %c2_26 = arith.constant 2 : index
    %c0_27 = arith.constant 0 : index
    %c0_28 = arith.constant 0 : index
    %20 = vector.load %arg1[%c2_26, %c0_27, %c0_28] : memref<4x8x128xf32, #tpu.memory_space<vmem>>, vector<1x8x128xf32>
    %21 = vector.shape_cast %20 : vector<1x8x128xf32> to vector<8x128xf32>
    %c3_29 = arith.constant 3 : index
    %c0_30 = arith.constant 0 : index
    %c0_31 = arith.constant 0 : index
    %22 = vector.load %arg1[%c3_29, %c0_30, %c0_31] : memref<4x8x128xf32, #tpu.memory_space<vmem>>, vector<1x8x128xf32>
    %23 = vector.shape_cast %22 : vector<1x8x128xf32> to vector<8x128xf32>
    %24 = arith.mulf %9, %5 : vector<1x128xf32>
    %25 = vector.broadcast %24 : vector<1x128xf32> to vector<8x128xf32>
    %26 = arith.mulf %17, %25 : vector<8x128xf32>
    %27 = vector.broadcast %1 : vector<1x128xf32> to vector<8x128xf32>
    %28 = arith.addf %27, %26 : vector<8x128xf32>
    %29 = arith.mulf %11, %7 : vector<1x128xf32>
    %30 = vector.broadcast %29 : vector<1x128xf32> to vector<8x128xf32>
    %31 = arith.mulf %19, %30 : vector<8x128xf32>
    %32 = vector.broadcast %3 : vector<1x128xf32> to vector<8x128xf32>
    %33 = arith.addf %32, %31 : vector<8x128xf32>
    %34 = vector.broadcast %13 : vector<1x128xf32> to vector<8x128xf32>
    %35 = arith.mulf %21, %34 : vector<8x128xf32>
    %36 = math.exp %35 : vector<8x128xf32>
    %37 = vector.broadcast %5 : vector<1x128xf32> to vector<8x128xf32>
    %38 = arith.mulf %37, %36 : vector<8x128xf32>
    %39 = vector.broadcast %15 : vector<1x128xf32> to vector<8x128xf32>
    %40 = arith.mulf %23, %39 : vector<8x128xf32>
    %41 = math.exp %40 : vector<8x128xf32>
    %42 = vector.broadcast %7 : vector<1x128xf32> to vector<8x128xf32>
    %43 = arith.mulf %42, %41 : vector<8x128xf32>
    %cst = arith.constant 5.000000e-01 : f32
    %44 = vector.broadcast %cst : f32 to vector<8x128xf32>
    %45 = arith.mulf %44, %38 : vector<8x128xf32>
    %46 = arith.subf %28, %45 : vector<8x128xf32>
    %c0_32 = arith.constant 0 : index
    %c0_33 = arith.constant 0 : index
    %c0_34 = arith.constant 0 : index
    %47 = vector.load %arg4[%c0_32, %c0_33, %c0_34] : memref<4x8x128xf32, #tpu.memory_space<vmem>>, vector<1x8x128xf32>
    %48 = vector.shape_cast %47 : vector<1x8x128xf32> to vector<8x128xf32>
    %49 = vector.shape_cast %46 : vector<8x128xf32> to vector<1x8x128xf32>
    tpu.vector_store %arg4[%c0_32, %c0_33, %c0_34], %49 {strides = array<i32>} : memref<4x8x128xf32, #tpu.memory_space<vmem>>, vector<1x8x128xf32>,
    %cst_35 = arith.constant 5.000000e-01 : f32
    %50 = vector.broadcast %cst_35 : f32 to vector<8x128xf32>
    %51 = arith.mulf %50, %43 : vector<8x128xf32>
    %52 = arith.subf %33, %51 : vector<8x128xf32>
    %c1_36 = arith.constant 1 : index
    %c0_37 = arith.constant 0 : index
    %c0_38 = arith.constant 0 : index
    %53 = vector.load %arg4[%c1_36, %c0_37, %c0_38] : memref<4x8x128xf32, #tpu.memory_space<vmem>>, vector<1x8x128xf32>
    %54 = vector.shape_cast %53 : vector<1x8x128xf32> to vector<8x128xf32>
    %55 = vector.shape_cast %52 : vector<8x128xf32> to vector<1x8x128xf32>
    tpu.vector_store %arg4[%c1_36, %c0_37, %c0_38], %55 {strides = array<i32>} : memref<4x8x128xf32, #tpu.memory_space<vmem>>, vector<1x8x128xf32>,
    %cst_39 = arith.constant 5.000000e-01 : f32
    %56 = vector.broadcast %cst_39 : f32 to vector<8x128xf32>
    %57 = arith.mulf %56, %38 : vector<8x128xf32>
    %58 = arith.addf %28, %57 : vector<8x128xf32>
    %c2_40 = arith.constant 2 : index
    %c0_41 = arith.constant 0 : index
    %c0_42 = arith.constant 0 : index
    %59 = vector.load %arg4[%c2_40, %c0_41, %c0_42] : memref<4x8x128xf32, #tpu.memory_space<vmem>>, vector<1x8x128xf32>
    %60 = vector.shape_cast %59 : vector<1x8x128xf32> to vector<8x128xf32>
    %61 = vector.shape_cast %58 : vector<8x128xf32> to vector<1x8x128xf32>
    tpu.vector_store %arg4[%c2_40, %c0_41, %c0_42], %61 {strides = array<i32>} : memref<4x8x128xf32, #tpu.memory_space<vmem>>, vector<1x8x128xf32>,
    %cst_43 = arith.constant 5.000000e-01 : f32
    %62 = vector.broadcast %cst_43 : f32 to vector<8x128xf32>
    %63 = arith.mulf %62, %43 : vector<8x128xf32>
    %64 = arith.addf %33, %63 : vector<8x128xf32>
    %c3_44 = arith.constant 3 : index
    %c0_45 = arith.constant 0 : index
    %c0_46 = arith.constant 0 : index
    %65 = vector.load %arg4[%c3_44, %c0_45, %c0_46] : memref<4x8x128xf32, #tpu.memory_space<vmem>>, vector<1x8x128xf32>
    %66 = vector.shape_cast %65 : vector<1x8x128xf32> to vector<8x128xf32>
    %67 = vector.shape_cast %64 : vector<8x128xf32> to vector<1x8x128xf32>
    tpu.vector_store %arg4[%c3_44, %c0_45, %c0_46], %67 {strides = array<i32>} : memref<4x8x128xf32, #tpu.memory_space<vmem>>, vector<1x8x128xf32>,
    return
  }
  func.func @transform_0(%arg0: i32) -> (i32, i32, i32) {
    %c0_i32 = arith.constant 0 : i32
    %c0_i32_0 = arith.constant 0 : i32
    %c0_i32_1 = arith.constant 0 : i32
    return %c0_i32, %arg0, %c0_i32_0 : i32, i32, i32
  }
  func.func @transform_1(%arg0: i32) -> (i32, i32, i32) {
    %c0_i32 = arith.constant 0 : i32
    %c0_i32_0 = arith.constant 0 : i32
    %c0_i32_1 = arith.constant 0 : i32
    %c0_i32_2 = arith.constant 0 : i32
    return %c0_i32, %c0_i32_0, %c0_i32_1 : i32, i32, i32
  }
  func.func @transform_2(%arg0: i32) -> (i32, i32, i32) {
    %c0_i32 = arith.constant 0 : i32
    %c0_i32_0 = arith.constant 0 : i32
    %c0_i32_1 = arith.constant 0 : i32
    %c0_i32_2 = arith.constant 0 : i32
    return %c0_i32, %c0_i32_0, %c0_i32_1 : i32, i32, i32
  }
  func.func @transform_3(%arg0: i32) -> (i32, i32, i32) {
    %c0_i32 = arith.constant 0 : i32
    %c0_i32_0 = arith.constant 0 : i32
    %c0_i32_1 = arith.constant 0 : i32
    return %c0_i32, %arg0, %c0_i32_0 : i32, i32, i32
  }
}

module attributes {stable_mosaic.version = 11 : i64} {
  func.func @_iou_nms_kernel(%arg0: i32, %arg1: memref<4x8x128xf32, #tpu.memory_space<vmem>>, %arg2: memref<128x8x4xf32, #tpu.memory_space<vmem>>, %arg3: memref<8x128xf32, #tpu.memory_space<vmem>>, %arg4: memref<8x128xf32, #tpu.memory_space<vmem>>, %arg5: memref<128x8x128xf32, #tpu.memory_space<vmem>>) attributes {dimension_semantics = [#tpu.dimension_semantics<parallel>], iteration_bounds = array<i64: 1>, scalar_prefetch = 0 : i64, scratch_operands = 1 : i64, tpu.core_type = #tpu.core_type<tc>, window_params = [{transform_indices = @transform_0, window_bounds = array<i64: 4, 8, 128>}, {transform_indices = @transform_1, window_bounds = array<i64: 128, 8, 4>}, {transform_indices = @transform_2, window_bounds = array<i64: 8, 128>}, {transform_indices = @transform_3, window_bounds = array<i64: 8, 128>}]} {
    %c0 = arith.constant 0 : index
    %c0_0 = arith.constant 0 : index
    %c0_1 = arith.constant 0 : index
    %0 = vector.load %arg1[%c0, %c0_0, %c0_1] : memref<4x8x128xf32, #tpu.memory_space<vmem>>, vector<1x8x128xf32>
    %1 = vector.shape_cast %0 : vector<1x8x128xf32> to vector<8x128xf32>
    %2 = vector.shape_cast %1 : vector<8x128xf32> to vector<1x8x128xf32>
    %c1 = arith.constant 1 : index
    %c0_2 = arith.constant 0 : index
    %c0_3 = arith.constant 0 : index
    %3 = vector.load %arg1[%c1, %c0_2, %c0_3] : memref<4x8x128xf32, #tpu.memory_space<vmem>>, vector<1x8x128xf32>
    %4 = vector.shape_cast %3 : vector<1x8x128xf32> to vector<8x128xf32>
    %5 = vector.shape_cast %4 : vector<8x128xf32> to vector<1x8x128xf32>
    %c2 = arith.constant 2 : index
    %c0_4 = arith.constant 0 : index
    %c0_5 = arith.constant 0 : index
    %6 = vector.load %arg1[%c2, %c0_4, %c0_5] : memref<4x8x128xf32, #tpu.memory_space<vmem>>, vector<1x8x128xf32>
    %7 = vector.shape_cast %6 : vector<1x8x128xf32> to vector<8x128xf32>
    %8 = vector.shape_cast %7 : vector<8x128xf32> to vector<1x8x128xf32>
    %c3 = arith.constant 3 : index
    %c0_6 = arith.constant 0 : index
    %c0_7 = arith.constant 0 : index
    %9 = vector.load %arg1[%c3, %c0_6, %c0_7] : memref<4x8x128xf32, #tpu.memory_space<vmem>>, vector<1x8x128xf32>
    %10 = vector.shape_cast %9 : vector<1x8x128xf32> to vector<8x128xf32>
    %11 = vector.shape_cast %10 : vector<8x128xf32> to vector<1x8x128xf32>
    %12 = arith.subf %8, %2 : vector<1x8x128xf32>
    %13 = arith.subf %11, %5 : vector<1x8x128xf32>
    %14 = arith.mulf %12, %13 : vector<1x8x128xf32>
    %c0_8 = arith.constant 0 : index
    %c0_9 = arith.constant 0 : index
    %c0_10 = arith.constant 0 : index
    %15 = vector.load %arg2[%c0_8, %c0_9, %c0_10] : memref<128x8x4xf32, #tpu.memory_space<vmem>>, vector<128x8x4xf32>
    %16 = vector.extract_strided_slice %15 {offsets = [0, 0, 0], sizes = [128, 8, 1], strides = [1, 1, 1]} : vector<128x8x4xf32> to vector<128x8x1xf32>
    %17 = vector.extract_strided_slice %15 {offsets = [0, 0, 1], sizes = [128, 8, 1], strides = [1, 1, 1]} : vector<128x8x4xf32> to vector<128x8x1xf32>
    %18 = vector.extract_strided_slice %15 {offsets = [0, 0, 2], sizes = [128, 8, 1], strides = [1, 1, 1]} : vector<128x8x4xf32> to vector<128x8x1xf32>
    %19 = vector.extract_strided_slice %15 {offsets = [0, 0, 3], sizes = [128, 8, 1], strides = [1, 1, 1]} : vector<128x8x4xf32> to vector<128x8x1xf32>
    %20 = arith.subf %18, %16 : vector<128x8x1xf32>
    %21 = arith.subf %19, %17 : vector<128x8x1xf32>
    %22 = arith.mulf %20, %21 : vector<128x8x1xf32>
    %23 = vector.broadcast %18 : vector<128x8x1xf32> to vector<128x8x128xf32>
    %24 = vector.broadcast %8 : vector<1x8x128xf32> to vector<128x8x128xf32>
    %25 = arith.minimumf %23, %24 : vector<128x8x128xf32>
    %26 = vector.broadcast %16 : vector<128x8x1xf32> to vector<128x8x128xf32>
    %27 = vector.broadcast %2 : vector<1x8x128xf32> to vector<128x8x128xf32>
    %28 = arith.maximumf %26, %27 : vector<128x8x128xf32>
    %29 = arith.subf %25, %28 : vector<128x8x128xf32>
    %cst = arith.constant 0.000000e+00 : f32
    %30 = vector.broadcast %cst : f32 to vector<128x8x128xf32>
    %31 = arith.maximumf %29, %30 : vector<128x8x128xf32>
    %32 = vector.broadcast %19 : vector<128x8x1xf32> to vector<128x8x128xf32>
    %33 = vector.broadcast %11 : vector<1x8x128xf32> to vector<128x8x128xf32>
    %34 = arith.minimumf %32, %33 : vector<128x8x128xf32>
    %35 = vector.broadcast %17 : vector<128x8x1xf32> to vector<128x8x128xf32>
    %36 = vector.broadcast %5 : vector<1x8x128xf32> to vector<128x8x128xf32>
    %37 = arith.maximumf %35, %36 : vector<128x8x128xf32>
    %38 = arith.subf %34, %37 : vector<128x8x128xf32>
    %cst_11 = arith.constant 0.000000e+00 : f32
    %39 = vector.broadcast %cst_11 : f32 to vector<128x8x128xf32>
    %40 = arith.maximumf %38, %39 : vector<128x8x128xf32>
    %41 = arith.mulf %31, %40 : vector<128x8x128xf32>
    %42 = vector.broadcast %22 : vector<128x8x1xf32> to vector<128x8x128xf32>
    %43 = vector.broadcast %14 : vector<1x8x128xf32> to vector<128x8x128xf32>
    %44 = arith.addf %42, %43 : vector<128x8x128xf32>
    %45 = arith.subf %44, %41 : vector<128x8x128xf32>
    %cst_12 = arith.constant 9.99999996E-13 : f32
    %46 = vector.broadcast %cst_12 : f32 to vector<128x8x128xf32>
    %47 = arith.maximumf %45, %46 : vector<128x8x128xf32>
    %48 = arith.divf %41, %47 : vector<128x8x128xf32>
    %c0_13 = arith.constant 0 : index
    %c0_14 = arith.constant 0 : index
    %c0_15 = arith.constant 0 : index
    %49 = vector.load %arg5[%c0_13, %c0_14, %c0_15] : memref<128x8x128xf32, #tpu.memory_space<vmem>>, vector<128x8x128xf32>
    tpu.vector_store %arg5[%c0_13, %c0_14, %c0_15], %48 {strides = array<i32>} : memref<128x8x128xf32, #tpu.memory_space<vmem>>, vector<128x8x128xf32>,
    %50 = tpu.iota {dimensions = array<i32: 1>} : vector<8x128xi32>
    %c0_16 = arith.constant 0 : index
    %c0_17 = arith.constant 0 : index
    %51 = vector.load %arg3[%c0_16, %c0_17] : memref<8x128xf32, #tpu.memory_space<vmem>>, vector<8x128xf32>
    %c0_i32 = arith.constant 0 : i32
    %c8_i32 = arith.constant 8 : i32
    %52 = arith.addi %c0_i32, %c8_i32 : i32
    %c1_i32 = arith.constant 1 : i32
    %53 = scf.for %arg6 = %c0_i32 to %52 step %c1_i32 iter_args(%arg7 = %51) -> (vector<8x128xf32>)  : i32 {
      %55 = arith.index_cast %arg6 : i32 to index
      %c0_21 = arith.constant 0 : index
      %c0_22 = arith.constant 0 : index
      %56 = vector.load %arg5[%55, %c0_21, %c0_22] : memref<128x8x128xf32, #tpu.memory_space<vmem>>, vector<1x8x128xf32>
      %57 = vector.shape_cast %56 : vector<1x8x128xf32> to vector<8x128xf32>
      %58 = vector.broadcast %arg6 : i32 to vector<8x128xi32>
      %59 = arith.cmpi eq, %50, %58 : vector<8x128xi32>
      %cst_23 = arith.constant 0.000000e+00 : f32
      %60 = vector.broadcast %cst_23 : f32 to vector<8x128xf32>
      %61 = arith.select %59, %arg7, %60 : vector<8x128xi1>, vector<8x128xf32>
      %cst_24 = arith.constant dense<0xFF800000> : vector<8xf32>
      %62 = vector.multi_reduction <maximumf>, %61, %cst_24 [1] : vector<8x128xf32> to vector<8xf32>
      %63 = vector.shape_cast %62 : vector<8xf32> to vector<8x1xf32>
      %cst_25 = arith.constant 4.500000e-01 : f32
      %64 = vector.broadcast %cst_25 : f32 to vector<8x128xf32>
      %65 = arith.cmpf ogt, %57, %64 : vector<8x128xf32>
      %66 = vector.broadcast %arg6 : i32 to vector<8x128xi32>
      %67 = arith.cmpi sgt, %50, %66 : vector<8x128xi32>
      %68 = arith.andi %65, %67 : vector<8x128xi1>
      %cst_26 = arith.constant 5.000000e-01 : f32
      %69 = vector.broadcast %cst_26 : f32 to vector<8x1xf32>
      %70 = arith.cmpf ogt, %63, %69 : vector<8x1xf32>
      %71 = vector.broadcast %70 : vector<8x1xi1> to vector<8x128xi1>
      %72 = arith.andi %68, %71 : vector<8x128xi1>
      %cst_27 = arith.constant 0.000000e+00 : f32
      %73 = vector.broadcast %cst_27 : f32 to vector<8x128xf32>
      %74 = arith.select %72, %73, %arg7 : vector<8x128xi1>, vector<8x128xf32>
      scf.yield %74 : vector<8x128xf32>
    }
    %c8_i32_18 = arith.constant 8 : i32
    %c0_19 = arith.constant 0 : index
    %c0_20 = arith.constant 0 : index
    %54 = vector.load %arg4[%c0_19, %c0_20] : memref<8x128xf32, #tpu.memory_space<vmem>>, vector<8x128xf32>
    tpu.vector_store %arg4[%c0_19, %c0_20], %53 {strides = array<i32>} : memref<8x128xf32, #tpu.memory_space<vmem>>, vector<8x128xf32>,
    return
  }
  func.func @transform_0(%arg0: i32) -> (i32, i32, i32) {
    %c0_i32 = arith.constant 0 : i32
    %c0_i32_0 = arith.constant 0 : i32
    %c0_i32_1 = arith.constant 0 : i32
    return %c0_i32, %arg0, %c0_i32_0 : i32, i32, i32
  }
  func.func @transform_1(%arg0: i32) -> (i32, i32, i32) {
    %c0_i32 = arith.constant 0 : i32
    %c0_i32_0 = arith.constant 0 : i32
    %c0_i32_1 = arith.constant 0 : i32
    return %c0_i32, %arg0, %c0_i32_0 : i32, i32, i32
  }
  func.func @transform_2(%arg0: i32) -> (i32, i32) {
    %c0_i32 = arith.constant 0 : i32
    %c0_i32_0 = arith.constant 0 : i32
    return %arg0, %c0_i32 : i32, i32
  }
  func.func @transform_3(%arg0: i32) -> (i32, i32) {
    %c0_i32 = arith.constant 0 : i32
    %c0_i32_0 = arith.constant 0 : i32
    return %arg0, %c0_i32 : i32, i32
  }
}

</mosaic_0001>

<llo_original>
// kernel: _device_stage.2
$region0: #{_device_stage.2}
  #allocation0 [shape = 'u32[]', space=smem, size = 0x4, offset = 0x4, fixed_abs, tag = 'smem constant byte address 0x4 - core index']
  #allocation1 [shape = 'u32[72,128]{1,0:T(1,128)}', space=vmem, size = 0x9000, scoped, tag = 'internal scratch']
  %s0 = inlined_call_operand.vmem [shape: f32[4,8,128], index: 0, kind: input, shape index: {}]
  %s1 = inlined_call_operand.vmem [shape: f32[4,1,128], index: 1, kind: input, shape index: {}]
  %s2 = inlined_call_operand.vmem [shape: f32[4,1,128], index: 2, kind: input, shape index: {}]
  %s3 = inlined_call_operand.vmem [shape: f32[4,8,128], index: 3, kind: output, shape index: {}]
  %s4 = sld [smem:[#allocation0]]
  $region22: #{_device_stage.2} parent=0
    _
  %s6 = ssub.s32 1, %s4
  %s7 = scalar_select 0, %s6, %s4
  // Predicated region
  $region2: #{_device_stage.2} parent=0 // pred_check
    _
  $region3: #{_device_stage.2} parent=0 // pred_check_branch
    %9 = sbr.rel (0) target = $region5
  $region4: #{_device_stage.2} parent=0 // pred_region
    _
  $region5: #{_device_stage.2} parent=0 // pred_fallthru
    _
  // Predicated region
  $region6: #{_device_stage.2} parent=0 // pred_check
    _
  $region7: #{_device_stage.2} parent=0 // pred_check_branch
    %11 = sbr.rel (0) target = $region9
  $region8: #{_device_stage.2} parent=0 // pred_region
    _
  $region9: #{_device_stage.2} parent=0 // pred_fallthru
    _
  // Predicated region
  $region10: #{_device_stage.2} parent=0 // pred_check
    _
  $region11: #{_device_stage.2} parent=0 // pred_check_branch
    %13 = sbr.rel (0) target = $region13
  $region12: #{_device_stage.2} parent=0 // pred_region
    _
  $region13: #{_device_stage.2} parent=0 // pred_fallthru
    _
  %v14 = vld [vmem:[%s1] sm:$0x1]
  %s15 = scalar_lea.vmem %s1, 1
  %v16 = vld [vmem:[%s15] sm:$0x1]
  %s17 = scalar_lea.vmem %s1, 2
  %v18 = vld [vmem:[%s17] sm:$0x1]
  %s19 = scalar_lea.vmem %s1, 3
  %v20 = vld [vmem:[%s19] sm:$0x1]
  %v21 = vld [vmem:[%s2] sm:$0x1]
  %s22 = scalar_lea.vmem %s2, 1
  %v23 = vld [vmem:[%s22] sm:$0x1]
  %s24 = scalar_lea.vmem %s2, 2
  %v25 = vld [vmem:[%s24] sm:$0x1]
  %s26 = scalar_lea.vmem %s2, 3
  %v27 = vld [vmem:[%s26] sm:$0x1]
  %v28 = vld [vmem:[%s0] sm:$0xff]
  %s29 = scalar_lea.vmem %s0, 8
  %v30 = vld [vmem:[%s29] sm:$0xff]
  %s31 = scalar_lea.vmem %s0, 16
  %v32 = vld [vmem:[%s31] sm:$0xff]
  %s33 = scalar_lea.vmem %s0, 24
  %v34 = vld [vmem:[%s33] sm:$0xff]
  %v35 = vmul.f32 %v21, %v18
  %v37 = vperm.slane %v35, 0
  %v39 = vmul.f32 %v28, %v37
  %v41 = vperm.slane %v14, 0
  %v43 = vadd.f32 %v41, %v39
  %v44 = vmul.f32 %v23, %v20
  %v46 = vperm.slane %v44, 0
  %v48 = vmul.f32 %v30, %v46
  %v50 = vperm.slane %v16, 0
  %v52 = vadd.f32 %v50, %v48
  %v54 = vperm.slane %v25, 0
  %v56 = vmul.f32 %v32, %v54
  %v57 = vmul.f32 %v56, 1.442695
  %v58 = vpow.pop %v57
  %v60 = vperm.slane %v18, 0
  %v62 = vmul.f32 %v60, %v58
  %v64 = vperm.slane %v27, 0
  %v66 = vmul.f32 %v34, %v64
  %v67 = vmul.f32 %v66, 1.442695
  %v68 = vpow.pop %v67
  %v70 = vperm.slane %v20, 0
  %v72 = vmul.f32 %v70, %v68
  %v73 = vmul.f32 %v62, 0.5
  %v74 = vsub.f32 %v43, %v73
  %75 = vst [vmem:[%s3] sm:$0xff] %v74
  %v76 = vmul.f32 %v72, 0.5
  %v77 = vsub.f32 %v52, %v76
  %s78 = scalar_lea.vmem %s3, 8
  %79 = vst [vmem:[%s78] sm:$0xff] %v77
  %v80 = vadd.f32 %v43, %v73
  %s81 = scalar_lea.vmem %s3, 16
  %82 = vst [vmem:[%s81] sm:$0xff] %v80
  %v83 = vadd.f32 %v52, %v76
  %s84 = scalar_lea.vmem %s3, 24
  %85 = vst [vmem:[%s84] sm:$0xff] %v83
  // Predicated region
  $region14: #{_device_stage.2} parent=0 // pred_check
    _
  $region15: #{_device_stage.2} parent=0 // pred_check_branch
    %87 = sbr.rel (0) target = $region17
  $region16: #{_device_stage.2} parent=0 // pred_region
    _
  $region17: #{_device_stage.2} parent=0 // pred_fallthru
    _
  // Predicated region
  $region18: #{_device_stage.2} parent=0 // pred_check
    _
  $region19: #{_device_stage.2} parent=0 // pred_check_branch
    %89 = sbr.rel (0) target = $region21
  $region20: #{_device_stage.2} parent=0 // pred_region
    _
  $region21: #{_device_stage.2} parent=0 // pred_fallthru
    _

// kernel: _device_stage.3
$region0: #{_device_stage.3}
  #allocation0 [shape = 'u32[]', space=smem, size = 0x4, offset = 0x4, fixed_abs, tag = 'smem constant byte address 0x4 - core index']
  #allocation1 [shape = 'u32[72,128]{1,0:T(1,128)}', space=vmem, size = 0x9000, scoped, tag = 'internal scratch']
  #allocation2 [shape = 'f32[128,8,128]{2,1,0:T(8,128)}', space=vmem, size = 0x80000, scoped, tag = 'scratch operand']
  %s0 = inlined_call_operand.vmem [shape: f32[4,8,128], index: 0, kind: input, shape index: {}]
  %s1 = inlined_call_operand.vmem [shape: f32[128,8,4], index: 1, kind: input, shape index: {}]
  %s2 = inlined_call_operand.vmem [shape: f32[8,128], index: 2, kind: input, shape index: {}]
  %s3 = inlined_call_operand.hbm [shape: f32[8,128], index: 3, kind: output, shape index: {}]
  %s4 = sld [smem:[#allocation0]]
  $region29: #{_device_stage.3} parent=0
    _
  %s6 = ssub.s32 1, %s4
  %s7 = scalar_select 0, %s6, %s4
  $region1: #{_device_stage.3} parent=0
    #allocation3 [shape = 'u8[4096]{0}', space=vmem, size = 0x1000, scoped, tag = 'output window, operand 0, single buffered']
    #allocation4 [shape = 's32[1]{0}', space=sflag, size = 0x4, scoped, tag = 'scoped memory for _device_stage.3']
    %8 = vsyncpa [#allocation4], 0
    // Predicated region
    $region2: #{_device_stage.3} parent=1 // pred_check
      _
    $region3: #{_device_stage.3} parent=1 // pred_check_branch
      %10 = sbr.rel (0) target = $region5
    $region4: #{_device_stage.3} parent=1 // pred_region
      _
    $region5: #{_device_stage.3} parent=1 // pred_fallthru
      _
    // Predicated region
    $region6: #{_device_stage.3} parent=1 // pred_check
      _
    $region7: #{_device_stage.3} parent=1 // pred_check_branch
      %12 = sbr.rel (0) target = $region9
    $region8: #{_device_stage.3} parent=1 // pred_region
      _
    $region9: #{_device_stage.3} parent=1 // pred_fallthru
      _
    // Predicated region
    $region10: #{_device_stage.3} parent=1 // pred_check
      _
    $region11: #{_device_stage.3} parent=1 // pred_check_branch
      %14 = sbr.rel (0) target = $region13
    $region12: #{_device_stage.3} parent=1 // pred_region
      _
    $region13: #{_device_stage.3} parent=1 // pred_fallthru
      _
    %v15 = vld [vmem:[%s0] sm:$0xff]
    %s16 = scalar_lea.vmem %s0, 8
    %v17 = vld [vmem:[%s16] sm:$0xff]
    %s18 = scalar_lea.vmem %s0, 16
    %v19 = vld [vmem:[%s18] sm:$0xff]
    %s20 = scalar_lea.vmem %s0, 24
    %v21 = vld [vmem:[%s20] sm:$0xff]
    %v22 = vsub.f32 %v19, %v15
    %v23 = vsub.f32 %v21, %v17
    %v24 = vmul.f32 %v22, %v23
    %v25 = vld [vmem:[%s1] sm:$0xff]
    %v26 = vld [vmem:[%s1 + $0x8] sm:$0xff]
    %v27 = vld [vmem:[%s1 + $0x10] sm:$0xff]
    %v28 = vld [vmem:[%s1 + $0x18] sm:$0xff]
    %v29 = vld [vmem:[%s1 + $0x20] sm:$0xff]
    %v30 = vld [vmem:[%s1 + $0x28] sm:$0xff]
    %v31 = vld [vmem:[%s1 + $0x30] sm:$0xff]
    %v32 = vld [vmem:[%s1 + $0x38] sm:$0xff]
    %v33 = vld [vmem:[%s1 + $0x40] sm:$0xff]
    %v34 = vld [vmem:[%s1 + $0x48] sm:$0xff]
    %v35 = vld [vmem:[%s1 + $0x50] sm:$0xff]
    %v36 = vld [vmem:[%s1 + $0x58] sm:$0xff]
    %v37 = vld [vmem:[%s1 + $0x60] sm:$0xff]
    %v38 = vld [vmem:[%s1 + $0x68] sm:$0xff]
    %v39 = vld [vmem:[%s1 + $0x70] sm:$0xff]
    %v40 = vld [vmem:[%s1 + $0x78] sm:$0xff]
    %v41 = vld [vmem:[%s1 + $0x80] sm:$0xff]
    %v42 = vld [vmem:[%s1 + $0x88] sm:$0xff]
    %v43 = vld [vmem:[%s1 + $0x90] sm:$0xff]
    %v44 = vld [vmem:[%s1 + $0x98] sm:$0xff]
    %v45 = vld [vmem:[%s1 + $0xa0] sm:$0xff]
    %v46 = vld [vmem:[%s1 + $0xa8] sm:$0xff]
    %v47 = vld [vmem:[%s1 + $0xb0] sm:$0xff]
    %v48 = vld [vmem:[%s1 + $0xb8] sm:$0xff]
    %v49 = vld [vmem:[%s1 + $0xc0] sm:$0xff]
    %v50 = vld [vmem:[%s1 + $0xc8] sm:$0xff]
    %v51 = vld [vmem:[%s1 + $0xd0] sm:$0xff]
    %v52 = vld [vmem:[%s1 + $0xd8] sm:$0xff]
    %v53 = vld [vmem:[%s1 + $0xe0] sm:$0xff]
    %v54 = vld [vmem:[%s1 + $0xe8] sm:$0xff]
    %v55 = vld [vmem:[%s1 + $0xf0] sm:$0xff]
    %v56 = vld [vmem:[%s1 + $0xf8] sm:$0xff]
    %v57 = vld [vmem:[%s1 + $0x100] sm:$0xff]
    %v58 = vld [vmem:[%s1 + $0x108] sm:$0xff]
    %v59 = vld [vmem:[%s1 + $0x110] sm:$0xff]
    %v60 = vld [vmem:[%s1 + $0x118] sm:$0xff]
    %v61 = vld [vmem:[%s1 + $0x120] sm:$0xff]
    %v62 = vld [vmem:[%s1 + $0x128] sm:$0xff]
    %v63 = vld [vmem:[%s1 + $0x130] sm:$0xff]
    %v64 = vld [vmem:[%s1 + $0x138] sm:$0xff]
    %v65 = vld [vmem:[%s1 + $0x140] sm:$0xff]
    %v66 = vld [vmem:[%s1 + $0x148] sm:$0xff]
    %v67 = vld [vmem:[%s1 + $0x150] sm:$0xff]
    %v68 = vld [vmem:[%s1 + $0x158] sm:$0xff]
    %v69 = vld [vmem:[%s1 + $0x160] sm:$0xff]
    %v70 = vld [vmem:[%s1 + $0x168] sm:$0xff]
    %v71 = vld [vmem:[%s1 + $0x170] sm:$0xff]
    %v72 = vld [vmem:[%s1 + $0x178] sm:$0xff]
    %v73 = vld [vmem:[%s1 + $0x180] sm:$0xff]
    %v74 = vld [vmem:[%s1 + $0x188] sm:$0xff]
    %v75 = vld [vmem:[%s1 + $0x190] sm:$0xff]
    %v76 = vld [vmem:[%s1 + $0x198] sm:$0xff]
    %v77 = vld [vmem:[%s1 + $0x1a0] sm:$0xff]
    %v78 = vld [vmem:[%s1 + $0x1a8] sm:$0xff]
    %v79 = vld [vmem:[%s1 + $0x1b0] sm:$0xff]
    %v80 = vld [vmem:[%s1 + $0x1b8] sm:$0xff]
    %v81 = vld [vmem:[%s1 + $0x1c0] sm:$0xff]
    %v82 = vld [vmem:[%s1 + $0x1c8] sm:$0xff]
    %v83 = vld [vmem:[%s1 + $0x1d0] sm:$0xff]
    %v84 = vld [vmem:[%s1 + $0x1d8] sm:$0xff]
    %v85 = vld [vmem:[%s1 + $0x1e0] sm:$0xff]
    %v86 = vld [vmem:[%s1 + $0x1e8] sm:$0xff]
    %v87 = vld [vmem:[%s1 + $0x1f0] sm:$0xff]
    %v88 = vld [vmem:[%s1 + $0x1f8] sm:$0xff]
    %v89 = vld [vmem:[%s1 + $0x200] sm:$0xff]
    %v90 = vld [vmem:[%s1 + $0x208] sm:$0xff]
    %v91 = vld [vmem:[%s1 + $0x210] sm:$0xff]
    %v92 = vld [vmem:[%s1 + $0x218] sm:$0xff]
    %v93 = vld [vmem:[%s1 + $0x220] sm:$0xff]
    %v94 = vld [vmem:[%s1 + $0x228] sm:$0xff]
    %v95 = vld [vmem:[%s1 + $0x230] sm:$0xff]
    %v96 = vld [vmem:[%s1 + $0x238] sm:$0xff]
    %v97 = vld [vmem:[%s1 + $0x240] sm:$0xff]
    %v98 = vld [vmem:[%s1 + $0x248] sm:$0xff]
    %v99 = vld [vmem:[%s1 + $0x250] sm:$0xff]
    %v100 = vld [vmem:[%s1 + $0x258] sm:$0xff]
    %v101 = vld [vmem:[%s1 + $0x260] sm:$0xff]
    %v102 = vld [vmem:[%s1 + $0x268] sm:$0xff]
    %v103 = vld [vmem:[%s1 + $0x270] sm:$0xff]
    %v104 = vld [vmem:[%s1 + $0x278] sm:$0xff]
    %v105 = vld [vmem:[%s1 + $0x280] sm:$0xff]
    %v106 = vld [vmem:[%s1 + $0x288] sm:$0xff]
    %v107 = vld [vmem:[%s1 + $0x290] sm:$0xff]
    %v108 = vld [vmem:[%s1 + $0x298] sm:$0xff]
    %v109 = vld [vmem:[%s1 + $0x2a0] sm:$0xff]
    %v110 = vld [vmem:[%s1 + $0x2a8] sm:$0xff]
    %v111 = vld [vmem:[%s1 + $0x2b0] sm:$0xff]
    %v112 = vld [vmem:[%s1 + $0x2b8] sm:$0xff]
    %v113 = vld [vmem:[%s1 + $0x2c0] sm:$0xff]
    %v114 = vld [vmem:[%s1 + $0x2c8] sm:$0xff]
    %v115 = vld [vmem:[%s1 + $0x2d0] sm:$0xff]
    %v116 = vld [vmem:[%s1 + $0x2d8] sm:$0xff]
    %v117 = vld [vmem:[%s1 + $0x2e0] sm:$0xff]
    %v118 = vld [vmem:[%s1 + $0x2e8] sm:$0xff]
    %v119 = vld [vmem:[%s1 + $0x2f0] sm:$0xff]
    %v120 = vld [vmem:[%s1 + $0x2f8] sm:$0xff]
    %v121 = vld [vmem:[%s1 + $0x300] sm:$0xff]
    %v122 = vld [vmem:[%s1 + $0x308] sm:$0xff]
    %v123 = vld [vmem:[%s1 + $0x310] sm:$0xff]
    %v124 = vld [vmem:[%s1 + $0x318] sm:$0xff]
    %v125 = vld [vmem:[%s1 + $0x320] sm:$0xff]
    %v126 = vld [vmem:[%s1 + $0x328] sm:$0xff]
    %v127 = vld [vmem:[%s1 + $0x330] sm:$0xff]
    %v128 = vld [vmem:[%s1 + $0x338] sm:$0xff]
    %v129 = vld [vmem:[%s1 + $0x340] sm:$0xff]
    %v130 = vld [vmem:[%s1 + $0x348] sm:$0xff]
    %v131 = vld [vmem:[%s1 + $0x350] sm:$0xff]
    %v132 = vld [vmem:[%s1 + $0x358] sm:$0xff]
    %v133 = vld [vmem:[%s1 + $0x360] sm:$0xff]
    %v134 = vld [vmem:[%s1 + $0x368] sm:$0xff]
    %v135 = vld [vmem:[%s1 + $0x370] sm:$0xff]
    %v136 = vld [vmem:[%s1 + $0x378] sm:$0xff]
    %v137 = vld [vmem:[%s1 + $0x380] sm:$0xff]
    %v138 = vld [vmem:[%s1 + $0x388] sm:$0xff]
    %v139 = vld [vmem:[%s1 + $0x390] sm:$0xff]
    %v140 = vld [vmem:[%s1 + $0x398] sm:$0xff]
    %v141 = vld [vmem:[%s1 + $0x3a0] sm:$0xff]
    %v142 = vld [vmem:[%s1 + $0x3a8] sm:$0xff]
    %v143 = vld [vmem:[%s1 + $0x3b0] sm:$0xff]
    %v144 = vld [vmem:[%s1 + $0x3b8] sm:$0xff]
    %v145 = vld [vmem:[%s1 + $0x3c0] sm:$0xff]
    %v146 = vld [vmem:[%s1 + $0x3c8] sm:$0xff]
    %v147 = vld [vmem:[%s1 + $0x3d0] sm:$0xff]
    %v148 = vld [vmem:[%s1 + $0x3d8] sm:$0xff]
    %v149 = vld [vmem:[%s1 + $0x3e0] sm:$0xff]
    %v150 = vld [vmem:[%s1 + $0x3e8] sm:$0xff]
    %v151 = vld [vmem:[%s1 + $0x3f0] sm:$0xff]
    %v152 = vld [vmem:[%s1 + $0x3f8] sm:$0xff]
    %281 = vrot.lane.b32.xlu0 %v25, 2
    %v282 = vpop.permute.xlu0 %281
    %283 = vrot.lane.b32.xlu0 %v26, 2
    %v284 = vpop.permute.xlu0 %283
    %285 = vrot.lane.b32.xlu0 %v27, 2
    %v286 = vpop.permute.xlu0 %285
    %287 = vrot.lane.b32.xlu0 %v28, 2
    %v288 = vpop.permute.xlu0 %287
    %289 = vrot.lane.b32.xlu0 %v29, 2
    %v290 = vpop.permute.xlu0 %289
    %291 = vrot.lane.b32.xlu0 %v30, 2
    %v292 = vpop.permute.xlu0 %291
    %293 = vrot.lane.b32.xlu0 %v31, 2
    %v294 = vpop.permute.xlu0 %293
    %295 = vrot.lane.b32.xlu0 %v32, 2
    %v296 = vpop.permute.xlu0 %295
    %297 = vrot.lane.b32.xlu0 %v33, 2
    %v298 = vpop.permute.xlu0 %297
    %299 = vrot.lane.b32.xlu0 %v34, 2
    %v300 = vpop.permute.xlu0 %299
    %301 = vrot.lane.b32.xlu0 %v35, 2
    %v302 = vpop.permute.xlu0 %301
    %303 = vrot.lane.b32.xlu0 %v36, 2
    %v304 = vpop.permute.xlu0 %303
    %305 = vrot.lane.b32.xlu0 %v37, 2
    %v306 = vpop.permute.xlu0 %305
    %307 = vrot.lane.b32.xlu0 %v38, 2
    %v308 = vpop.permute.xlu0 %307
    %309 = vrot.lane.b32.xlu0 %v39, 2
    %v310 = vpop.permute.xlu0 %309
    %311 = vrot.lane.b32.xlu0 %v40, 2
    %v312 = vpop.permute.xlu0 %311
    %313 = vrot.lane.b32.xlu0 %v41, 2
    %v314 = vpop.permute.xlu0 %313
    %315 = vrot.lane.b32.xlu0 %v42, 2
    %v316 = vpop.permute.xlu0 %315
    %317 = vrot.lane.b32.xlu0 %v43, 2
    %v318 = vpop.permute.xlu0 %317
    %319 = vrot.lane.b32.xlu0 %v44, 2
    %v320 = vpop.permute.xlu0 %319
    %321 = vrot.lane.b32.xlu0 %v45, 2
    %v322 = vpop.permute.xlu0 %321
    %323 = vrot.lane.b32.xlu0 %v46, 2
    %v324 = vpop.permute.xlu0 %323
    %325 = vrot.lane.b32.xlu0 %v47, 2
    %v326 = vpop.permute.xlu0 %325
    %327 = vrot.lane.b32.xlu0 %v48, 2
    %v328 = vpop.permute.xlu0 %327
    %329 = vrot.lane.b32.xlu0 %v49, 2
    %v330 = vpop.permute.xlu0 %329
    %331 = vrot.lane.b32.xlu0 %v50, 2
    %v332 = vpop.permute.xlu0 %331
    %333 = vrot.lane.b32.xlu0 %v51, 2
    %v334 = vpop.permute.xlu0 %333
    %335 = vrot.lane.b32.xlu0 %v52, 2
    %v336 = vpop.permute.xlu0 %335
    %337 = vrot.lane.b32.xlu0 %v53, 2
    %v338 = vpop.permute.xlu0 %337
    %339 = vrot.lane.b32.xlu0 %v54, 2
    %v340 = vpop.permute.xlu0 %339
    %341 = vrot.lane.b32.xlu0 %v55, 2
    %v342 = vpop.permute.xlu0 %341
    %343 = vrot.lane.b32.xlu0 %v56, 2
    %v344 = vpop.permute.xlu0 %343
    %345 = vrot.lane.b32.xlu0 %v57, 2
    %v346 = vpop.permute.xlu0 %345
    %347 = vrot.lane.b32.xlu0 %v58, 2
    %v348 = vpop.permute.xlu0 %347
    %349 = vrot.lane.b32.xlu0 %v59, 2
    %v350 = vpop.permute.xlu0 %349
    %351 = vrot.lane.b32.xlu0 %v60, 2
    %v352 = vpop.permute.xlu0 %351
    %353 = vrot.lane.b32.xlu0 %v61, 2
    %v354 = vpop.permute.xlu0 %353
    %355 = vrot.lane.b32.xlu0 %v62, 2
    %v356 = vpop.permute.xlu0 %355
    %357 = vrot.lane.b32.xlu0 %v63, 2
    %v358 = vpop.permute.xlu0 %357
    %359 = vrot.lane.b32.xlu0 %v64, 2
    %v360 = vpop.permute.xlu0 %359
    %361 = vrot.lane.b32.xlu0 %v65, 2
    %v362 = vpop.permute.xlu0 %361
    %363 = vrot.lane.b32.xlu0 %v66, 2
    %v364 = vpop.permute.xlu0 %363
    %365 = vrot.lane.b32.xlu0 %v67, 2
    %v366 = vpop.permute.xlu0 %365
    %367 = vrot.lane.b32.xlu0 %v68, 2
    %v368 = vpop.permute.xlu0 %367
    %369 = vrot.lane.b32.xlu0 %v69, 2
    %v370 = vpop.permute.xlu0 %369
    %371 = vrot.lane.b32.xlu0 %v70, 2
    %v372 = vpop.permute.xlu0 %371
    %373 = vrot.lane.b32.xlu0 %v71, 2
    %v374 = vpop.permute.xlu0 %373
    %375 = vrot.lane.b32.xlu0 %v72, 2
    %v376 = vpop.permute.xlu0 %375
    %377 = vrot.lane.b32.xlu0 %v73, 2
    %v378 = vpop.permute.xlu0 %377
    %379 = vrot.lane.b32.xlu0 %v74, 2
    %v380 = vpop.permute.xlu0 %379
    %381 = vrot.lane.b32.xlu0 %v75, 2
    %v382 = vpop.permute.xlu0 %381
    %383 = vrot.lane.b32.xlu0 %v76, 2
    %v384 = vpop.permute.xlu0 %383
    %385 = vrot.lane.b32.xlu0 %v77, 2
    %v386 = vpop.permute.xlu0 %385
    %387 = vrot.lane.b32.xlu0 %v78, 2
    %v388 = vpop.permute.xlu0 %387
    %389 = vrot.lane.b32.xlu0 %v79, 2
    %v390 = vpop.permute.xlu0 %389
    %391 = vrot.lane.b32.xlu0 %v80, 2
    %v392 = vpop.permute.xlu0 %391
    %393 = vrot.lane.b32.xlu0 %v81, 2
    %v394 = vpop.permute.xlu0 %393
    %395 = vrot.lane.b32.xlu0 %v82, 2
    %v396 = vpop.permute.xlu0 %395
    %397 = vrot.lane.b32.xlu0 %v83, 2
    %v398 = vpop.permute.xlu0 %397
    %399 = vrot.lane.b32.xlu0 %v84, 2
    %v400 = vpop.permute.xlu0 %399
    %401 = vrot.lane.b32.xlu0 %v85, 2
    %v402 = vpop.permute.xlu0 %401
    %403 = vrot.lane.b32.xlu0 %v86, 2
    %v404 = vpop.permute.xlu0 %403
    %405 = vrot.lane.b32.xlu0 %v87, 2
    %v406 = vpop.permute.xlu0 %405
    %407 = vrot.lane.b32.xlu0 %v88, 2
    %v408 = vpop.permute.xlu0 %407
    %409 = vrot.lane.b32.xlu0 %v89, 2
    %v410 = vpop.permute.xlu0 %409
    %411 = vrot.lane.b32.xlu0 %v90, 2
    %v412 = vpop.permute.xlu0 %411
    %413 = vrot.lane.b32.xlu0 %v91, 2
    %v414 = vpop.permute.xlu0 %413
    %415 = vrot.lane.b32.xlu0 %v92, 2
    %v416 = vpop.permute.xlu0 %415
    %417 = vrot.lane.b32.xlu0 %v93, 2
    %v418 = vpop.permute.xlu0 %417
    %419 = vrot.lane.b32.xlu0 %v94, 2
    %v420 = vpop.permute.xlu0 %419
    %421 = vrot.lane.b32.xlu0 %v95, 2
    %v422 = vpop.permute.xlu0 %421
    %423 = vrot.lane.b32.xlu0 %v96, 2
    %v424 = vpop.permute.xlu0 %423
    %425 = vrot.lane.b32.xlu0 %v97, 2
    %v426 = vpop.permute.xlu0 %425
    %427 = vrot.lane.b32.xlu0 %v98, 2
    %v428 = vpop.permute.xlu0 %427
    %429 = vrot.lane.b32.xlu0 %v99, 2
    %v430 = vpop.permute.xlu0 %429
    %431 = vrot.lane.b32.xlu0 %v100, 2
    %v432 = vpop.permute.xlu0 %431
    %433 = vrot.lane.b32.xlu0 %v101, 2
    %v434 = vpop.permute.xlu0 %433
    %435 = vrot.lane.b32.xlu0 %v102, 2
    %v436 = vpop.permute.xlu0 %435
    %437 = vrot.lane.b32.xlu0 %v103, 2
    %v438 = vpop.permute.xlu0 %437
    %439 = vrot.lane.b32.xlu0 %v104, 2
    %v440 = vpop.permute.xlu0 %439
    %441 = vrot.lane.b32.xlu0 %v105, 2
    %v442 = vpop.permute.xlu0 %441
    %443 = vrot.lane.b32.xlu0 %v106, 2
    %v444 = vpop.permute.xlu0 %443
    %445 = vrot.lane.b32.xlu0 %v107, 2
    %v446 = vpop.permute.xlu0 %445
    %447 = vrot.lane.b32.xlu0 %v108, 2
    %v448 = vpop.permute.xlu0 %447
    %449 = vrot.lane.b32.xlu0 %v109, 2
    %v450 = vpop.permute.xlu0 %449
    %451 = vrot.lane.b32.xlu0 %v110, 2
    %v452 = vpop.permute.xlu0 %451
    %453 = vrot.lane.b32.xlu0 %v111, 2
    %v454 = vpop.permute.xlu0 %453
    %455 = vrot.lane.b32.xlu0 %v112, 2
    %v456 = vpop.permute.xlu0 %455
    %457 = vrot.lane.b32.xlu0 %v113, 2
    %v458 = vpop.permute.xlu0 %457
    %459 = vrot.lane.b32.xlu0 %v114, 2
    %v460 = vpop.permute.xlu0 %459
    %461 = vrot.lane.b32.xlu0 %v115, 2
    %v462 = vpop.permute.xlu0 %461
    %463 = vrot.lane.b32.xlu0 %v116, 2
    %v464 = vpop.permute.xlu0 %463
    %465 = vrot.lane.b32.xlu0 %v117, 2
    %v466 = vpop.permute.xlu0 %465
    %467 = vrot.lane.b32.xlu0 %v118, 2
    %v468 = vpop.permute.xlu0 %467
    %469 = vrot.lane.b32.xlu0 %v119, 2
    %v470 = vpop.permute.xlu0 %469
    %471 = vrot.lane.b32.xlu0 %v120, 2
    %v472 = vpop.permute.xlu0 %471
    %473 = vrot.lane.b32.xlu0 %v121, 2
    %v474 = vpop.permute.xlu0 %473
    %475 = vrot.lane.b32.xlu0 %v122, 2
    %v476 = vpop.permute.xlu0 %475
    %477 = vrot.lane.b32.xlu0 %v123, 2
    %v478 = vpop.permute.xlu0 %477
    %479 = vrot.lane.b32.xlu0 %v124, 2
    %v480 = vpop.permute.xlu0 %479
    %481 = vrot.lane.b32.xlu0 %v125, 2
    %v482 = vpop.permute.xlu0 %481
    %483 = vrot.lane.b32.xlu0 %v126, 2
    %v484 = vpop.permute.xlu0 %483
    %485 = vrot.lane.b32.xlu0 %v127, 2
    %v486 = vpop.permute.xlu0 %485
    %487 = vrot.lane.b32.xlu0 %v128, 2
    %v488 = vpop.permute.xlu0 %487
    %489 = vrot.lane.b32.xlu0 %v129, 2
    %v490 = vpop.permute.xlu0 %489
    %491 = vrot.lane.b32.xlu0 %v130, 2
    %v492 = vpop.permute.xlu0 %491
    %493 = vrot.lane.b32.xlu0 %v131, 2
    %v494 = vpop.permute.xlu0 %493
    %495 = vrot.lane.b32.xlu0 %v132, 2
    %v496 = vpop.permute.xlu0 %495
    %497 = vrot.lane.b32.xlu0 %v133, 2
    %v498 = vpop.permute.xlu0 %497
    %499 = vrot.lane.b32.xlu0 %v134, 2
    %v500 = vpop.permute.xlu0 %499
    %501 = vrot.lane.b32.xlu0 %v135, 2
    %v502 = vpop.permute.xlu0 %501
    %503 = vrot.lane.b32.xlu0 %v136, 2
    %v504 = vpop.permute.xlu0 %503
    %505 = vrot.lane.b32.xlu0 %v137, 2
    %v506 = vpop.permute.xlu0 %505
    %507 = vrot.lane.b32.xlu0 %v138, 2
    %v508 = vpop.permute.xlu0 %507
    %509 = vrot.lane.b32.xlu0 %v139, 2
    %v510 = vpop.permute.xlu0 %509
    %511 = vrot.lane.b32.xlu0 %v140, 2
    %v512 = vpop.permute.xlu0 %511
    %513 = vrot.lane.b32.xlu0 %v141, 2
    %v514 = vpop.permute.xlu0 %513
    %515 = vrot.lane.b32.xlu0 %v142, 2
    %v516 = vpop.permute.xlu0 %515
    %517 = vrot.lane.b32.xlu0 %v143, 2
    %v518 = vpop.permute.xlu0 %517
    %519 = vrot.lane.b32.xlu0 %v144, 2
    %v520 = vpop.permute.xlu0 %519
    %521 = vrot.lane.b32.xlu0 %v145, 2
    %v522 = vpop.permute.xlu0 %521
    %523 = vrot.lane.b32.xlu0 %v146, 2
    %v524 = vpop.permute.xlu0 %523
    %525 = vrot.lane.b32.xlu0 %v147, 2
    %v526 = vpop.permute.xlu0 %525
    %527 = vrot.lane.b32.xlu0 %v148, 2
    %v528 = vpop.permute.xlu0 %527
    %529 = vrot.lane.b32.xlu0 %v149, 2
    %v530 = vpop.permute.xlu0 %529
    %531 = vrot.lane.b32.xlu0 %v150, 2
    %v532 = vpop.permute.xlu0 %531
    %533 = vrot.lane.b32.xlu0 %v151, 2
    %v534 = vpop.permute.xlu0 %533
    %535 = vrot.lane.b32.xlu0 %v152, 2
    %v536 = vpop.permute.xlu0 %535
    %v665 = vsub.f32 %v25, %v282
    %v666 = vsub.f32 %v26, %v284
    %v667 = vsub.f32 %v27, %v286
    %v668 = vsub.f32 %v28, %v288
    %v669 = vsub.f32 %v29, %v290
    %v670 = vsub.f32 %v30, %v292
    %v671 = vsub.f32 %v31, %v294
    %v672 = vsub.f32 %v32, %v296
    %v673 = vsub.f32 %v33, %v298
    %v674 = vsub.f32 %v34, %v300
    %v675 = vsub.f32 %v35, %v302
    %v676 = vsub.f32 %v36, %v304
    %v677 = vsub.f32 %v37, %v306
    %v678 = vsub.f32 %v38, %v308
    %v679 = vsub.f32 %v39, %v310
    %v680 = vsub.f32 %v40, %v312
    %v681 = vsub.f32 %v41, %v314
    %v682 = vsub.f32 %v42, %v316
    %v683 = vsub.f32 %v43, %v318
    %v684 = vsub.f32 %v44, %v320
    %v685 = vsub.f32 %v45, %v322
    %v686 = vsub.f32 %v46, %v324
    %v687 = vsub.f32 %v47, %v326
    %v688 = vsub.f32 %v48, %v328
    %v689 = vsub.f32 %v49, %v330
    %v690 = vsub.f32 %v50, %v332
    %v691 = vsub.f32 %v51, %v334
    %v692 = vsub.f32 %v52, %v336
    %v693 = vsub.f32 %v53, %v338
    %v694 = vsub.f32 %v54, %v340
    %v695 = vsub.f32 %v55, %v342
    %v696 = vsub.f32 %v56, %v344
    %v697 = vsub.f32 %v57, %v346
    %v698 = vsub.f32 %v58, %v348
    %v699 = vsub.f32 %v59, %v350
    %v700 = vsub.f32 %v60, %v352
    %v701 = vsub.f32 %v61, %v354
    %v702 = vsub.f32 %v62, %v356
    %v703 = vsub.f32 %v63, %v358
    %v704 = vsub.f32 %v64, %v360
    %v705 = vsub.f32 %v65, %v362
    %v706 = vsub.f32 %v66, %v364
    %v707 = vsub.f32 %v67, %v366
    %v708 = vsub.f32 %v68, %v368
    %v709 = vsub.f32 %v69, %v370
    %v710 = vsub.f32 %v70, %v372
    %v711 = vsub.f32 %v71, %v374
    %v712 = vsub.f32 %v72, %v376
    %v713 = vsub.f32 %v73, %v378
    %v714 = vsub.f32 %v74, %v380
    %v715 = vsub.f32 %v75, %v382
    %v716 = vsub.f32 %v76, %v384
    %v717 = vsub.f32 %v77, %v386
    %v718 = vsub.f32 %v78, %v388
    %v719 = vsub.f32 %v79, %v390
    %v720 = vsub.f32 %v80, %v392
    %v721 = vsub.f32 %v81, %v394
    %v722 = vsub.f32 %v82, %v396
    %v723 = vsub.f32 %v83, %v398
    %v724 = vsub.f32 %v84, %v400
    %v725 = vsub.f32 %v85, %v402
    %v726 = vsub.f32 %v86, %v404
    %v727 = vsub.f32 %v87, %v406
    %v728 = vsub.f32 %v88, %v408
    %v729 = vsub.f32 %v89, %v410
    %v730 = vsub.f32 %v90, %v412
    %v731 = vsub.f32 %v91, %v414
    %v732 = vsub.f32 %v92, %v416
    %v733 = vsub.f32 %v93, %v418
    %v734 = vsub.f32 %v94, %v420
    %v735 = vsub.f32 %v95, %v422
    %v736 = vsub.f32 %v96, %v424
    %v737 = vsub.f32 %v97, %v426
    %v738 = vsub.f32 %v98, %v428
    %v739 = vsub.f32 %v99, %v430
    %v740 = vsub.f32 %v100, %v432
    %v741 = vsub.f32 %v101, %v434
    %v742 = vsub.f32 %v102, %v436
    %v743 = vsub.f32 %v103, %v438
    %v744 = vsub.f32 %v104, %v440
    %v745 = vsub.f32 %v105, %v442
    %v746 = vsub.f32 %v106, %v444
    %v747 = vsub.f32 %v107, %v446
    %v748 = vsub.f32 %v108, %v448
    %v749 = vsub.f32 %v109, %v450
    %v750 = vsub.f32 %v110, %v452
    %v751 = vsub.f32 %v111, %v454
    %v752 = vsub.f32 %v112, %v456
    %v753 = vsub.f32 %v113, %v458
    %v754 = vsub.f32 %v114, %v460
    %v755 = vsub.f32 %v115, %v462
    %v756 = vsub.f32 %v116, %v464
    %v757 = vsub.f32 %v117, %v466
    %v758 = vsub.f32 %v118, %v468
    %v759 = vsub.f32 %v119, %v470
    %v760 = vsub.f32 %v120, %v472
    %v761 = vsub.f32 %v121, %v474
    %v762 = vsub.f32 %v122, %v476
    %v763 = vsub.f32 %v123, %v478
    %v764 = vsub.f32 %v124, %v480
    %v765 = vsub.f32 %v125, %v482
    %v766 = vsub.f32 %v126, %v484
    %v767 = vsub.f32 %v127, %v486
    %v768 = vsub.f32 %v128, %v488
    %v769 = vsub.f32 %v129, %v490
    %v770 = vsub.f32 %v130, %v492
    %v771 = vsub.f32 %v131, %v494
    %v772 = vsub.f32 %v132, %v496
    %v773 = vsub.f32 %v133, %v498
    %v774 = vsub.f32 %v134, %v500
    %v775 = vsub.f32 %v135, %v502
    %v776 = vsub.f32 %v136, %v504
    %v777 = vsub.f32 %v137, %v506
    %v778 = vsub.f32 %v138, %v508
    %v779 = vsub.f32 %v139, %v510
    %v780 = vsub.f32 %v140, %v512
    %v781 = vsub.f32 %v141, %v514
    %v782 = vsub.f32 %v142, %v516
    %v783 = vsub.f32 %v143, %v518
    %v784 = vsub.f32 %v144, %v520
    %v785 = vsub.f32 %v145, %v522
    %v786 = vsub.f32 %v146, %v524
    %v787 = vsub.f32 %v147, %v526
    %v788 = vsub.f32 %v148, %v528
    %v789 = vsub.f32 %v149, %v530
    %v790 = vsub.f32 %v150, %v532
    %v791 = vsub.f32 %v151, %v534
    %v792 = vsub.f32 %v152, %v536
    %921 = vrot.lane.b32.xlu0 %v665, 127
    %v922 = vpop.permute.xlu0 %921
    %923 = vrot.lane.b32.xlu0 %v666, 127
    %v924 = vpop.permute.xlu0 %923
    %925 = vrot.lane.b32.xlu0 %v667, 127
    %v926 = vpop.permute.xlu0 %925
    %927 = vrot.lane.b32.xlu0 %v668, 127
    %v928 = vpop.permute.xlu0 %927
    %929 = vrot.lane.b32.xlu0 %v669, 127
    %v930 = vpop.permute.xlu0 %929
    %931 = vrot.lane.b32.xlu0 %v670, 127
    %v932 = vpop.permute.xlu0 %931
    %933 = vrot.lane.b32.xlu0 %v671, 127
    %v934 = vpop.permute.xlu0 %933
    %935 = vrot.lane.b32.xlu0 %v672, 127
    %v936 = vpop.permute.xlu0 %935
    %937 = vrot.lane.b32.xlu0 %v673, 127
    %v938 = vpop.permute.xlu0 %937
    %939 = vrot.lane.b32.xlu0 %v674, 127
    %v940 = vpop.permute.xlu0 %939
    %941 = vrot.lane.b32.xlu0 %v675, 127
    %v942 = vpop.permute.xlu0 %941
    %943 = vrot.lane.b32.xlu0 %v676, 127
    %v944 = vpop.permute.xlu0 %943
    %945 = vrot.lane.b32.xlu0 %v677, 127
    %v946 = vpop.permute.xlu0 %945
    %947 = vrot.lane.b32.xlu0 %v678, 127
    %v948 = vpop.permute.xlu0 %947
    %949 = vrot.lane.b32.xlu0 %v679, 127
    %v950 = vpop.permute.xlu0 %949
    %951 = vrot.lane.b32.xlu0 %v680, 127
    %v952 = vpop.permute.xlu0 %951
    %953 = vrot.lane.b32.xlu0 %v681, 127
    %v954 = vpop.permute.xlu0 %953
    %955 = vrot.lane.b32.xlu0 %v682, 127
    %v956 = vpop.permute.xlu0 %955
    %957 = vrot.lane.b32.xlu0 %v683, 127
    %v958 = vpop.permute.xlu0 %957
    %959 = vrot.lane.b32.xlu0 %v684, 127
    %v960 = vpop.permute.xlu0 %959
    %961 = vrot.lane.b32.xlu0 %v685, 127
    %v962 = vpop.permute.xlu0 %961
    %963 = vrot.lane.b32.xlu0 %v686, 127
    %v964 = vpop.permute.xlu0 %963
    %965 = vrot.lane.b32.xlu0 %v687, 127
    %v966 = vpop.permute.xlu0 %965
    %967 = vrot.lane.b32.xlu0 %v688, 127
    %v968 = vpop.permute.xlu0 %967
    %969 = vrot.lane.b32.xlu0 %v689, 127
    %v970 = vpop.permute.xlu0 %969
    %971 = vrot.lane.b32.xlu0 %v690, 127
    %v972 = vpop.permute.xlu0 %971
    %973 = vrot.lane.b32.xlu0 %v691, 127
    %v974 = vpop.permute.xlu0 %973
    %975 = vrot.lane.b32.xlu0 %v692, 127
    %v976 = vpop.permute.xlu0 %975
    %977 = vrot.lane.b32.xlu0 %v693, 127
    %v978 = vpop.permute.xlu0 %977
    %979 = vrot.lane.b32.xlu0 %v694, 127
    %v980 = vpop.permute.xlu0 %979
    %981 = vrot.lane.b32.xlu0 %v695, 127
    %v982 = vpop.permute.xlu0 %981
    %983 = vrot.lane.b32.xlu0 %v696, 127
    %v984 = vpop.permute.xlu0 %983
    %985 = vrot.lane.b32.xlu0 %v697, 127
    %v986 = vpop.permute.xlu0 %985
    %987 = vrot.lane.b32.xlu0 %v698, 127
    %v988 = vpop.permute.xlu0 %987
    %989 = vrot.lane.b32.xlu0 %v699, 127
    %v990 = vpop.permute.xlu0 %989
    %991 = vrot.lane.b32.xlu0 %v700, 127
    %v992 = vpop.permute.xlu0 %991
    %993 = vrot.lane.b32.xlu0 %v701, 127
    %v994 = vpop.permute.xlu0 %993
    %995 = vrot.lane.b32.xlu0 %v702, 127
    %v996 = vpop.permute.xlu0 %995
    %997 = vrot.lane.b32.xlu0 %v703, 127
    %v998 = vpop.permute.xlu0 %997
    %999 = vrot.lane.b32.xlu0 %v704, 127
    %v1000 = vpop.permute.xlu0 %999
    %1001 = vrot.lane.b32.xlu0 %v705, 127
    %v1002 = vpop.permute.xlu0 %1001
    %1003 = vrot.lane.b32.xlu0 %v706, 127
    %v1004 = vpop.permute.xlu0 %1003
    %1005 = vrot.lane.b32.xlu0 %v707, 127
    %v1006 = vpop.permute.xlu0 %1005
    %1007 = vrot.lane.b32.xlu0 %v708, 127
    %v1008 = vpop.permute.xlu0 %1007
    %1009 = vrot.lane.b32.xlu0 %v709, 127
    %v1010 = vpop.permute.xlu0 %1009
    %1011 = vrot.lane.b32.xlu0 %v710, 127
    %v1012 = vpop.permute.xlu0 %1011
    %1013 = vrot.lane.b32.xlu0 %v711, 127
    %v1014 = vpop.permute.xlu0 %1013
    %1015 = vrot.lane.b32.xlu0 %v712, 127
    %v1016 = vpop.permute.xlu0 %1015
    %1017 = vrot.lane.b32.xlu0 %v713, 127
    %v1018 = vpop.permute.xlu0 %1017
    %1019 = vrot.lane.b32.xlu0 %v714, 127
    %v1020 = vpop.permute.xlu0 %1019
    %1021 = vrot.lane.b32.xlu0 %v715, 127
    %v1022 = vpop.permute.xlu0 %1021
    %1023 = vrot.lane.b32.xlu0 %v716, 127
    %v1024 = vpop.permute.xlu0 %1023
    %1025 = vrot.lane.b32.xlu0 %v717, 127
    %v1026 = vpop.permute.xlu0 %1025
    %1027 = vrot.lane.b32.xlu0 %v718, 127
    %v1028 = vpop.permute.xlu0 %1027
    %1029 = vrot.lane.b32.xlu0 %v719, 127
    %v1030 = vpop.permute.xlu0 %1029
    %1031 = vrot.lane.b32.xlu0 %v720, 127
    %v1032 = vpop.permute.xlu0 %1031
    %1033 = vrot.lane.b32.xlu0 %v721, 127
    %v1034 = vpop.permute.xlu0 %1033
    %1035 = vrot.lane.b32.xlu0 %v722, 127
    %v1036 = vpop.permute.xlu0 %1035
    %1037 = vrot.lane.b32.xlu0 %v723, 127
    %v1038 = vpop.permute.xlu0 %1037
    %1039 = vrot.lane.b32.xlu0 %v724, 127
    %v1040 = vpop.permute.xlu0 %1039
    %1041 = vrot.lane.b32.xlu0 %v725, 127
    %v1042 = vpop.permute.xlu0 %1041
    %1043 = vrot.lane.b32.xlu0 %v726, 127
    %v1044 = vpop.permute.xlu0 %1043
    %1045 = vrot.lane.b32.xlu0 %v727, 127
    %v1046 = vpop.permute.xlu0 %1045
    %1047 = vrot.lane.b32.xlu0 %v728, 127
    %v1048 = vpop.permute.xlu0 %1047
    %1049 = vrot.lane.b32.xlu0 %v729, 127
    %v1050 = vpop.permute.xlu0 %1049
    %1051 = vrot.lane.b32.xlu0 %v730, 127
    %v1052 = vpop.permute.xlu0 %1051
    %1053 = vrot.lane.b32.xlu0 %v731, 127
    %v1054 = vpop.permute.xlu0 %1053
    %1055 = vrot.lane.b32.xlu0 %v732, 127
    %v1056 = vpop.permute.xlu0 %1055
    %1057 = vrot.lane.b32.xlu0 %v733, 127
    %v1058 = vpop.permute.xlu0 %1057
    %1059 = vrot.lane.b32.xlu0 %v734, 127
    %v1060 = vpop.permute.xlu0 %1059
    %1061 = vrot.lane.b32.xlu0 %v735, 127
    %v1062 = vpop.permute.xlu0 %1061
    %1063 = vrot.lane.b32.xlu0 %v736, 127
    %v1064 = vpop.permute.xlu0 %1063
    %1065 = vrot.lane.b32.xlu0 %v737, 127
    %v1066 = vpop.permute.xlu0 %1065
    %1067 = vrot.lane.b32.xlu0 %v738, 127
    %v1068 = vpop.permute.xlu0 %1067
    %1069 = vrot.lane.b32.xlu0 %v739, 127
    %v1070 = vpop.permute.xlu0 %1069
    %1071 = vrot.lane.b32.xlu0 %v740, 127
    %v1072 = vpop.permute.xlu0 %1071
    %1073 = vrot.lane.b32.xlu0 %v741, 127
    %v1074 = vpop.permute.xlu0 %1073
    %1075 = vrot.lane.b32.xlu0 %v742, 127
    %v1076 = vpop.permute.xlu0 %1075
    %1077 = vrot.lane.b32.xlu0 %v743, 127
    %v1078 = vpop.permute.xlu0 %1077
    %1079 = vrot.lane.b32.xlu0 %v744, 127
    %v1080 = vpop.permute.xlu0 %1079
    %1081 = vrot.lane.b32.xlu0 %v745, 127
    %v1082 = vpop.permute.xlu0 %1081
    %1083 = vrot.lane.b32.xlu0 %v746, 127
    %v1084 = vpop.permute.xlu0 %1083
    %1085 = vrot.lane.b32.xlu0 %v747, 127
    %v1086 = vpop.permute.xlu0 %1085
    %1087 = vrot.lane.b32.xlu0 %v748, 127
    %v1088 = vpop.permute.xlu0 %1087
    %1089 = vrot.lane.b32.xlu0 %v749, 127
    %v1090 = vpop.permute.xlu0 %1089
    %1091 = vrot.lane.b32.xlu0 %v750, 127
    %v1092 = vpop.permute.xlu0 %1091
    %1093 = vrot.lane.b32.xlu0 %v751, 127
    %v1094 = vpop.permute.xlu0 %1093
    %1095 = vrot.lane.b32.xlu0 %v752, 127
    %v1096 = vpop.permute.xlu0 %1095
    %1097 = vrot.lane.b32.xlu0 %v753, 127
    %v1098 = vpop.permute.xlu0 %1097
    %1099 = vrot.lane.b32.xlu0 %v754, 127
    %v1100 = vpop.permute.xlu0 %1099
    %1101 = vrot.lane.b32.xlu0 %v755, 127
    %v1102 = vpop.permute.xlu0 %1101
    %1103 = vrot.lane.b32.xlu0 %v756, 127
    %v1104 = vpop.permute.xlu0 %1103
    %1105 = vrot.lane.b32.xlu0 %v757, 127
    %v1106 = vpop.permute.xlu0 %1105
    %1107 = vrot.lane.b32.xlu0 %v758, 127
    %v1108 = vpop.permute.xlu0 %1107
    %1109 = vrot.lane.b32.xlu0 %v759, 127
    %v1110 = vpop.permute.xlu0 %1109
    %1111 = vrot.lane.b32.xlu0 %v760, 127
    %v1112 = vpop.permute.xlu0 %1111
    %1113 = vrot.lane.b32.xlu0 %v761, 127
    %v1114 = vpop.permute.xlu0 %1113
    %1115 = vrot.lane.b32.xlu0 %v762, 127
    %v1116 = vpop.permute.xlu0 %1115
    %1117 = vrot.lane.b32.xlu0 %v763, 127
    %v1118 = vpop.permute.xlu0 %1117
    %1119 = vrot.lane.b32.xlu0 %v764, 127
    %v1120 = vpop.permute.xlu0 %1119
    %1121 = vrot.lane.b32.xlu0 %v765, 127
    %v1122 = vpop.permute.xlu0 %1121
    %1123 = vrot.lane.b32.xlu0 %v766, 127
    %v1124 = vpop.permute.xlu0 %1123
    %1125 = vrot.lane.b32.xlu0 %v767, 127
    %v1126 = vpop.permute.xlu0 %1125
    %1127 = vrot.lane.b32.xlu0 %v768, 127
    %v1128 = vpop.permute.xlu0 %1127
    %1129 = vrot.lane.b32.xlu0 %v769, 127
    %v1130 = vpop.permute.xlu0 %1129
    %1131 = vrot.lane.b32.xlu0 %v770, 127
    %v1132 = vpop.permute.xlu0 %1131
    %1133 = vrot.lane.b32.xlu0 %v771, 127
    %v1134 = vpop.permute.xlu0 %1133
    %1135 = vrot.lane.b32.xlu0 %v772, 127
    %v1136 = vpop.permute.xlu0 %1135
    %1137 = vrot.lane.b32.xlu0 %v773, 127
    %v1138 = vpop.permute.xlu0 %1137
    %1139 = vrot.lane.b32.xlu0 %v774, 127
    %v1140 = vpop.permute.xlu0 %1139
    %1141 = vrot.lane.b32.xlu0 %v775, 127
    %v1142 = vpop.permute.xlu0 %1141
    %1143 = vrot.lane.b32.xlu0 %v776, 127
    %v1144 = vpop.permute.xlu0 %1143
    %1145 = vrot.lane.b32.xlu0 %v777, 127
    %v1146 = vpop.permute.xlu0 %1145
    %1147 = vrot.lane.b32.xlu0 %v778, 127
    %v1148 = vpop.permute.xlu0 %1147
    %1149 = vrot.lane.b32.xlu0 %v779, 127
    %v1150 = vpop.permute.xlu0 %1149
    %1151 = vrot.lane.b32.xlu0 %v780, 127
    %v1152 = vpop.permute.xlu0 %1151
    %1153 = vrot.lane.b32.xlu0 %v781, 127
    %v1154 = vpop.permute.xlu0 %1153
    %1155 = vrot.lane.b32.xlu0 %v782, 127
    %v1156 = vpop.permute.xlu0 %1155
    %1157 = vrot.lane.b32.xlu0 %v783, 127
    %v1158 = vpop.permute.xlu0 %1157
    %1159 = vrot.lane.b32.xlu0 %v784, 127
    %v1160 = vpop.permute.xlu0 %1159
    %1161 = vrot.lane.b32.xlu0 %v785, 127
    %v1162 = vpop.permute.xlu0 %1161
    %1163 = vrot.lane.b32.xlu0 %v786, 127
    %v1164 = vpop.permute.xlu0 %1163
    %1165 = vrot.lane.b32.xlu0 %v787, 127
    %v1166 = vpop.permute.xlu0 %1165
    %1167 = vrot.lane.b32.xlu0 %v788, 127
    %v1168 = vpop.permute.xlu0 %1167
    %1169 = vrot.lane.b32.xlu0 %v789, 127
    %v1170 = vpop.permute.xlu0 %1169
    %1171 = vrot.lane.b32.xlu0 %v790, 127
    %v1172 = vpop.permute.xlu0 %1171
    %1173 = vrot.lane.b32.xlu0 %v791, 127
    %v1174 = vpop.permute.xlu0 %1173
    %1175 = vrot.lane.b32.xlu0 %v792, 127
    %v1176 = vpop.permute.xlu0 %1175
    %v1305 = vmul.f32 %v665, %v922
    %v1306 = vmul.f32 %v666, %v924
    %v1307 = vmul.f32 %v667, %v926
    %v1308 = vmul.f32 %v668, %v928
    %v1309 = vmul.f32 %v669, %v930
    %v1310 = vmul.f32 %v670, %v932
    %v1311 = vmul.f32 %v671, %v934
    %v1312 = vmul.f32 %v672, %v936
    %v1313 = vmul.f32 %v673, %v938
    %v1314 = vmul.f32 %v674, %v940
    %v1315 = vmul.f32 %v675, %v942
    %v1316 = vmul.f32 %v676, %v944
    %v1317 = vmul.f32 %v677, %v946
    %v1318 = vmul.f32 %v678, %v948
    %v1319 = vmul.f32 %v679, %v950
    %v1320 = vmul.f32 %v680, %v952
    %v1321 = vmul.f32 %v681, %v954
    %v1322 = vmul.f32 %v682, %v956
    %v1323 = vmul.f32 %v683, %v958
    %v1324 = vmul.f32 %v684, %v960
    %v1325 = vmul.f32 %v685, %v962
    %v1326 = vmul.f32 %v686, %v964
    %v1327 = vmul.f32 %v687, %v966
    %v1328 = vmul.f32 %v688, %v968
    %v1329 = vmul.f32 %v689, %v970
    %v1330 = vmul.f32 %v690, %v972
    %v1331 = vmul.f32 %v691, %v974
    %v1332 = vmul.f32 %v692, %v976
    %v1333 = vmul.f32 %v693, %v978
    %v1334 = vmul.f32 %v694, %v980
    %v1335 = vmul.f32 %v695, %v982
    %v1336 = vmul.f32 %v696, %v984
    %v1337 = vmul.f32 %v697, %v986
    %v1338 = vmul.f32 %v698, %v988
    %v1339 = vmul.f32 %v699, %v990
    %v1340 = vmul.f32 %v700, %v992
    %v1341 = vmul.f32 %v701, %v994
    %v1342 = vmul.f32 %v702, %v996
    %v1343 = vmul.f32 %v703, %v998
    %v1344 = vmul.f32 %v704, %v1000
    %v1345 = vmul.f32 %v705, %v1002
    %v1346 = vmul.f32 %v706, %v1004
    %v1347 = vmul.f32 %v707, %v1006
    %v1348 = vmul.f32 %v708, %v1008
    %v1349 = vmul.f32 %v709, %v1010
    %v1350 = vmul.f32 %v710, %v1012
    %v1351 = vmul.f32 %v711, %v1014
    %v1352 = vmul.f32 %v712, %v1016
    %v1353 = vmul.f32 %v713, %v1018
    %v1354 = vmul.f32 %v714, %v1020
    %v1355 = vmul.f32 %v715, %v1022
    %v1356 = vmul.f32 %v716, %v1024
    %v1357 = vmul.f32 %v717, %v1026
    %v1358 = vmul.f32 %v718, %v1028
    %v1359 = vmul.f32 %v719, %v1030
    %v1360 = vmul.f32 %v720, %v1032
    %v1361 = vmul.f32 %v721, %v1034
    %v1362 = vmul.f32 %v722, %v1036
    %v1363 = vmul.f32 %v723, %v1038
    %v1364 = vmul.f32 %v724, %v1040
    %v1365 = vmul.f32 %v725, %v1042
    %v1366 = vmul.f32 %v726, %v1044
    %v1367 = vmul.f32 %v727, %v1046
    %v1368 = vmul.f32 %v728, %v1048
    %v1369 = vmul.f32 %v729, %v1050
    %v1370 = vmul.f32 %v730, %v1052
    %v1371 = vmul.f32 %v731, %v1054
    %v1372 = vmul.f32 %v732, %v1056
    %v1373 = vmul.f32 %v733, %v1058
    %v1374 = vmul.f32 %v734, %v1060
    %v1375 = vmul.f32 %v735, %v1062
    %v1376 = vmul.f32 %v736, %v1064
    %v1377 = vmul.f32 %v737, %v1066
    %v1378 = vmul.f32 %v738, %v1068
    %v1379 = vmul.f32 %v739, %v1070
    %v1380 = vmul.f32 %v740, %v1072
    %v1381 = vmul.f32 %v741, %v1074
    %v1382 = vmul.f32 %v742, %v1076
    %v1383 = vmul.f32 %v743, %v1078
    %v1384 = vmul.f32 %v744, %v1080
    %v1385 = vmul.f32 %v745, %v1082
    %v1386 = vmul.f32 %v746, %v1084
    %v1387 = vmul.f32 %v747, %v1086
    %v1388 = vmul.f32 %v748, %v1088
    %v1389 = vmul.f32 %v749, %v1090
    %v1390 = vmul.f32 %v750, %v1092
    %v1391 = vmul.f32 %v751, %v1094
    %v1392 = vmul.f32 %v752, %v1096
    %v1393 = vmul.f32 %v753, %v1098
    %v1394 = vmul.f32 %v754, %v1100
    %v1395 = vmul.f32 %v755, %v1102
    %v1396 = vmul.f32 %v756, %v1104
    %v1397 = vmul.f32 %v757, %v1106
    %v1398 = vmul.f32 %v758, %v1108
    %v1399 = vmul.f32 %v759, %v1110
    %v1400 = vmul.f32 %v760, %v1112
    %v1401 = vmul.f32 %v761, %v1114
    %v1402 = vmul.f32 %v762, %v1116
    %v1403 = vmul.f32 %v763, %v1118
    %v1404 = vmul.f32 %v764, %v1120
    %v1405 = vmul.f32 %v765, %v1122
    %v1406 = vmul.f32 %v766, %v1124
    %v1407 = vmul.f32 %v767, %v1126
    %v1408 = vmul.f32 %v768, %v1128
    %v1409 = vmul.f32 %v769, %v1130
    %v1410 = vmul.f32 %v770, %v1132
    %v1411 = vmul.f32 %v771, %v1134
    %v1412 = vmul.f32 %v772, %v1136
    %v1413 = vmul.f32 %v773, %v1138
    %v1414 = vmul.f32 %v774, %v1140
    %v1415 = vmul.f32 %v775, %v1142
    %v1416 = vmul.f32 %v776, %v1144
    %v1417 = vmul.f32 %v777, %v1146
    %v1418 = vmul.f32 %v778, %v1148
    %v1419 = vmul.f32 %v779, %v1150
    %v1420 = vmul.f32 %v780, %v1152
    %v1421 = vmul.f32 %v781, %v1154
    %v1422 = vmul.f32 %v782, %v1156
    %v1423 = vmul.f32 %v783, %v1158
    %v1424 = vmul.f32 %v784, %v1160
    %v1425 = vmul.f32 %v785, %v1162
    %v1426 = vmul.f32 %v786, %v1164
    %v1427 = vmul.f32 %v787, %v1166
    %v1428 = vmul.f32 %v788, %v1168
    %v1429 = vmul.f32 %v789, %v1170
    %v1430 = vmul.f32 %v790, %v1172
    %v1431 = vmul.f32 %v791, %v1174
    %v1432 = vmul.f32 %v792, %v1176
    %1433 = vset.pattern.permute.xlu0 2
    %1434 = vperm.xlu0 %1433, %v25
    %v1435 = vpop.permute.xlu0 %1434
    %1437 = vset.pattern.permute.xlu0 2
    %1438 = vperm.xlu0 %1437, %v26
    %v1439 = vpop.permute.xlu0 %1438
    %1441 = vset.pattern.permute.xlu0 2
    %1442 = vperm.xlu0 %1441, %v27
    %v1443 = vpop.permute.xlu0 %1442
    %1445 = vset.pattern.permute.xlu0 2
    %1446 = vperm.xlu0 %1445, %v28
    %v1447 = vpop.permute.xlu0 %1446
    %1449 = vset.pattern.permute.xlu0 2
    %1450 = vperm.xlu0 %1449, %v29
    %v1451 = vpop.permute.xlu0 %1450
    %1453 = vset.pattern.permute.xlu0 2
    %1454 = vperm.xlu0 %1453, %v30
    %v1455 = vpop.permute.xlu0 %1454
    %1457 = vset.pattern.permute.xlu0 2
    %1458 = vperm.xlu0 %1457, %v31
    %v1459 = vpop.permute.xlu0 %1458
    %1461 = vset.pattern.permute.xlu0 2
    %1462 = vperm.xlu0 %1461, %v32
    %v1463 = vpop.permute.xlu0 %1462
    %1465 = vset.pattern.permute.xlu0 2
    %1466 = vperm.xlu0 %1465, %v33
    %v1467 = vpop.permute.xlu0 %1466
    %1469 = vset.pattern.permute.xlu0 2
    %1470 = vperm.xlu0 %1469, %v34
    %v1471 = vpop.permute.xlu0 %1470
    %1473 = vset.pattern.permute.xlu0 2
    %1474 = vperm.xlu0 %1473, %v35
    %v1475 = vpop.permute.xlu0 %1474
    %1477 = vset.pattern.permute.xlu0 2
    %1478 = vperm.xlu0 %1477, %v36
    %v1479 = vpop.permute.xlu0 %1478
    %1481 = vset.pattern.permute.xlu0 2
    %1482 = vperm.xlu0 %1481, %v37
    %v1483 = vpop.permute.xlu0 %1482
    %1485 = vset.pattern.permute.xlu0 2
    %1486 = vperm.xlu0 %1485, %v38
    %v1487 = vpop.permute.xlu0 %1486
    %1489 = vset.pattern.permute.xlu0 2
    %1490 = vperm.xlu0 %1489, %v39
    %v1491 = vpop.permute.xlu0 %1490
    %1493 = vset.pattern.permute.xlu0 2
    %1494 = vperm.xlu0 %1493, %v40
    %v1495 = vpop.permute.xlu0 %1494
    %1497 = vset.pattern.permute.xlu0 2
    %1498 = vperm.xlu0 %1497, %v41
    %v1499 = vpop.permute.xlu0 %1498
    %1501 = vset.pattern.permute.xlu0 2
    %1502 = vperm.xlu0 %1501, %v42
    %v1503 = vpop.permute.xlu0 %1502
    %1505 = vset.pattern.permute.xlu0 2
    %1506 = vperm.xlu0 %1505, %v43
    %v1507 = vpop.permute.xlu0 %1506
    %1509 = vset.pattern.permute.xlu0 2
    %1510 = vperm.xlu0 %1509, %v44
    %v1511 = vpop.permute.xlu0 %1510
    %1513 = vset.pattern.permute.xlu0 2
    %1514 = vperm.xlu0 %1513, %v45
    %v1515 = vpop.permute.xlu0 %1514
    %1517 = vset.pattern.permute.xlu0 2
    %1518 = vperm.xlu0 %1517, %v46
    %v1519 = vpop.permute.xlu0 %1518
    %1521 = vset.pattern.permute.xlu0 2
    %1522 = vperm.xlu0 %1521, %v47
    %v1523 = vpop.permute.xlu0 %1522
    %1525 = vset.pattern.permute.xlu0 2
    %1526 = vperm.xlu0 %1525, %v48
    %v1527 = vpop.permute.xlu0 %1526
    %1529 = vset.pattern.permute.xlu0 2
    %1530 = vperm.xlu0 %1529, %v49
    %v1531 = vpop.permute.xlu0 %1530
    %1533 = vset.pattern.permute.xlu0 2
    %1534 = vperm.xlu0 %1533, %v50
    %v1535 = vpop.permute.xlu0 %1534
    %1537 = vset.pattern.permute.xlu0 2
    %1538 = vperm.xlu0 %1537, %v51
    %v1539 = vpop.permute.xlu0 %1538
    %1541 = vset.pattern.permute.xlu0 2
    %1542 = vperm.xlu0 %1541, %v52
    %v1543 = vpop.permute.xlu0 %1542
    %1545 = vset.pattern.permute.xlu0 2
    %1546 = vperm.xlu0 %1545, %v53
    %v1547 = vpop.permute.xlu0 %1546
    %1549 = vset.pattern.permute.xlu0 2
    %1550 = vperm.xlu0 %1549, %v54
    %v1551 = vpop.permute.xlu0 %1550
    %1553 = vset.pattern.permute.xlu0 2
    %1554 = vperm.xlu0 %1553, %v55
    %v1555 = vpop.permute.xlu0 %1554
    %1557 = vset.pattern.permute.xlu0 2
    %1558 = vperm.xlu0 %1557, %v56
    %v1559 = vpop.permute.xlu0 %1558
    %1561 = vset.pattern.permute.xlu0 2
    %1562 = vperm.xlu0 %1561, %v57
    %v1563 = vpop.permute.xlu0 %1562
    %1565 = vset.pattern.permute.xlu0 2
    %1566 = vperm.xlu0 %1565, %v58
    %v1567 = vpop.permute.xlu0 %1566
    %1569 = vset.pattern.permute.xlu0 2
    %1570 = vperm.xlu0 %1569, %v59
    %v1571 = vpop.permute.xlu0 %1570
    %1573 = vset.pattern.permute.xlu0 2
    %1574 = vperm.xlu0 %1573, %v60
    %v1575 = vpop.permute.xlu0 %1574
    %1577 = vset.pattern.permute.xlu0 2
    %1578 = vperm.xlu0 %1577, %v61
    %v1579 = vpop.permute.xlu0 %1578
    %1581 = vset.pattern.permute.xlu0 2
    %1582 = vperm.xlu0 %1581, %v62
    %v1583 = vpop.permute.xlu0 %1582
    %1585 = vset.pattern.permute.xlu0 2
    %1586 = vperm.xlu0 %1585, %v63
    %v1587 = vpop.permute.xlu0 %1586
    %1589 = vset.pattern.permute.xlu0 2
    %1590 = vperm.xlu0 %1589, %v64
    %v1591 = vpop.permute.xlu0 %1590
    %1593 = vset.pattern.permute.xlu0 2
    %1594 = vperm.xlu0 %1593, %v65
    %v1595 = vpop.permute.xlu0 %1594
    %1597 = vset.pattern.permute.xlu0 2
    %1598 = vperm.xlu0 %1597, %v66
    %v1599 = vpop.permute.xlu0 %1598
    %1601 = vset.pattern.permute.xlu0 2
    %1602 = vperm.xlu0 %1601, %v67
    %v1603 = vpop.permute.xlu0 %1602
    %1605 = vset.pattern.permute.xlu0 2
    %1606 = vperm.xlu0 %1605, %v68
    %v1607 = vpop.permute.xlu0 %1606
    %1609 = vset.pattern.permute.xlu0 2
    %1610 = vperm.xlu0 %1609, %v69
    %v1611 = vpop.permute.xlu0 %1610
    %1613 = vset.pattern.permute.xlu0 2
    %1614 = vperm.xlu0 %1613, %v70
    %v1615 = vpop.permute.xlu0 %1614
    %1617 = vset.pattern.permute.xlu0 2
    %1618 = vperm.xlu0 %1617, %v71
    %v1619 = vpop.permute.xlu0 %1618
    %1621 = vset.pattern.permute.xlu0 2
    %1622 = vperm.xlu0 %1621, %v72
    %v1623 = vpop.permute.xlu0 %1622
    %1625 = vset.pattern.permute.xlu0 2
    %1626 = vperm.xlu0 %1625, %v73
    %v1627 = vpop.permute.xlu0 %1626
    %1629 = vset.pattern.permute.xlu0 2
    %1630 = vperm.xlu0 %1629, %v74
    %v1631 = vpop.permute.xlu0 %1630
    %1633 = vset.pattern.permute.xlu0 2
    %1634 = vperm.xlu0 %1633, %v75
    %v1635 = vpop.permute.xlu0 %1634
    %1637 = vset.pattern.permute.xlu0 2
    %1638 = vperm.xlu0 %1637, %v76
    %v1639 = vpop.permute.xlu0 %1638
    %1641 = vset.pattern.permute.xlu0 2
    %1642 = vperm.xlu0 %1641, %v77
    %v1643 = vpop.permute.xlu0 %1642
    %1645 = vset.pattern.permute.xlu0 2
    %1646 = vperm.xlu0 %1645, %v78
    %v1647 = vpop.permute.xlu0 %1646
    %1649 = vset.pattern.permute.xlu0 2
    %1650 = vperm.xlu0 %1649, %v79
    %v1651 = vpop.permute.xlu0 %1650
    %1653 = vset.pattern.permute.xlu0 2
    %1654 = vperm.xlu0 %1653, %v80
    %v1655 = vpop.permute.xlu0 %1654
    %1657 = vset.pattern.permute.xlu0 2
    %1658 = vperm.xlu0 %1657, %v81
    %v1659 = vpop.permute.xlu0 %1658
    %1661 = vset.pattern.permute.xlu0 2
    %1662 = vperm.xlu0 %1661, %v82
    %v1663 = vpop.permute.xlu0 %1662
    %1665 = vset.pattern.permute.xlu0 2
    %1666 = vperm.xlu0 %1665, %v83
    %v1667 = vpop.permute.xlu0 %1666
    %1669 = vset.pattern.permute.xlu0 2
    %1670 = vperm.xlu0 %1669, %v84
    %v1671 = vpop.permute.xlu0 %1670
    %1673 = vset.pattern.permute.xlu0 2
    %1674 = vperm.xlu0 %1673, %v85
    %v1675 = vpop.permute.xlu0 %1674
    %1677 = vset.pattern.permute.xlu0 2
    %1678 = vperm.xlu0 %1677, %v86
    %v1679 = vpop.permute.xlu0 %1678
    %1681 = vset.pattern.permute.xlu0 2
    %1682 = vperm.xlu0 %1681, %v87
    %v1683 = vpop.permute.xlu0 %1682
    %1685 = vset.pattern.permute.xlu0 2
    %1686 = vperm.xlu0 %1685, %v88
    %v1687 = vpop.permute.xlu0 %1686
    %1689 = vset.pattern.permute.xlu0 2
    %1690 = vperm.xlu0 %1689, %v89
    %v1691 = vpop.permute.xlu0 %1690
    %1693 = vset.pattern.permute.xlu0 2
    %1694 = vperm.xlu0 %1693, %v90
    %v1695 = vpop.permute.xlu0 %1694
    %1697 = vset.pattern.permute.xlu0 2
    %1698 = vperm.xlu0 %1697, %v91
    %v1699 = vpop.permute.xlu0 %1698
    %1701 = vset.pattern.permute.xlu0 2
    %1702 = vperm.xlu0 %1701, %v92
    %v1703 = vpop.permute.xlu0 %1702
    %1705 = vset.pattern.permute.xlu0 2
    %1706 = vperm.xlu0 %1705, %v93
    %v1707 = vpop.permute.xlu0 %1706
    %1709 = vset.pattern.permute.xlu0 2
    %1710 = vperm.xlu0 %1709, %v94
    %v1711 = vpop.permute.xlu0 %1710
    %1713 = vset.pattern.permute.xlu0 2
    %1714 = vperm.xlu0 %1713, %v95
    %v1715 = vpop.permute.xlu0 %1714
    %1717 = vset.pattern.permute.xlu0 2
    %1718 = vperm.xlu0 %1717, %v96
    %v1719 = vpop.permute.xlu0 %1718
    %1721 = vset.pattern.permute.xlu0 2
    %1722 = vperm.xlu0 %1721, %v97
    %v1723 = vpop.permute.xlu0 %1722
    %1725 = vset.pattern.permute.xlu0 2
    %1726 = vperm.xlu0 %1725, %v98
    %v1727 = vpop.permute.xlu0 %1726
    %1729 = vset.pattern.permute.xlu0 2
    %1730 = vperm.xlu0 %1729, %v99
    %v1731 = vpop.permute.xlu0 %1730
    %1733 = vset.pattern.permute.xlu0 2
    %1734 = vperm.xlu0 %1733, %v100
    %v1735 = vpop.permute.xlu0 %1734
    %1737 = vset.pattern.permute.xlu0 2
    %1738 = vperm.xlu0 %1737, %v101
    %v1739 = vpop.permute.xlu0 %1738
    %1741 = vset.pattern.permute.xlu0 2
    %1742 = vperm.xlu0 %1741, %v102
    %v1743 = vpop.permute.xlu0 %1742
    %1745 = vset.pattern.permute.xlu0 2
    %1746 = vperm.xlu0 %1745, %v103
    %v1747 = vpop.permute.xlu0 %1746
    %1749 = vset.pattern.permute.xlu0 2
    %1750 = vperm.xlu0 %1749, %v104
    %v1751 = vpop.permute.xlu0 %1750
    %1753 = vset.pattern.permute.xlu0 2
    %1754 = vperm.xlu0 %1753, %v105
    %v1755 = vpop.permute.xlu0 %1754
    %1757 = vset.pattern.permute.xlu0 2
    %1758 = vperm.xlu0 %1757, %v106
    %v1759 = vpop.permute.xlu0 %1758
    %1761 = vset.pattern.permute.xlu0 2
    %1762 = vperm.xlu0 %1761, %v107
    %v1763 = vpop.permute.xlu0 %1762
    %1765 = vset.pattern.permute.xlu0 2
    %1766 = vperm.xlu0 %1765, %v108
    %v1767 = vpop.permute.xlu0 %1766
    %1769 = vset.pattern.permute.xlu0 2
    %1770 = vperm.xlu0 %1769, %v109
    %v1771 = vpop.permute.xlu0 %1770
    %1773 = vset.pattern.permute.xlu0 2
    %1774 = vperm.xlu0 %1773, %v110
    %v1775 = vpop.permute.xlu0 %1774
    %1777 = vset.pattern.permute.xlu0 2
    %1778 = vperm.xlu0 %1777, %v111
    %v1779 = vpop.permute.xlu0 %1778
    %1781 = vset.pattern.permute.xlu0 2
    %1782 = vperm.xlu0 %1781, %v112
    %v1783 = vpop.permute.xlu0 %1782
    %1785 = vset.pattern.permute.xlu0 2
    %1786 = vperm.xlu0 %1785, %v113
    %v1787 = vpop.permute.xlu0 %1786
    %1789 = vset.pattern.permute.xlu0 2
    %1790 = vperm.xlu0 %1789, %v114
    %v1791 = vpop.permute.xlu0 %1790
    %1793 = vset.pattern.permute.xlu0 2
    %1794 = vperm.xlu0 %1793, %v115
    %v1795 = vpop.permute.xlu0 %1794
    %1797 = vset.pattern.permute.xlu0 2
    %1798 = vperm.xlu0 %1797, %v116
    %v1799 = vpop.permute.xlu0 %1798
    %1801 = vset.pattern.permute.xlu0 2
    %1802 = vperm.xlu0 %1801, %v117
    %v1803 = vpop.permute.xlu0 %1802
    %1805 = vset.pattern.permute.xlu0 2
    %1806 = vperm.xlu0 %1805, %v118
    %v1807 = vpop.permute.xlu0 %1806
    %1809 = vset.pattern.permute.xlu0 2
    %1810 = vperm.xlu0 %1809, %v119
    %v1811 = vpop.permute.xlu0 %1810
    %1813 = vset.pattern.permute.xlu0 2
    %1814 = vperm.xlu0 %1813, %v120
    %v1815 = vpop.permute.xlu0 %1814
    %1817 = vset.pattern.permute.xlu0 2
    %1818 = vperm.xlu0 %1817, %v121
    %v1819 = vpop.permute.xlu0 %1818
    %1821 = vset.pattern.permute.xlu0 2
    %1822 = vperm.xlu0 %1821, %v122
    %v1823 = vpop.permute.xlu0 %1822
    %1825 = vset.pattern.permute.xlu0 2
    %1826 = vperm.xlu0 %1825, %v123
    %v1827 = vpop.permute.xlu0 %1826
    %1829 = vset.pattern.permute.xlu0 2
    %1830 = vperm.xlu0 %1829, %v124
    %v1831 = vpop.permute.xlu0 %1830
    %1833 = vset.pattern.permute.xlu0 2
    %1834 = vperm.xlu0 %1833, %v125
    %v1835 = vpop.permute.xlu0 %1834
    %1837 = vset.pattern.permute.xlu0 2
    %1838 = vperm.xlu0 %1837, %v126
    %v1839 = vpop.permute.xlu0 %1838
    %1841 = vset.pattern.permute.xlu0 2
    %1842 = vperm.xlu0 %1841, %v127
    %v1843 = vpop.permute.xlu0 %1842
    %1845 = vset.pattern.permute.xlu0 2
    %1846 = vperm.xlu0 %1845, %v128
    %v1847 = vpop.permute.xlu0 %1846
    %1849 = vset.pattern.permute.xlu0 2
    %1850 = vperm.xlu0 %1849, %v129
    %v1851 = vpop.permute.xlu0 %1850
    %1853 = vset.pattern.permute.xlu0 2
    %1854 = vperm.xlu0 %1853, %v130
    %v1855 = vpop.permute.xlu0 %1854
    %1857 = vset.pattern.permute.xlu0 2
    %1858 = vperm.xlu0 %1857, %v131
    %v1859 = vpop.permute.xlu0 %1858
    %1861 = vset.pattern.permute.xlu0 2
    %1862 = vperm.xlu0 %1861, %v132
    %v1863 = vpop.permute.xlu0 %1862
    %1865 = vset.pattern.permute.xlu0 2
    %1866 = vperm.xlu0 %1865, %v133
    %v1867 = vpop.permute.xlu0 %1866
    %1869 = vset.pattern.permute.xlu0 2
    %1870 = vperm.xlu0 %1869, %v134
    %v1871 = vpop.permute.xlu0 %1870
    %1873 = vset.pattern.permute.xlu0 2
    %1874 = vperm.xlu0 %1873, %v135
    %v1875 = vpop.permute.xlu0 %1874
    %1877 = vset.pattern.permute.xlu0 2
    %1878 = vperm.xlu0 %1877, %v136
    %v1879 = vpop.permute.xlu0 %1878
    %1881 = vset.pattern.permute.xlu0 2
    %1882 = vperm.xlu0 %1881, %v137
    %v1883 = vpop.permute.xlu0 %1882
    %1885 = vset.pattern.permute.xlu0 2
    %1886 = vperm.xlu0 %1885, %v138
    %v1887 = vpop.permute.xlu0 %1886
    %1889 = vset.pattern.permute.xlu0 2
    %1890 = vperm.xlu0 %1889, %v139
    %v1891 = vpop.permute.xlu0 %1890
    %1893 = vset.pattern.permute.xlu0 2
    %1894 = vperm.xlu0 %1893, %v140
    %v1895 = vpop.permute.xlu0 %1894
    %1897 = vset.pattern.permute.xlu0 2
    %1898 = vperm.xlu0 %1897, %v141
    %v1899 = vpop.permute.xlu0 %1898
    %1901 = vset.pattern.permute.xlu0 2
    %1902 = vperm.xlu0 %1901, %v142
    %v1903 = vpop.permute.xlu0 %1902
    %1905 = vset.pattern.permute.xlu0 2
    %1906 = vperm.xlu0 %1905, %v143
    %v1907 = vpop.permute.xlu0 %1906
    %1909 = vset.pattern.permute.xlu0 2
    %1910 = vperm.xlu0 %1909, %v144
    %v1911 = vpop.permute.xlu0 %1910
    %1913 = vset.pattern.permute.xlu0 2
    %1914 = vperm.xlu0 %1913, %v145
    %v1915 = vpop.permute.xlu0 %1914
    %1917 = vset.pattern.permute.xlu0 2
    %1918 = vperm.xlu0 %1917, %v146
    %v1919 = vpop.permute.xlu0 %1918
    %1921 = vset.pattern.permute.xlu0 2
    %1922 = vperm.xlu0 %1921, %v147
    %v1923 = vpop.permute.xlu0 %1922
    %1925 = vset.pattern.permute.xlu0 2
    %1926 = vperm.xlu0 %1925, %v148
    %v1927 = vpop.permute.xlu0 %1926
    %1929 = vset.pattern.permute.xlu0 2
    %1930 = vperm.xlu0 %1929, %v149
    %v1931 = vpop.permute.xlu0 %1930
    %1933 = vset.pattern.permute.xlu0 2
    %1934 = vperm.xlu0 %1933, %v150
    %v1935 = vpop.permute.xlu0 %1934
    %1937 = vset.pattern.permute.xlu0 2
    %1938 = vperm.xlu0 %1937, %v151
    %v1939 = vpop.permute.xlu0 %1938
    %1941 = vset.pattern.permute.xlu0 2
    %1942 = vperm.xlu0 %1941, %v152
    %v1943 = vpop.permute.xlu0 %1942
    %v1945 = vmin.f32 %v1435, %v19
    %v1946 = vmin.f32 %v1439, %v19
    %v1947 = vmin.f32 %v1443, %v19
    %v1948 = vmin.f32 %v1447, %v19
    %v1949 = vmin.f32 %v1451, %v19
    %v1950 = vmin.f32 %v1455, %v19
    %v1951 = vmin.f32 %v1459, %v19
    %v1952 = vmin.f32 %v1463, %v19
    %v1953 = vmin.f32 %v1467, %v19
    %v1954 = vmin.f32 %v1471, %v19
    %v1955 = vmin.f32 %v1475, %v19
    %v1956 = vmin.f32 %v1479, %v19
    %v1957 = vmin.f32 %v1483, %v19
    %v1958 = vmin.f32 %v1487, %v19
    %v1959 = vmin.f32 %v1491, %v19
    %v1960 = vmin.f32 %v1495, %v19
    %v1961 = vmin.f32 %v1499, %v19
    %v1962 = vmin.f32 %v1503, %v19
    %v1963 = vmin.f32 %v1507, %v19
    %v1964 = vmin.f32 %v1511, %v19
    %v1965 = vmin.f32 %v1515, %v19
    %v1966 = vmin.f32 %v1519, %v19
    %v1967 = vmin.f32 %v1523, %v19
    %v1968 = vmin.f32 %v1527, %v19
    %v1969 = vmin.f32 %v1531, %v19
    %v1970 = vmin.f32 %v1535, %v19
    %v1971 = vmin.f32 %v1539, %v19
    %v1972 = vmin.f32 %v1543, %v19
    %v1973 = vmin.f32 %v1547, %v19
    %v1974 = vmin.f32 %v1551, %v19
    %v1975 = vmin.f32 %v1555, %v19
    %v1976 = vmin.f32 %v1559, %v19
    %v1977 = vmin.f32 %v1563, %v19
    %v1978 = vmin.f32 %v1567, %v19
    %v1979 = vmin.f32 %v1571, %v19
    %v1980 = vmin.f32 %v1575, %v19
    %v1981 = vmin.f32 %v1579, %v19
    %v1982 = vmin.f32 %v1583, %v19
    %v1983 = vmin.f32 %v1587, %v19
    %v1984 = vmin.f32 %v1591, %v19
    %v1985 = vmin.f32 %v1595, %v19
    %v1986 = vmin.f32 %v1599, %v19
    %v1987 = vmin.f32 %v1603, %v19
    %v1988 = vmin.f32 %v1607, %v19
    %v1989 = vmin.f32 %v1611, %v19
    %v1990 = vmin.f32 %v1615, %v19
    %v1991 = vmin.f32 %v1619, %v19
    %v1992 = vmin.f32 %v1623, %v19
    %v1993 = vmin.f32 %v1627, %v19
    %v1994 = vmin.f32 %v1631, %v19
    %v1995 = vmin.f32 %v1635, %v19
    %v1996 = vmin.f32 %v1639, %v19
    %v1997 = vmin.f32 %v1643, %v19
    %v1998 = vmin.f32 %v1647, %v19
    %v1999 = vmin.f32 %v1651, %v19
    %v2000 = vmin.f32 %v1655, %v19
    %v2001 = vmin.f32 %v1659, %v19
    %v2002 = vmin.f32 %v1663, %v19
    %v2003 = vmin.f32 %v1667, %v19
    %v2004 = vmin.f32 %v1671, %v19
    %v2005 = vmin.f32 %v1675, %v19
    %v2006 = vmin.f32 %v1679, %v19
    %v2007 = vmin.f32 %v1683, %v19
    %v2008 = vmin.f32 %v1687, %v19
    %v2009 = vmin.f32 %v1691, %v19
    %v2010 = vmin.f32 %v1695, %v19
    %v2011 = vmin.f32 %v1699, %v19
    %v2012 = vmin.f32 %v1703, %v19
    %v2013 = vmin.f32 %v1707, %v19
    %v2014 = vmin.f32 %v1711, %v19
    %v2015 = vmin.f32 %v1715, %v19
    %v2016 = vmin.f32 %v1719, %v19
    %v2017 = vmin.f32 %v1723, %v19
    %v2018 = vmin.f32 %v1727, %v19
    %v2019 = vmin.f32 %v1731, %v19
    %v2020 = vmin.f32 %v1735, %v19
    %v2021 = vmin.f32 %v1739, %v19
    %v2022 = vmin.f32 %v1743, %v19
    %v2023 = vmin.f32 %v1747, %v19
    %v2024 = vmin.f32 %v1751, %v19
    %v2025 = vmin.f32 %v1755, %v19
    %v2026 = vmin.f32 %v1759, %v19
    %v2027 = vmin.f32 %v1763, %v19
    %v2028 = vmin.f32 %v1767, %v19
    %v2029 = vmin.f32 %v1771, %v19
    %v2030 = vmin.f32 %v1775, %v19
    %v2031 = vmin.f32 %v1779, %v19
    %v2032 = vmin.f32 %v1783, %v19
    %v2033 = vmin.f32 %v1787, %v19
    %v2034 = vmin.f32 %v1791, %v19
    %v2035 = vmin.f32 %v1795, %v19
    %v2036 = vmin.f32 %v1799, %v19
    %v2037 = vmin.f32 %v1803, %v19
    %v2038 = vmin.f32 %v1807, %v19
    %v2039 = vmin.f32 %v1811, %v19
    %v2040 = vmin.f32 %v1815, %v19
    %v2041 = vmin.f32 %v1819, %v19
    %v2042 = vmin.f32 %v1823, %v19
    %v2043 = vmin.f32 %v1827, %v19
    %v2044 = vmin.f32 %v1831, %v19
    %v2045 = vmin.f32 %v1835, %v19
    %v2046 = vmin.f32 %v1839, %v19
    %v2047 = vmin.f32 %v1843, %v19
    %v2048 = vmin.f32 %v1847, %v19
    %v2049 = vmin.f32 %v1851, %v19
    %v2050 = vmin.f32 %v1855, %v19
    %v2051 = vmin.f32 %v1859, %v19
    %v2052 = vmin.f32 %v1863, %v19
    %v2053 = vmin.f32 %v1867, %v19
    %v2054 = vmin.f32 %v1871, %v19
    %v2055 = vmin.f32 %v1875, %v19
    %v2056 = vmin.f32 %v1879, %v19
    %v2057 = vmin.f32 %v1883, %v19
    %v2058 = vmin.f32 %v1887, %v19
    %v2059 = vmin.f32 %v1891, %v19
    %v2060 = vmin.f32 %v1895, %v19
    %v2061 = vmin.f32 %v1899, %v19
    %v2062 = vmin.f32 %v1903, %v19
    %v2063 = vmin.f32 %v1907, %v19
    %v2064 = vmin.f32 %v1911, %v19
    %v2065 = vmin.f32 %v1915, %v19
    %v2066 = vmin.f32 %v1919, %v19
    %v2067 = vmin.f32 %v1923, %v19
    %v2068 = vmin.f32 %v1927, %v19
    %v2069 = vmin.f32 %v1931, %v19
    %v2070 = vmin.f32 %v1935, %v19
    %v2071 = vmin.f32 %v1939, %v19
    %v2072 = vmin.f32 %v1943, %v19
    %2073 = vset.pattern.permute.xlu0 0
    %2074 = vperm.xlu0 %2073, %v25
    %v2075 = vpop.permute.xlu0 %2074
    %2077 = vset.pattern.permute.xlu0 0
    %2078 = vperm.xlu0 %2077, %v26
    %v2079 = vpop.permute.xlu0 %2078
    %2081 = vset.pattern.permute.xlu0 0
    %2082 = vperm.xlu0 %2081, %v27
    %v2083 = vpop.permute.xlu0 %2082
    %2085 = vset.pattern.permute.xlu0 0
    %2086 = vperm.xlu0 %2085, %v28
    %v2087 = vpop.permute.xlu0 %2086
    %2089 = vset.pattern.permute.xlu0 0
    %2090 = vperm.xlu0 %2089, %v29
    %v2091 = vpop.permute.xlu0 %2090
    %2093 = vset.pattern.permute.xlu0 0
    %2094 = vperm.xlu0 %2093, %v30
    %v2095 = vpop.permute.xlu0 %2094
    %2097 = vset.pattern.permute.xlu0 0
    %2098 = vperm.xlu0 %2097, %v31
    %v2099 = vpop.permute.xlu0 %2098
    %2101 = vset.pattern.permute.xlu0 0
    %2102 = vperm.xlu0 %2101, %v32
    %v2103 = vpop.permute.xlu0 %2102
    %2105 = vset.pattern.permute.xlu0 0
    %2106 = vperm.xlu0 %2105, %v33
    %v2107 = vpop.permute.xlu0 %2106
    %2109 = vset.pattern.permute.xlu0 0
    %2110 = vperm.xlu0 %2109, %v34
    %v2111 = vpop.permute.xlu0 %2110
    %2113 = vset.pattern.permute.xlu0 0
    %2114 = vperm.xlu0 %2113, %v35
    %v2115 = vpop.permute.xlu0 %2114
    %2117 = vset.pattern.permute.xlu0 0
    %2118 = vperm.xlu0 %2117, %v36
    %v2119 = vpop.permute.xlu0 %2118
    %2121 = vset.pattern.permute.xlu0 0
    %2122 = vperm.xlu0 %2121, %v37
    %v2123 = vpop.permute.xlu0 %2122
    %2125 = vset.pattern.permute.xlu0 0
    %2126 = vperm.xlu0 %2125, %v38
    %v2127 = vpop.permute.xlu0 %2126
    %2129 = vset.pattern.permute.xlu0 0
    %2130 = vperm.xlu0 %2129, %v39
    %v2131 = vpop.permute.xlu0 %2130
    %2133 = vset.pattern.permute.xlu0 0
    %2134 = vperm.xlu0 %2133, %v40
    %v2135 = vpop.permute.xlu0 %2134
    %2137 = vset.pattern.permute.xlu0 0
    %2138 = vperm.xlu0 %2137, %v41
    %v2139 = vpop.permute.xlu0 %2138
    %2141 = vset.pattern.permute.xlu0 0
    %2142 = vperm.xlu0 %2141, %v42
    %v2143 = vpop.permute.xlu0 %2142
    %2145 = vset.pattern.permute.xlu0 0
    %2146 = vperm.xlu0 %2145, %v43
    %v2147 = vpop.permute.xlu0 %2146
    %2149 = vset.pattern.permute.xlu0 0
    %2150 = vperm.xlu0 %2149, %v44
    %v2151 = vpop.permute.xlu0 %2150
    %2153 = vset.pattern.permute.xlu0 0
    %2154 = vperm.xlu0 %2153, %v45
    %v2155 = vpop.permute.xlu0 %2154
    %2157 = vset.pattern.permute.xlu0 0
    %2158 = vperm.xlu0 %2157, %v46
    %v2159 = vpop.permute.xlu0 %2158
    %2161 = vset.pattern.permute.xlu0 0
    %2162 = vperm.xlu0 %2161, %v47
    %v2163 = vpop.permute.xlu0 %2162
    %2165 = vset.pattern.permute.xlu0 0
    %2166 = vperm.xlu0 %2165, %v48
    %v2167 = vpop.permute.xlu0 %2166
    %2169 = vset.pattern.permute.xlu0 0
    %2170 = vperm.xlu0 %2169, %v49
    %v2171 = vpop.permute.xlu0 %2170
    %2173 = vset.pattern.permute.xlu0 0
    %2174 = vperm.xlu0 %2173, %v50
    %v2175 = vpop.permute.xlu0 %2174
    %2177 = vset.pattern.permute.xlu0 0
    %2178 = vperm.xlu0 %2177, %v51
    %v2179 = vpop.permute.xlu0 %2178
    %2181 = vset.pattern.permute.xlu0 0
    %2182 = vperm.xlu0 %2181, %v52
    %v2183 = vpop.permute.xlu0 %2182
    %2185 = vset.pattern.permute.xlu0 0
    %2186 = vperm.xlu0 %2185, %v53
    %v2187 = vpop.permute.xlu0 %2186
    %2189 = vset.pattern.permute.xlu0 0
    %2190 = vperm.xlu0 %2189, %v54
    %v2191 = vpop.permute.xlu0 %2190
    %2193 = vset.pattern.permute.xlu0 0
    %2194 = vperm.xlu0 %2193, %v55
    %v2195 = vpop.permute.xlu0 %2194
    %2197 = vset.pattern.permute.xlu0 0
    %2198 = vperm.xlu0 %2197, %v56
    %v2199 = vpop.permute.xlu0 %2198
    %2201 = vset.pattern.permute.xlu0 0
    %2202 = vperm.xlu0 %2201, %v57
    %v2203 = vpop.permute.xlu0 %2202
    %2205 = vset.pattern.permute.xlu0 0
    %2206 = vperm.xlu0 %2205, %v58
    %v2207 = vpop.permute.xlu0 %2206
    %2209 = vset.pattern.permute.xlu0 0
    %2210 = vperm.xlu0 %2209, %v59
    %v2211 = vpop.permute.xlu0 %2210
    %2213 = vset.pattern.permute.xlu0 0
    %2214 = vperm.xlu0 %2213, %v60
    %v2215 = vpop.permute.xlu0 %2214
    %2217 = vset.pattern.permute.xlu0 0
    %2218 = vperm.xlu0 %2217, %v61
    %v2219 = vpop.permute.xlu0 %2218
    %2221 = vset.pattern.permute.xlu0 0
    %2222 = vperm.xlu0 %2221, %v62
    %v2223 = vpop.permute.xlu0 %2222
    %2225 = vset.pattern.permute.xlu0 0
    %2226 = vperm.xlu0 %2225, %v63
    %v2227 = vpop.permute.xlu0 %2226
    %2229 = vset.pattern.permute.xlu0 0
    %2230 = vperm.xlu0 %2229, %v64
    %v2231 = vpop.permute.xlu0 %2230
    %2233 = vset.pattern.permute.xlu0 0
    %2234 = vperm.xlu0 %2233, %v65
    %v2235 = vpop.permute.xlu0 %2234
    %2237 = vset.pattern.permute.xlu0 0
    %2238 = vperm.xlu0 %2237, %v66
    %v2239 = vpop.permute.xlu0 %2238
    %2241 = vset.pattern.permute.xlu0 0
    %2242 = vperm.xlu0 %2241, %v67
    %v2243 = vpop.permute.xlu0 %2242
    %2245 = vset.pattern.permute.xlu0 0
    %2246 = vperm.xlu0 %2245, %v68
    %v2247 = vpop.permute.xlu0 %2246
    %2249 = vset.pattern.permute.xlu0 0
    %2250 = vperm.xlu0 %2249, %v69
    %v2251 = vpop.permute.xlu0 %2250
    %2253 = vset.pattern.permute.xlu0 0
    %2254 = vperm.xlu0 %2253, %v70
    %v2255 = vpop.permute.xlu0 %2254
    %2257 = vset.pattern.permute.xlu0 0
    %2258 = vperm.xlu0 %2257, %v71
    %v2259 = vpop.permute.xlu0 %2258
    %2261 = vset.pattern.permute.xlu0 0
    %2262 = vperm.xlu0 %2261, %v72
    %v2263 = vpop.permute.xlu0 %2262
    %2265 = vset.pattern.permute.xlu0 0
    %2266 = vperm.xlu0 %2265, %v73
    %v2267 = vpop.permute.xlu0 %2266
    %2269 = vset.pattern.permute.xlu0 0
    %2270 = vperm.xlu0 %2269, %v74
    %v2271 = vpop.permute.xlu0 %2270
    %2273 = vset.pattern.permute.xlu0 0
    %2274 = vperm.xlu0 %2273, %v75
    %v2275 = vpop.permute.xlu0 %2274
    %2277 = vset.pattern.permute.xlu0 0
    %2278 = vperm.xlu0 %2277, %v76
    %v2279 = vpop.permute.xlu0 %2278
    %2281 = vset.pattern.permute.xlu0 0
    %2282 = vperm.xlu0 %2281, %v77
    %v2283 = vpop.permute.xlu0 %2282
    %2285 = vset.pattern.permute.xlu0 0
    %2286 = vperm.xlu0 %2285, %v78
    %v2287 = vpop.permute.xlu0 %2286
    %2289 = vset.pattern.permute.xlu0 0
    %2290 = vperm.xlu0 %2289, %v79
    %v2291 = vpop.permute.xlu0 %2290
    %2293 = vset.pattern.permute.xlu0 0
    %2294 = vperm.xlu0 %2293, %v80
    %v2295 = vpop.permute.xlu0 %2294
    %2297 = vset.pattern.permute.xlu0 0
    %2298 = vperm.xlu0 %2297, %v81
    %v2299 = vpop.permute.xlu0 %2298
    %2301 = vset.pattern.permute.xlu0 0
    %2302 = vperm.xlu0 %2301, %v82
    %v2303 = vpop.permute.xlu0 %2302
    %2305 = vset.pattern.permute.xlu0 0
    %2306 = vperm.xlu0 %2305, %v83
    %v2307 = vpop.permute.xlu0 %2306
    %2309 = vset.pattern.permute.xlu0 0
    %2310 = vperm.xlu0 %2309, %v84
    %v2311 = vpop.permute.xlu0 %2310
    %2313 = vset.pattern.permute.xlu0 0
    %2314 = vperm.xlu0 %2313, %v85
    %v2315 = vpop.permute.xlu0 %2314
    %2317 = vset.pattern.permute.xlu0 0
    %2318 = vperm.xlu0 %2317, %v86
    %v2319 = vpop.permute.xlu0 %2318
    %2321 = vset.pattern.permute.xlu0 0
    %2322 = vperm.xlu0 %2321, %v87
    %v2323 = vpop.permute.xlu0 %2322
    %2325 = vset.pattern.permute.xlu0 0
    %2326 = vperm.xlu0 %2325, %v88
    %v2327 = vpop.permute.xlu0 %2326
    %2329 = vset.pattern.permute.xlu0 0
    %2330 = vperm.xlu0 %2329, %v89
    %v2331 = vpop.permute.xlu0 %2330
    %2333 = vset.pattern.permute.xlu0 0
    %2334 = vperm.xlu0 %2333, %v90
    %v2335 = vpop.permute.xlu0 %2334
    %2337 = vset.pattern.permute.xlu0 0
    %2338 = vperm.xlu0 %2337, %v91
    %v2339 = vpop.permute.xlu0 %2338
    %2341 = vset.pattern.permute.xlu0 0
    %2342 = vperm.xlu0 %2341, %v92
    %v2343 = vpop.permute.xlu0 %2342
    %2345 = vset.pattern.permute.xlu0 0
    %2346 = vperm.xlu0 %2345, %v93
    %v2347 = vpop.permute.xlu0 %2346
    %2349 = vset.pattern.permute.xlu0 0
    %2350 = vperm.xlu0 %2349, %v94
    %v2351 = vpop.permute.xlu0 %2350
    %2353 = vset.pattern.permute.xlu0 0
    %2354 = vperm.xlu0 %2353, %v95
    %v2355 = vpop.permute.xlu0 %2354
    %2357 = vset.pattern.permute.xlu0 0
    %2358 = vperm.xlu0 %2357, %v96
    %v2359 = vpop.permute.xlu0 %2358
    %2361 = vset.pattern.permute.xlu0 0
    %2362 = vperm.xlu0 %2361, %v97
    %v2363 = vpop.permute.xlu0 %2362
    %2365 = vset.pattern.permute.xlu0 0
    %2366 = vperm.xlu0 %2365, %v98
    %v2367 = vpop.permute.xlu0 %2366
    %2369 = vset.pattern.permute.xlu0 0
    %2370 = vperm.xlu0 %2369, %v99
    %v2371 = vpop.permute.xlu0 %2370
    %2373 = vset.pattern.permute.xlu0 0
    %2374 = vperm.xlu0 %2373, %v100
    %v2375 = vpop.permute.xlu0 %2374
    %2377 = vset.pattern.permute.xlu0 0
    %2378 = vperm.xlu0 %2377, %v101
    %v2379 = vpop.permute.xlu0 %2378
    %2381 = vset.pattern.permute.xlu0 0
    %2382 = vperm.xlu0 %2381, %v102
    %v2383 = vpop.permute.xlu0 %2382
    %2385 = vset.pattern.permute.xlu0 0
    %2386 = vperm.xlu0 %2385, %v103
    %v2387 = vpop.permute.xlu0 %2386
    %2389 = vset.pattern.permute.xlu0 0
    %2390 = vperm.xlu0 %2389, %v104
    %v2391 = vpop.permute.xlu0 %2390
    %2393 = vset.pattern.permute.xlu0 0
    %2394 = vperm.xlu0 %2393, %v105
    %v2395 = vpop.permute.xlu0 %2394
    %2397 = vset.pattern.permute.xlu0 0
    %2398 = vperm.xlu0 %2397, %v106
    %v2399 = vpop.permute.xlu0 %2398
    %2401 = vset.pattern.permute.xlu0 0
    %2402 = vperm.xlu0 %2401, %v107
    %v2403 = vpop.permute.xlu0 %2402
    %2405 = vset.pattern.permute.xlu0 0
    %2406 = vperm.xlu0 %2405, %v108
    %v2407 = vpop.permute.xlu0 %2406
    %2409 = vset.pattern.permute.xlu0 0
    %2410 = vperm.xlu0 %2409, %v109
    %v2411 = vpop.permute.xlu0 %2410
    %2413 = vset.pattern.permute.xlu0 0
    %2414 = vperm.xlu0 %2413, %v110
    %v2415 = vpop.permute.xlu0 %2414
    %2417 = vset.pattern.permute.xlu0 0
    %2418 = vperm.xlu0 %2417, %v111
    %v2419 = vpop.permute.xlu0 %2418
    %2421 = vset.pattern.permute.xlu0 0
    %2422 = vperm.xlu0 %2421, %v112
    %v2423 = vpop.permute.xlu0 %2422
    %2425 = vset.pattern.permute.xlu0 0
    %2426 = vperm.xlu0 %2425, %v113
    %v2427 = vpop.permute.xlu0 %2426
    %2429 = vset.pattern.permute.xlu0 0
    %2430 = vperm.xlu0 %2429, %v114
    %v2431 = vpop.permute.xlu0 %2430
    %2433 = vset.pattern.permute.xlu0 0
    %2434 = vperm.xlu0 %2433, %v115
    %v2435 = vpop.permute.xlu0 %2434
    %2437 = vset.pattern.permute.xlu0 0
    %2438 = vperm.xlu0 %2437, %v116
    %v2439 = vpop.permute.xlu0 %2438
    %2441 = vset.pattern.permute.xlu0 0
    %2442 = vperm.xlu0 %2441, %v117
    %v2443 = vpop.permute.xlu0 %2442
    %2445 = vset.pattern.permute.xlu0 0
    %2446 = vperm.xlu0 %2445, %v118
    %v2447 = vpop.permute.xlu0 %2446
    %2449 = vset.pattern.permute.xlu0 0
    %2450 = vperm.xlu0 %2449, %v119
    %v2451 = vpop.permute.xlu0 %2450
    %2453 = vset.pattern.permute.xlu0 0
    %2454 = vperm.xlu0 %2453, %v120
    %v2455 = vpop.permute.xlu0 %2454
    %2457 = vset.pattern.permute.xlu0 0
    %2458 = vperm.xlu0 %2457, %v121
    %v2459 = vpop.permute.xlu0 %2458
    %2461 = vset.pattern.permute.xlu0 0
    %2462 = vperm.xlu0 %2461, %v122
    %v2463 = vpop.permute.xlu0 %2462
    %2465 = vset.pattern.permute.xlu0 0
    %2466 = vperm.xlu0 %2465, %v123
    %v2467 = vpop.permute.xlu0 %2466
    %2469 = vset.pattern.permute.xlu0 0
    %2470 = vperm.xlu0 %2469, %v124
    %v2471 = vpop.permute.xlu0 %2470
    %2473 = vset.pattern.permute.xlu0 0
    %2474 = vperm.xlu0 %2473, %v125
    %v2475 = vpop.permute.xlu0 %2474
    %2477 = vset.pattern.permute.xlu0 0
    %2478 = vperm.xlu0 %2477, %v126
    %v2479 = vpop.permute.xlu0 %2478
    %2481 = vset.pattern.permute.xlu0 0
    %2482 = vperm.xlu0 %2481, %v127
    %v2483 = vpop.permute.xlu0 %2482
    %2485 = vset.pattern.permute.xlu0 0
    %2486 = vperm.xlu0 %2485, %v128
    %v2487 = vpop.permute.xlu0 %2486
    %2489 = vset.pattern.permute.xlu0 0
    %2490 = vperm.xlu0 %2489, %v129
    %v2491 = vpop.permute.xlu0 %2490
    %2493 = vset.pattern.permute.xlu0 0
    %2494 = vperm.xlu0 %2493, %v130
    %v2495 = vpop.permute.xlu0 %2494
    %2497 = vset.pattern.permute.xlu0 0
    %2498 = vperm.xlu0 %2497, %v131
    %v2499 = vpop.permute.xlu0 %2498
    %2501 = vset.pattern.permute.xlu0 0
    %2502 = vperm.xlu0 %2501, %v132
    %v2503 = vpop.permute.xlu0 %2502
    %2505 = vset.pattern.permute.xlu0 0
    %2506 = vperm.xlu0 %2505, %v133
    %v2507 = vpop.permute.xlu0 %2506
    %2509 = vset.pattern.permute.xlu0 0
    %2510 = vperm.xlu0 %2509, %v134
    %v2511 = vpop.permute.xlu0 %2510
    %2513 = vset.pattern.permute.xlu0 0
    %2514 = vperm.xlu0 %2513, %v135
    %v2515 = vpop.permute.xlu0 %2514
    %2517 = vset.pattern.permute.xlu0 0
    %2518 = vperm.xlu0 %2517, %v136
    %v2519 = vpop.permute.xlu0 %2518
    %2521 = vset.pattern.permute.xlu0 0
    %2522 = vperm.xlu0 %2521, %v137
    %v2523 = vpop.permute.xlu0 %2522
    %2525 = vset.pattern.permute.xlu0 0
    %2526 = vperm.xlu0 %2525, %v138
    %v2527 = vpop.permute.xlu0 %2526
    %2529 = vset.pattern.permute.xlu0 0
    %2530 = vperm.xlu0 %2529, %v139
    %v2531 = vpop.permute.xlu0 %2530
    %2533 = vset.pattern.permute.xlu0 0
    %2534 = vperm.xlu0 %2533, %v140
    %v2535 = vpop.permute.xlu0 %2534
    %2537 = vset.pattern.permute.xlu0 0
    %2538 = vperm.xlu0 %2537, %v141
    %v2539 = vpop.permute.xlu0 %2538
    %2541 = vset.pattern.permute.xlu0 0
    %2542 = vperm.xlu0 %2541, %v142
    %v2543 = vpop.permute.xlu0 %2542
    %2545 = vset.pattern.permute.xlu0 0
    %2546 = vperm.xlu0 %2545, %v143
    %v2547 = vpop.permute.xlu0 %2546
    %2549 = vset.pattern.permute.xlu0 0
    %2550 = vperm.xlu0 %2549, %v144
    %v2551 = vpop.permute.xlu0 %2550
    %2553 = vset.pattern.permute.xlu0 0
    %2554 = vperm.xlu0 %2553, %v145
    %v2555 = vpop.permute.xlu0 %2554
    %2557 = vset.pattern.permute.xlu0 0
    %2558 = vperm.xlu0 %2557, %v146
    %v2559 = vpop.permute.xlu0 %2558
    %2561 = vset.pattern.permute.xlu0 0
    %2562 = vperm.xlu0 %2561, %v147
    %v2563 = vpop.permute.xlu0 %2562
    %2565 = vset.pattern.permute.xlu0 0
    %2566 = vperm.xlu0 %2565, %v148
    %v2567 = vpop.permute.xlu0 %2566
    %2569 = vset.pattern.permute.xlu0 0
    %2570 = vperm.xlu0 %2569, %v149
    %v2571 = vpop.permute.xlu0 %2570
    %2573 = vset.pattern.permute.xlu0 0
    %2574 = vperm.xlu0 %2573, %v150
    %v2575 = vpop.permute.xlu0 %2574
    %2577 = vset.pattern.permute.xlu0 0
    %2578 = vperm.xlu0 %2577, %v151
    %v2579 = vpop.permute.xlu0 %2578
    %2581 = vset.pattern.permute.xlu0 0
    %2582 = vperm.xlu0 %2581, %v152
    %v2583 = vpop.permute.xlu0 %2582
    %v2585 = vmax.f32 %v2075, %v15
    %v2586 = vmax.f32 %v2079, %v15
    %v2587 = vmax.f32 %v2083, %v15
    %v2588 = vmax.f32 %v2087, %v15
    %v2589 = vmax.f32 %v2091, %v15
    %v2590 = vmax.f32 %v2095, %v15
    %v2591 = vmax.f32 %v2099, %v15
    %v2592 = vmax.f32 %v2103, %v15
    %v2593 = vmax.f32 %v2107, %v15
    %v2594 = vmax.f32 %v2111, %v15
    %v2595 = vmax.f32 %v2115, %v15
    %v2596 = vmax.f32 %v2119, %v15
    %v2597 = vmax.f32 %v2123, %v15
    %v2598 = vmax.f32 %v2127, %v15
    %v2599 = vmax.f32 %v2131, %v15
    %v2600 = vmax.f32 %v2135, %v15
    %v2601 = vmax.f32 %v2139, %v15
    %v2602 = vmax.f32 %v2143, %v15
    %v2603 = vmax.f32 %v2147, %v15
    %v2604 = vmax.f32 %v2151, %v15
    %v2605 = vmax.f32 %v2155, %v15
    %v2606 = vmax.f32 %v2159, %v15
    %v2607 = vmax.f32 %v2163, %v15
    %v2608 = vmax.f32 %v2167, %v15
    %v2609 = vmax.f32 %v2171, %v15
    %v2610 = vmax.f32 %v2175, %v15
    %v2611 = vmax.f32 %v2179, %v15
    %v2612 = vmax.f32 %v2183, %v15
    %v2613 = vmax.f32 %v2187, %v15
    %v2614 = vmax.f32 %v2191, %v15
    %v2615 = vmax.f32 %v2195, %v15
    %v2616 = vmax.f32 %v2199, %v15
    %v2617 = vmax.f32 %v2203, %v15
    %v2618 = vmax.f32 %v2207, %v15
    %v2619 = vmax.f32 %v2211, %v15
    %v2620 = vmax.f32 %v2215, %v15
    %v2621 = vmax.f32 %v2219, %v15
    %v2622 = vmax.f32 %v2223, %v15
    %v2623 = vmax.f32 %v2227, %v15
    %v2624 = vmax.f32 %v2231, %v15
    %v2625 = vmax.f32 %v2235, %v15
    %v2626 = vmax.f32 %v2239, %v15
    %v2627 = vmax.f32 %v2243, %v15
    %v2628 = vmax.f32 %v2247, %v15
    %v2629 = vmax.f32 %v2251, %v15
    %v2630 = vmax.f32 %v2255, %v15
    %v2631 = vmax.f32 %v2259, %v15
    %v2632 = vmax.f32 %v2263, %v15
    %v2633 = vmax.f32 %v2267, %v15
    %v2634 = vmax.f32 %v2271, %v15
    %v2635 = vmax.f32 %v2275, %v15
    %v2636 = vmax.f32 %v2279, %v15
    %v2637 = vmax.f32 %v2283, %v15
    %v2638 = vmax.f32 %v2287, %v15
    %v2639 = vmax.f32 %v2291, %v15
    %v2640 = vmax.f32 %v2295, %v15
    %v2641 = vmax.f32 %v2299, %v15
    %v2642 = vmax.f32 %v2303, %v15
    %v2643 = vmax.f32 %v2307, %v15
    %v2644 = vmax.f32 %v2311, %v15
    %v2645 = vmax.f32 %v2315, %v15
    %v2646 = vmax.f32 %v2319, %v15
    %v2647 = vmax.f32 %v2323, %v15
    %v2648 = vmax.f32 %v2327, %v15
    %v2649 = vmax.f32 %v2331, %v15
    %v2650 = vmax.f32 %v2335, %v15
    %v2651 = vmax.f32 %v2339, %v15
    %v2652 = vmax.f32 %v2343, %v15
    %v2653 = vmax.f32 %v2347, %v15
    %v2654 = vmax.f32 %v2351, %v15
    %v2655 = vmax.f32 %v2355, %v15
    %v2656 = vmax.f32 %v2359, %v15
    %v2657 = vmax.f32 %v2363, %v15
    %v2658 = vmax.f32 %v2367, %v15
    %v2659 = vmax.f32 %v2371, %v15
    %v2660 = vmax.f32 %v2375, %v15
    %v2661 = vmax.f32 %v2379, %v15
    %v2662 = vmax.f32 %v2383, %v15
    %v2663 = vmax.f32 %v2387, %v15
    %v2664 = vmax.f32 %v2391, %v15
    %v2665 = vmax.f32 %v2395, %v15
    %v2666 = vmax.f32 %v2399, %v15
    %v2667 = vmax.f32 %v2403, %v15
    %v2668 = vmax.f32 %v2407, %v15
    %v2669 = vmax.f32 %v2411, %v15
    %v2670 = vmax.f32 %v2415, %v15
    %v2671 = vmax.f32 %v2419, %v15
    %v2672 = vmax.f32 %v2423, %v15
    %v2673 = vmax.f32 %v2427, %v15
    %v2674 = vmax.f32 %v2431, %v15
    %v2675 = vmax.f32 %v2435, %v15
    %v2676 = vmax.f32 %v2439, %v15
    %v2677 = vmax.f32 %v2443, %v15
    %v2678 = vmax.f32 %v2447, %v15
    %v2679 = vmax.f32 %v2451, %v15
    %v2680 = vmax.f32 %v2455, %v15
    %v2681 = vmax.f32 %v2459, %v15
    %v2682 = vmax.f32 %v2463, %v15
    %v2683 = vmax.f32 %v2467, %v15
    %v2684 = vmax.f32 %v2471, %v15
    %v2685 = vmax.f32 %v2475, %v15
    %v2686 = vmax.f32 %v2479, %v15
    %v2687 = vmax.f32 %v2483, %v15
    %v2688 = vmax.f32 %v2487, %v15
    %v2689 = vmax.f32 %v2491, %v15
    %v2690 = vmax.f32 %v2495, %v15
    %v2691 = vmax.f32 %v2499, %v15
    %v2692 = vmax.f32 %v2503, %v15
    %v2693 = vmax.f32 %v2507, %v15
    %v2694 = vmax.f32 %v2511, %v15
    %v2695 = vmax.f32 %v2515, %v15
    %v2696 = vmax.f32 %v2519, %v15
    %v2697 = vmax.f32 %v2523, %v15
    %v2698 = vmax.f32 %v2527, %v15
    %v2699 = vmax.f32 %v2531, %v15
    %v2700 = vmax.f32 %v2535, %v15
    %v2701 = vmax.f32 %v2539, %v15
    %v2702 = vmax.f32 %v2543, %v15
    %v2703 = vmax.f32 %v2547, %v15
    %v2704 = vmax.f32 %v2551, %v15
    %v2705 = vmax.f32 %v2555, %v15
    %v2706 = vmax.f32 %v2559, %v15
    %v2707 = vmax.f32 %v2563, %v15
    %v2708 = vmax.f32 %v2567, %v15
    %v2709 = vmax.f32 %v2571, %v15
    %v2710 = vmax.f32 %v2575, %v15
    %v2711 = vmax.f32 %v2579, %v15
    %v2712 = vmax.f32 %v2583, %v15
    %v2713 = vsub.f32 %v1945, %v2585
    %v2714 = vsub.f32 %v1946, %v2586
    %v2715 = vsub.f32 %v1947, %v2587
    %v2716 = vsub.f32 %v1948, %v2588
    %v2717 = vsub.f32 %v1949, %v2589
    %v2718 = vsub.f32 %v1950, %v2590
    %v2719 = vsub.f32 %v1951, %v2591
    %v2720 = vsub.f32 %v1952, %v2592
    %v2721 = vsub.f32 %v1953, %v2593
    %v2722 = vsub.f32 %v1954, %v2594
    %v2723 = vsub.f32 %v1955, %v2595
    %v2724 = vsub.f32 %v1956, %v2596
    %v2725 = vsub.f32 %v1957, %v2597
    %v2726 = vsub.f32 %v1958, %v2598
    %v2727 = vsub.f32 %v1959, %v2599
    %v2728 = vsub.f32 %v1960, %v2600
    %v2729 = vsub.f32 %v1961, %v2601
    %v2730 = vsub.f32 %v1962, %v2602
    %v2731 = vsub.f32 %v1963, %v2603
    %v2732 = vsub.f32 %v1964, %v2604
    %v2733 = vsub.f32 %v1965, %v2605
    %v2734 = vsub.f32 %v1966, %v2606
    %v2735 = vsub.f32 %v1967, %v2607
    %v2736 = vsub.f32 %v1968, %v2608
    %v2737 = vsub.f32 %v1969, %v2609
    %v2738 = vsub.f32 %v1970, %v2610
    %v2739 = vsub.f32 %v1971, %v2611
    %v2740 = vsub.f32 %v1972, %v2612
    %v2741 = vsub.f32 %v1973, %v2613
    %v2742 = vsub.f32 %v1974, %v2614
    %v2743 = vsub.f32 %v1975, %v2615
    %v2744 = vsub.f32 %v1976, %v2616
    %v2745 = vsub.f32 %v1977, %v2617
    %v2746 = vsub.f32 %v1978, %v2618
    %v2747 = vsub.f32 %v1979, %v2619
    %v2748 = vsub.f32 %v1980, %v2620
    %v2749 = vsub.f32 %v1981, %v2621
    %v2750 = vsub.f32 %v1982, %v2622
    %v2751 = vsub.f32 %v1983, %v2623
    %v2752 = vsub.f32 %v1984, %v2624
    %v2753 = vsub.f32 %v1985, %v2625
    %v2754 = vsub.f32 %v1986, %v2626
    %v2755 = vsub.f32 %v1987, %v2627
    %v2756 = vsub.f32 %v1988, %v2628
    %v2757 = vsub.f32 %v1989, %v2629
    %v2758 = vsub.f32 %v1990, %v2630
    %v2759 = vsub.f32 %v1991, %v2631
    %v2760 = vsub.f32 %v1992, %v2632
    %v2761 = vsub.f32 %v1993, %v2633
    %v2762 = vsub.f32 %v1994, %v2634
    %v2763 = vsub.f32 %v1995, %v2635
    %v2764 = vsub.f32 %v1996, %v2636
    %v2765 = vsub.f32 %v1997, %v2637
    %v2766 = vsub.f32 %v1998, %v2638
    %v2767 = vsub.f32 %v1999, %v2639
    %v2768 = vsub.f32 %v2000, %v2640
    %v2769 = vsub.f32 %v2001, %v2641
    %v2770 = vsub.f32 %v2002, %v2642
    %v2771 = vsub.f32 %v2003, %v2643
    %v2772 = vsub.f32 %v2004, %v2644
    %v2773 = vsub.f32 %v2005, %v2645
    %v2774 = vsub.f32 %v2006, %v2646
    %v2775 = vsub.f32 %v2007, %v2647
    %v2776 = vsub.f32 %v2008, %v2648
    %v2777 = vsub.f32 %v2009, %v2649
    %v2778 = vsub.f32 %v2010, %v2650
    %v2779 = vsub.f32 %v2011, %v2651
    %v2780 = vsub.f32 %v2012, %v2652
    %v2781 = vsub.f32 %v2013, %v2653
    %v2782 = vsub.f32 %v2014, %v2654
    %v2783 = vsub.f32 %v2015, %v2655
    %v2784 = vsub.f32 %v2016, %v2656
    %v2785 = vsub.f32 %v2017, %v2657
    %v2786 = vsub.f32 %v2018, %v2658
    %v2787 = vsub.f32 %v2019, %v2659
    %v2788 = vsub.f32 %v2020, %v2660
    %v2789 = vsub.f32 %v2021, %v2661
    %v2790 = vsub.f32 %v2022, %v2662
    %v2791 = vsub.f32 %v2023, %v2663
    %v2792 = vsub.f32 %v2024, %v2664
    %v2793 = vsub.f32 %v2025, %v2665
    %v2794 = vsub.f32 %v2026, %v2666
    %v2795 = vsub.f32 %v2027, %v2667
    %v2796 = vsub.f32 %v2028, %v2668
    %v2797 = vsub.f32 %v2029, %v2669
    %v2798 = vsub.f32 %v2030, %v2670
    %v2799 = vsub.f32 %v2031, %v2671
    %v2800 = vsub.f32 %v2032, %v2672
    %v2801 = vsub.f32 %v2033, %v2673
    %v2802 = vsub.f32 %v2034, %v2674
    %v2803 = vsub.f32 %v2035, %v2675
    %v2804 = vsub.f32 %v2036, %v2676
    %v2805 = vsub.f32 %v2037, %v2677
    %v2806 = vsub.f32 %v2038, %v2678
    %v2807 = vsub.f32 %v2039, %v2679
    %v2808 = vsub.f32 %v2040, %v2680
    %v2809 = vsub.f32 %v2041, %v2681
    %v2810 = vsub.f32 %v2042, %v2682
    %v2811 = vsub.f32 %v2043, %v2683
    %v2812 = vsub.f32 %v2044, %v2684
    %v2813 = vsub.f32 %v2045, %v2685
    %v2814 = vsub.f32 %v2046, %v2686
    %v2815 = vsub.f32 %v2047, %v2687
    %v2816 = vsub.f32 %v2048, %v2688
    %v2817 = vsub.f32 %v2049, %v2689
    %v2818 = vsub.f32 %v2050, %v2690
    %v2819 = vsub.f32 %v2051, %v2691
    %v2820 = vsub.f32 %v2052, %v2692
    %v2821 = vsub.f32 %v2053, %v2693
    %v2822 = vsub.f32 %v2054, %v2694
    %v2823 = vsub.f32 %v2055, %v2695
    %v2824 = vsub.f32 %v2056, %v2696
    %v2825 = vsub.f32 %v2057, %v2697
    %v2826 = vsub.f32 %v2058, %v2698
    %v2827 = vsub.f32 %v2059, %v2699
    %v2828 = vsub.f32 %v2060, %v2700
    %v2829 = vsub.f32 %v2061, %v2701
    %v2830 = vsub.f32 %v2062, %v2702
    %v2831 = vsub.f32 %v2063, %v2703
    %v2832 = vsub.f32 %v2064, %v2704
    %v2833 = vsub.f32 %v2065, %v2705
    %v2834 = vsub.f32 %v2066, %v2706
    %v2835 = vsub.f32 %v2067, %v2707
    %v2836 = vsub.f32 %v2068, %v2708
    %v2837 = vsub.f32 %v2069, %v2709
    %v2838 = vsub.f32 %v2070, %v2710
    %v2839 = vsub.f32 %v2071, %v2711
    %v2840 = vsub.f32 %v2072, %v2712
    %v2841 = vmax.f32 %v2713, 0.0
    %v2842 = vmax.f32 %v2714, 0.0
    %v2843 = vmax.f32 %v2715, 0.0
    %v2844 = vmax.f32 %v2716, 0.0
    %v2845 = vmax.f32 %v2717, 0.0
    %v2846 = vmax.f32 %v2718, 0.0
    %v2847 = vmax.f32 %v2719, 0.0
    %v2848 = vmax.f32 %v2720, 0.0
    %v2849 = vmax.f32 %v2721, 0.0
    %v2850 = vmax.f32 %v2722, 0.0
    %v2851 = vmax.f32 %v2723, 0.0
    %v2852 = vmax.f32 %v2724, 0.0
    %v2853 = vmax.f32 %v2725, 0.0
    %v2854 = vmax.f32 %v2726, 0.0
    %v2855 = vmax.f32 %v2727, 0.0
    %v2856 = vmax.f32 %v2728, 0.0
    %v2857 = vmax.f32 %v2729, 0.0
    %v2858 = vmax.f32 %v2730, 0.0
    %v2859 = vmax.f32 %v2731, 0.0
    %v2860 = vmax.f32 %v2732, 0.0
    %v2861 = vmax.f32 %v2733, 0.0
    %v2862 = vmax.f32 %v2734, 0.0
    %v2863 = vmax.f32 %v2735, 0.0
    %v2864 = vmax.f32 %v2736, 0.0
    %v2865 = vmax.f32 %v2737, 0.0
    %v2866 = vmax.f32 %v2738, 0.0
    %v2867 = vmax.f32 %v2739, 0.0
    %v2868 = vmax.f32 %v2740, 0.0
    %v2869 = vmax.f32 %v2741, 0.0
    %v2870 = vmax.f32 %v2742, 0.0
    %v2871 = vmax.f32 %v2743, 0.0
    %v2872 = vmax.f32 %v2744, 0.0
    %v2873 = vmax.f32 %v2745, 0.0
    %v2874 = vmax.f32 %v2746, 0.0
    %v2875 = vmax.f32 %v2747, 0.0
    %v2876 = vmax.f32 %v2748, 0.0
    %v2877 = vmax.f32 %v2749, 0.0
    %v2878 = vmax.f32 %v2750, 0.0
    %v2879 = vmax.f32 %v2751, 0.0
    %v2880 = vmax.f32 %v2752, 0.0
    %v2881 = vmax.f32 %v2753, 0.0
    %v2882 = vmax.f32 %v2754, 0.0
    %v2883 = vmax.f32 %v2755, 0.0
    %v2884 = vmax.f32 %v2756, 0.0
    %v2885 = vmax.f32 %v2757, 0.0
    %v2886 = vmax.f32 %v2758, 0.0
    %v2887 = vmax.f32 %v2759, 0.0
    %v2888 = vmax.f32 %v2760, 0.0
    %v2889 = vmax.f32 %v2761, 0.0
    %v2890 = vmax.f32 %v2762, 0.0
    %v2891 = vmax.f32 %v2763, 0.0
    %v2892 = vmax.f32 %v2764, 0.0
    %v2893 = vmax.f32 %v2765, 0.0
    %v2894 = vmax.f32 %v2766, 0.0
    %v2895 = vmax.f32 %v2767, 0.0
    %v2896 = vmax.f32 %v2768, 0.0
    %v2897 = vmax.f32 %v2769, 0.0
    %v2898 = vmax.f32 %v2770, 0.0
    %v2899 = vmax.f32 %v2771, 0.0
    %v2900 = vmax.f32 %v2772, 0.0
    %v2901 = vmax.f32 %v2773, 0.0
    %v2902 = vmax.f32 %v2774, 0.0
    %v2903 = vmax.f32 %v2775, 0.0
    %v2904 = vmax.f32 %v2776, 0.0
    %v2905 = vmax.f32 %v2777, 0.0
    %v2906 = vmax.f32 %v2778, 0.0
    %v2907 = vmax.f32 %v2779, 0.0
    %v2908 = vmax.f32 %v2780, 0.0
    %v2909 = vmax.f32 %v2781, 0.0
    %v2910 = vmax.f32 %v2782, 0.0
    %v2911 = vmax.f32 %v2783, 0.0
    %v2912 = vmax.f32 %v2784, 0.0
    %v2913 = vmax.f32 %v2785, 0.0
    %v2914 = vmax.f32 %v2786, 0.0
    %v2915 = vmax.f32 %v2787, 0.0
    %v2916 = vmax.f32 %v2788, 0.0
    %v2917 = vmax.f32 %v2789, 0.0
    %v2918 = vmax.f32 %v2790, 0.0
    %v2919 = vmax.f32 %v2791, 0.0
    %v2920 = vmax.f32 %v2792, 0.0
    %v2921 = vmax.f32 %v2793, 0.0
    %v2922 = vmax.f32 %v2794, 0.0
    %v2923 = vmax.f32 %v2795, 0.0
    %v2924 = vmax.f32 %v2796, 0.0
    %v2925 = vmax.f32 %v2797, 0.0
    %v2926 = vmax.f32 %v2798, 0.0
    %v2927 = vmax.f32 %v2799, 0.0
    %v2928 = vmax.f32 %v2800, 0.0
    %v2929 = vmax.f32 %v2801, 0.0
    %v2930 = vmax.f32 %v2802, 0.0
    %v2931 = vmax.f32 %v2803, 0.0
    %v2932 = vmax.f32 %v2804, 0.0
    %v2933 = vmax.f32 %v2805, 0.0
    %v2934 = vmax.f32 %v2806, 0.0
    %v2935 = vmax.f32 %v2807, 0.0
    %v2936 = vmax.f32 %v2808, 0.0
    %v2937 = vmax.f32 %v2809, 0.0
    %v2938 = vmax.f32 %v2810, 0.0
    %v2939 = vmax.f32 %v2811, 0.0
    %v2940 = vmax.f32 %v2812, 0.0
    %v2941 = vmax.f32 %v2813, 0.0
    %v2942 = vmax.f32 %v2814, 0.0
    %v2943 = vmax.f32 %v2815, 0.0
    %v2944 = vmax.f32 %v2816, 0.0
    %v2945 = vmax.f32 %v2817, 0.0
    %v2946 = vmax.f32 %v2818, 0.0
    %v2947 = vmax.f32 %v2819, 0.0
    %v2948 = vmax.f32 %v2820, 0.0
    %v2949 = vmax.f32 %v2821, 0.0
    %v2950 = vmax.f32 %v2822, 0.0
    %v2951 = vmax.f32 %v2823, 0.0
    %v2952 = vmax.f32 %v2824, 0.0
    %v2953 = vmax.f32 %v2825, 0.0
    %v2954 = vmax.f32 %v2826, 0.0
    %v2955 = vmax.f32 %v2827, 0.0
    %v2956 = vmax.f32 %v2828, 0.0
    %v2957 = vmax.f32 %v2829, 0.0
    %v2958 = vmax.f32 %v2830, 0.0
    %v2959 = vmax.f32 %v2831, 0.0
    %v2960 = vmax.f32 %v2832, 0.0
    %v2961 = vmax.f32 %v2833, 0.0
    %v2962 = vmax.f32 %v2834, 0.0
    %v2963 = vmax.f32 %v2835, 0.0
    %v2964 = vmax.f32 %v2836, 0.0
    %v2965 = vmax.f32 %v2837, 0.0
    %v2966 = vmax.f32 %v2838, 0.0
    %v2967 = vmax.f32 %v2839, 0.0
    %v2968 = vmax.f32 %v2840, 0.0
    %2969 = vset.pattern.permute.xlu0 3
    %2970 = vperm.xlu0 %2969, %v25
    %v2971 = vpop.permute.xlu0 %2970
    %2973 = vset.pattern.permute.xlu0 3
    %2974 = vperm.xlu0 %2973, %v26
    %v2975 = vpop.permute.xlu0 %2974
    %2977 = vset.pattern.permute.xlu0 3
    %2978 = vperm.xlu0 %2977, %v27
    %v2979 = vpop.permute.xlu0 %2978
    %2981 = vset.pattern.permute.xlu0 3
    %2982 = vperm.xlu0 %2981, %v28
    %v2983 = vpop.permute.xlu0 %2982
    %2985 = vset.pattern.permute.xlu0 3
    %2986 = vperm.xlu0 %2985, %v29
    %v2987 = vpop.permute.xlu0 %2986
    %2989 = vset.pattern.permute.xlu0 3
    %2990 = vperm.xlu0 %2989, %v30
    %v2991 = vpop.permute.xlu0 %2990
    %2993 = vset.pattern.permute.xlu0 3
    %2994 = vperm.xlu0 %2993, %v31
    %v2995 = vpop.permute.xlu0 %2994
    %2997 = vset.pattern.permute.xlu0 3
    %2998 = vperm.xlu0 %2997, %v32
    %v2999 = vpop.permute.xlu0 %2998
    %3001 = vset.pattern.permute.xlu0 3
    %3002 = vperm.xlu0 %3001, %v33
    %v3003 = vpop.permute.xlu0 %3002
    %3005 = vset.pattern.permute.xlu0 3
    %3006 = vperm.xlu0 %3005, %v34
    %v3007 = vpop.permute.xlu0 %3006
    %3009 = vset.pattern.permute.xlu0 3
    %3010 = vperm.xlu0 %3009, %v35
    %v3011 = vpop.permute.xlu0 %3010
    %3013 = vset.pattern.permute.xlu0 3
    %3014 = vperm.xlu0 %3013, %v36
    %v3015 = vpop.permute.xlu0 %3014
    %3017 = vset.pattern.permute.xlu0 3
    %3018 = vperm.xlu0 %3017, %v37
    %v3019 = vpop.permute.xlu0 %3018
    %3021 = vset.pattern.permute.xlu0 3
    %3022 = vperm.xlu0 %3021, %v38
    %v3023 = vpop.permute.xlu0 %3022
    %3025 = vset.pattern.permute.xlu0 3
    %3026 = vperm.xlu0 %3025, %v39
    %v3027 = vpop.permute.xlu0 %3026
    %3029 = vset.pattern.permute.xlu0 3
    %3030 = vperm.xlu0 %3029, %v40
    %v3031 = vpop.permute.xlu0 %3030
    %3033 = vset.pattern.permute.xlu0 3
    %3034 = vperm.xlu0 %3033, %v41
    %v3035 = vpop.permute.xlu0 %3034
    %3037 = vset.pattern.permute.xlu0 3
    %3038 = vperm.xlu0 %3037, %v42
    %v3039 = vpop.permute.xlu0 %3038
    %3041 = vset.pattern.permute.xlu0 3
    %3042 = vperm.xlu0 %3041, %v43
    %v3043 = vpop.permute.xlu0 %3042
    %3045 = vset.pattern.permute.xlu0 3
    %3046 = vperm.xlu0 %3045, %v44
    %v3047 = vpop.permute.xlu0 %3046
    %3049 = vset.pattern.permute.xlu0 3
    %3050 = vperm.xlu0 %3049, %v45
    %v3051 = vpop.permute.xlu0 %3050
    %3053 = vset.pattern.permute.xlu0 3
    %3054 = vperm.xlu0 %3053, %v46
    %v3055 = vpop.permute.xlu0 %3054
    %3057 = vset.pattern.permute.xlu0 3
    %3058 = vperm.xlu0 %3057, %v47
    %v3059 = vpop.permute.xlu0 %3058
    %3061 = vset.pattern.permute.xlu0 3
    %3062 = vperm.xlu0 %3061, %v48
    %v3063 = vpop.permute.xlu0 %3062
    %3065 = vset.pattern.permute.xlu0 3
    %3066 = vperm.xlu0 %3065, %v49
    %v3067 = vpop.permute.xlu0 %3066
    %3069 = vset.pattern.permute.xlu0 3
    %3070 = vperm.xlu0 %3069, %v50
    %v3071 = vpop.permute.xlu0 %3070
    %3073 = vset.pattern.permute.xlu0 3
    %3074 = vperm.xlu0 %3073, %v51
    %v3075 = vpop.permute.xlu0 %3074
    %3077 = vset.pattern.permute.xlu0 3
    %3078 = vperm.xlu0 %3077, %v52
    %v3079 = vpop.permute.xlu0 %3078
    %3081 = vset.pattern.permute.xlu0 3
    %3082 = vperm.xlu0 %3081, %v53
    %v3083 = vpop.permute.xlu0 %3082
    %3085 = vset.pattern.permute.xlu0 3
    %3086 = vperm.xlu0 %3085, %v54
    %v3087 = vpop.permute.xlu0 %3086
    %3089 = vset.pattern.permute.xlu0 3
    %3090 = vperm.xlu0 %3089, %v55
    %v3091 = vpop.permute.xlu0 %3090
    %3093 = vset.pattern.permute.xlu0 3
    %3094 = vperm.xlu0 %3093, %v56
    %v3095 = vpop.permute.xlu0 %3094
    %3097 = vset.pattern.permute.xlu0 3
    %3098 = vperm.xlu0 %3097, %v57
    %v3099 = vpop.permute.xlu0 %3098
    %3101 = vset.pattern.permute.xlu0 3
    %3102 = vperm.xlu0 %3101, %v58
    %v3103 = vpop.permute.xlu0 %3102
    %3105 = vset.pattern.permute.xlu0 3
    %3106 = vperm.xlu0 %3105, %v59
    %v3107 = vpop.permute.xlu0 %3106
    %3109 = vset.pattern.permute.xlu0 3
    %3110 = vperm.xlu0 %3109, %v60
    %v3111 = vpop.permute.xlu0 %3110
    %3113 = vset.pattern.permute.xlu0 3
    %3114 = vperm.xlu0 %3113, %v61
    %v3115 = vpop.permute.xlu0 %3114
    %3117 = vset.pattern.permute.xlu0 3
    %3118 = vperm.xlu0 %3117, %v62
    %v3119 = vpop.permute.xlu0 %3118
    %3121 = vset.pattern.permute.xlu0 3
    %3122 = vperm.xlu0 %3121, %v63
    %v3123 = vpop.permute.xlu0 %3122
    %3125 = vset.pattern.permute.xlu0 3
    %3126 = vperm.xlu0 %3125, %v64
    %v3127 = vpop.permute.xlu0 %3126
    %3129 = vset.pattern.permute.xlu0 3
    %3130 = vperm.xlu0 %3129, %v65
    %v3131 = vpop.permute.xlu0 %3130
    %3133 = vset.pattern.permute.xlu0 3
    %3134 = vperm.xlu0 %3133, %v66
    %v3135 = vpop.permute.xlu0 %3134
    %3137 = vset.pattern.permute.xlu0 3
    %3138 = vperm.xlu0 %3137, %v67
    %v3139 = vpop.permute.xlu0 %3138
    %3141 = vset.pattern.permute.xlu0 3
    %3142 = vperm.xlu0 %3141, %v68
    %v3143 = vpop.permute.xlu0 %3142
    %3145 = vset.pattern.permute.xlu0 3
    %3146 = vperm.xlu0 %3145, %v69
    %v3147 = vpop.permute.xlu0 %3146
    %3149 = vset.pattern.permute.xlu0 3
    %3150 = vperm.xlu0 %3149, %v70
    %v3151 = vpop.permute.xlu0 %3150
    %3153 = vset.pattern.permute.xlu0 3
    %3154 = vperm.xlu0 %3153, %v71
    %v3155 = vpop.permute.xlu0 %3154
    %3157 = vset.pattern.permute.xlu0 3
    %3158 = vperm.xlu0 %3157, %v72
    %v3159 = vpop.permute.xlu0 %3158
    %3161 = vset.pattern.permute.xlu0 3
    %3162 = vperm.xlu0 %3161, %v73
    %v3163 = vpop.permute.xlu0 %3162
    %3165 = vset.pattern.permute.xlu0 3
    %3166 = vperm.xlu0 %3165, %v74
    %v3167 = vpop.permute.xlu0 %3166
    %3169 = vset.pattern.permute.xlu0 3
    %3170 = vperm.xlu0 %3169, %v75
    %v3171 = vpop.permute.xlu0 %3170
    %3173 = vset.pattern.permute.xlu0 3
    %3174 = vperm.xlu0 %3173, %v76
    %v3175 = vpop.permute.xlu0 %3174
    %3177 = vset.pattern.permute.xlu0 3
    %3178 = vperm.xlu0 %3177, %v77
    %v3179 = vpop.permute.xlu0 %3178
    %3181 = vset.pattern.permute.xlu0 3
    %3182 = vperm.xlu0 %3181, %v78
    %v3183 = vpop.permute.xlu0 %3182
    %3185 = vset.pattern.permute.xlu0 3
    %3186 = vperm.xlu0 %3185, %v79
    %v3187 = vpop.permute.xlu0 %3186
    %3189 = vset.pattern.permute.xlu0 3
    %3190 = vperm.xlu0 %3189, %v80
    %v3191 = vpop.permute.xlu0 %3190
    %3193 = vset.pattern.permute.xlu0 3
    %3194 = vperm.xlu0 %3193, %v81
    %v3195 = vpop.permute.xlu0 %3194
    %3197 = vset.pattern.permute.xlu0 3
    %3198 = vperm.xlu0 %3197, %v82
    %v3199 = vpop.permute.xlu0 %3198
    %3201 = vset.pattern.permute.xlu0 3
    %3202 = vperm.xlu0 %3201, %v83
    %v3203 = vpop.permute.xlu0 %3202
    %3205 = vset.pattern.permute.xlu0 3
    %3206 = vperm.xlu0 %3205, %v84
    %v3207 = vpop.permute.xlu0 %3206
    %3209 = vset.pattern.permute.xlu0 3
    %3210 = vperm.xlu0 %3209, %v85
    %v3211 = vpop.permute.xlu0 %3210
    %3213 = vset.pattern.permute.xlu0 3
    %3214 = vperm.xlu0 %3213, %v86
    %v3215 = vpop.permute.xlu0 %3214
    %3217 = vset.pattern.permute.xlu0 3
    %3218 = vperm.xlu0 %3217, %v87
    %v3219 = vpop.permute.xlu0 %3218
    %3221 = vset.pattern.permute.xlu0 3
    %3222 = vperm.xlu0 %3221, %v88
    %v3223 = vpop.permute.xlu0 %3222
    %3225 = vset.pattern.permute.xlu0 3
    %3226 = vperm.xlu0 %3225, %v89
    %v3227 = vpop.permute.xlu0 %3226
    %3229 = vset.pattern.permute.xlu0 3
    %3230 = vperm.xlu0 %3229, %v90
    %v3231 = vpop.permute.xlu0 %3230
    %3233 = vset.pattern.permute.xlu0 3
    %3234 = vperm.xlu0 %3233, %v91
    %v3235 = vpop.permute.xlu0 %3234
    %3237 = vset.pattern.permute.xlu0 3
    %3238 = vperm.xlu0 %3237, %v92
    %v3239 = vpop.permute.xlu0 %3238
    %3241 = vset.pattern.permute.xlu0 3
    %3242 = vperm.xlu0 %3241, %v93
    %v3243 = vpop.permute.xlu0 %3242
    %3245 = vset.pattern.permute.xlu0 3
    %3246 = vperm.xlu0 %3245, %v94
    %v3247 = vpop.permute.xlu0 %3246
    %3249 = vset.pattern.permute.xlu0 3
    %3250 = vperm.xlu0 %3249, %v95
    %v3251 = vpop.permute.xlu0 %3250
    %3253 = vset.pattern.permute.xlu0 3
    %3254 = vperm.xlu0 %3253, %v96
    %v3255 = vpop.permute.xlu0 %3254
    %3257 = vset.pattern.permute.xlu0 3
    %3258 = vperm.xlu0 %3257, %v97
    %v3259 = vpop.permute.xlu0 %3258
    %3261 = vset.pattern.permute.xlu0 3
    %3262 = vperm.xlu0 %3261, %v98
    %v3263 = vpop.permute.xlu0 %3262
    %3265 = vset.pattern.permute.xlu0 3
    %3266 = vperm.xlu0 %3265, %v99
    %v3267 = vpop.permute.xlu0 %3266
    %3269 = vset.pattern.permute.xlu0 3
    %3270 = vperm.xlu0 %3269, %v100
    %v3271 = vpop.permute.xlu0 %3270
    %3273 = vset.pattern.permute.xlu0 3
    %3274 = vperm.xlu0 %3273, %v101
    %v3275 = vpop.permute.xlu0 %3274
    %3277 = vset.pattern.permute.xlu0 3
    %3278 = vperm.xlu0 %3277, %v102
    %v3279 = vpop.permute.xlu0 %3278
    %3281 = vset.pattern.permute.xlu0 3
    %3282 = vperm.xlu0 %3281, %v103
    %v3283 = vpop.permute.xlu0 %3282
    %3285 = vset.pattern.permute.xlu0 3
    %3286 = vperm.xlu0 %3285, %v104
    %v3287 = vpop.permute.xlu0 %3286
    %3289 = vset.pattern.permute.xlu0 3
    %3290 = vperm.xlu0 %3289, %v105
    %v3291 = vpop.permute.xlu0 %3290
    %3293 = vset.pattern.permute.xlu0 3
    %3294 = vperm.xlu0 %3293, %v106
    %v3295 = vpop.permute.xlu0 %3294
    %3297 = vset.pattern.permute.xlu0 3
    %3298 = vperm.xlu0 %3297, %v107
    %v3299 = vpop.permute.xlu0 %3298
    %3301 = vset.pattern.permute.xlu0 3
    %3302 = vperm.xlu0 %3301, %v108
    %v3303 = vpop.permute.xlu0 %3302
    %3305 = vset.pattern.permute.xlu0 3
    %3306 = vperm.xlu0 %3305, %v109
    %v3307 = vpop.permute.xlu0 %3306
    %3309 = vset.pattern.permute.xlu0 3
    %3310 = vperm.xlu0 %3309, %v110
    %v3311 = vpop.permute.xlu0 %3310
    %3313 = vset.pattern.permute.xlu0 3
    %3314 = vperm.xlu0 %3313, %v111
    %v3315 = vpop.permute.xlu0 %3314
    %3317 = vset.pattern.permute.xlu0 3
    %3318 = vperm.xlu0 %3317, %v112
    %v3319 = vpop.permute.xlu0 %3318
    %3321 = vset.pattern.permute.xlu0 3
    %3322 = vperm.xlu0 %3321, %v113
    %v3323 = vpop.permute.xlu0 %3322
    %3325 = vset.pattern.permute.xlu0 3
    %3326 = vperm.xlu0 %3325, %v114
    %v3327 = vpop.permute.xlu0 %3326
    %3329 = vset.pattern.permute.xlu0 3
    %3330 = vperm.xlu0 %3329, %v115
    %v3331 = vpop.permute.xlu0 %3330
    %3333 = vset.pattern.permute.xlu0 3
    %3334 = vperm.xlu0 %3333, %v116
    %v3335 = vpop.permute.xlu0 %3334
    %3337 = vset.pattern.permute.xlu0 3
    %3338 = vperm.xlu0 %3337, %v117
    %v3339 = vpop.permute.xlu0 %3338
    %3341 = vset.pattern.permute.xlu0 3
    %3342 = vperm.xlu0 %3341, %v118
    %v3343 = vpop.permute.xlu0 %3342
    %3345 = vset.pattern.permute.xlu0 3
    %3346 = vperm.xlu0 %3345, %v119
    %v3347 = vpop.permute.xlu0 %3346
    %3349 = vset.pattern.permute.xlu0 3
    %3350 = vperm.xlu0 %3349, %v120
    %v3351 = vpop.permute.xlu0 %3350
    %3353 = vset.pattern.permute.xlu0 3
    %3354 = vperm.xlu0 %3353, %v121
    %v3355 = vpop.permute.xlu0 %3354
    %3357 = vset.pattern.permute.xlu0 3
    %3358 = vperm.xlu0 %3357, %v122
    %v3359 = vpop.permute.xlu0 %3358
    %3361 = vset.pattern.permute.xlu0 3
    %3362 = vperm.xlu0 %3361, %v123
    %v3363 = vpop.permute.xlu0 %3362
    %3365 = vset.pattern.permute.xlu0 3
    %3366 = vperm.xlu0 %3365, %v124
    %v3367 = vpop.permute.xlu0 %3366
    %3369 = vset.pattern.permute.xlu0 3
    %3370 = vperm.xlu0 %3369, %v125
    %v3371 = vpop.permute.xlu0 %3370
    %3373 = vset.pattern.permute.xlu0 3
    %3374 = vperm.xlu0 %3373, %v126
    %v3375 = vpop.permute.xlu0 %3374
    %3377 = vset.pattern.permute.xlu0 3
    %3378 = vperm.xlu0 %3377, %v127
    %v3379 = vpop.permute.xlu0 %3378
    %3381 = vset.pattern.permute.xlu0 3
    %3382 = vperm.xlu0 %3381, %v128
    %v3383 = vpop.permute.xlu0 %3382
    %3385 = vset.pattern.permute.xlu0 3
    %3386 = vperm.xlu0 %3385, %v129
    %v3387 = vpop.permute.xlu0 %3386
    %3389 = vset.pattern.permute.xlu0 3
    %3390 = vperm.xlu0 %3389, %v130
    %v3391 = vpop.permute.xlu0 %3390
    %3393 = vset.pattern.permute.xlu0 3
    %3394 = vperm.xlu0 %3393, %v131
    %v3395 = vpop.permute.xlu0 %3394
    %3397 = vset.pattern.permute.xlu0 3
    %3398 = vperm.xlu0 %3397, %v132
    %v3399 = vpop.permute.xlu0 %3398
    %3401 = vset.pattern.permute.xlu0 3
    %3402 = vperm.xlu0 %3401, %v133
    %v3403 = vpop.permute.xlu0 %3402
    %3405 = vset.pattern.permute.xlu0 3
    %3406 = vperm.xlu0 %3405, %v134
    %v3407 = vpop.permute.xlu0 %3406
    %3409 = vset.pattern.permute.xlu0 3
    %3410 = vperm.xlu0 %3409, %v135
    %v3411 = vpop.permute.xlu0 %3410
    %3413 = vset.pattern.permute.xlu0 3
    %3414 = vperm.xlu0 %3413, %v136
    %v3415 = vpop.permute.xlu0 %3414
    %3417 = vset.pattern.permute.xlu0 3
    %3418 = vperm.xlu0 %3417, %v137
    %v3419 = vpop.permute.xlu0 %3418
    %3421 = vset.pattern.permute.xlu0 3
    %3422 = vperm.xlu0 %3421, %v138
    %v3423 = vpop.permute.xlu0 %3422
    %3425 = vset.pattern.permute.xlu0 3
    %3426 = vperm.xlu0 %3425, %v139
    %v3427 = vpop.permute.xlu0 %3426
    %3429 = vset.pattern.permute.xlu0 3
    %3430 = vperm.xlu0 %3429, %v140
    %v3431 = vpop.permute.xlu0 %3430
    %3433 = vset.pattern.permute.xlu0 3
    %3434 = vperm.xlu0 %3433, %v141
    %v3435 = vpop.permute.xlu0 %3434
    %3437 = vset.pattern.permute.xlu0 3
    %3438 = vperm.xlu0 %3437, %v142
    %v3439 = vpop.permute.xlu0 %3438
    %3441 = vset.pattern.permute.xlu0 3
    %3442 = vperm.xlu0 %3441, %v143
    %v3443 = vpop.permute.xlu0 %3442
    %3445 = vset.pattern.permute.xlu0 3
    %3446 = vperm.xlu0 %3445, %v144
    %v3447 = vpop.permute.xlu0 %3446
    %3449 = vset.pattern.permute.xlu0 3
    %3450 = vperm.xlu0 %3449, %v145
    %v3451 = vpop.permute.xlu0 %3450
    %3453 = vset.pattern.permute.xlu0 3
    %3454 = vperm.xlu0 %3453, %v146
    %v3455 = vpop.permute.xlu0 %3454
    %3457 = vset.pattern.permute.xlu0 3
    %3458 = vperm.xlu0 %3457, %v147
    %v3459 = vpop.permute.xlu0 %3458
    %3461 = vset.pattern.permute.xlu0 3
    %3462 = vperm.xlu0 %3461, %v148
    %v3463 = vpop.permute.xlu0 %3462
    %3465 = vset.pattern.permute.xlu0 3
    %3466 = vperm.xlu0 %3465, %v149
    %v3467 = vpop.permute.xlu0 %3466
    %3469 = vset.pattern.permute.xlu0 3
    %3470 = vperm.xlu0 %3469, %v150
    %v3471 = vpop.permute.xlu0 %3470
    %3473 = vset.pattern.permute.xlu0 3
    %3474 = vperm.xlu0 %3473, %v151
    %v3475 = vpop.permute.xlu0 %3474
    %3477 = vset.pattern.permute.xlu0 3
    %3478 = vperm.xlu0 %3477, %v152
    %v3479 = vpop.permute.xlu0 %3478
    %v3481 = vmin.f32 %v2971, %v21
    %v3482 = vmin.f32 %v2975, %v21
    %v3483 = vmin.f32 %v2979, %v21
    %v3484 = vmin.f32 %v2983, %v21
    %v3485 = vmin.f32 %v2987, %v21
    %v3486 = vmin.f32 %v2991, %v21
    %v3487 = vmin.f32 %v2995, %v21
    %v3488 = vmin.f32 %v2999, %v21
    %v3489 = vmin.f32 %v3003, %v21
    %v3490 = vmin.f32 %v3007, %v21
    %v3491 = vmin.f32 %v3011, %v21
    %v3492 = vmin.f32 %v3015, %v21
    %v3493 = vmin.f32 %v3019, %v21
    %v3494 = vmin.f32 %v3023, %v21
    %v3495 = vmin.f32 %v3027, %v21
    %v3496 = vmin.f32 %v3031, %v21
    %v3497 = vmin.f32 %v3035, %v21
    %v3498 = vmin.f32 %v3039, %v21
    %v3499 = vmin.f32 %v3043, %v21
    %v3500 = vmin.f32 %v3047, %v21
    %v3501 = vmin.f32 %v3051, %v21
    %v3502 = vmin.f32 %v3055, %v21
    %v3503 = vmin.f32 %v3059, %v21
    %v3504 = vmin.f32 %v3063, %v21
    %v3505 = vmin.f32 %v3067, %v21
    %v3506 = vmin.f32 %v3071, %v21
    %v3507 = vmin.f32 %v3075, %v21
    %v3508 = vmin.f32 %v3079, %v21
    %v3509 = vmin.f32 %v3083, %v21
    %v3510 = vmin.f32 %v3087, %v21
    %v3511 = vmin.f32 %v3091, %v21
    %v3512 = vmin.f32 %v3095, %v21
    %v3513 = vmin.f32 %v3099, %v21
    %v3514 = vmin.f32 %v3103, %v21
    %v3515 = vmin.f32 %v3107, %v21
    %v3516 = vmin.f32 %v3111, %v21
    %v3517 = vmin.f32 %v3115, %v21
    %v3518 = vmin.f32 %v3119, %v21
    %v3519 = vmin.f32 %v3123, %v21
    %v3520 = vmin.f32 %v3127, %v21
    %v3521 = vmin.f32 %v3131, %v21
    %v3522 = vmin.f32 %v3135, %v21
    %v3523 = vmin.f32 %v3139, %v21
    %v3524 = vmin.f32 %v3143, %v21
    %v3525 = vmin.f32 %v3147, %v21
    %v3526 = vmin.f32 %v3151, %v21
    %v3527 = vmin.f32 %v3155, %v21
    %v3528 = vmin.f32 %v3159, %v21
    %v3529 = vmin.f32 %v3163, %v21
    %v3530 = vmin.f32 %v3167, %v21
    %v3531 = vmin.f32 %v3171, %v21
    %v3532 = vmin.f32 %v3175, %v21
    %v3533 = vmin.f32 %v3179, %v21
    %v3534 = vmin.f32 %v3183, %v21
    %v3535 = vmin.f32 %v3187, %v21
    %v3536 = vmin.f32 %v3191, %v21
    %v3537 = vmin.f32 %v3195, %v21
    %v3538 = vmin.f32 %v3199, %v21
    %v3539 = vmin.f32 %v3203, %v21
    %v3540 = vmin.f32 %v3207, %v21
    %v3541 = vmin.f32 %v3211, %v21
    %v3542 = vmin.f32 %v3215, %v21
    %v3543 = vmin.f32 %v3219, %v21
    %v3544 = vmin.f32 %v3223, %v21
    %v3545 = vmin.f32 %v3227, %v21
    %v3546 = vmin.f32 %v3231, %v21
    %v3547 = vmin.f32 %v3235, %v21
    %v3548 = vmin.f32 %v3239, %v21
    %v3549 = vmin.f32 %v3243, %v21
    %v3550 = vmin.f32 %v3247, %v21
    %v3551 = vmin.f32 %v3251, %v21
    %v3552 = vmin.f32 %v3255, %v21
    %v3553 = vmin.f32 %v3259, %v21
    %v3554 = vmin.f32 %v3263, %v21
    %v3555 = vmin.f32 %v3267, %v21
    %v3556 = vmin.f32 %v3271, %v21
    %v3557 = vmin.f32 %v3275, %v21
    %v3558 = vmin.f32 %v3279, %v21
    %v3559 = vmin.f32 %v3283, %v21
    %v3560 = vmin.f32 %v3287, %v21
    %v3561 = vmin.f32 %v3291, %v21
    %v3562 = vmin.f32 %v3295, %v21
    %v3563 = vmin.f32 %v3299, %v21
    %v3564 = vmin.f32 %v3303, %v21
    %v3565 = vmin.f32 %v3307, %v21
    %v3566 = vmin.f32 %v3311, %v21
    %v3567 = vmin.f32 %v3315, %v21
    %v3568 = vmin.f32 %v3319, %v21
    %v3569 = vmin.f32 %v3323, %v21
    %v3570 = vmin.f32 %v3327, %v21
    %v3571 = vmin.f32 %v3331, %v21
    %v3572 = vmin.f32 %v3335, %v21
    %v3573 = vmin.f32 %v3339, %v21
    %v3574 = vmin.f32 %v3343, %v21
    %v3575 = vmin.f32 %v3347, %v21
    %v3576 = vmin.f32 %v3351, %v21
    %v3577 = vmin.f32 %v3355, %v21
    %v3578 = vmin.f32 %v3359, %v21
    %v3579 = vmin.f32 %v3363, %v21
    %v3580 = vmin.f32 %v3367, %v21
    %v3581 = vmin.f32 %v3371, %v21
    %v3582 = vmin.f32 %v3375, %v21
    %v3583 = vmin.f32 %v3379, %v21
    %v3584 = vmin.f32 %v3383, %v21
    %v3585 = vmin.f32 %v3387, %v21
    %v3586 = vmin.f32 %v3391, %v21
    %v3587 = vmin.f32 %v3395, %v21
    %v3588 = vmin.f32 %v3399, %v21
    %v3589 = vmin.f32 %v3403, %v21
    %v3590 = vmin.f32 %v3407, %v21
    %v3591 = vmin.f32 %v3411, %v21
    %v3592 = vmin.f32 %v3415, %v21
    %v3593 = vmin.f32 %v3419, %v21
    %v3594 = vmin.f32 %v3423, %v21
    %v3595 = vmin.f32 %v3427, %v21
    %v3596 = vmin.f32 %v3431, %v21
    %v3597 = vmin.f32 %v3435, %v21
    %v3598 = vmin.f32 %v3439, %v21
    %v3599 = vmin.f32 %v3443, %v21
    %v3600 = vmin.f32 %v3447, %v21
    %v3601 = vmin.f32 %v3451, %v21
    %v3602 = vmin.f32 %v3455, %v21
    %v3603 = vmin.f32 %v3459, %v21
    %v3604 = vmin.f32 %v3463, %v21
    %v3605 = vmin.f32 %v3467, %v21
    %v3606 = vmin.f32 %v3471, %v21
    %v3607 = vmin.f32 %v3475, %v21
    %v3608 = vmin.f32 %v3479, %v21
    %3609 = vset.pattern.permute.xlu0 1
    %3610 = vperm.xlu0 %3609, %v25
    %v3611 = vpop.permute.xlu0 %3610
    %3613 = vset.pattern.permute.xlu0 1
    %3614 = vperm.xlu0 %3613, %v26
    %v3615 = vpop.permute.xlu0 %3614
    %3617 = vset.pattern.permute.xlu0 1
    %3618 = vperm.xlu0 %3617, %v27
    %v3619 = vpop.permute.xlu0 %3618
    %3621 = vset.pattern.permute.xlu0 1
    %3622 = vperm.xlu0 %3621, %v28
    %v3623 = vpop.permute.xlu0 %3622
    %3625 = vset.pattern.permute.xlu0 1
    %3626 = vperm.xlu0 %3625, %v29
    %v3627 = vpop.permute.xlu0 %3626
    %3629 = vset.pattern.permute.xlu0 1
    %3630 = vperm.xlu0 %3629, %v30
    %v3631 = vpop.permute.xlu0 %3630
    %3633 = vset.pattern.permute.xlu0 1
    %3634 = vperm.xlu0 %3633, %v31
    %v3635 = vpop.permute.xlu0 %3634
    %3637 = vset.pattern.permute.xlu0 1
    %3638 = vperm.xlu0 %3637, %v32
    %v3639 = vpop.permute.xlu0 %3638
    %3641 = vset.pattern.permute.xlu0 1
    %3642 = vperm.xlu0 %3641, %v33
    %v3643 = vpop.permute.xlu0 %3642
    %3645 = vset.pattern.permute.xlu0 1
    %3646 = vperm.xlu0 %3645, %v34
    %v3647 = vpop.permute.xlu0 %3646
    %3649 = vset.pattern.permute.xlu0 1
    %3650 = vperm.xlu0 %3649, %v35
    %v3651 = vpop.permute.xlu0 %3650
    %3653 = vset.pattern.permute.xlu0 1
    %3654 = vperm.xlu0 %3653, %v36
    %v3655 = vpop.permute.xlu0 %3654
    %3657 = vset.pattern.permute.xlu0 1
    %3658 = vperm.xlu0 %3657, %v37
    %v3659 = vpop.permute.xlu0 %3658
    %3661 = vset.pattern.permute.xlu0 1
    %3662 = vperm.xlu0 %3661, %v38
    %v3663 = vpop.permute.xlu0 %3662
    %3665 = vset.pattern.permute.xlu0 1
    %3666 = vperm.xlu0 %3665, %v39
    %v3667 = vpop.permute.xlu0 %3666
    %3669 = vset.pattern.permute.xlu0 1
    %3670 = vperm.xlu0 %3669, %v40
    %v3671 = vpop.permute.xlu0 %3670
    %3673 = vset.pattern.permute.xlu0 1
    %3674 = vperm.xlu0 %3673, %v41
    %v3675 = vpop.permute.xlu0 %3674
    %3677 = vset.pattern.permute.xlu0 1
    %3678 = vperm.xlu0 %3677, %v42
    %v3679 = vpop.permute.xlu0 %3678
    %3681 = vset.pattern.permute.xlu0 1
    %3682 = vperm.xlu0 %3681, %v43
    %v3683 = vpop.permute.xlu0 %3682
    %3685 = vset.pattern.permute.xlu0 1
    %3686 = vperm.xlu0 %3685, %v44
    %v3687 = vpop.permute.xlu0 %3686
    %3689 = vset.pattern.permute.xlu0 1
    %3690 = vperm.xlu0 %3689, %v45
    %v3691 = vpop.permute.xlu0 %3690
    %3693 = vset.pattern.permute.xlu0 1
    %3694 = vperm.xlu0 %3693, %v46
    %v3695 = vpop.permute.xlu0 %3694
    %3697 = vset.pattern.permute.xlu0 1
    %3698 = vperm.xlu0 %3697, %v47
    %v3699 = vpop.permute.xlu0 %3698
    %3701 = vset.pattern.permute.xlu0 1
    %3702 = vperm.xlu0 %3701, %v48
    %v3703 = vpop.permute.xlu0 %3702
    %3705 = vset.pattern.permute.xlu0 1
    %3706 = vperm.xlu0 %3705, %v49
    %v3707 = vpop.permute.xlu0 %3706
    %3709 = vset.pattern.permute.xlu0 1
    %3710 = vperm.xlu0 %3709, %v50
    %v3711 = vpop.permute.xlu0 %3710
    %3713 = vset.pattern.permute.xlu0 1
    %3714 = vperm.xlu0 %3713, %v51
    %v3715 = vpop.permute.xlu0 %3714
    %3717 = vset.pattern.permute.xlu0 1
    %3718 = vperm.xlu0 %3717, %v52
    %v3719 = vpop.permute.xlu0 %3718
    %3721 = vset.pattern.permute.xlu0 1
    %3722 = vperm.xlu0 %3721, %v53
    %v3723 = vpop.permute.xlu0 %3722
    %3725 = vset.pattern.permute.xlu0 1
    %3726 = vperm.xlu0 %3725, %v54
    %v3727 = vpop.permute.xlu0 %3726
    %3729 = vset.pattern.permute.xlu0 1
    %3730 = vperm.xlu0 %3729, %v55
    %v3731 = vpop.permute.xlu0 %3730
    %3733 = vset.pattern.permute.xlu0 1
    %3734 = vperm.xlu0 %3733, %v56
    %v3735 = vpop.permute.xlu0 %3734
    %3737 = vset.pattern.permute.xlu0 1
    %3738 = vperm.xlu0 %3737, %v57
    %v3739 = vpop.permute.xlu0 %3738
    %3741 = vset.pattern.permute.xlu0 1
    %3742 = vperm.xlu0 %3741, %v58
    %v3743 = vpop.permute.xlu0 %3742
    %3745 = vset.pattern.permute.xlu0 1
    %3746 = vperm.xlu0 %3745, %v59
    %v3747 = vpop.permute.xlu0 %3746
    %3749 = vset.pattern.permute.xlu0 1
    %3750 = vperm.xlu0 %3749, %v60
    %v3751 = vpop.permute.xlu0 %3750
    %3753 = vset.pattern.permute.xlu0 1
    %3754 = vperm.xlu0 %3753, %v61
    %v3755 = vpop.permute.xlu0 %3754
    %3757 = vset.pattern.permute.xlu0 1
    %3758 = vperm.xlu0 %3757, %v62
    %v3759 = vpop.permute.xlu0 %3758
    %3761 = vset.pattern.permute.xlu0 1
    %3762 = vperm.xlu0 %3761, %v63
    %v3763 = vpop.permute.xlu0 %3762
    %3765 = vset.pattern.permute.xlu0 1
    %3766 = vperm.xlu0 %3765, %v64
    %v3767 = vpop.permute.xlu0 %3766
    %3769 = vset.pattern.permute.xlu0 1
    %3770 = vperm.xlu0 %3769, %v65
    %v3771 = vpop.permute.xlu0 %3770
    %3773 = vset.pattern.permute.xlu0 1
    %3774 = vperm.xlu0 %3773, %v66
    %v3775 = vpop.permute.xlu0 %3774
    %3777 = vset.pattern.permute.xlu0 1
    %3778 = vperm.xlu0 %3777, %v67
    %v3779 = vpop.permute.xlu0 %3778
    %3781 = vset.pattern.permute.xlu0 1
    %3782 = vperm.xlu0 %3781, %v68
    %v3783 = vpop.permute.xlu0 %3782
    %3785 = vset.pattern.permute.xlu0 1
    %3786 = vperm.xlu0 %3785, %v69
    %v3787 = vpop.permute.xlu0 %3786
    %3789 = vset.pattern.permute.xlu0 1
    %3790 = vperm.xlu0 %3789, %v70
    %v3791 = vpop.permute.xlu0 %3790
    %3793 = vset.pattern.permute.xlu0 1
    %3794 = vperm.xlu0 %3793, %v71
    %v3795 = vpop.permute.xlu0 %3794
    %3797 = vset.pattern.permute.xlu0 1
    %3798 = vperm.xlu0 %3797, %v72
    %v3799 = vpop.permute.xlu0 %3798
    %3801 = vset.pattern.permute.xlu0 1
    %3802 = vperm.xlu0 %3801, %v73
    %v3803 = vpop.permute.xlu0 %3802
    %3805 = vset.pattern.permute.xlu0 1
    %3806 = vperm.xlu0 %3805, %v74
    %v3807 = vpop.permute.xlu0 %3806
    %3809 = vset.pattern.permute.xlu0 1
    %3810 = vperm.xlu0 %3809, %v75
    %v3811 = vpop.permute.xlu0 %3810
    %3813 = vset.pattern.permute.xlu0 1
    %3814 = vperm.xlu0 %3813, %v76
    %v3815 = vpop.permute.xlu0 %3814
    %3817 = vset.pattern.permute.xlu0 1
    %3818 = vperm.xlu0 %3817, %v77
    %v3819 = vpop.permute.xlu0 %3818
    %3821 = vset.pattern.permute.xlu0 1
    %3822 = vperm.xlu0 %3821, %v78
    %v3823 = vpop.permute.xlu0 %3822
    %3825 = vset.pattern.permute.xlu0 1
    %3826 = vperm.xlu0 %3825, %v79
    %v3827 = vpop.permute.xlu0 %3826
    %3829 = vset.pattern.permute.xlu0 1
    %3830 = vperm.xlu0 %3829, %v80
    %v3831 = vpop.permute.xlu0 %3830
    %3833 = vset.pattern.permute.xlu0 1
    %3834 = vperm.xlu0 %3833, %v81
    %v3835 = vpop.permute.xlu0 %3834
    %3837 = vset.pattern.permute.xlu0 1
    %3838 = vperm.xlu0 %3837, %v82
    %v3839 = vpop.permute.xlu0 %3838
    %3841 = vset.pattern.permute.xlu0 1
    %3842 = vperm.xlu0 %3841, %v83
    %v3843 = vpop.permute.xlu0 %3842
    %3845 = vset.pattern.permute.xlu0 1
    %3846 = vperm.xlu0 %3845, %v84
    %v3847 = vpop.permute.xlu0 %3846
    %3849 = vset.pattern.permute.xlu0 1
    %3850 = vperm.xlu0 %3849, %v85
    %v3851 = vpop.permute.xlu0 %3850
    %3853 = vset.pattern.permute.xlu0 1
    %3854 = vperm.xlu0 %3853, %v86
    %v3855 = vpop.permute.xlu0 %3854
    %3857 = vset.pattern.permute.xlu0 1
    %3858 = vperm.xlu0 %3857, %v87
    %v3859 = vpop.permute.xlu0 %3858
    %3861 = vset.pattern.permute.xlu0 1
    %3862 = vperm.xlu0 %3861, %v88
    %v3863 = vpop.permute.xlu0 %3862
    %3865 = vset.pattern.permute.xlu0 1
    %3866 = vperm.xlu0 %3865, %v89
    %v3867 = vpop.permute.xlu0 %3866
    %3869 = vset.pattern.permute.xlu0 1
    %3870 = vperm.xlu0 %3869, %v90
    %v3871 = vpop.permute.xlu0 %3870
    %3873 = vset.pattern.permute.xlu0 1
    %3874 = vperm.xlu0 %3873, %v91
    %v3875 = vpop.permute.xlu0 %3874
    %3877 = vset.pattern.permute.xlu0 1
    %3878 = vperm.xlu0 %3877, %v92
    %v3879 = vpop.permute.xlu0 %3878
    %3881 = vset.pattern.permute.xlu0 1
    %3882 = vperm.xlu0 %3881, %v93
    %v3883 = vpop.permute.xlu0 %3882
    %3885 = vset.pattern.permute.xlu0 1
    %3886 = vperm.xlu0 %3885, %v94
    %v3887 = vpop.permute.xlu0 %3886
    %3889 = vset.pattern.permute.xlu0 1
    %3890 = vperm.xlu0 %3889, %v95
    %v3891 = vpop.permute.xlu0 %3890
    %3893 = vset.pattern.permute.xlu0 1
    %3894 = vperm.xlu0 %3893, %v96
    %v3895 = vpop.permute.xlu0 %3894
    %3897 = vset.pattern.permute.xlu0 1
    %3898 = vperm.xlu0 %3897, %v97
    %v3899 = vpop.permute.xlu0 %3898
    %3901 = vset.pattern.permute.xlu0 1
    %3902 = vperm.xlu0 %3901, %v98
    %v3903 = vpop.permute.xlu0 %3902
    %3905 = vset.pattern.permute.xlu0 1
    %3906 = vperm.xlu0 %3905, %v99
    %v3907 = vpop.permute.xlu0 %3906
    %3909 = vset.pattern.permute.xlu0 1
    %3910 = vperm.xlu0 %3909, %v100
    %v3911 = vpop.permute.xlu0 %3910
    %3913 = vset.pattern.permute.xlu0 1
    %3914 = vperm.xlu0 %3913, %v101
    %v3915 = vpop.permute.xlu0 %3914
    %3917 = vset.pattern.permute.xlu0 1
    %3918 = vperm.xlu0 %3917, %v102
    %v3919 = vpop.permute.xlu0 %3918
    %3921 = vset.pattern.permute.xlu0 1
    %3922 = vperm.xlu0 %3921, %v103
    %v3923 = vpop.permute.xlu0 %3922
    %3925 = vset.pattern.permute.xlu0 1
    %3926 = vperm.xlu0 %3925, %v104
    %v3927 = vpop.permute.xlu0 %3926
    %3929 = vset.pattern.permute.xlu0 1
    %3930 = vperm.xlu0 %3929, %v105
    %v3931 = vpop.permute.xlu0 %3930
    %3933 = vset.pattern.permute.xlu0 1
    %3934 = vperm.xlu0 %3933, %v106
    %v3935 = vpop.permute.xlu0 %3934
    %3937 = vset.pattern.permute.xlu0 1
    %3938 = vperm.xlu0 %3937, %v107
    %v3939 = vpop.permute.xlu0 %3938
    %3941 = vset.pattern.permute.xlu0 1
    %3942 = vperm.xlu0 %3941, %v108
    %v3943 = vpop.permute.xlu0 %3942
    %3945 = vset.pattern.permute.xlu0 1
    %3946 = vperm.xlu0 %3945, %v109
    %v3947 = vpop.permute.xlu0 %3946
    %3949 = vset.pattern.permute.xlu0 1
    %3950 = vperm.xlu0 %3949, %v110
    %v3951 = vpop.permute.xlu0 %3950
    %3953 = vset.pattern.permute.xlu0 1
    %3954 = vperm.xlu0 %3953, %v111
    %v3955 = vpop.permute.xlu0 %3954
    %3957 = vset.pattern.permute.xlu0 1
    %3958 = vperm.xlu0 %3957, %v112
    %v3959 = vpop.permute.xlu0 %3958
    %3961 = vset.pattern.permute.xlu0 1
    %3962 = vperm.xlu0 %3961, %v113
    %v3963 = vpop.permute.xlu0 %3962
    %3965 = vset.pattern.permute.xlu0 1
    %3966 = vperm.xlu0 %3965, %v114
    %v3967 = vpop.permute.xlu0 %3966
    %3969 = vset.pattern.permute.xlu0 1
    %3970 = vperm.xlu0 %3969, %v115
    %v3971 = vpop.permute.xlu0 %3970
    %3973 = vset.pattern.permute.xlu0 1
    %3974 = vperm.xlu0 %3973, %v116
    %v3975 = vpop.permute.xlu0 %3974
    %3977 = vset.pattern.permute.xlu0 1
    %3978 = vperm.xlu0 %3977, %v117
    %v3979 = vpop.permute.xlu0 %3978
    %3981 = vset.pattern.permute.xlu0 1
    %3982 = vperm.xlu0 %3981, %v118
    %v3983 = vpop.permute.xlu0 %3982
    %3985 = vset.pattern.permute.xlu0 1
    %3986 = vperm.xlu0 %3985, %v119
    %v3987 = vpop.permute.xlu0 %3986
    %3989 = vset.pattern.permute.xlu0 1
    %3990 = vperm.xlu0 %3989, %v120
    %v3991 = vpop.permute.xlu0 %3990
    %3993 = vset.pattern.permute.xlu0 1
    %3994 = vperm.xlu0 %3993, %v121
    %v3995 = vpop.permute.xlu0 %3994
    %3997 = vset.pattern.permute.xlu0 1
    %3998 = vperm.xlu0 %3997, %v122
    %v3999 = vpop.permute.xlu0 %3998
    %4001 = vset.pattern.permute.xlu0 1
    %4002 = vperm.xlu0 %4001, %v123
    %v4003 = vpop.permute.xlu0 %4002
    %4005 = vset.pattern.permute.xlu0 1
    %4006 = vperm.xlu0 %4005, %v124
    %v4007 = vpop.permute.xlu0 %4006
    %4009 = vset.pattern.permute.xlu0 1
    %4010 = vperm.xlu0 %4009, %v125
    %v4011 = vpop.permute.xlu0 %4010
    %4013 = vset.pattern.permute.xlu0 1
    %4014 = vperm.xlu0 %4013, %v126
    %v4015 = vpop.permute.xlu0 %4014
    %4017 = vset.pattern.permute.xlu0 1
    %4018 = vperm.xlu0 %4017, %v127
    %v4019 = vpop.permute.xlu0 %4018
    %4021 = vset.pattern.permute.xlu0 1
    %4022 = vperm.xlu0 %4021, %v128
    %v4023 = vpop.permute.xlu0 %4022
    %4025 = vset.pattern.permute.xlu0 1
    %4026 = vperm.xlu0 %4025, %v129
    %v4027 = vpop.permute.xlu0 %4026
    %4029 = vset.pattern.permute.xlu0 1
    %4030 = vperm.xlu0 %4029, %v130
    %v4031 = vpop.permute.xlu0 %4030
    %4033 = vset.pattern.permute.xlu0 1
    %4034 = vperm.xlu0 %4033, %v131
    %v4035 = vpop.permute.xlu0 %4034
    %4037 = vset.pattern.permute.xlu0 1
    %4038 = vperm.xlu0 %4037, %v132
    %v4039 = vpop.permute.xlu0 %4038
    %4041 = vset.pattern.permute.xlu0 1
    %4042 = vperm.xlu0 %4041, %v133
    %v4043 = vpop.permute.xlu0 %4042
    %4045 = vset.pattern.permute.xlu0 1
    %4046 = vperm.xlu0 %4045, %v134
    %v4047 = vpop.permute.xlu0 %4046
    %4049 = vset.pattern.permute.xlu0 1
    %4050 = vperm.xlu0 %4049, %v135
    %v4051 = vpop.permute.xlu0 %4050
    %4053 = vset.pattern.permute.xlu0 1
    %4054 = vperm.xlu0 %4053, %v136
    %v4055 = vpop.permute.xlu0 %4054
    %4057 = vset.pattern.permute.xlu0 1
    %4058 = vperm.xlu0 %4057, %v137
    %v4059 = vpop.permute.xlu0 %4058
    %4061 = vset.pattern.permute.xlu0 1
    %4062 = vperm.xlu0 %4061, %v138
    %v4063 = vpop.permute.xlu0 %4062
    %4065 = vset.pattern.permute.xlu0 1
    %4066 = vperm.xlu0 %4065, %v139
    %v4067 = vpop.permute.xlu0 %4066
    %4069 = vset.pattern.permute.xlu0 1
    %4070 = vperm.xlu0 %4069, %v140
    %v4071 = vpop.permute.xlu0 %4070
    %4073 = vset.pattern.permute.xlu0 1
    %4074 = vperm.xlu0 %4073, %v141
    %v4075 = vpop.permute.xlu0 %4074
    %4077 = vset.pattern.permute.xlu0 1
    %4078 = vperm.xlu0 %4077, %v142
    %v4079 = vpop.permute.xlu0 %4078
    %4081 = vset.pattern.permute.xlu0 1
    %4082 = vperm.xlu0 %4081, %v143
    %v4083 = vpop.permute.xlu0 %4082
    %4085 = vset.pattern.permute.xlu0 1
    %4086 = vperm.xlu0 %4085, %v144
    %v4087 = vpop.permute.xlu0 %4086
    %4089 = vset.pattern.permute.xlu0 1
    %4090 = vperm.xlu0 %4089, %v145
    %v4091 = vpop.permute.xlu0 %4090
    %4093 = vset.pattern.permute.xlu0 1
    %4094 = vperm.xlu0 %4093, %v146
    %v4095 = vpop.permute.xlu0 %4094
    %4097 = vset.pattern.permute.xlu0 1
    %4098 = vperm.xlu0 %4097, %v147
    %v4099 = vpop.permute.xlu0 %4098
    %4101 = vset.pattern.permute.xlu0 1
    %4102 = vperm.xlu0 %4101, %v148
    %v4103 = vpop.permute.xlu0 %4102
    %4105 = vset.pattern.permute.xlu0 1
    %4106 = vperm.xlu0 %4105, %v149
    %v4107 = vpop.permute.xlu0 %4106
    %4109 = vset.pattern.permute.xlu0 1
    %4110 = vperm.xlu0 %4109, %v150
    %v4111 = vpop.permute.xlu0 %4110
    %4113 = vset.pattern.permute.xlu0 1
    %4114 = vperm.xlu0 %4113, %v151
    %v4115 = vpop.permute.xlu0 %4114
    %4117 = vset.pattern.permute.xlu0 1
    %4118 = vperm.xlu0 %4117, %v152
    %v4119 = vpop.permute.xlu0 %4118
    %v4121 = vmax.f32 %v3611, %v17
    %v4122 = vmax.f32 %v3615, %v17
    %v4123 = vmax.f32 %v3619, %v17
    %v4124 = vmax.f32 %v3623, %v17
    %v4125 = vmax.f32 %v3627, %v17
    %v4126 = vmax.f32 %v3631, %v17
    %v4127 = vmax.f32 %v3635, %v17
    %v4128 = vmax.f32 %v3639, %v17
    %v4129 = vmax.f32 %v3643, %v17
    %v4130 = vmax.f32 %v3647, %v17
    %v4131 = vmax.f32 %v3651, %v17
    %v4132 = vmax.f32 %v3655, %v17
    %v4133 = vmax.f32 %v3659, %v17
    %v4134 = vmax.f32 %v3663, %v17
    %v4135 = vmax.f32 %v3667, %v17
    %v4136 = vmax.f32 %v3671, %v17
    %v4137 = vmax.f32 %v3675, %v17
    %v4138 = vmax.f32 %v3679, %v17
    %v4139 = vmax.f32 %v3683, %v17
    %v4140 = vmax.f32 %v3687, %v17
    %v4141 = vmax.f32 %v3691, %v17
    %v4142 = vmax.f32 %v3695, %v17
    %v4143 = vmax.f32 %v3699, %v17
    %v4144 = vmax.f32 %v3703, %v17
    %v4145 = vmax.f32 %v3707, %v17
    %v4146 = vmax.f32 %v3711, %v17
    %v4147 = vmax.f32 %v3715, %v17
    %v4148 = vmax.f32 %v3719, %v17
    %v4149 = vmax.f32 %v3723, %v17
    %v4150 = vmax.f32 %v3727, %v17
    %v4151 = vmax.f32 %v3731, %v17
    %v4152 = vmax.f32 %v3735, %v17
    %v4153 = vmax.f32 %v3739, %v17
    %v4154 = vmax.f32 %v3743, %v17
    %v4155 = vmax.f32 %v3747, %v17
    %v4156 = vmax.f32 %v3751, %v17
    %v4157 = vmax.f32 %v3755, %v17
    %v4158 = vmax.f32 %v3759, %v17
    %v4159 = vmax.f32 %v3763, %v17
    %v4160 = vmax.f32 %v3767, %v17
    %v4161 = vmax.f32 %v3771, %v17
    %v4162 = vmax.f32 %v3775, %v17
    %v4163 = vmax.f32 %v3779, %v17
    %v4164 = vmax.f32 %v3783, %v17
    %v4165 = vmax.f32 %v3787, %v17
    %v4166 = vmax.f32 %v3791, %v17
    %v4167 = vmax.f32 %v3795, %v17
    %v4168 = vmax.f32 %v3799, %v17
    %v4169 = vmax.f32 %v3803, %v17
    %v4170 = vmax.f32 %v3807, %v17
    %v4171 = vmax.f32 %v3811, %v17
    %v4172 = vmax.f32 %v3815, %v17
    %v4173 = vmax.f32 %v3819, %v17
    %v4174 = vmax.f32 %v3823, %v17
    %v4175 = vmax.f32 %v3827, %v17
    %v4176 = vmax.f32 %v3831, %v17
    %v4177 = vmax.f32 %v3835, %v17
    %v4178 = vmax.f32 %v3839, %v17
    %v4179 = vmax.f32 %v3843, %v17
    %v4180 = vmax.f32 %v3847, %v17
    %v4181 = vmax.f32 %v3851, %v17
    %v4182 = vmax.f32 %v3855, %v17
    %v4183 = vmax.f32 %v3859, %v17
    %v4184 = vmax.f32 %v3863, %v17
    %v4185 = vmax.f32 %v3867, %v17
    %v4186 = vmax.f32 %v3871, %v17
    %v4187 = vmax.f32 %v3875, %v17
    %v4188 = vmax.f32 %v3879, %v17
    %v4189 = vmax.f32 %v3883, %v17
    %v4190 = vmax.f32 %v3887, %v17
    %v4191 = vmax.f32 %v3891, %v17
    %v4192 = vmax.f32 %v3895, %v17
    %v4193 = vmax.f32 %v3899, %v17
    %v4194 = vmax.f32 %v3903, %v17
    %v4195 = vmax.f32 %v3907, %v17
    %v4196 = vmax.f32 %v3911, %v17
    %v4197 = vmax.f32 %v3915, %v17
    %v4198 = vmax.f32 %v3919, %v17
    %v4199 = vmax.f32 %v3923, %v17
    %v4200 = vmax.f32 %v3927, %v17
    %v4201 = vmax.f32 %v3931, %v17
    %v4202 = vmax.f32 %v3935, %v17
    %v4203 = vmax.f32 %v3939, %v17
    %v4204 = vmax.f32 %v3943, %v17
    %v4205 = vmax.f32 %v3947, %v17
    %v4206 = vmax.f32 %v3951, %v17
    %v4207 = vmax.f32 %v3955, %v17
    %v4208 = vmax.f32 %v3959, %v17
    %v4209 = vmax.f32 %v3963, %v17
    %v4210 = vmax.f32 %v3967, %v17
    %v4211 = vmax.f32 %v3971, %v17
    %v4212 = vmax.f32 %v3975, %v17
    %v4213 = vmax.f32 %v3979, %v17
    %v4214 = vmax.f32 %v3983, %v17
    %v4215 = vmax.f32 %v3987, %v17
    %v4216 = vmax.f32 %v3991, %v17
    %v4217 = vmax.f32 %v3995, %v17
    %v4218 = vmax.f32 %v3999, %v17
    %v4219 = vmax.f32 %v4003, %v17
    %v4220 = vmax.f32 %v4007, %v17
    %v4221 = vmax.f32 %v4011, %v17
    %v4222 = vmax.f32 %v4015, %v17
    %v4223 = vmax.f32 %v4019, %v17
    %v4224 = vmax.f32 %v4023, %v17
    %v4225 = vmax.f32 %v4027, %v17
    %v4226 = vmax.f32 %v4031, %v17
    %v4227 = vmax.f32 %v4035, %v17
    %v4228 = vmax.f32 %v4039, %v17
    %v4229 = vmax.f32 %v4043, %v17
    %v4230 = vmax.f32 %v4047, %v17
    %v4231 = vmax.f32 %v4051, %v17
    %v4232 = vmax.f32 %v4055, %v17
    %v4233 = vmax.f32 %v4059, %v17
    %v4234 = vmax.f32 %v4063, %v17
    %v4235 = vmax.f32 %v4067, %v17
    %v4236 = vmax.f32 %v4071, %v17
    %v4237 = vmax.f32 %v4075, %v17
    %v4238 = vmax.f32 %v4079, %v17
    %v4239 = vmax.f32 %v4083, %v17
    %v4240 = vmax.f32 %v4087, %v17
    %v4241 = vmax.f32 %v4091, %v17
    %v4242 = vmax.f32 %v4095, %v17
    %v4243 = vmax.f32 %v4099, %v17
    %v4244 = vmax.f32 %v4103, %v17
    %v4245 = vmax.f32 %v4107, %v17
    %v4246 = vmax.f32 %v4111, %v17
    %v4247 = vmax.f32 %v4115, %v17
    %v4248 = vmax.f32 %v4119, %v17
    %v4249 = vsub.f32 %v3481, %v4121
    %v4250 = vsub.f32 %v3482, %v4122
    %v4251 = vsub.f32 %v3483, %v4123
    %v4252 = vsub.f32 %v3484, %v4124
    %v4253 = vsub.f32 %v3485, %v4125
    %v4254 = vsub.f32 %v3486, %v4126
    %v4255 = vsub.f32 %v3487, %v4127
    %v4256 = vsub.f32 %v3488, %v4128
    %v4257 = vsub.f32 %v3489, %v4129
    %v4258 = vsub.f32 %v3490, %v4130
    %v4259 = vsub.f32 %v3491, %v4131
    %v4260 = vsub.f32 %v3492, %v4132
    %v4261 = vsub.f32 %v3493, %v4133
    %v4262 = vsub.f32 %v3494, %v4134
    %v4263 = vsub.f32 %v3495, %v4135
    %v4264 = vsub.f32 %v3496, %v4136
    %v4265 = vsub.f32 %v3497, %v4137
    %v4266 = vsub.f32 %v3498, %v4138
    %v4267 = vsub.f32 %v3499, %v4139
    %v4268 = vsub.f32 %v3500, %v4140
    %v4269 = vsub.f32 %v3501, %v4141
    %v4270 = vsub.f32 %v3502, %v4142
    %v4271 = vsub.f32 %v3503, %v4143
    %v4272 = vsub.f32 %v3504, %v4144
    %v4273 = vsub.f32 %v3505, %v4145
    %v4274 = vsub.f32 %v3506, %v4146
    %v4275 = vsub.f32 %v3507, %v4147
    %v4276 = vsub.f32 %v3508, %v4148
    %v4277 = vsub.f32 %v3509, %v4149
    %v4278 = vsub.f32 %v3510, %v4150
    %v4279 = vsub.f32 %v3511, %v4151
    %v4280 = vsub.f32 %v3512, %v4152
    %v4281 = vsub.f32 %v3513, %v4153
    %v4282 = vsub.f32 %v3514, %v4154
    %v4283 = vsub.f32 %v3515, %v4155
    %v4284 = vsub.f32 %v3516, %v4156
    %v4285 = vsub.f32 %v3517, %v4157
    %v4286 = vsub.f32 %v3518, %v4158
    %v4287 = vsub.f32 %v3519, %v4159
    %v4288 = vsub.f32 %v3520, %v4160
    %v4289 = vsub.f32 %v3521, %v4161
    %v4290 = vsub.f32 %v3522, %v4162
    %v4291 = vsub.f32 %v3523, %v4163
    %v4292 = vsub.f32 %v3524, %v4164
    %v4293 = vsub.f32 %v3525, %v4165
    %v4294 = vsub.f32 %v3526, %v4166
    %v4295 = vsub.f32 %v3527, %v4167
    %v4296 = vsub.f32 %v3528, %v4168
    %v4297 = vsub.f32 %v3529, %v4169
    %v4298 = vsub.f32 %v3530, %v4170
    %v4299 = vsub.f32 %v3531, %v4171
    %v4300 = vsub.f32 %v3532, %v4172
    %v4301 = vsub.f32 %v3533, %v4173
    %v4302 = vsub.f32 %v3534, %v4174
    %v4303 = vsub.f32 %v3535, %v4175
    %v4304 = vsub.f32 %v3536, %v4176
    %v4305 = vsub.f32 %v3537, %v4177
    %v4306 = vsub.f32 %v3538, %v4178
    %v4307 = vsub.f32 %v3539, %v4179
    %v4308 = vsub.f32 %v3540, %v4180
    %v4309 = vsub.f32 %v3541, %v4181
    %v4310 = vsub.f32 %v3542, %v4182
    %v4311 = vsub.f32 %v3543, %v4183
    %v4312 = vsub.f32 %v3544, %v4184
    %v4313 = vsub.f32 %v3545, %v4185
    %v4314 = vsub.f32 %v3546, %v4186
    %v4315 = vsub.f32 %v3547, %v4187
    %v4316 = vsub.f32 %v3548, %v4188
    %v4317 = vsub.f32 %v3549, %v4189
    %v4318 = vsub.f32 %v3550, %v4190
    %v4319 = vsub.f32 %v3551, %v4191
    %v4320 = vsub.f32 %v3552, %v4192
    %v4321 = vsub.f32 %v3553, %v4193
    %v4322 = vsub.f32 %v3554, %v4194
    %v4323 = vsub.f32 %v3555, %v4195
    %v4324 = vsub.f32 %v3556, %v4196
    %v4325 = vsub.f32 %v3557, %v4197
    %v4326 = vsub.f32 %v3558, %v4198
    %v4327 = vsub.f32 %v3559, %v4199
    %v4328 = vsub.f32 %v3560, %v4200
    %v4329 = vsub.f32 %v3561, %v4201
    %v4330 = vsub.f32 %v3562, %v4202
    %v4331 = vsub.f32 %v3563, %v4203
    %v4332 = vsub.f32 %v3564, %v4204
    %v4333 = vsub.f32 %v3565, %v4205
    %v4334 = vsub.f32 %v3566, %v4206
    %v4335 = vsub.f32 %v3567, %v4207
    %v4336 = vsub.f32 %v3568, %v4208
    %v4337 = vsub.f32 %v3569, %v4209
    %v4338 = vsub.f32 %v3570, %v4210
    %v4339 = vsub.f32 %v3571, %v4211
    %v4340 = vsub.f32 %v3572, %v4212
    %v4341 = vsub.f32 %v3573, %v4213
    %v4342 = vsub.f32 %v3574, %v4214
    %v4343 = vsub.f32 %v3575, %v4215
    %v4344 = vsub.f32 %v3576, %v4216
    %v4345 = vsub.f32 %v3577, %v4217
    %v4346 = vsub.f32 %v3578, %v4218
    %v4347 = vsub.f32 %v3579, %v4219
    %v4348 = vsub.f32 %v3580, %v4220
    %v4349 = vsub.f32 %v3581, %v4221
    %v4350 = vsub.f32 %v3582, %v4222
    %v4351 = vsub.f32 %v3583, %v4223
    %v4352 = vsub.f32 %v3584, %v4224
    %v4353 = vsub.f32 %v3585, %v4225
    %v4354 = vsub.f32 %v3586, %v4226
    %v4355 = vsub.f32 %v3587, %v4227
    %v4356 = vsub.f32 %v3588, %v4228
    %v4357 = vsub.f32 %v3589, %v4229
    %v4358 = vsub.f32 %v3590, %v4230
    %v4359 = vsub.f32 %v3591, %v4231
    %v4360 = vsub.f32 %v3592, %v4232
    %v4361 = vsub.f32 %v3593, %v4233
    %v4362 = vsub.f32 %v3594, %v4234
    %v4363 = vsub.f32 %v3595, %v4235
    %v4364 = vsub.f32 %v3596, %v4236
    %v4365 = vsub.f32 %v3597, %v4237
    %v4366 = vsub.f32 %v3598, %v4238
    %v4367 = vsub.f32 %v3599, %v4239
    %v4368 = vsub.f32 %v3600, %v4240
    %v4369 = vsub.f32 %v3601, %v4241
    %v4370 = vsub.f32 %v3602, %v4242
    %v4371 = vsub.f32 %v3603, %v4243
    %v4372 = vsub.f32 %v3604, %v4244
    %v4373 = vsub.f32 %v3605, %v4245
    %v4374 = vsub.f32 %v3606, %v4246
    %v4375 = vsub.f32 %v3607, %v4247
    %v4376 = vsub.f32 %v3608, %v4248
    %v4377 = vmax.f32 %v4249, 0.0
    %v4378 = vmax.f32 %v4250, 0.0
    %v4379 = vmax.f32 %v4251, 0.0
    %v4380 = vmax.f32 %v4252, 0.0
    %v4381 = vmax.f32 %v4253, 0.0
    %v4382 = vmax.f32 %v4254, 0.0
    %v4383 = vmax.f32 %v4255, 0.0
    %v4384 = vmax.f32 %v4256, 0.0
    %v4385 = vmax.f32 %v4257, 0.0
    %v4386 = vmax.f32 %v4258, 0.0
    %v4387 = vmax.f32 %v4259, 0.0
    %v4388 = vmax.f32 %v4260, 0.0
    %v4389 = vmax.f32 %v4261, 0.0
    %v4390 = vmax.f32 %v4262, 0.0
    %v4391 = vmax.f32 %v4263, 0.0
    %v4392 = vmax.f32 %v4264, 0.0
    %v4393 = vmax.f32 %v4265, 0.0
    %v4394 = vmax.f32 %v4266, 0.0
    %v4395 = vmax.f32 %v4267, 0.0
    %v4396 = vmax.f32 %v4268, 0.0
    %v4397 = vmax.f32 %v4269, 0.0
    %v4398 = vmax.f32 %v4270, 0.0
    %v4399 = vmax.f32 %v4271, 0.0
    %v4400 = vmax.f32 %v4272, 0.0
    %v4401 = vmax.f32 %v4273, 0.0
    %v4402 = vmax.f32 %v4274, 0.0
    %v4403 = vmax.f32 %v4275, 0.0
    %v4404 = vmax.f32 %v4276, 0.0
    %v4405 = vmax.f32 %v4277, 0.0
    %v4406 = vmax.f32 %v4278, 0.0
    %v4407 = vmax.f32 %v4279, 0.0
    %v4408 = vmax.f32 %v4280, 0.0
    %v4409 = vmax.f32 %v4281, 0.0
    %v4410 = vmax.f32 %v4282, 0.0
    %v4411 = vmax.f32 %v4283, 0.0
    %v4412 = vmax.f32 %v4284, 0.0
    %v4413 = vmax.f32 %v4285, 0.0
    %v4414 = vmax.f32 %v4286, 0.0
    %v4415 = vmax.f32 %v4287, 0.0
    %v4416 = vmax.f32 %v4288, 0.0
    %v4417 = vmax.f32 %v4289, 0.0
    %v4418 = vmax.f32 %v4290, 0.0
    %v4419 = vmax.f32 %v4291, 0.0
    %v4420 = vmax.f32 %v4292, 0.0
    %v4421 = vmax.f32 %v4293, 0.0
    %v4422 = vmax.f32 %v4294, 0.0
    %v4423 = vmax.f32 %v4295, 0.0
    %v4424 = vmax.f32 %v4296, 0.0
    %v4425 = vmax.f32 %v4297, 0.0
    %v4426 = vmax.f32 %v4298, 0.0
    %v4427 = vmax.f32 %v4299, 0.0
    %v4428 = vmax.f32 %v4300, 0.0
    %v4429 = vmax.f32 %v4301, 0.0
    %v4430 = vmax.f32 %v4302, 0.0
    %v4431 = vmax.f32 %v4303, 0.0
    %v4432 = vmax.f32 %v4304, 0.0
    %v4433 = vmax.f32 %v4305, 0.0
    %v4434 = vmax.f32 %v4306, 0.0
    %v4435 = vmax.f32 %v4307, 0.0
    %v4436 = vmax.f32 %v4308, 0.0
    %v4437 = vmax.f32 %v4309, 0.0
    %v4438 = vmax.f32 %v4310, 0.0
    %v4439 = vmax.f32 %v4311, 0.0
    %v4440 = vmax.f32 %v4312, 0.0
    %v4441 = vmax.f32 %v4313, 0.0
    %v4442 = vmax.f32 %v4314, 0.0
    %v4443 = vmax.f32 %v4315, 0.0
    %v4444 = vmax.f32 %v4316, 0.0
    %v4445 = vmax.f32 %v4317, 0.0
    %v4446 = vmax.f32 %v4318, 0.0
    %v4447 = vmax.f32 %v4319, 0.0
    %v4448 = vmax.f32 %v4320, 0.0
    %v4449 = vmax.f32 %v4321, 0.0
    %v4450 = vmax.f32 %v4322, 0.0
    %v4451 = vmax.f32 %v4323, 0.0
    %v4452 = vmax.f32 %v4324, 0.0
    %v4453 = vmax.f32 %v4325, 0.0
    %v4454 = vmax.f32 %v4326, 0.0
    %v4455 = vmax.f32 %v4327, 0.0
    %v4456 = vmax.f32 %v4328, 0.0
    %v4457 = vmax.f32 %v4329, 0.0
    %v4458 = vmax.f32 %v4330, 0.0
    %v4459 = vmax.f32 %v4331, 0.0
    %v4460 = vmax.f32 %v4332, 0.0
    %v4461 = vmax.f32 %v4333, 0.0
    %v4462 = vmax.f32 %v4334, 0.0
    %v4463 = vmax.f32 %v4335, 0.0
    %v4464 = vmax.f32 %v4336, 0.0
    %v4465 = vmax.f32 %v4337, 0.0
    %v4466 = vmax.f32 %v4338, 0.0
    %v4467 = vmax.f32 %v4339, 0.0
    %v4468 = vmax.f32 %v4340, 0.0
    %v4469 = vmax.f32 %v4341, 0.0
    %v4470 = vmax.f32 %v4342, 0.0
    %v4471 = vmax.f32 %v4343, 0.0
    %v4472 = vmax.f32 %v4344, 0.0
    %v4473 = vmax.f32 %v4345, 0.0
    %v4474 = vmax.f32 %v4346, 0.0
    %v4475 = vmax.f32 %v4347, 0.0
    %v4476 = vmax.f32 %v4348, 0.0
    %v4477 = vmax.f32 %v4349, 0.0
    %v4478 = vmax.f32 %v4350, 0.0
    %v4479 = vmax.f32 %v4351, 0.0
    %v4480 = vmax.f32 %v4352, 0.0
    %v4481 = vmax.f32 %v4353, 0.0
    %v4482 = vmax.f32 %v4354, 0.0
    %v4483 = vmax.f32 %v4355, 0.0
    %v4484 = vmax.f32 %v4356, 0.0
    %v4485 = vmax.f32 %v4357, 0.0
    %v4486 = vmax.f32 %v4358, 0.0
    %v4487 = vmax.f32 %v4359, 0.0
    %v4488 = vmax.f32 %v4360, 0.0
    %v4489 = vmax.f32 %v4361, 0.0
    %v4490 = vmax.f32 %v4362, 0.0
    %v4491 = vmax.f32 %v4363, 0.0
    %v4492 = vmax.f32 %v4364, 0.0
    %v4493 = vmax.f32 %v4365, 0.0
    %v4494 = vmax.f32 %v4366, 0.0
    %v4495 = vmax.f32 %v4367, 0.0
    %v4496 = vmax.f32 %v4368, 0.0
    %v4497 = vmax.f32 %v4369, 0.0
    %v4498 = vmax.f32 %v4370, 0.0
    %v4499 = vmax.f32 %v4371, 0.0
    %v4500 = vmax.f32 %v4372, 0.0
    %v4501 = vmax.f32 %v4373, 0.0
    %v4502 = vmax.f32 %v4374, 0.0
    %v4503 = vmax.f32 %v4375, 0.0
    %v4504 = vmax.f32 %v4376, 0.0
    %v4505 = vmul.f32 %v2841, %v4377
    %v4506 = vmul.f32 %v2842, %v4378
    %v4507 = vmul.f32 %v2843, %v4379
    %v4508 = vmul.f32 %v2844, %v4380
    %v4509 = vmul.f32 %v2845, %v4381
    %v4510 = vmul.f32 %v2846, %v4382
    %v4511 = vmul.f32 %v2847, %v4383
    %v4512 = vmul.f32 %v2848, %v4384
    %v4513 = vmul.f32 %v2849, %v4385
    %v4514 = vmul.f32 %v2850, %v4386
    %v4515 = vmul.f32 %v2851, %v4387
    %v4516 = vmul.f32 %v2852, %v4388
    %v4517 = vmul.f32 %v2853, %v4389
    %v4518 = vmul.f32 %v2854, %v4390
    %v4519 = vmul.f32 %v2855, %v4391
    %v4520 = vmul.f32 %v2856, %v4392
    %v4521 = vmul.f32 %v2857, %v4393
    %v4522 = vmul.f32 %v2858, %v4394
    %v4523 = vmul.f32 %v2859, %v4395
    %v4524 = vmul.f32 %v2860, %v4396
    %v4525 = vmul.f32 %v2861, %v4397
    %v4526 = vmul.f32 %v2862, %v4398
    %v4527 = vmul.f32 %v2863, %v4399
    %v4528 = vmul.f32 %v2864, %v4400
    %v4529 = vmul.f32 %v2865, %v4401
    %v4530 = vmul.f32 %v2866, %v4402
    %v4531 = vmul.f32 %v2867, %v4403
    %v4532 = vmul.f32 %v2868, %v4404
    %v4533 = vmul.f32 %v2869, %v4405
    %v4534 = vmul.f32 %v2870, %v4406
    %v4535 = vmul.f32 %v2871, %v4407
    %v4536 = vmul.f32 %v2872, %v4408
    %v4537 = vmul.f32 %v2873, %v4409
    %v4538 = vmul.f32 %v2874, %v4410
    %v4539 = vmul.f32 %v2875, %v4411
    %v4540 = vmul.f32 %v2876, %v4412
    %v4541 = vmul.f32 %v2877, %v4413
    %v4542 = vmul.f32 %v2878, %v4414
    %v4543 = vmul.f32 %v2879, %v4415
    %v4544 = vmul.f32 %v2880, %v4416
    %v4545 = vmul.f32 %v2881, %v4417
    %v4546 = vmul.f32 %v2882, %v4418
    %v4547 = vmul.f32 %v2883, %v4419
    %v4548 = vmul.f32 %v2884, %v4420
    %v4549 = vmul.f32 %v2885, %v4421
    %v4550 = vmul.f32 %v2886, %v4422
    %v4551 = vmul.f32 %v2887, %v4423
    %v4552 = vmul.f32 %v2888, %v4424
    %v4553 = vmul.f32 %v2889, %v4425
    %v4554 = vmul.f32 %v2890, %v4426
    %v4555 = vmul.f32 %v2891, %v4427
    %v4556 = vmul.f32 %v2892, %v4428
    %v4557 = vmul.f32 %v2893, %v4429
    %v4558 = vmul.f32 %v2894, %v4430
    %v4559 = vmul.f32 %v2895, %v4431
    %v4560 = vmul.f32 %v2896, %v4432
    %v4561 = vmul.f32 %v2897, %v4433
    %v4562 = vmul.f32 %v2898, %v4434
    %v4563 = vmul.f32 %v2899, %v4435
    %v4564 = vmul.f32 %v2900, %v4436
    %v4565 = vmul.f32 %v2901, %v4437
    %v4566 = vmul.f32 %v2902, %v4438
    %v4567 = vmul.f32 %v2903, %v4439
    %v4568 = vmul.f32 %v2904, %v4440
    %v4569 = vmul.f32 %v2905, %v4441
    %v4570 = vmul.f32 %v2906, %v4442
    %v4571 = vmul.f32 %v2907, %v4443
    %v4572 = vmul.f32 %v2908, %v4444
    %v4573 = vmul.f32 %v2909, %v4445
    %v4574 = vmul.f32 %v2910, %v4446
    %v4575 = vmul.f32 %v2911, %v4447
    %v4576 = vmul.f32 %v2912, %v4448
    %v4577 = vmul.f32 %v2913, %v4449
    %v4578 = vmul.f32 %v2914, %v4450
    %v4579 = vmul.f32 %v2915, %v4451
    %v4580 = vmul.f32 %v2916, %v4452
    %v4581 = vmul.f32 %v2917, %v4453
    %v4582 = vmul.f32 %v2918, %v4454
    %v4583 = vmul.f32 %v2919, %v4455
    %v4584 = vmul.f32 %v2920, %v4456
    %v4585 = vmul.f32 %v2921, %v4457
    %v4586 = vmul.f32 %v2922, %v4458
    %v4587 = vmul.f32 %v2923, %v4459
    %v4588 = vmul.f32 %v2924, %v4460
    %v4589 = vmul.f32 %v2925, %v4461
    %v4590 = vmul.f32 %v2926, %v4462
    %v4591 = vmul.f32 %v2927, %v4463
    %v4592 = vmul.f32 %v2928, %v4464
    %v4593 = vmul.f32 %v2929, %v4465
    %v4594 = vmul.f32 %v2930, %v4466
    %v4595 = vmul.f32 %v2931, %v4467
    %v4596 = vmul.f32 %v2932, %v4468
    %v4597 = vmul.f32 %v2933, %v4469
    %v4598 = vmul.f32 %v2934, %v4470
    %v4599 = vmul.f32 %v2935, %v4471
    %v4600 = vmul.f32 %v2936, %v4472
    %v4601 = vmul.f32 %v2937, %v4473
    %v4602 = vmul.f32 %v2938, %v4474
    %v4603 = vmul.f32 %v2939, %v4475
    %v4604 = vmul.f32 %v2940, %v4476
    %v4605 = vmul.f32 %v2941, %v4477
    %v4606 = vmul.f32 %v2942, %v4478
    %v4607 = vmul.f32 %v2943, %v4479
    %v4608 = vmul.f32 %v2944, %v4480
    %v4609 = vmul.f32 %v2945, %v4481
    %v4610 = vmul.f32 %v2946, %v4482
    %v4611 = vmul.f32 %v2947, %v4483
    %v4612 = vmul.f32 %v2948, %v4484
    %v4613 = vmul.f32 %v2949, %v4485
    %v4614 = vmul.f32 %v2950, %v4486
    %v4615 = vmul.f32 %v2951, %v4487
    %v4616 = vmul.f32 %v2952, %v4488
    %v4617 = vmul.f32 %v2953, %v4489
    %v4618 = vmul.f32 %v2954, %v4490
    %v4619 = vmul.f32 %v2955, %v4491
    %v4620 = vmul.f32 %v2956, %v4492
    %v4621 = vmul.f32 %v2957, %v4493
    %v4622 = vmul.f32 %v2958, %v4494
    %v4623 = vmul.f32 %v2959, %v4495
    %v4624 = vmul.f32 %v2960, %v4496
    %v4625 = vmul.f32 %v2961, %v4497
    %v4626 = vmul.f32 %v2962, %v4498
    %v4627 = vmul.f32 %v2963, %v4499
    %v4628 = vmul.f32 %v2964, %v4500
    %v4629 = vmul.f32 %v2965, %v4501
    %v4630 = vmul.f32 %v2966, %v4502
    %v4631 = vmul.f32 %v2967, %v4503
    %v4632 = vmul.f32 %v2968, %v4504
    %4634 = vset.pattern.permute.xlu0 2
    %4635 = vperm.xlu0 %4634, %v1305
    %v4636 = vpop.permute.xlu0 %4635
    %4639 = vset.pattern.permute.xlu0 2
    %4640 = vperm.xlu0 %4639, %v1306
    %v4641 = vpop.permute.xlu0 %4640
    %4644 = vset.pattern.permute.xlu0 2
    %4645 = vperm.xlu0 %4644, %v1307
    %v4646 = vpop.permute.xlu0 %4645
    %4649 = vset.pattern.permute.xlu0 2
    %4650 = vperm.xlu0 %4649, %v1308
    %v4651 = vpop.permute.xlu0 %4650
    %4654 = vset.pattern.permute.xlu0 2
    %4655 = vperm.xlu0 %4654, %v1309
    %v4656 = vpop.permute.xlu0 %4655
    %4659 = vset.pattern.permute.xlu0 2
    %4660 = vperm.xlu0 %4659, %v1310
    %v4661 = vpop.permute.xlu0 %4660
    %4664 = vset.pattern.permute.xlu0 2
    %4665 = vperm.xlu0 %4664, %v1311
    %v4666 = vpop.permute.xlu0 %4665
    %4669 = vset.pattern.permute.xlu0 2
    %4670 = vperm.xlu0 %4669, %v1312
    %v4671 = vpop.permute.xlu0 %4670
    %4674 = vset.pattern.permute.xlu0 2
    %4675 = vperm.xlu0 %4674, %v1313
    %v4676 = vpop.permute.xlu0 %4675
    %4679 = vset.pattern.permute.xlu0 2
    %4680 = vperm.xlu0 %4679, %v1314
    %v4681 = vpop.permute.xlu0 %4680
    %4684 = vset.pattern.permute.xlu0 2
    %4685 = vperm.xlu0 %4684, %v1315
    %v4686 = vpop.permute.xlu0 %4685
    %4689 = vset.pattern.permute.xlu0 2
    %4690 = vperm.xlu0 %4689, %v1316
    %v4691 = vpop.permute.xlu0 %4690
    %4694 = vset.pattern.permute.xlu0 2
    %4695 = vperm.xlu0 %4694, %v1317
    %v4696 = vpop.permute.xlu0 %4695
    %4699 = vset.pattern.permute.xlu0 2
    %4700 = vperm.xlu0 %4699, %v1318
    %v4701 = vpop.permute.xlu0 %4700
    %4704 = vset.pattern.permute.xlu0 2
    %4705 = vperm.xlu0 %4704, %v1319
    %v4706 = vpop.permute.xlu0 %4705
    %4709 = vset.pattern.permute.xlu0 2
    %4710 = vperm.xlu0 %4709, %v1320
    %v4711 = vpop.permute.xlu0 %4710
    %4714 = vset.pattern.permute.xlu0 2
    %4715 = vperm.xlu0 %4714, %v1321
    %v4716 = vpop.permute.xlu0 %4715
    %4719 = vset.pattern.permute.xlu0 2
    %4720 = vperm.xlu0 %4719, %v1322
    %v4721 = vpop.permute.xlu0 %4720
    %4724 = vset.pattern.permute.xlu0 2
    %4725 = vperm.xlu0 %4724, %v1323
    %v4726 = vpop.permute.xlu0 %4725
    %4729 = vset.pattern.permute.xlu0 2
    %4730 = vperm.xlu0 %4729, %v1324
    %v4731 = vpop.permute.xlu0 %4730
    %4734 = vset.pattern.permute.xlu0 2
    %4735 = vperm.xlu0 %4734, %v1325
    %v4736 = vpop.permute.xlu0 %4735
    %4739 = vset.pattern.permute.xlu0 2
    %4740 = vperm.xlu0 %4739, %v1326
    %v4741 = vpop.permute.xlu0 %4740
    %4744 = vset.pattern.permute.xlu0 2
    %4745 = vperm.xlu0 %4744, %v1327
    %v4746 = vpop.permute.xlu0 %4745
    %4749 = vset.pattern.permute.xlu0 2
    %4750 = vperm.xlu0 %4749, %v1328
    %v4751 = vpop.permute.xlu0 %4750
    %4754 = vset.pattern.permute.xlu0 2
    %4755 = vperm.xlu0 %4754, %v1329
    %v4756 = vpop.permute.xlu0 %4755
    %4759 = vset.pattern.permute.xlu0 2
    %4760 = vperm.xlu0 %4759, %v1330
    %v4761 = vpop.permute.xlu0 %4760
    %4764 = vset.pattern.permute.xlu0 2
    %4765 = vperm.xlu0 %4764, %v1331
    %v4766 = vpop.permute.xlu0 %4765
    %4769 = vset.pattern.permute.xlu0 2
    %4770 = vperm.xlu0 %4769, %v1332
    %v4771 = vpop.permute.xlu0 %4770
    %4774 = vset.pattern.permute.xlu0 2
    %4775 = vperm.xlu0 %4774, %v1333
    %v4776 = vpop.permute.xlu0 %4775
    %4779 = vset.pattern.permute.xlu0 2
    %4780 = vperm.xlu0 %4779, %v1334
    %v4781 = vpop.permute.xlu0 %4780
    %4784 = vset.pattern.permute.xlu0 2
    %4785 = vperm.xlu0 %4784, %v1335
    %v4786 = vpop.permute.xlu0 %4785
    %4789 = vset.pattern.permute.xlu0 2
    %4790 = vperm.xlu0 %4789, %v1336
    %v4791 = vpop.permute.xlu0 %4790
    %4794 = vset.pattern.permute.xlu0 2
    %4795 = vperm.xlu0 %4794, %v1337
    %v4796 = vpop.permute.xlu0 %4795
    %4799 = vset.pattern.permute.xlu0 2
    %4800 = vperm.xlu0 %4799, %v1338
    %v4801 = vpop.permute.xlu0 %4800
    %4804 = vset.pattern.permute.xlu0 2
    %4805 = vperm.xlu0 %4804, %v1339
    %v4806 = vpop.permute.xlu0 %4805
    %4809 = vset.pattern.permute.xlu0 2
    %4810 = vperm.xlu0 %4809, %v1340
    %v4811 = vpop.permute.xlu0 %4810
    %4814 = vset.pattern.permute.xlu0 2
    %4815 = vperm.xlu0 %4814, %v1341
    %v4816 = vpop.permute.xlu0 %4815
    %4819 = vset.pattern.permute.xlu0 2
    %4820 = vperm.xlu0 %4819, %v1342
    %v4821 = vpop.permute.xlu0 %4820
    %4824 = vset.pattern.permute.xlu0 2
    %4825 = vperm.xlu0 %4824, %v1343
    %v4826 = vpop.permute.xlu0 %4825
    %4829 = vset.pattern.permute.xlu0 2
    %4830 = vperm.xlu0 %4829, %v1344
    %v4831 = vpop.permute.xlu0 %4830
    %4834 = vset.pattern.permute.xlu0 2
    %4835 = vperm.xlu0 %4834, %v1345
    %v4836 = vpop.permute.xlu0 %4835
    %4839 = vset.pattern.permute.xlu0 2
    %4840 = vperm.xlu0 %4839, %v1346
    %v4841 = vpop.permute.xlu0 %4840
    %4844 = vset.pattern.permute.xlu0 2
    %4845 = vperm.xlu0 %4844, %v1347
    %v4846 = vpop.permute.xlu0 %4845
    %4849 = vset.pattern.permute.xlu0 2
    %4850 = vperm.xlu0 %4849, %v1348
    %v4851 = vpop.permute.xlu0 %4850
    %4854 = vset.pattern.permute.xlu0 2
    %4855 = vperm.xlu0 %4854, %v1349
    %v4856 = vpop.permute.xlu0 %4855
    %4859 = vset.pattern.permute.xlu0 2
    %4860 = vperm.xlu0 %4859, %v1350
    %v4861 = vpop.permute.xlu0 %4860
    %4864 = vset.pattern.permute.xlu0 2
    %4865 = vperm.xlu0 %4864, %v1351
    %v4866 = vpop.permute.xlu0 %4865
    %4869 = vset.pattern.permute.xlu0 2
    %4870 = vperm.xlu0 %4869, %v1352
    %v4871 = vpop.permute.xlu0 %4870
    %4874 = vset.pattern.permute.xlu0 2
    %4875 = vperm.xlu0 %4874, %v1353
    %v4876 = vpop.permute.xlu0 %4875
    %4879 = vset.pattern.permute.xlu0 2
    %4880 = vperm.xlu0 %4879, %v1354
    %v4881 = vpop.permute.xlu0 %4880
    %4884 = vset.pattern.permute.xlu0 2
    %4885 = vperm.xlu0 %4884, %v1355
    %v4886 = vpop.permute.xlu0 %4885
    %4889 = vset.pattern.permute.xlu0 2
    %4890 = vperm.xlu0 %4889, %v1356
    %v4891 = vpop.permute.xlu0 %4890
    %4894 = vset.pattern.permute.xlu0 2
    %4895 = vperm.xlu0 %4894, %v1357
    %v4896 = vpop.permute.xlu0 %4895
    %4899 = vset.pattern.permute.xlu0 2
    %4900 = vperm.xlu0 %4899, %v1358
    %v4901 = vpop.permute.xlu0 %4900
    %4904 = vset.pattern.permute.xlu0 2
    %4905 = vperm.xlu0 %4904, %v1359
    %v4906 = vpop.permute.xlu0 %4905
    %4909 = vset.pattern.permute.xlu0 2
    %4910 = vperm.xlu0 %4909, %v1360
    %v4911 = vpop.permute.xlu0 %4910
    %4914 = vset.pattern.permute.xlu0 2
    %4915 = vperm.xlu0 %4914, %v1361
    %v4916 = vpop.permute.xlu0 %4915
    %4919 = vset.pattern.permute.xlu0 2
    %4920 = vperm.xlu0 %4919, %v1362
    %v4921 = vpop.permute.xlu0 %4920
    %4924 = vset.pattern.permute.xlu0 2
    %4925 = vperm.xlu0 %4924, %v1363
    %v4926 = vpop.permute.xlu0 %4925
    %4929 = vset.pattern.permute.xlu0 2
    %4930 = vperm.xlu0 %4929, %v1364
    %v4931 = vpop.permute.xlu0 %4930
    %4934 = vset.pattern.permute.xlu0 2
    %4935 = vperm.xlu0 %4934, %v1365
    %v4936 = vpop.permute.xlu0 %4935
    %4939 = vset.pattern.permute.xlu0 2
    %4940 = vperm.xlu0 %4939, %v1366
    %v4941 = vpop.permute.xlu0 %4940
    %4944 = vset.pattern.permute.xlu0 2
    %4945 = vperm.xlu0 %4944, %v1367
    %v4946 = vpop.permute.xlu0 %4945
    %4949 = vset.pattern.permute.xlu0 2
    %4950 = vperm.xlu0 %4949, %v1368
    %v4951 = vpop.permute.xlu0 %4950
    %4954 = vset.pattern.permute.xlu0 2
    %4955 = vperm.xlu0 %4954, %v1369
    %v4956 = vpop.permute.xlu0 %4955
    %4959 = vset.pattern.permute.xlu0 2
    %4960 = vperm.xlu0 %4959, %v1370
    %v4961 = vpop.permute.xlu0 %4960
    %4964 = vset.pattern.permute.xlu0 2
    %4965 = vperm.xlu0 %4964, %v1371
    %v4966 = vpop.permute.xlu0 %4965
    %4969 = vset.pattern.permute.xlu0 2
    %4970 = vperm.xlu0 %4969, %v1372
    %v4971 = vpop.permute.xlu0 %4970
    %4974 = vset.pattern.permute.xlu0 2
    %4975 = vperm.xlu0 %4974, %v1373
    %v4976 = vpop.permute.xlu0 %4975
    %4979 = vset.pattern.permute.xlu0 2
    %4980 = vperm.xlu0 %4979, %v1374
    %v4981 = vpop.permute.xlu0 %4980
    %4984 = vset.pattern.permute.xlu0 2
    %4985 = vperm.xlu0 %4984, %v1375
    %v4986 = vpop.permute.xlu0 %4985
    %4989 = vset.pattern.permute.xlu0 2
    %4990 = vperm.xlu0 %4989, %v1376
    %v4991 = vpop.permute.xlu0 %4990
    %4994 = vset.pattern.permute.xlu0 2
    %4995 = vperm.xlu0 %4994, %v1377
    %v4996 = vpop.permute.xlu0 %4995
    %4999 = vset.pattern.permute.xlu0 2
    %5000 = vperm.xlu0 %4999, %v1378
    %v5001 = vpop.permute.xlu0 %5000
    %5004 = vset.pattern.permute.xlu0 2
    %5005 = vperm.xlu0 %5004, %v1379
    %v5006 = vpop.permute.xlu0 %5005
    %5009 = vset.pattern.permute.xlu0 2
    %5010 = vperm.xlu0 %5009, %v1380
    %v5011 = vpop.permute.xlu0 %5010
    %5014 = vset.pattern.permute.xlu0 2
    %5015 = vperm.xlu0 %5014, %v1381
    %v5016 = vpop.permute.xlu0 %5015
    %5019 = vset.pattern.permute.xlu0 2
    %5020 = vperm.xlu0 %5019, %v1382
    %v5021 = vpop.permute.xlu0 %5020
    %5024 = vset.pattern.permute.xlu0 2
    %5025 = vperm.xlu0 %5024, %v1383
    %v5026 = vpop.permute.xlu0 %5025
    %5029 = vset.pattern.permute.xlu0 2
    %5030 = vperm.xlu0 %5029, %v1384
    %v5031 = vpop.permute.xlu0 %5030
    %5034 = vset.pattern.permute.xlu0 2
    %5035 = vperm.xlu0 %5034, %v1385
    %v5036 = vpop.permute.xlu0 %5035
    %5039 = vset.pattern.permute.xlu0 2
    %5040 = vperm.xlu0 %5039, %v1386
    %v5041 = vpop.permute.xlu0 %5040
    %5044 = vset.pattern.permute.xlu0 2
    %5045 = vperm.xlu0 %5044, %v1387
    %v5046 = vpop.permute.xlu0 %5045
    %5049 = vset.pattern.permute.xlu0 2
    %5050 = vperm.xlu0 %5049, %v1388
    %v5051 = vpop.permute.xlu0 %5050
    %5054 = vset.pattern.permute.xlu0 2
    %5055 = vperm.xlu0 %5054, %v1389
    %v5056 = vpop.permute.xlu0 %5055
    %5059 = vset.pattern.permute.xlu0 2
    %5060 = vperm.xlu0 %5059, %v1390
    %v5061 = vpop.permute.xlu0 %5060
    %5064 = vset.pattern.permute.xlu0 2
    %5065 = vperm.xlu0 %5064, %v1391
    %v5066 = vpop.permute.xlu0 %5065
    %5069 = vset.pattern.permute.xlu0 2
    %5070 = vperm.xlu0 %5069, %v1392
    %v5071 = vpop.permute.xlu0 %5070
    %5074 = vset.pattern.permute.xlu0 2
    %5075 = vperm.xlu0 %5074, %v1393
    %v5076 = vpop.permute.xlu0 %5075
    %5079 = vset.pattern.permute.xlu0 2
    %5080 = vperm.xlu0 %5079, %v1394
    %v5081 = vpop.permute.xlu0 %5080
    %5084 = vset.pattern.permute.xlu0 2
    %5085 = vperm.xlu0 %5084, %v1395
    %v5086 = vpop.permute.xlu0 %5085
    %5089 = vset.pattern.permute.xlu0 2
    %5090 = vperm.xlu0 %5089, %v1396
    %v5091 = vpop.permute.xlu0 %5090
    %5094 = vset.pattern.permute.xlu0 2
    %5095 = vperm.xlu0 %5094, %v1397
    %v5096 = vpop.permute.xlu0 %5095
    %5099 = vset.pattern.permute.xlu0 2
    %5100 = vperm.xlu0 %5099, %v1398
    %v5101 = vpop.permute.xlu0 %5100
    %5104 = vset.pattern.permute.xlu0 2
    %5105 = vperm.xlu0 %5104, %v1399
    %v5106 = vpop.permute.xlu0 %5105
    %5109 = vset.pattern.permute.xlu0 2
    %5110 = vperm.xlu0 %5109, %v1400
    %v5111 = vpop.permute.xlu0 %5110
    %5114 = vset.pattern.permute.xlu0 2
    %5115 = vperm.xlu0 %5114, %v1401
    %v5116 = vpop.permute.xlu0 %5115
    %5119 = vset.pattern.permute.xlu0 2
    %5120 = vperm.xlu0 %5119, %v1402
    %v5121 = vpop.permute.xlu0 %5120
    %5124 = vset.pattern.permute.xlu0 2
    %5125 = vperm.xlu0 %5124, %v1403
    %v5126 = vpop.permute.xlu0 %5125
    %5129 = vset.pattern.permute.xlu0 2
    %5130 = vperm.xlu0 %5129, %v1404
    %v5131 = vpop.permute.xlu0 %5130
    %5134 = vset.pattern.permute.xlu0 2
    %5135 = vperm.xlu0 %5134, %v1405
    %v5136 = vpop.permute.xlu0 %5135
    %5139 = vset.pattern.permute.xlu0 2
    %5140 = vperm.xlu0 %5139, %v1406
    %v5141 = vpop.permute.xlu0 %5140
    %5144 = vset.pattern.permute.xlu0 2
    %5145 = vperm.xlu0 %5144, %v1407
    %v5146 = vpop.permute.xlu0 %5145
    %5149 = vset.pattern.permute.xlu0 2
    %5150 = vperm.xlu0 %5149, %v1408
    %v5151 = vpop.permute.xlu0 %5150
    %5154 = vset.pattern.permute.xlu0 2
    %5155 = vperm.xlu0 %5154, %v1409
    %v5156 = vpop.permute.xlu0 %5155
    %5159 = vset.pattern.permute.xlu0 2
    %5160 = vperm.xlu0 %5159, %v1410
    %v5161 = vpop.permute.xlu0 %5160
    %5164 = vset.pattern.permute.xlu0 2
    %5165 = vperm.xlu0 %5164, %v1411
    %v5166 = vpop.permute.xlu0 %5165
    %5169 = vset.pattern.permute.xlu0 2
    %5170 = vperm.xlu0 %5169, %v1412
    %v5171 = vpop.permute.xlu0 %5170
    %5174 = vset.pattern.permute.xlu0 2
    %5175 = vperm.xlu0 %5174, %v1413
    %v5176 = vpop.permute.xlu0 %5175
    %5179 = vset.pattern.permute.xlu0 2
    %5180 = vperm.xlu0 %5179, %v1414
    %v5181 = vpop.permute.xlu0 %5180
    %5184 = vset.pattern.permute.xlu0 2
    %5185 = vperm.xlu0 %5184, %v1415
    %v5186 = vpop.permute.xlu0 %5185
    %5189 = vset.pattern.permute.xlu0 2
    %5190 = vperm.xlu0 %5189, %v1416
    %v5191 = vpop.permute.xlu0 %5190
    %5194 = vset.pattern.permute.xlu0 2
    %5195 = vperm.xlu0 %5194, %v1417
    %v5196 = vpop.permute.xlu0 %5195
    %5199 = vset.pattern.permute.xlu0 2
    %5200 = vperm.xlu0 %5199, %v1418
    %v5201 = vpop.permute.xlu0 %5200
    %5204 = vset.pattern.permute.xlu0 2
    %5205 = vperm.xlu0 %5204, %v1419
    %v5206 = vpop.permute.xlu0 %5205
    %5209 = vset.pattern.permute.xlu0 2
    %5210 = vperm.xlu0 %5209, %v1420
    %v5211 = vpop.permute.xlu0 %5210
    %5214 = vset.pattern.permute.xlu0 2
    %5215 = vperm.xlu0 %5214, %v1421
    %v5216 = vpop.permute.xlu0 %5215
    %5219 = vset.pattern.permute.xlu0 2
    %5220 = vperm.xlu0 %5219, %v1422
    %v5221 = vpop.permute.xlu0 %5220
    %5224 = vset.pattern.permute.xlu0 2
    %5225 = vperm.xlu0 %5224, %v1423
    %v5226 = vpop.permute.xlu0 %5225
    %5229 = vset.pattern.permute.xlu0 2
    %5230 = vperm.xlu0 %5229, %v1424
    %v5231 = vpop.permute.xlu0 %5230
    %5234 = vset.pattern.permute.xlu0 2
    %5235 = vperm.xlu0 %5234, %v1425
    %v5236 = vpop.permute.xlu0 %5235
    %5239 = vset.pattern.permute.xlu0 2
    %5240 = vperm.xlu0 %5239, %v1426
    %v5241 = vpop.permute.xlu0 %5240
    %5244 = vset.pattern.permute.xlu0 2
    %5245 = vperm.xlu0 %5244, %v1427
    %v5246 = vpop.permute.xlu0 %5245
    %5249 = vset.pattern.permute.xlu0 2
    %5250 = vperm.xlu0 %5249, %v1428
    %v5251 = vpop.permute.xlu0 %5250
    %5254 = vset.pattern.permute.xlu0 2
    %5255 = vperm.xlu0 %5254, %v1429
    %v5256 = vpop.permute.xlu0 %5255
    %5259 = vset.pattern.permute.xlu0 2
    %5260 = vperm.xlu0 %5259, %v1430
    %v5261 = vpop.permute.xlu0 %5260
    %5264 = vset.pattern.permute.xlu0 2
    %5265 = vperm.xlu0 %5264, %v1431
    %v5266 = vpop.permute.xlu0 %5265
    %5269 = vset.pattern.permute.xlu0 2
    %5270 = vperm.xlu0 %5269, %v1432
    %v5271 = vpop.permute.xlu0 %5270
    %v5273 = vadd.f32 %v4636, %v24
    %v5274 = vadd.f32 %v4641, %v24
    %v5275 = vadd.f32 %v4646, %v24
    %v5276 = vadd.f32 %v4651, %v24
    %v5277 = vadd.f32 %v4656, %v24
    %v5278 = vadd.f32 %v4661, %v24
    %v5279 = vadd.f32 %v4666, %v24
    %v5280 = vadd.f32 %v4671, %v24
    %v5281 = vadd.f32 %v4676, %v24
    %v5282 = vadd.f32 %v4681, %v24
    %v5283 = vadd.f32 %v4686, %v24
    %v5284 = vadd.f32 %v4691, %v24
    %v5285 = vadd.f32 %v4696, %v24
    %v5286 = vadd.f32 %v4701, %v24
    %v5287 = vadd.f32 %v4706, %v24
    %v5288 = vadd.f32 %v4711, %v24
    %v5289 = vadd.f32 %v4716, %v24
    %v5290 = vadd.f32 %v4721, %v24
    %v5291 = vadd.f32 %v4726, %v24
    %v5292 = vadd.f32 %v4731, %v24
    %v5293 = vadd.f32 %v4736, %v24
    %v5294 = vadd.f32 %v4741, %v24
    %v5295 = vadd.f32 %v4746, %v24
    %v5296 = vadd.f32 %v4751, %v24
    %v5297 = vadd.f32 %v4756, %v24
    %v5298 = vadd.f32 %v4761, %v24
    %v5299 = vadd.f32 %v4766, %v24
    %v5300 = vadd.f32 %v4771, %v24
    %v5301 = vadd.f32 %v4776, %v24
    %v5302 = vadd.f32 %v4781, %v24
    %v5303 = vadd.f32 %v4786, %v24
    %v5304 = vadd.f32 %v4791, %v24
    %v5305 = vadd.f32 %v4796, %v24
    %v5306 = vadd.f32 %v4801, %v24
    %v5307 = vadd.f32 %v4806, %v24
    %v5308 = vadd.f32 %v4811, %v24
    %v5309 = vadd.f32 %v4816, %v24
    %v5310 = vadd.f32 %v4821, %v24
    %v5311 = vadd.f32 %v4826, %v24
    %v5312 = vadd.f32 %v4831, %v24
    %v5313 = vadd.f32 %v4836, %v24
    %v5314 = vadd.f32 %v4841, %v24
    %v5315 = vadd.f32 %v4846, %v24
    %v5316 = vadd.f32 %v4851, %v24
    %v5317 = vadd.f32 %v4856, %v24
    %v5318 = vadd.f32 %v4861, %v24
    %v5319 = vadd.f32 %v4866, %v24
    %v5320 = vadd.f32 %v4871, %v24
    %v5321 = vadd.f32 %v4876, %v24
    %v5322 = vadd.f32 %v4881, %v24
    %v5323 = vadd.f32 %v4886, %v24
    %v5324 = vadd.f32 %v4891, %v24
    %v5325 = vadd.f32 %v4896, %v24
    %v5326 = vadd.f32 %v4901, %v24
    %v5327 = vadd.f32 %v4906, %v24
    %v5328 = vadd.f32 %v4911, %v24
    %v5329 = vadd.f32 %v4916, %v24
    %v5330 = vadd.f32 %v4921, %v24
    %v5331 = vadd.f32 %v4926, %v24
    %v5332 = vadd.f32 %v4931, %v24
    %v5333 = vadd.f32 %v4936, %v24
    %v5334 = vadd.f32 %v4941, %v24
    %v5335 = vadd.f32 %v4946, %v24
    %v5336 = vadd.f32 %v4951, %v24
    %v5337 = vadd.f32 %v4956, %v24
    %v5338 = vadd.f32 %v4961, %v24
    %v5339 = vadd.f32 %v4966, %v24
    %v5340 = vadd.f32 %v4971, %v24
    %v5341 = vadd.f32 %v4976, %v24
    %v5342 = vadd.f32 %v4981, %v24
    %v5343 = vadd.f32 %v4986, %v24
    %v5344 = vadd.f32 %v4991, %v24
    %v5345 = vadd.f32 %v4996, %v24
    %v5346 = vadd.f32 %v5001, %v24
    %v5347 = vadd.f32 %v5006, %v24
    %v5348 = vadd.f32 %v5011, %v24
    %v5349 = vadd.f32 %v5016, %v24
    %v5350 = vadd.f32 %v5021, %v24
    %v5351 = vadd.f32 %v5026, %v24
    %v5352 = vadd.f32 %v5031, %v24
    %v5353 = vadd.f32 %v5036, %v24
    %v5354 = vadd.f32 %v5041, %v24
    %v5355 = vadd.f32 %v5046, %v24
    %v5356 = vadd.f32 %v5051, %v24
    %v5357 = vadd.f32 %v5056, %v24
    %v5358 = vadd.f32 %v5061, %v24
    %v5359 = vadd.f32 %v5066, %v24
    %v5360 = vadd.f32 %v5071, %v24
    %v5361 = vadd.f32 %v5076, %v24
    %v5362 = vadd.f32 %v5081, %v24
    %v5363 = vadd.f32 %v5086, %v24
    %v5364 = vadd.f32 %v5091, %v24
    %v5365 = vadd.f32 %v5096, %v24
    %v5366 = vadd.f32 %v5101, %v24
    %v5367 = vadd.f32 %v5106, %v24
    %v5368 = vadd.f32 %v5111, %v24
    %v5369 = vadd.f32 %v5116, %v24
    %v5370 = vadd.f32 %v5121, %v24
    %v5371 = vadd.f32 %v5126, %v24
    %v5372 = vadd.f32 %v5131, %v24
    %v5373 = vadd.f32 %v5136, %v24
    %v5374 = vadd.f32 %v5141, %v24
    %v5375 = vadd.f32 %v5146, %v24
    %v5376 = vadd.f32 %v5151, %v24
    %v5377 = vadd.f32 %v5156, %v24
    %v5378 = vadd.f32 %v5161, %v24
    %v5379 = vadd.f32 %v5166, %v24
    %v5380 = vadd.f32 %v5171, %v24
    %v5381 = vadd.f32 %v5176, %v24
    %v5382 = vadd.f32 %v5181, %v24
    %v5383 = vadd.f32 %v5186, %v24
    %v5384 = vadd.f32 %v5191, %v24
    %v5385 = vadd.f32 %v5196, %v24
    %v5386 = vadd.f32 %v5201, %v24
    %v5387 = vadd.f32 %v5206, %v24
    %v5388 = vadd.f32 %v5211, %v24
    %v5389 = vadd.f32 %v5216, %v24
    %v5390 = vadd.f32 %v5221, %v24
    %v5391 = vadd.f32 %v5226, %v24
    %v5392 = vadd.f32 %v5231, %v24
    %v5393 = vadd.f32 %v5236, %v24
    %v5394 = vadd.f32 %v5241, %v24
    %v5395 = vadd.f32 %v5246, %v24
    %v5396 = vadd.f32 %v5251, %v24
    %v5397 = vadd.f32 %v5256, %v24
    %v5398 = vadd.f32 %v5261, %v24
    %v5399 = vadd.f32 %v5266, %v24
    %v5400 = vadd.f32 %v5271, %v24
    %v5401 = vsub.f32 %v5273, %v4505
    %v5402 = vsub.f32 %v5274, %v4506
    %v5403 = vsub.f32 %v5275, %v4507
    %v5404 = vsub.f32 %v5276, %v4508
    %v5405 = vsub.f32 %v5277, %v4509
    %v5406 = vsub.f32 %v5278, %v4510
    %v5407 = vsub.f32 %v5279, %v4511
    %v5408 = vsub.f32 %v5280, %v4512
    %v5409 = vsub.f32 %v5281, %v4513
    %v5410 = vsub.f32 %v5282, %v4514
    %v5411 = vsub.f32 %v5283, %v4515
    %v5412 = vsub.f32 %v5284, %v4516
    %v5413 = vsub.f32 %v5285, %v4517
    %v5414 = vsub.f32 %v5286, %v4518
    %v5415 = vsub.f32 %v5287, %v4519
    %v5416 = vsub.f32 %v5288, %v4520
    %v5417 = vsub.f32 %v5289, %v4521
    %v5418 = vsub.f32 %v5290, %v4522
    %v5419 = vsub.f32 %v5291, %v4523
    %v5420 = vsub.f32 %v5292, %v4524
    %v5421 = vsub.f32 %v5293, %v4525
    %v5422 = vsub.f32 %v5294, %v4526
    %v5423 = vsub.f32 %v5295, %v4527
    %v5424 = vsub.f32 %v5296, %v4528
    %v5425 = vsub.f32 %v5297, %v4529
    %v5426 = vsub.f32 %v5298, %v4530
    %v5427 = vsub.f32 %v5299, %v4531
    %v5428 = vsub.f32 %v5300, %v4532
    %v5429 = vsub.f32 %v5301, %v4533
    %v5430 = vsub.f32 %v5302, %v4534
    %v5431 = vsub.f32 %v5303, %v4535
    %v5432 = vsub.f32 %v5304, %v4536
    %v5433 = vsub.f32 %v5305, %v4537
    %v5434 = vsub.f32 %v5306, %v4538
    %v5435 = vsub.f32 %v5307, %v4539
    %v5436 = vsub.f32 %v5308, %v4540
    %v5437 = vsub.f32 %v5309, %v4541
    %v5438 = vsub.f32 %v5310, %v4542
    %v5439 = vsub.f32 %v5311, %v4543
    %v5440 = vsub.f32 %v5312, %v4544
    %v5441 = vsub.f32 %v5313, %v4545
    %v5442 = vsub.f32 %v5314, %v4546
    %v5443 = vsub.f32 %v5315, %v4547
    %v5444 = vsub.f32 %v5316, %v4548
    %v5445 = vsub.f32 %v5317, %v4549
    %v5446 = vsub.f32 %v5318, %v4550
    %v5447 = vsub.f32 %v5319, %v4551
    %v5448 = vsub.f32 %v5320, %v4552
    %v5449 = vsub.f32 %v5321, %v4553
    %v5450 = vsub.f32 %v5322, %v4554
    %v5451 = vsub.f32 %v5323, %v4555
    %v5452 = vsub.f32 %v5324, %v4556
    %v5453 = vsub.f32 %v5325, %v4557
    %v5454 = vsub.f32 %v5326, %v4558
    %v5455 = vsub.f32 %v5327, %v4559
    %v5456 = vsub.f32 %v5328, %v4560
    %v5457 = vsub.f32 %v5329, %v4561
    %v5458 = vsub.f32 %v5330, %v4562
    %v5459 = vsub.f32 %v5331, %v4563
    %v5460 = vsub.f32 %v5332, %v4564
    %v5461 = vsub.f32 %v5333, %v4565
    %v5462 = vsub.f32 %v5334, %v4566
    %v5463 = vsub.f32 %v5335, %v4567
    %v5464 = vsub.f32 %v5336, %v4568
    %v5465 = vsub.f32 %v5337, %v4569
    %v5466 = vsub.f32 %v5338, %v4570
    %v5467 = vsub.f32 %v5339, %v4571
    %v5468 = vsub.f32 %v5340, %v4572
    %v5469 = vsub.f32 %v5341, %v4573
    %v5470 = vsub.f32 %v5342, %v4574
    %v5471 = vsub.f32 %v5343, %v4575
    %v5472 = vsub.f32 %v5344, %v4576
    %v5473 = vsub.f32 %v5345, %v4577
    %v5474 = vsub.f32 %v5346, %v4578
    %v5475 = vsub.f32 %v5347, %v4579
    %v5476 = vsub.f32 %v5348, %v4580
    %v5477 = vsub.f32 %v5349, %v4581
    %v5478 = vsub.f32 %v5350, %v4582
    %v5479 = vsub.f32 %v5351, %v4583
    %v5480 = vsub.f32 %v5352, %v4584
    %v5481 = vsub.f32 %v5353, %v4585
    %v5482 = vsub.f32 %v5354, %v4586
    %v5483 = vsub.f32 %v5355, %v4587
    %v5484 = vsub.f32 %v5356, %v4588
    %v5485 = vsub.f32 %v5357, %v4589
    %v5486 = vsub.f32 %v5358, %v4590
    %v5487 = vsub.f32 %v5359, %v4591
    %v5488 = vsub.f32 %v5360, %v4592
    %v5489 = vsub.f32 %v5361, %v4593
    %v5490 = vsub.f32 %v5362, %v4594
    %v5491 = vsub.f32 %v5363, %v4595
    %v5492 = vsub.f32 %v5364, %v4596
    %v5493 = vsub.f32 %v5365, %v4597
    %v5494 = vsub.f32 %v5366, %v4598
    %v5495 = vsub.f32 %v5367, %v4599
    %v5496 = vsub.f32 %v5368, %v4600
    %v5497 = vsub.f32 %v5369, %v4601
    %v5498 = vsub.f32 %v5370, %v4602
    %v5499 = vsub.f32 %v5371, %v4603
    %v5500 = vsub.f32 %v5372, %v4604
    %v5501 = vsub.f32 %v5373, %v4605
    %v5502 = vsub.f32 %v5374, %v4606
    %v5503 = vsub.f32 %v5375, %v4607
    %v5504 = vsub.f32 %v5376, %v4608
    %v5505 = vsub.f32 %v5377, %v4609
    %v5506 = vsub.f32 %v5378, %v4610
    %v5507 = vsub.f32 %v5379, %v4611
    %v5508 = vsub.f32 %v5380, %v4612
    %v5509 = vsub.f32 %v5381, %v4613
    %v5510 = vsub.f32 %v5382, %v4614
    %v5511 = vsub.f32 %v5383, %v4615
    %v5512 = vsub.f32 %v5384, %v4616
    %v5513 = vsub.f32 %v5385, %v4617
    %v5514 = vsub.f32 %v5386, %v4618
    %v5515 = vsub.f32 %v5387, %v4619
    %v5516 = vsub.f32 %v5388, %v4620
    %v5517 = vsub.f32 %v5389, %v4621
    %v5518 = vsub.f32 %v5390, %v4622
    %v5519 = vsub.f32 %v5391, %v4623
    %v5520 = vsub.f32 %v5392, %v4624
    %v5521 = vsub.f32 %v5393, %v4625
    %v5522 = vsub.f32 %v5394, %v4626
    %v5523 = vsub.f32 %v5395, %v4627
    %v5524 = vsub.f32 %v5396, %v4628
    %v5525 = vsub.f32 %v5397, %v4629
    %v5526 = vsub.f32 %v5398, %v4630
    %v5527 = vsub.f32 %v5399, %v4631
    %v5528 = vsub.f32 %v5400, %v4632
    %v5529 = vmax.f32 %v5401, 1e-12
    %v5530 = vmax.f32 %v5402, 1e-12
    %v5531 = vmax.f32 %v5403, 1e-12
    %v5532 = vmax.f32 %v5404, 1e-12
    %v5533 = vmax.f32 %v5405, 1e-12
    %v5534 = vmax.f32 %v5406, 1e-12
    %v5535 = vmax.f32 %v5407, 1e-12
    %v5536 = vmax.f32 %v5408, 1e-12
    %v5537 = vmax.f32 %v5409, 1e-12
    %v5538 = vmax.f32 %v5410, 1e-12
    %v5539 = vmax.f32 %v5411, 1e-12
    %v5540 = vmax.f32 %v5412, 1e-12
    %v5541 = vmax.f32 %v5413, 1e-12
    %v5542 = vmax.f32 %v5414, 1e-12
    %v5543 = vmax.f32 %v5415, 1e-12
    %v5544 = vmax.f32 %v5416, 1e-12
    %v5545 = vmax.f32 %v5417, 1e-12
    %v5546 = vmax.f32 %v5418, 1e-12
    %v5547 = vmax.f32 %v5419, 1e-12
    %v5548 = vmax.f32 %v5420, 1e-12
    %v5549 = vmax.f32 %v5421, 1e-12
    %v5550 = vmax.f32 %v5422, 1e-12
    %v5551 = vmax.f32 %v5423, 1e-12
    %v5552 = vmax.f32 %v5424, 1e-12
    %v5553 = vmax.f32 %v5425, 1e-12
    %v5554 = vmax.f32 %v5426, 1e-12
    %v5555 = vmax.f32 %v5427, 1e-12
    %v5556 = vmax.f32 %v5428, 1e-12
    %v5557 = vmax.f32 %v5429, 1e-12
    %v5558 = vmax.f32 %v5430, 1e-12
    %v5559 = vmax.f32 %v5431, 1e-12
    %v5560 = vmax.f32 %v5432, 1e-12
    %v5561 = vmax.f32 %v5433, 1e-12
    %v5562 = vmax.f32 %v5434, 1e-12
    %v5563 = vmax.f32 %v5435, 1e-12
    %v5564 = vmax.f32 %v5436, 1e-12
    %v5565 = vmax.f32 %v5437, 1e-12
    %v5566 = vmax.f32 %v5438, 1e-12
    %v5567 = vmax.f32 %v5439, 1e-12
    %v5568 = vmax.f32 %v5440, 1e-12
    %v5569 = vmax.f32 %v5441, 1e-12
    %v5570 = vmax.f32 %v5442, 1e-12
    %v5571 = vmax.f32 %v5443, 1e-12
    %v5572 = vmax.f32 %v5444, 1e-12
    %v5573 = vmax.f32 %v5445, 1e-12
    %v5574 = vmax.f32 %v5446, 1e-12
    %v5575 = vmax.f32 %v5447, 1e-12
    %v5576 = vmax.f32 %v5448, 1e-12
    %v5577 = vmax.f32 %v5449, 1e-12
    %v5578 = vmax.f32 %v5450, 1e-12
    %v5579 = vmax.f32 %v5451, 1e-12
    %v5580 = vmax.f32 %v5452, 1e-12
    %v5581 = vmax.f32 %v5453, 1e-12
    %v5582 = vmax.f32 %v5454, 1e-12
    %v5583 = vmax.f32 %v5455, 1e-12
    %v5584 = vmax.f32 %v5456, 1e-12
    %v5585 = vmax.f32 %v5457, 1e-12
    %v5586 = vmax.f32 %v5458, 1e-12
    %v5587 = vmax.f32 %v5459, 1e-12
    %v5588 = vmax.f32 %v5460, 1e-12
    %v5589 = vmax.f32 %v5461, 1e-12
    %v5590 = vmax.f32 %v5462, 1e-12
    %v5591 = vmax.f32 %v5463, 1e-12
    %v5592 = vmax.f32 %v5464, 1e-12
    %v5593 = vmax.f32 %v5465, 1e-12
    %v5594 = vmax.f32 %v5466, 1e-12
    %v5595 = vmax.f32 %v5467, 1e-12
    %v5596 = vmax.f32 %v5468, 1e-12
    %v5597 = vmax.f32 %v5469, 1e-12
    %v5598 = vmax.f32 %v5470, 1e-12
    %v5599 = vmax.f32 %v5471, 1e-12
    %v5600 = vmax.f32 %v5472, 1e-12
    %v5601 = vmax.f32 %v5473, 1e-12
    %v5602 = vmax.f32 %v5474, 1e-12
    %v5603 = vmax.f32 %v5475, 1e-12
    %v5604 = vmax.f32 %v5476, 1e-12
    %v5605 = vmax.f32 %v5477, 1e-12
    %v5606 = vmax.f32 %v5478, 1e-12
    %v5607 = vmax.f32 %v5479, 1e-12
    %v5608 = vmax.f32 %v5480, 1e-12
    %v5609 = vmax.f32 %v5481, 1e-12
    %v5610 = vmax.f32 %v5482, 1e-12
    %v5611 = vmax.f32 %v5483, 1e-12
    %v5612 = vmax.f32 %v5484, 1e-12
    %v5613 = vmax.f32 %v5485, 1e-12
    %v5614 = vmax.f32 %v5486, 1e-12
    %v5615 = vmax.f32 %v5487, 1e-12
    %v5616 = vmax.f32 %v5488, 1e-12
    %v5617 = vmax.f32 %v5489, 1e-12
    %v5618 = vmax.f32 %v5490, 1e-12
    %v5619 = vmax.f32 %v5491, 1e-12
    %v5620 = vmax.f32 %v5492, 1e-12
    %v5621 = vmax.f32 %v5493, 1e-12
    %v5622 = vmax.f32 %v5494, 1e-12
    %v5623 = vmax.f32 %v5495, 1e-12
    %v5624 = vmax.f32 %v5496, 1e-12
    %v5625 = vmax.f32 %v5497, 1e-12
    %v5626 = vmax.f32 %v5498, 1e-12
    %v5627 = vmax.f32 %v5499, 1e-12
    %v5628 = vmax.f32 %v5500, 1e-12
    %v5629 = vmax.f32 %v5501, 1e-12
    %v5630 = vmax.f32 %v5502, 1e-12
    %v5631 = vmax.f32 %v5503, 1e-12
    %v5632 = vmax.f32 %v5504, 1e-12
    %v5633 = vmax.f32 %v5505, 1e-12
    %v5634 = vmax.f32 %v5506, 1e-12
    %v5635 = vmax.f32 %v5507, 1e-12
    %v5636 = vmax.f32 %v5508, 1e-12
    %v5637 = vmax.f32 %v5509, 1e-12
    %v5638 = vmax.f32 %v5510, 1e-12
    %v5639 = vmax.f32 %v5511, 1e-12
    %v5640 = vmax.f32 %v5512, 1e-12
    %v5641 = vmax.f32 %v5513, 1e-12
    %v5642 = vmax.f32 %v5514, 1e-12
    %v5643 = vmax.f32 %v5515, 1e-12
    %v5644 = vmax.f32 %v5516, 1e-12
    %v5645 = vmax.f32 %v5517, 1e-12
    %v5646 = vmax.f32 %v5518, 1e-12
    %v5647 = vmax.f32 %v5519, 1e-12
    %v5648 = vmax.f32 %v5520, 1e-12
    %v5649 = vmax.f32 %v5521, 1e-12
    %v5650 = vmax.f32 %v5522, 1e-12
    %v5651 = vmax.f32 %v5523, 1e-12
    %v5652 = vmax.f32 %v5524, 1e-12
    %v5653 = vmax.f32 %v5525, 1e-12
    %v5654 = vmax.f32 %v5526, 1e-12
    %v5655 = vmax.f32 %v5527, 1e-12
    %v5656 = vmax.f32 %v5528, 1e-12
    %v5657 = vrcp.pop %v5529
    %v5658 = vmul.f32 %v5529, %v5657
    %v5659 = vsub.f32 1.0, %v5658
    %v5660 = vmul.f32 %v5657, %v5659
    %v5661 = vadd.f32 %v5657, %v5660
    %vm5662 = vweird.f32 %v5529
    %vm5663 = vweird.f32 %v5657
    %vm5664 = vmor %vm5662, %vm5663
    %v5665 = vsel %vm5664, %v5657, %v5661
    %v5666 = vand.u32 2147483647, %v5529
    %vm5667 = vcmp.eq.f32.partialorder %v5666, 8.507059e+37
    %v5668 = vand.u32 %v5529, 2147483648
    %v5669 = vor.u32 1.1754944e-38, %v5668
    %v5670 = vsel %vm5667, %v5669, %v5665
    %v5671 = vmul.f32 %v4505, %v5670
    %v5672 = vrcp.pop %v5530
    %v5673 = vmul.f32 %v5530, %v5672
    %v5674 = vsub.f32 1.0, %v5673
    %v5675 = vmul.f32 %v5672, %v5674
    %v5676 = vadd.f32 %v5672, %v5675
    %vm5677 = vweird.f32 %v5530
    %vm5678 = vweird.f32 %v5672
    %vm5679 = vmor %vm5677, %vm5678
    %v5680 = vsel %vm5679, %v5672, %v5676
    %v5681 = vand.u32 2147483647, %v5530
    %vm5682 = vcmp.eq.f32.partialorder %v5681, 8.507059e+37
    %v5683 = vand.u32 %v5530, 2147483648
    %v5684 = vor.u32 1.1754944e-38, %v5683
    %v5685 = vsel %vm5682, %v5684, %v5680
    %v5686 = vmul.f32 %v4506, %v5685
    %v5687 = vrcp.pop %v5531
    %v5688 = vmul.f32 %v5531, %v5687
    %v5689 = vsub.f32 1.0, %v5688
    %v5690 = vmul.f32 %v5687, %v5689
    %v5691 = vadd.f32 %v5687, %v5690
    %vm5692 = vweird.f32 %v5531
    %vm5693 = vweird.f32 %v5687
    %vm5694 = vmor %vm5692, %vm5693
    %v5695 = vsel %vm5694, %v5687, %v5691
    %v5696 = vand.u32 2147483647, %v5531
    %vm5697 = vcmp.eq.f32.partialorder %v5696, 8.507059e+37
    %v5698 = vand.u32 %v5531, 2147483648
    %v5699 = vor.u32 1.1754944e-38, %v5698
    %v5700 = vsel %vm5697, %v5699, %v5695
    %v5701 = vmul.f32 %v4507, %v5700
    %v5702 = vrcp.pop %v5532
    %v5703 = vmul.f32 %v5532, %v5702
    %v5704 = vsub.f32 1.0, %v5703
    %v5705 = vmul.f32 %v5702, %v5704
    %v5706 = vadd.f32 %v5702, %v5705
    %vm5707 = vweird.f32 %v5532
    %vm5708 = vweird.f32 %v5702
    %vm5709 = vmor %vm5707, %vm5708
    %v5710 = vsel %vm5709, %v5702, %v5706
    %v5711 = vand.u32 2147483647, %v5532
    %vm5712 = vcmp.eq.f32.partialorder %v5711, 8.507059e+37
    %v5713 = vand.u32 %v5532, 2147483648
    %v5714 = vor.u32 1.1754944e-38, %v5713
    %v5715 = vsel %vm5712, %v5714, %v5710
    %v5716 = vmul.f32 %v4508, %v5715
    %v5717 = vrcp.pop %v5533
    %v5718 = vmul.f32 %v5533, %v5717
    %v5719 = vsub.f32 1.0, %v5718
    %v5720 = vmul.f32 %v5717, %v5719
    %v5721 = vadd.f32 %v5717, %v5720
    %vm5722 = vweird.f32 %v5533
    %vm5723 = vweird.f32 %v5717
    %vm5724 = vmor %vm5722, %vm5723
    %v5725 = vsel %vm5724, %v5717, %v5721
    %v5726 = vand.u32 2147483647, %v5533
    %vm5727 = vcmp.eq.f32.partialorder %v5726, 8.507059e+37
    %v5728 = vand.u32 %v5533, 2147483648
    %v5729 = vor.u32 1.1754944e-38, %v5728
    %v5730 = vsel %vm5727, %v5729, %v5725
    %v5731 = vmul.f32 %v4509, %v5730
    %v5732 = vrcp.pop %v5534
    %v5733 = vmul.f32 %v5534, %v5732
    %v5734 = vsub.f32 1.0, %v5733
    %v5735 = vmul.f32 %v5732, %v5734
    %v5736 = vadd.f32 %v5732, %v5735
    %vm5737 = vweird.f32 %v5534
    %vm5738 = vweird.f32 %v5732
    %vm5739 = vmor %vm5737, %vm5738
    %v5740 = vsel %vm5739, %v5732, %v5736
    %v5741 = vand.u32 2147483647, %v5534
    %vm5742 = vcmp.eq.f32.partialorder %v5741, 8.507059e+37
    %v5743 = vand.u32 %v5534, 2147483648
    %v5744 = vor.u32 1.1754944e-38, %v5743
    %v5745 = vsel %vm5742, %v5744, %v5740
    %v5746 = vmul.f32 %v4510, %v5745
    %v5747 = vrcp.pop %v5535
    %v5748 = vmul.f32 %v5535, %v5747
    %v5749 = vsub.f32 1.0, %v5748
    %v5750 = vmul.f32 %v5747, %v5749
    %v5751 = vadd.f32 %v5747, %v5750
    %vm5752 = vweird.f32 %v5535
    %vm5753 = vweird.f32 %v5747
    %vm5754 = vmor %vm5752, %vm5753
    %v5755 = vsel %vm5754, %v5747, %v5751
    %v5756 = vand.u32 2147483647, %v5535
    %vm5757 = vcmp.eq.f32.partialorder %v5756, 8.507059e+37
    %v5758 = vand.u32 %v5535, 2147483648
    %v5759 = vor.u32 1.1754944e-38, %v5758
    %v5760 = vsel %vm5757, %v5759, %v5755
    %v5761 = vmul.f32 %v4511, %v5760
    %v5762 = vrcp.pop %v5536
    %v5763 = vmul.f32 %v5536, %v5762
    %v5764 = vsub.f32 1.0, %v5763
    %v5765 = vmul.f32 %v5762, %v5764
    %v5766 = vadd.f32 %v5762, %v5765
    %vm5767 = vweird.f32 %v5536
    %vm5768 = vweird.f32 %v5762
    %vm5769 = vmor %vm5767, %vm5768
    %v5770 = vsel %vm5769, %v5762, %v5766
    %v5771 = vand.u32 2147483647, %v5536
    %vm5772 = vcmp.eq.f32.partialorder %v5771, 8.507059e+37
    %v5773 = vand.u32 %v5536, 2147483648
    %v5774 = vor.u32 1.1754944e-38, %v5773
    %v5775 = vsel %vm5772, %v5774, %v5770
    %v5776 = vmul.f32 %v4512, %v5775
    %v5777 = vrcp.pop %v5537
    %v5778 = vmul.f32 %v5537, %v5777
    %v5779 = vsub.f32 1.0, %v5778
    %v5780 = vmul.f32 %v5777, %v5779
    %v5781 = vadd.f32 %v5777, %v5780
    %vm5782 = vweird.f32 %v5537
    %vm5783 = vweird.f32 %v5777
    %vm5784 = vmor %vm5782, %vm5783
    %v5785 = vsel %vm5784, %v5777, %v5781
    %v5786 = vand.u32 2147483647, %v5537
    %vm5787 = vcmp.eq.f32.partialorder %v5786, 8.507059e+37
    %v5788 = vand.u32 %v5537, 2147483648
    %v5789 = vor.u32 1.1754944e-38, %v5788
    %v5790 = vsel %vm5787, %v5789, %v5785
    %v5791 = vmul.f32 %v4513, %v5790
    %v5792 = vrcp.pop %v5538
    %v5793 = vmul.f32 %v5538, %v5792
    %v5794 = vsub.f32 1.0, %v5793
    %v5795 = vmul.f32 %v5792, %v5794
    %v5796 = vadd.f32 %v5792, %v5795
    %vm5797 = vweird.f32 %v5538
    %vm5798 = vweird.f32 %v5792
    %vm5799 = vmor %vm5797, %vm5798
    %v5800 = vsel %vm5799, %v5792, %v5796
    %v5801 = vand.u32 2147483647, %v5538
    %vm5802 = vcmp.eq.f32.partialorder %v5801, 8.507059e+37
    %v5803 = vand.u32 %v5538, 2147483648
    %v5804 = vor.u32 1.1754944e-38, %v5803
    %v5805 = vsel %vm5802, %v5804, %v5800
    %v5806 = vmul.f32 %v4514, %v5805
    %v5807 = vrcp.pop %v5539
    %v5808 = vmul.f32 %v5539, %v5807
    %v5809 = vsub.f32 1.0, %v5808
    %v5810 = vmul.f32 %v5807, %v5809
    %v5811 = vadd.f32 %v5807, %v5810
    %vm5812 = vweird.f32 %v5539
    %vm5813 = vweird.f32 %v5807
    %vm5814 = vmor %vm5812, %vm5813
    %v5815 = vsel %vm5814, %v5807, %v5811
    %v5816 = vand.u32 2147483647, %v5539
    %vm5817 = vcmp.eq.f32.partialorder %v5816, 8.507059e+37
    %v5818 = vand.u32 %v5539, 2147483648
    %v5819 = vor.u32 1.1754944e-38, %v5818
    %v5820 = vsel %vm5817, %v5819, %v5815
    %v5821 = vmul.f32 %v4515, %v5820
    %v5822 = vrcp.pop %v5540
    %v5823 = vmul.f32 %v5540, %v5822
    %v5824 = vsub.f32 1.0, %v5823
    %v5825 = vmul.f32 %v5822, %v5824
    %v5826 = vadd.f32 %v5822, %v5825
    %vm5827 = vweird.f32 %v5540
    %vm5828 = vweird.f32 %v5822
    %vm5829 = vmor %vm5827, %vm5828
    %v5830 = vsel %vm5829, %v5822, %v5826
    %v5831 = vand.u32 2147483647, %v5540
    %vm5832 = vcmp.eq.f32.partialorder %v5831, 8.507059e+37
    %v5833 = vand.u32 %v5540, 2147483648
    %v5834 = vor.u32 1.1754944e-38, %v5833
    %v5835 = vsel %vm5832, %v5834, %v5830
    %v5836 = vmul.f32 %v4516, %v5835
    %v5837 = vrcp.pop %v5541
    %v5838 = vmul.f32 %v5541, %v5837
    %v5839 = vsub.f32 1.0, %v5838
    %v5840 = vmul.f32 %v5837, %v5839
    %v5841 = vadd.f32 %v5837, %v5840
    %vm5842 = vweird.f32 %v5541
    %vm5843 = vweird.f32 %v5837
    %vm5844 = vmor %vm5842, %vm5843
    %v5845 = vsel %vm5844, %v5837, %v5841
    %v5846 = vand.u32 2147483647, %v5541
    %vm5847 = vcmp.eq.f32.partialorder %v5846, 8.507059e+37
    %v5848 = vand.u32 %v5541, 2147483648
    %v5849 = vor.u32 1.1754944e-38, %v5848
    %v5850 = vsel %vm5847, %v5849, %v5845
    %v5851 = vmul.f32 %v4517, %v5850
    %v5852 = vrcp.pop %v5542
    %v5853 = vmul.f32 %v5542, %v5852
    %v5854 = vsub.f32 1.0, %v5853
    %v5855 = vmul.f32 %v5852, %v5854
    %v5856 = vadd.f32 %v5852, %v5855
    %vm5857 = vweird.f32 %v5542
    %vm5858 = vweird.f32 %v5852
    %vm5859 = vmor %vm5857, %vm5858
    %v5860 = vsel %vm5859, %v5852, %v5856
    %v5861 = vand.u32 2147483647, %v5542
    %vm5862 = vcmp.eq.f32.partialorder %v5861, 8.507059e+37
    %v5863 = vand.u32 %v5542, 2147483648
    %v5864 = vor.u32 1.1754944e-38, %v5863
    %v5865 = vsel %vm5862, %v5864, %v5860
    %v5866 = vmul.f32 %v4518, %v5865
    %v5867 = vrcp.pop %v5543
    %v5868 = vmul.f32 %v5543, %v5867
    %v5869 = vsub.f32 1.0, %v5868
    %v5870 = vmul.f32 %v5867, %v5869
    %v5871 = vadd.f32 %v5867, %v5870
    %vm5872 = vweird.f32 %v5543
    %vm5873 = vweird.f32 %v5867
    %vm5874 = vmor %vm5872, %vm5873
    %v5875 = vsel %vm5874, %v5867, %v5871
    %v5876 = vand.u32 2147483647, %v5543
    %vm5877 = vcmp.eq.f32.partialorder %v5876, 8.507059e+37
    %v5878 = vand.u32 %v5543, 2147483648
    %v5879 = vor.u32 1.1754944e-38, %v5878
    %v5880 = vsel %vm5877, %v5879, %v5875
    %v5881 = vmul.f32 %v4519, %v5880
    %v5882 = vrcp.pop %v5544
    %v5883 = vmul.f32 %v5544, %v5882
    %v5884 = vsub.f32 1.0, %v5883
    %v5885 = vmul.f32 %v5882, %v5884
    %v5886 = vadd.f32 %v5882, %v5885
    %vm5887 = vweird.f32 %v5544
    %vm5888 = vweird.f32 %v5882
    %vm5889 = vmor %vm5887, %vm5888
    %v5890 = vsel %vm5889, %v5882, %v5886
    %v5891 = vand.u32 2147483647, %v5544
    %vm5892 = vcmp.eq.f32.partialorder %v5891, 8.507059e+37
    %v5893 = vand.u32 %v5544, 2147483648
    %v5894 = vor.u32 1.1754944e-38, %v5893
    %v5895 = vsel %vm5892, %v5894, %v5890
    %v5896 = vmul.f32 %v4520, %v5895
    %v5897 = vrcp.pop %v5545
    %v5898 = vmul.f32 %v5545, %v5897
    %v5899 = vsub.f32 1.0, %v5898
    %v5900 = vmul.f32 %v5897, %v5899
    %v5901 = vadd.f32 %v5897, %v5900
    %vm5902 = vweird.f32 %v5545
    %vm5903 = vweird.f32 %v5897
    %vm5904 = vmor %vm5902, %vm5903
    %v5905 = vsel %vm5904, %v5897, %v5901
    %v5906 = vand.u32 2147483647, %v5545
    %vm5907 = vcmp.eq.f32.partialorder %v5906, 8.507059e+37
    %v5908 = vand.u32 %v5545, 2147483648
    %v5909 = vor.u32 1.1754944e-38, %v5908
    %v5910 = vsel %vm5907, %v5909, %v5905
    %v5911 = vmul.f32 %v4521, %v5910
    %v5912 = vrcp.pop %v5546
    %v5913 = vmul.f32 %v5546, %v5912
    %v5914 = vsub.f32 1.0, %v5913
    %v5915 = vmul.f32 %v5912, %v5914
    %v5916 = vadd.f32 %v5912, %v5915
    %vm5917 = vweird.f32 %v5546
    %vm5918 = vweird.f32 %v5912
    %vm5919 = vmor %vm5917, %vm5918
    %v5920 = vsel %vm5919, %v5912, %v5916
    %v5921 = vand.u32 2147483647, %v5546
    %vm5922 = vcmp.eq.f32.partialorder %v5921, 8.507059e+37
    %v5923 = vand.u32 %v5546, 2147483648
    %v5924 = vor.u32 1.1754944e-38, %v5923
    %v5925 = vsel %vm5922, %v5924, %v5920
    %v5926 = vmul.f32 %v4522, %v5925
    %v5927 = vrcp.pop %v5547
    %v5928 = vmul.f32 %v5547, %v5927
    %v5929 = vsub.f32 1.0, %v5928
    %v5930 = vmul.f32 %v5927, %v5929
    %v5931 = vadd.f32 %v5927, %v5930
    %vm5932 = vweird.f32 %v5547
    %vm5933 = vweird.f32 %v5927
    %vm5934 = vmor %vm5932, %vm5933
    %v5935 = vsel %vm5934, %v5927, %v5931
    %v5936 = vand.u32 2147483647, %v5547
    %vm5937 = vcmp.eq.f32.partialorder %v5936, 8.507059e+37
    %v5938 = vand.u32 %v5547, 2147483648
    %v5939 = vor.u32 1.1754944e-38, %v5938
    %v5940 = vsel %vm5937, %v5939, %v5935
    %v5941 = vmul.f32 %v4523, %v5940
    %v5942 = vrcp.pop %v5548
    %v5943 = vmul.f32 %v5548, %v5942
    %v5944 = vsub.f32 1.0, %v5943
    %v5945 = vmul.f32 %v5942, %v5944
    %v5946 = vadd.f32 %v5942, %v5945
    %vm5947 = vweird.f32 %v5548
    %vm5948 = vweird.f32 %v5942
    %vm5949 = vmor %vm5947, %vm5948
    %v5950 = vsel %vm5949, %v5942, %v5946
    %v5951 = vand.u32 2147483647, %v5548
    %vm5952 = vcmp.eq.f32.partialorder %v5951, 8.507059e+37
    %v5953 = vand.u32 %v5548, 2147483648
    %v5954 = vor.u32 1.1754944e-38, %v5953
    %v5955 = vsel %vm5952, %v5954, %v5950
    %v5956 = vmul.f32 %v4524, %v5955
    %v5957 = vrcp.pop %v5549
    %v5958 = vmul.f32 %v5549, %v5957
    %v5959 = vsub.f32 1.0, %v5958
    %v5960 = vmul.f32 %v5957, %v5959
    %v5961 = vadd.f32 %v5957, %v5960
    %vm5962 = vweird.f32 %v5549
    %vm5963 = vweird.f32 %v5957
    %vm5964 = vmor %vm5962, %vm5963
    %v5965 = vsel %vm5964, %v5957, %v5961
    %v5966 = vand.u32 2147483647, %v5549
    %vm5967 = vcmp.eq.f32.partialorder %v5966, 8.507059e+37
    %v5968 = vand.u32 %v5549, 2147483648
    %v5969 = vor.u32 1.1754944e-38, %v5968
    %v5970 = vsel %vm5967, %v5969, %v5965
    %v5971 = vmul.f32 %v4525, %v5970
    %v5972 = vrcp.pop %v5550
    %v5973 = vmul.f32 %v5550, %v5972
    %v5974 = vsub.f32 1.0, %v5973
    %v5975 = vmul.f32 %v5972, %v5974
    %v5976 = vadd.f32 %v5972, %v5975
    %vm5977 = vweird.f32 %v5550
    %vm5978 = vweird.f32 %v5972
    %vm5979 = vmor %vm5977, %vm5978
    %v5980 = vsel %vm5979, %v5972, %v5976
    %v5981 = vand.u32 2147483647, %v5550
    %vm5982 = vcmp.eq.f32.partialorder %v5981, 8.507059e+37
    %v5983 = vand.u32 %v5550, 2147483648
    %v5984 = vor.u32 1.1754944e-38, %v5983
    %v5985 = vsel %vm5982, %v5984, %v5980
    %v5986 = vmul.f32 %v4526, %v5985
    %v5987 = vrcp.pop %v5551
    %v5988 = vmul.f32 %v5551, %v5987
    %v5989 = vsub.f32 1.0, %v5988
    %v5990 = vmul.f32 %v5987, %v5989
    %v5991 = vadd.f32 %v5987, %v5990
    %vm5992 = vweird.f32 %v5551
    %vm5993 = vweird.f32 %v5987
    %vm5994 = vmor %vm5992, %vm5993
    %v5995 = vsel %vm5994, %v5987, %v5991
    %v5996 = vand.u32 2147483647, %v5551
    %vm5997 = vcmp.eq.f32.partialorder %v5996, 8.507059e+37
    %v5998 = vand.u32 %v5551, 2147483648
    %v5999 = vor.u32 1.1754944e-38, %v5998
    %v6000 = vsel %vm5997, %v5999, %v5995
    %v6001 = vmul.f32 %v4527, %v6000
    %v6002 = vrcp.pop %v5552
    %v6003 = vmul.f32 %v5552, %v6002
    %v6004 = vsub.f32 1.0, %v6003
    %v6005 = vmul.f32 %v6002, %v6004
    %v6006 = vadd.f32 %v6002, %v6005
    %vm6007 = vweird.f32 %v5552
    %vm6008 = vweird.f32 %v6002
    %vm6009 = vmor %vm6007, %vm6008
    %v6010 = vsel %vm6009, %v6002, %v6006
    %v6011 = vand.u32 2147483647, %v5552
    %vm6012 = vcmp.eq.f32.partialorder %v6011, 8.507059e+37
    %v6013 = vand.u32 %v5552, 2147483648
    %v6014 = vor.u32 1.1754944e-38, %v6013
    %v6015 = vsel %vm6012, %v6014, %v6010
    %v6016 = vmul.f32 %v4528, %v6015
    %v6017 = vrcp.pop %v5553
    %v6018 = vmul.f32 %v5553, %v6017
    %v6019 = vsub.f32 1.0, %v6018
    %v6020 = vmul.f32 %v6017, %v6019
    %v6021 = vadd.f32 %v6017, %v6020
    %vm6022 = vweird.f32 %v5553
    %vm6023 = vweird.f32 %v6017
    %vm6024 = vmor %vm6022, %vm6023
    %v6025 = vsel %vm6024, %v6017, %v6021
    %v6026 = vand.u32 2147483647, %v5553
    %vm6027 = vcmp.eq.f32.partialorder %v6026, 8.507059e+37
    %v6028 = vand.u32 %v5553, 2147483648
    %v6029 = vor.u32 1.1754944e-38, %v6028
    %v6030 = vsel %vm6027, %v6029, %v6025
    %v6031 = vmul.f32 %v4529, %v6030
    %v6032 = vrcp.pop %v5554
    %v6033 = vmul.f32 %v5554, %v6032
    %v6034 = vsub.f32 1.0, %v6033
    %v6035 = vmul.f32 %v6032, %v6034
    %v6036 = vadd.f32 %v6032, %v6035
    %vm6037 = vweird.f32 %v5554
    %vm6038 = vweird.f32 %v6032
    %vm6039 = vmor %vm6037, %vm6038
    %v6040 = vsel %vm6039, %v6032, %v6036
    %v6041 = vand.u32 2147483647, %v5554
    %vm6042 = vcmp.eq.f32.partialorder %v6041, 8.507059e+37
    %v6043 = vand.u32 %v5554, 2147483648
    %v6044 = vor.u32 1.1754944e-38, %v6043
    %v6045 = vsel %vm6042, %v6044, %v6040
    %v6046 = vmul.f32 %v4530, %v6045
    %v6047 = vrcp.pop %v5555
    %v6048 = vmul.f32 %v5555, %v6047
    %v6049 = vsub.f32 1.0, %v6048
    %v6050 = vmul.f32 %v6047, %v6049
    %v6051 = vadd.f32 %v6047, %v6050
    %vm6052 = vweird.f32 %v5555
    %vm6053 = vweird.f32 %v6047
    %vm6054 = vmor %vm6052, %vm6053
    %v6055 = vsel %vm6054, %v6047, %v6051
    %v6056 = vand.u32 2147483647, %v5555
    %vm6057 = vcmp.eq.f32.partialorder %v6056, 8.507059e+37
    %v6058 = vand.u32 %v5555, 2147483648
    %v6059 = vor.u32 1.1754944e-38, %v6058
    %v6060 = vsel %vm6057, %v6059, %v6055
    %v6061 = vmul.f32 %v4531, %v6060
    %v6062 = vrcp.pop %v5556
    %v6063 = vmul.f32 %v5556, %v6062
    %v6064 = vsub.f32 1.0, %v6063
    %v6065 = vmul.f32 %v6062, %v6064
    %v6066 = vadd.f32 %v6062, %v6065
    %vm6067 = vweird.f32 %v5556
    %vm6068 = vweird.f32 %v6062
    %vm6069 = vmor %vm6067, %vm6068
    %v6070 = vsel %vm6069, %v6062, %v6066
    %v6071 = vand.u32 2147483647, %v5556
    %vm6072 = vcmp.eq.f32.partialorder %v6071, 8.507059e+37
    %v6073 = vand.u32 %v5556, 2147483648
    %v6074 = vor.u32 1.1754944e-38, %v6073
    %v6075 = vsel %vm6072, %v6074, %v6070
    %v6076 = vmul.f32 %v4532, %v6075
    %v6077 = vrcp.pop %v5557
    %v6078 = vmul.f32 %v5557, %v6077
    %v6079 = vsub.f32 1.0, %v6078
    %v6080 = vmul.f32 %v6077, %v6079
    %v6081 = vadd.f32 %v6077, %v6080
    %vm6082 = vweird.f32 %v5557
    %vm6083 = vweird.f32 %v6077
    %vm6084 = vmor %vm6082, %vm6083
    %v6085 = vsel %vm6084, %v6077, %v6081
    %v6086 = vand.u32 2147483647, %v5557
    %vm6087 = vcmp.eq.f32.partialorder %v6086, 8.507059e+37
    %v6088 = vand.u32 %v5557, 2147483648
    %v6089 = vor.u32 1.1754944e-38, %v6088
    %v6090 = vsel %vm6087, %v6089, %v6085
    %v6091 = vmul.f32 %v4533, %v6090
    %v6092 = vrcp.pop %v5558
    %v6093 = vmul.f32 %v5558, %v6092
    %v6094 = vsub.f32 1.0, %v6093
    %v6095 = vmul.f32 %v6092, %v6094
    %v6096 = vadd.f32 %v6092, %v6095
    %vm6097 = vweird.f32 %v5558
    %vm6098 = vweird.f32 %v6092
    %vm6099 = vmor %vm6097, %vm6098
    %v6100 = vsel %vm6099, %v6092, %v6096
    %v6101 = vand.u32 2147483647, %v5558
    %vm6102 = vcmp.eq.f32.partialorder %v6101, 8.507059e+37
    %v6103 = vand.u32 %v5558, 2147483648
    %v6104 = vor.u32 1.1754944e-38, %v6103
    %v6105 = vsel %vm6102, %v6104, %v6100
    %v6106 = vmul.f32 %v4534, %v6105
    %v6107 = vrcp.pop %v5559
    %v6108 = vmul.f32 %v5559, %v6107
    %v6109 = vsub.f32 1.0, %v6108
    %v6110 = vmul.f32 %v6107, %v6109
    %v6111 = vadd.f32 %v6107, %v6110
    %vm6112 = vweird.f32 %v5559
    %vm6113 = vweird.f32 %v6107
    %vm6114 = vmor %vm6112, %vm6113
    %v6115 = vsel %vm6114, %v6107, %v6111
    %v6116 = vand.u32 2147483647, %v5559
    %vm6117 = vcmp.eq.f32.partialorder %v6116, 8.507059e+37
    %v6118 = vand.u32 %v5559, 2147483648
    %v6119 = vor.u32 1.1754944e-38, %v6118
    %v6120 = vsel %vm6117, %v6119, %v6115
    %v6121 = vmul.f32 %v4535, %v6120
    %v6122 = vrcp.pop %v5560
    %v6123 = vmul.f32 %v5560, %v6122
    %v6124 = vsub.f32 1.0, %v6123
    %v6125 = vmul.f32 %v6122, %v6124
    %v6126 = vadd.f32 %v6122, %v6125
    %vm6127 = vweird.f32 %v5560
    %vm6128 = vweird.f32 %v6122
    %vm6129 = vmor %vm6127, %vm6128
    %v6130 = vsel %vm6129, %v6122, %v6126
    %v6131 = vand.u32 2147483647, %v5560
    %vm6132 = vcmp.eq.f32.partialorder %v6131, 8.507059e+37
    %v6133 = vand.u32 %v5560, 2147483648
    %v6134 = vor.u32 1.1754944e-38, %v6133
    %v6135 = vsel %vm6132, %v6134, %v6130
    %v6136 = vmul.f32 %v4536, %v6135
    %v6137 = vrcp.pop %v5561
    %v6138 = vmul.f32 %v5561, %v6137
    %v6139 = vsub.f32 1.0, %v6138
    %v6140 = vmul.f32 %v6137, %v6139
    %v6141 = vadd.f32 %v6137, %v6140
    %vm6142 = vweird.f32 %v5561
    %vm6143 = vweird.f32 %v6137
    %vm6144 = vmor %vm6142, %vm6143
    %v6145 = vsel %vm6144, %v6137, %v6141
    %v6146 = vand.u32 2147483647, %v5561
    %vm6147 = vcmp.eq.f32.partialorder %v6146, 8.507059e+37
    %v6148 = vand.u32 %v5561, 2147483648
    %v6149 = vor.u32 1.1754944e-38, %v6148
    %v6150 = vsel %vm6147, %v6149, %v6145
    %v6151 = vmul.f32 %v4537, %v6150
    %v6152 = vrcp.pop %v5562
    %v6153 = vmul.f32 %v5562, %v6152
    %v6154 = vsub.f32 1.0, %v6153
    %v6155 = vmul.f32 %v6152, %v6154
    %v6156 = vadd.f32 %v6152, %v6155
    %vm6157 = vweird.f32 %v5562
    %vm6158 = vweird.f32 %v6152
    %vm6159 = vmor %vm6157, %vm6158
    %v6160 = vsel %vm6159, %v6152, %v6156
    %v6161 = vand.u32 2147483647, %v5562
    %vm6162 = vcmp.eq.f32.partialorder %v6161, 8.507059e+37
    %v6163 = vand.u32 %v5562, 2147483648
    %v6164 = vor.u32 1.1754944e-38, %v6163
    %v6165 = vsel %vm6162, %v6164, %v6160
    %v6166 = vmul.f32 %v4538, %v6165
    %v6167 = vrcp.pop %v5563
    %v6168 = vmul.f32 %v5563, %v6167
    %v6169 = vsub.f32 1.0, %v6168
    %v6170 = vmul.f32 %v6167, %v6169
    %v6171 = vadd.f32 %v6167, %v6170
    %vm6172 = vweird.f32 %v5563
    %vm6173 = vweird.f32 %v6167
    %vm6174 = vmor %vm6172, %vm6173
    %v6175 = vsel %vm6174, %v6167, %v6171
    %v6176 = vand.u32 2147483647, %v5563
    %vm6177 = vcmp.eq.f32.partialorder %v6176, 8.507059e+37
    %v6178 = vand.u32 %v5563, 2147483648
    %v6179 = vor.u32 1.1754944e-38, %v6178
    %v6180 = vsel %vm6177, %v6179, %v6175
    %v6181 = vmul.f32 %v4539, %v6180
    %v6182 = vrcp.pop %v5564
    %v6183 = vmul.f32 %v5564, %v6182
    %v6184 = vsub.f32 1.0, %v6183
    %v6185 = vmul.f32 %v6182, %v6184
    %v6186 = vadd.f32 %v6182, %v6185
    %vm6187 = vweird.f32 %v5564
    %vm6188 = vweird.f32 %v6182
    %vm6189 = vmor %vm6187, %vm6188
    %v6190 = vsel %vm6189, %v6182, %v6186
    %v6191 = vand.u32 2147483647, %v5564
    %vm6192 = vcmp.eq.f32.partialorder %v6191, 8.507059e+37
    %v6193 = vand.u32 %v5564, 2147483648
    %v6194 = vor.u32 1.1754944e-38, %v6193
    %v6195 = vsel %vm6192, %v6194, %v6190
    %v6196 = vmul.f32 %v4540, %v6195
    %v6197 = vrcp.pop %v5565
    %v6198 = vmul.f32 %v5565, %v6197
    %v6199 = vsub.f32 1.0, %v6198
    %v6200 = vmul.f32 %v6197, %v6199
    %v6201 = vadd.f32 %v6197, %v6200
    %vm6202 = vweird.f32 %v5565
    %vm6203 = vweird.f32 %v6197
    %vm6204 = vmor %vm6202, %vm6203
    %v6205 = vsel %vm6204, %v6197, %v6201
    %v6206 = vand.u32 2147483647, %v5565
    %vm6207 = vcmp.eq.f32.partialorder %v6206, 8.507059e+37
    %v6208 = vand.u32 %v5565, 2147483648
    %v6209 = vor.u32 1.1754944e-38, %v6208
    %v6210 = vsel %vm6207, %v6209, %v6205
    %v6211 = vmul.f32 %v4541, %v6210
    %v6212 = vrcp.pop %v5566
    %v6213 = vmul.f32 %v5566, %v6212
    %v6214 = vsub.f32 1.0, %v6213
    %v6215 = vmul.f32 %v6212, %v6214
    %v6216 = vadd.f32 %v6212, %v6215
    %vm6217 = vweird.f32 %v5566
    %vm6218 = vweird.f32 %v6212
    %vm6219 = vmor %vm6217, %vm6218
    %v6220 = vsel %vm6219, %v6212, %v6216
    %v6221 = vand.u32 2147483647, %v5566
    %vm6222 = vcmp.eq.f32.partialorder %v6221, 8.507059e+37
    %v6223 = vand.u32 %v5566, 2147483648
    %v6224 = vor.u32 1.1754944e-38, %v6223
    %v6225 = vsel %vm6222, %v6224, %v6220
    %v6226 = vmul.f32 %v4542, %v6225
    %v6227 = vrcp.pop %v5567
    %v6228 = vmul.f32 %v5567, %v6227
    %v6229 = vsub.f32 1.0, %v6228
    %v6230 = vmul.f32 %v6227, %v6229
    %v6231 = vadd.f32 %v6227, %v6230
    %vm6232 = vweird.f32 %v5567
    %vm6233 = vweird.f32 %v6227
    %vm6234 = vmor %vm6232, %vm6233
    %v6235 = vsel %vm6234, %v6227, %v6231
    %v6236 = vand.u32 2147483647, %v5567
    %vm6237 = vcmp.eq.f32.partialorder %v6236, 8.507059e+37
    %v6238 = vand.u32 %v5567, 2147483648
    %v6239 = vor.u32 1.1754944e-38, %v6238
    %v6240 = vsel %vm6237, %v6239, %v6235
    %v6241 = vmul.f32 %v4543, %v6240
    %v6242 = vrcp.pop %v5568
    %v6243 = vmul.f32 %v5568, %v6242
    %v6244 = vsub.f32 1.0, %v6243
    %v6245 = vmul.f32 %v6242, %v6244
    %v6246 = vadd.f32 %v6242, %v6245
    %vm6247 = vweird.f32 %v5568
    %vm6248 = vweird.f32 %v6242
    %vm6249 = vmor %vm6247, %vm6248
    %v6250 = vsel %vm6249, %v6242, %v6246
    %v6251 = vand.u32 2147483647, %v5568
    %vm6252 = vcmp.eq.f32.partialorder %v6251, 8.507059e+37
    %v6253 = vand.u32 %v5568, 2147483648
    %v6254 = vor.u32 1.1754944e-38, %v6253
    %v6255 = vsel %vm6252, %v6254, %v6250
    %v6256 = vmul.f32 %v4544, %v6255
    %v6257 = vrcp.pop %v5569
    %v6258 = vmul.f32 %v5569, %v6257
    %v6259 = vsub.f32 1.0, %v6258
    %v6260 = vmul.f32 %v6257, %v6259
    %v6261 = vadd.f32 %v6257, %v6260
    %vm6262 = vweird.f32 %v5569
    %vm6263 = vweird.f32 %v6257
    %vm6264 = vmor %vm6262, %vm6263
    %v6265 = vsel %vm6264, %v6257, %v6261
    %v6266 = vand.u32 2147483647, %v5569
    %vm6267 = vcmp.eq.f32.partialorder %v6266, 8.507059e+37
    %v6268 = vand.u32 %v5569, 2147483648
    %v6269 = vor.u32 1.1754944e-38, %v6268
    %v6270 = vsel %vm6267, %v6269, %v6265
    %v6271 = vmul.f32 %v4545, %v6270
    %v6272 = vrcp.pop %v5570
    %v6273 = vmul.f32 %v5570, %v6272
    %v6274 = vsub.f32 1.0, %v6273
    %v6275 = vmul.f32 %v6272, %v6274
    %v6276 = vadd.f32 %v6272, %v6275
    %vm6277 = vweird.f32 %v5570
    %vm6278 = vweird.f32 %v6272
    %vm6279 = vmor %vm6277, %vm6278
    %v6280 = vsel %vm6279, %v6272, %v6276
    %v6281 = vand.u32 2147483647, %v5570
    %vm6282 = vcmp.eq.f32.partialorder %v6281, 8.507059e+37
    %v6283 = vand.u32 %v5570, 2147483648
    %v6284 = vor.u32 1.1754944e-38, %v6283
    %v6285 = vsel %vm6282, %v6284, %v6280
    %v6286 = vmul.f32 %v4546, %v6285
    %v6287 = vrcp.pop %v5571
    %v6288 = vmul.f32 %v5571, %v6287
    %v6289 = vsub.f32 1.0, %v6288
    %v6290 = vmul.f32 %v6287, %v6289
    %v6291 = vadd.f32 %v6287, %v6290
    %vm6292 = vweird.f32 %v5571
    %vm6293 = vweird.f32 %v6287
    %vm6294 = vmor %vm6292, %vm6293
    %v6295 = vsel %vm6294, %v6287, %v6291
    %v6296 = vand.u32 2147483647, %v5571
    %vm6297 = vcmp.eq.f32.partialorder %v6296, 8.507059e+37
    %v6298 = vand.u32 %v5571, 2147483648
    %v6299 = vor.u32 1.1754944e-38, %v6298
    %v6300 = vsel %vm6297, %v6299, %v6295
    %v6301 = vmul.f32 %v4547, %v6300
    %v6302 = vrcp.pop %v5572
    %v6303 = vmul.f32 %v5572, %v6302
    %v6304 = vsub.f32 1.0, %v6303
    %v6305 = vmul.f32 %v6302, %v6304
    %v6306 = vadd.f32 %v6302, %v6305
    %vm6307 = vweird.f32 %v5572
    %vm6308 = vweird.f32 %v6302
    %vm6309 = vmor %vm6307, %vm6308
    %v6310 = vsel %vm6309, %v6302, %v6306
    %v6311 = vand.u32 2147483647, %v5572
    %vm6312 = vcmp.eq.f32.partialorder %v6311, 8.507059e+37
    %v6313 = vand.u32 %v5572, 2147483648
    %v6314 = vor.u32 1.1754944e-38, %v6313
    %v6315 = vsel %vm6312, %v6314, %v6310
    %v6316 = vmul.f32 %v4548, %v6315
    %v6317 = vrcp.pop %v5573
    %v6318 = vmul.f32 %v5573, %v6317
    %v6319 = vsub.f32 1.0, %v6318
    %v6320 = vmul.f32 %v6317, %v6319
    %v6321 = vadd.f32 %v6317, %v6320
    %vm6322 = vweird.f32 %v5573
    %vm6323 = vweird.f32 %v6317
    %vm6324 = vmor %vm6322, %vm6323
    %v6325 = vsel %vm6324, %v6317, %v6321
    %v6326 = vand.u32 2147483647, %v5573
    %vm6327 = vcmp.eq.f32.partialorder %v6326, 8.507059e+37
    %v6328 = vand.u32 %v5573, 2147483648
    %v6329 = vor.u32 1.1754944e-38, %v6328
    %v6330 = vsel %vm6327, %v6329, %v6325
    %v6331 = vmul.f32 %v4549, %v6330
    %v6332 = vrcp.pop %v5574
    %v6333 = vmul.f32 %v5574, %v6332
    %v6334 = vsub.f32 1.0, %v6333
    %v6335 = vmul.f32 %v6332, %v6334
    %v6336 = vadd.f32 %v6332, %v6335
    %vm6337 = vweird.f32 %v5574
    %vm6338 = vweird.f32 %v6332
    %vm6339 = vmor %vm6337, %vm6338
    %v6340 = vsel %vm6339, %v6332, %v6336
    %v6341 = vand.u32 2147483647, %v5574
    %vm6342 = vcmp.eq.f32.partialorder %v6341, 8.507059e+37
    %v6343 = vand.u32 %v5574, 2147483648
    %v6344 = vor.u32 1.1754944e-38, %v6343
    %v6345 = vsel %vm6342, %v6344, %v6340
    %v6346 = vmul.f32 %v4550, %v6345
    %v6347 = vrcp.pop %v5575
    %v6348 = vmul.f32 %v5575, %v6347
    %v6349 = vsub.f32 1.0, %v6348
    %v6350 = vmul.f32 %v6347, %v6349
    %v6351 = vadd.f32 %v6347, %v6350
    %vm6352 = vweird.f32 %v5575
    %vm6353 = vweird.f32 %v6347
    %vm6354 = vmor %vm6352, %vm6353
    %v6355 = vsel %vm6354, %v6347, %v6351
    %v6356 = vand.u32 2147483647, %v5575
    %vm6357 = vcmp.eq.f32.partialorder %v6356, 8.507059e+37
    %v6358 = vand.u32 %v5575, 2147483648
    %v6359 = vor.u32 1.1754944e-38, %v6358
    %v6360 = vsel %vm6357, %v6359, %v6355
    %v6361 = vmul.f32 %v4551, %v6360
    %v6362 = vrcp.pop %v5576
    %v6363 = vmul.f32 %v5576, %v6362
    %v6364 = vsub.f32 1.0, %v6363
    %v6365 = vmul.f32 %v6362, %v6364
    %v6366 = vadd.f32 %v6362, %v6365
    %vm6367 = vweird.f32 %v5576
    %vm6368 = vweird.f32 %v6362
    %vm6369 = vmor %vm6367, %vm6368
    %v6370 = vsel %vm6369, %v6362, %v6366
    %v6371 = vand.u32 2147483647, %v5576
    %vm6372 = vcmp.eq.f32.partialorder %v6371, 8.507059e+37
    %v6373 = vand.u32 %v5576, 2147483648
    %v6374 = vor.u32 1.1754944e-38, %v6373
    %v6375 = vsel %vm6372, %v6374, %v6370
    %v6376 = vmul.f32 %v4552, %v6375
    %v6377 = vrcp.pop %v5577
    %v6378 = vmul.f32 %v5577, %v6377
    %v6379 = vsub.f32 1.0, %v6378
    %v6380 = vmul.f32 %v6377, %v6379
    %v6381 = vadd.f32 %v6377, %v6380
    %vm6382 = vweird.f32 %v5577
    %vm6383 = vweird.f32 %v6377
    %vm6384 = vmor %vm6382, %vm6383
    %v6385 = vsel %vm6384, %v6377, %v6381
    %v6386 = vand.u32 2147483647, %v5577
    %vm6387 = vcmp.eq.f32.partialorder %v6386, 8.507059e+37
    %v6388 = vand.u32 %v5577, 2147483648
    %v6389 = vor.u32 1.1754944e-38, %v6388
    %v6390 = vsel %vm6387, %v6389, %v6385
    %v6391 = vmul.f32 %v4553, %v6390
    %v6392 = vrcp.pop %v5578
    %v6393 = vmul.f32 %v5578, %v6392
    %v6394 = vsub.f32 1.0, %v6393
    %v6395 = vmul.f32 %v6392, %v6394
    %v6396 = vadd.f32 %v6392, %v6395
    %vm6397 = vweird.f32 %v5578
    %vm6398 = vweird.f32 %v6392
    %vm6399 = vmor %vm6397, %vm6398
    %v6400 = vsel %vm6399, %v6392, %v6396
    %v6401 = vand.u32 2147483647, %v5578
    %vm6402 = vcmp.eq.f32.partialorder %v6401, 8.507059e+37
    %v6403 = vand.u32 %v5578, 2147483648
    %v6404 = vor.u32 1.1754944e-38, %v6403
    %v6405 = vsel %vm6402, %v6404, %v6400
    %v6406 = vmul.f32 %v4554, %v6405
    %v6407 = vrcp.pop %v5579
    %v6408 = vmul.f32 %v5579, %v6407
    %v6409 = vsub.f32 1.0, %v6408
    %v6410 = vmul.f32 %v6407, %v6409
    %v6411 = vadd.f32 %v6407, %v6410
    %vm6412 = vweird.f32 %v5579
    %vm6413 = vweird.f32 %v6407
    %vm6414 = vmor %vm6412, %vm6413
    %v6415 = vsel %vm6414, %v6407, %v6411
    %v6416 = vand.u32 2147483647, %v5579
    %vm6417 = vcmp.eq.f32.partialorder %v6416, 8.507059e+37
    %v6418 = vand.u32 %v5579, 2147483648
    %v6419 = vor.u32 1.1754944e-38, %v6418
    %v6420 = vsel %vm6417, %v6419, %v6415
    %v6421 = vmul.f32 %v4555, %v6420
    %v6422 = vrcp.pop %v5580
    %v6423 = vmul.f32 %v5580, %v6422
    %v6424 = vsub.f32 1.0, %v6423
    %v6425 = vmul.f32 %v6422, %v6424
    %v6426 = vadd.f32 %v6422, %v6425
    %vm6427 = vweird.f32 %v5580
    %vm6428 = vweird.f32 %v6422
    %vm6429 = vmor %vm6427, %vm6428
    %v6430 = vsel %vm6429, %v6422, %v6426
    %v6431 = vand.u32 2147483647, %v5580
    %vm6432 = vcmp.eq.f32.partialorder %v6431, 8.507059e+37
    %v6433 = vand.u32 %v5580, 2147483648
    %v6434 = vor.u32 1.1754944e-38, %v6433
    %v6435 = vsel %vm6432, %v6434, %v6430
    %v6436 = vmul.f32 %v4556, %v6435
    %v6437 = vrcp.pop %v5581
    %v6438 = vmul.f32 %v5581, %v6437
    %v6439 = vsub.f32 1.0, %v6438
    %v6440 = vmul.f32 %v6437, %v6439
    %v6441 = vadd.f32 %v6437, %v6440
    %vm6442 = vweird.f32 %v5581
    %vm6443 = vweird.f32 %v6437
    %vm6444 = vmor %vm6442, %vm6443
    %v6445 = vsel %vm6444, %v6437, %v6441
    %v6446 = vand.u32 2147483647, %v5581
    %vm6447 = vcmp.eq.f32.partialorder %v6446, 8.507059e+37
    %v6448 = vand.u32 %v5581, 2147483648
    %v6449 = vor.u32 1.1754944e-38, %v6448
    %v6450 = vsel %vm6447, %v6449, %v6445
    %v6451 = vmul.f32 %v4557, %v6450
    %v6452 = vrcp.pop %v5582
    %v6453 = vmul.f32 %v5582, %v6452
    %v6454 = vsub.f32 1.0, %v6453
    %v6455 = vmul.f32 %v6452, %v6454
    %v6456 = vadd.f32 %v6452, %v6455
    %vm6457 = vweird.f32 %v5582
    %vm6458 = vweird.f32 %v6452
    %vm6459 = vmor %vm6457, %vm6458
    %v6460 = vsel %vm6459, %v6452, %v6456
    %v6461 = vand.u32 2147483647, %v5582
    %vm6462 = vcmp.eq.f32.partialorder %v6461, 8.507059e+37
    %v6463 = vand.u32 %v5582, 2147483648
    %v6464 = vor.u32 1.1754944e-38, %v6463
    %v6465 = vsel %vm6462, %v6464, %v6460
    %v6466 = vmul.f32 %v4558, %v6465
    %v6467 = vrcp.pop %v5583
    %v6468 = vmul.f32 %v5583, %v6467
    %v6469 = vsub.f32 1.0, %v6468
    %v6470 = vmul.f32 %v6467, %v6469
    %v6471 = vadd.f32 %v6467, %v6470
    %vm6472 = vweird.f32 %v5583
    %vm6473 = vweird.f32 %v6467
    %vm6474 = vmor %vm6472, %vm6473
    %v6475 = vsel %vm6474, %v6467, %v6471
    %v6476 = vand.u32 2147483647, %v5583
    %vm6477 = vcmp.eq.f32.partialorder %v6476, 8.507059e+37
    %v6478 = vand.u32 %v5583, 2147483648
    %v6479 = vor.u32 1.1754944e-38, %v6478
    %v6480 = vsel %vm6477, %v6479, %v6475
    %v6481 = vmul.f32 %v4559, %v6480
    %v6482 = vrcp.pop %v5584
    %v6483 = vmul.f32 %v5584, %v6482
    %v6484 = vsub.f32 1.0, %v6483
    %v6485 = vmul.f32 %v6482, %v6484
    %v6486 = vadd.f32 %v6482, %v6485
    %vm6487 = vweird.f32 %v5584
    %vm6488 = vweird.f32 %v6482
    %vm6489 = vmor %vm6487, %vm6488
    %v6490 = vsel %vm6489, %v6482, %v6486
    %v6491 = vand.u32 2147483647, %v5584
    %vm6492 = vcmp.eq.f32.partialorder %v6491, 8.507059e+37
    %v6493 = vand.u32 %v5584, 2147483648
    %v6494 = vor.u32 1.1754944e-38, %v6493
    %v6495 = vsel %vm6492, %v6494, %v6490
    %v6496 = vmul.f32 %v4560, %v6495
    %v6497 = vrcp.pop %v5585
    %v6498 = vmul.f32 %v5585, %v6497
    %v6499 = vsub.f32 1.0, %v6498
    %v6500 = vmul.f32 %v6497, %v6499
    %v6501 = vadd.f32 %v6497, %v6500
    %vm6502 = vweird.f32 %v5585
    %vm6503 = vweird.f32 %v6497
    %vm6504 = vmor %vm6502, %vm6503
    %v6505 = vsel %vm6504, %v6497, %v6501
    %v6506 = vand.u32 2147483647, %v5585
    %vm6507 = vcmp.eq.f32.partialorder %v6506, 8.507059e+37
    %v6508 = vand.u32 %v5585, 2147483648
    %v6509 = vor.u32 1.1754944e-38, %v6508
    %v6510 = vsel %vm6507, %v6509, %v6505
    %v6511 = vmul.f32 %v4561, %v6510
    %v6512 = vrcp.pop %v5586
    %v6513 = vmul.f32 %v5586, %v6512
    %v6514 = vsub.f32 1.0, %v6513
    %v6515 = vmul.f32 %v6512, %v6514
    %v6516 = vadd.f32 %v6512, %v6515
    %vm6517 = vweird.f32 %v5586
    %vm6518 = vweird.f32 %v6512
    %vm6519 = vmor %vm6517, %vm6518
    %v6520 = vsel %vm6519, %v6512, %v6516
    %v6521 = vand.u32 2147483647, %v5586
    %vm6522 = vcmp.eq.f32.partialorder %v6521, 8.507059e+37
    %v6523 = vand.u32 %v5586, 2147483648
    %v6524 = vor.u32 1.1754944e-38, %v6523
    %v6525 = vsel %vm6522, %v6524, %v6520
    %v6526 = vmul.f32 %v4562, %v6525
    %v6527 = vrcp.pop %v5587
    %v6528 = vmul.f32 %v5587, %v6527
    %v6529 = vsub.f32 1.0, %v6528
    %v6530 = vmul.f32 %v6527, %v6529
    %v6531 = vadd.f32 %v6527, %v6530
    %vm6532 = vweird.f32 %v5587
    %vm6533 = vweird.f32 %v6527
    %vm6534 = vmor %vm6532, %vm6533
    %v6535 = vsel %vm6534, %v6527, %v6531
    %v6536 = vand.u32 2147483647, %v5587
    %vm6537 = vcmp.eq.f32.partialorder %v6536, 8.507059e+37
    %v6538 = vand.u32 %v5587, 2147483648
    %v6539 = vor.u32 1.1754944e-38, %v6538
    %v6540 = vsel %vm6537, %v6539, %v6535
    %v6541 = vmul.f32 %v4563, %v6540
    %v6542 = vrcp.pop %v5588
    %v6543 = vmul.f32 %v5588, %v6542
    %v6544 = vsub.f32 1.0, %v6543
    %v6545 = vmul.f32 %v6542, %v6544
    %v6546 = vadd.f32 %v6542, %v6545
    %vm6547 = vweird.f32 %v5588
    %vm6548 = vweird.f32 %v6542
    %vm6549 = vmor %vm6547, %vm6548
    %v6550 = vsel %vm6549, %v6542, %v6546
    %v6551 = vand.u32 2147483647, %v5588
    %vm6552 = vcmp.eq.f32.partialorder %v6551, 8.507059e+37
    %v6553 = vand.u32 %v5588, 2147483648
    %v6554 = vor.u32 1.1754944e-38, %v6553
    %v6555 = vsel %vm6552, %v6554, %v6550
    %v6556 = vmul.f32 %v4564, %v6555
    %v6557 = vrcp.pop %v5589
    %v6558 = vmul.f32 %v5589, %v6557
    %v6559 = vsub.f32 1.0, %v6558
    %v6560 = vmul.f32 %v6557, %v6559
    %v6561 = vadd.f32 %v6557, %v6560
    %vm6562 = vweird.f32 %v5589
    %vm6563 = vweird.f32 %v6557
    %vm6564 = vmor %vm6562, %vm6563
    %v6565 = vsel %vm6564, %v6557, %v6561
    %v6566 = vand.u32 2147483647, %v5589
    %vm6567 = vcmp.eq.f32.partialorder %v6566, 8.507059e+37
    %v6568 = vand.u32 %v5589, 2147483648
    %v6569 = vor.u32 1.1754944e-38, %v6568
    %v6570 = vsel %vm6567, %v6569, %v6565
    %v6571 = vmul.f32 %v4565, %v6570
    %v6572 = vrcp.pop %v5590
    %v6573 = vmul.f32 %v5590, %v6572
    %v6574 = vsub.f32 1.0, %v6573
    %v6575 = vmul.f32 %v6572, %v6574
    %v6576 = vadd.f32 %v6572, %v6575
    %vm6577 = vweird.f32 %v5590
    %vm6578 = vweird.f32 %v6572
    %vm6579 = vmor %vm6577, %vm6578
    %v6580 = vsel %vm6579, %v6572, %v6576
    %v6581 = vand.u32 2147483647, %v5590
    %vm6582 = vcmp.eq.f32.partialorder %v6581, 8.507059e+37
    %v6583 = vand.u32 %v5590, 2147483648
    %v6584 = vor.u32 1.1754944e-38, %v6583
    %v6585 = vsel %vm6582, %v6584, %v6580
    %v6586 = vmul.f32 %v4566, %v6585
    %v6587 = vrcp.pop %v5591
    %v6588 = vmul.f32 %v5591, %v6587
    %v6589 = vsub.f32 1.0, %v6588
    %v6590 = vmul.f32 %v6587, %v6589
    %v6591 = vadd.f32 %v6587, %v6590
    %vm6592 = vweird.f32 %v5591
    %vm6593 = vweird.f32 %v6587
    %vm6594 = vmor %vm6592, %vm6593
    %v6595 = vsel %vm6594, %v6587, %v6591
    %v6596 = vand.u32 2147483647, %v5591
    %vm6597 = vcmp.eq.f32.partialorder %v6596, 8.507059e+37
    %v6598 = vand.u32 %v5591, 2147483648
    %v6599 = vor.u32 1.1754944e-38, %v6598
    %v6600 = vsel %vm6597, %v6599, %v6595
    %v6601 = vmul.f32 %v4567, %v6600
    %v6602 = vrcp.pop %v5592
    %v6603 = vmul.f32 %v5592, %v6602
    %v6604 = vsub.f32 1.0, %v6603
    %v6605 = vmul.f32 %v6602, %v6604
    %v6606 = vadd.f32 %v6602, %v6605
    %vm6607 = vweird.f32 %v5592
    %vm6608 = vweird.f32 %v6602
    %vm6609 = vmor %vm6607, %vm6608
    %v6610 = vsel %vm6609, %v6602, %v6606
    %v6611 = vand.u32 2147483647, %v5592
    %vm6612 = vcmp.eq.f32.partialorder %v6611, 8.507059e+37
    %v6613 = vand.u32 %v5592, 2147483648
    %v6614 = vor.u32 1.1754944e-38, %v6613
    %v6615 = vsel %vm6612, %v6614, %v6610
    %v6616 = vmul.f32 %v4568, %v6615
    %v6617 = vrcp.pop %v5593
    %v6618 = vmul.f32 %v5593, %v6617
    %v6619 = vsub.f32 1.0, %v6618
    %v6620 = vmul.f32 %v6617, %v6619
    %v6621 = vadd.f32 %v6617, %v6620
    %vm6622 = vweird.f32 %v5593
    %vm6623 = vweird.f32 %v6617
    %vm6624 = vmor %vm6622, %vm6623
    %v6625 = vsel %vm6624, %v6617, %v6621
    %v6626 = vand.u32 2147483647, %v5593
    %vm6627 = vcmp.eq.f32.partialorder %v6626, 8.507059e+37
    %v6628 = vand.u32 %v5593, 2147483648
    %v6629 = vor.u32 1.1754944e-38, %v6628
    %v6630 = vsel %vm6627, %v6629, %v6625
    %v6631 = vmul.f32 %v4569, %v6630
    %v6632 = vrcp.pop %v5594
    %v6633 = vmul.f32 %v5594, %v6632
    %v6634 = vsub.f32 1.0, %v6633
    %v6635 = vmul.f32 %v6632, %v6634
    %v6636 = vadd.f32 %v6632, %v6635
    %vm6637 = vweird.f32 %v5594
    %vm6638 = vweird.f32 %v6632
    %vm6639 = vmor %vm6637, %vm6638
    %v6640 = vsel %vm6639, %v6632, %v6636
    %v6641 = vand.u32 2147483647, %v5594
    %vm6642 = vcmp.eq.f32.partialorder %v6641, 8.507059e+37
    %v6643 = vand.u32 %v5594, 2147483648
    %v6644 = vor.u32 1.1754944e-38, %v6643
    %v6645 = vsel %vm6642, %v6644, %v6640
    %v6646 = vmul.f32 %v4570, %v6645
    %v6647 = vrcp.pop %v5595
    %v6648 = vmul.f32 %v5595, %v6647
    %v6649 = vsub.f32 1.0, %v6648
    %v6650 = vmul.f32 %v6647, %v6649
    %v6651 = vadd.f32 %v6647, %v6650
    %vm6652 = vweird.f32 %v5595
    %vm6653 = vweird.f32 %v6647
    %vm6654 = vmor %vm6652, %vm6653
    %v6655 = vsel %vm6654, %v6647, %v6651
    %v6656 = vand.u32 2147483647, %v5595
    %vm6657 = vcmp.eq.f32.partialorder %v6656, 8.507059e+37
    %v6658 = vand.u32 %v5595, 2147483648
    %v6659 = vor.u32 1.1754944e-38, %v6658
    %v6660 = vsel %vm6657, %v6659, %v6655
    %v6661 = vmul.f32 %v4571, %v6660
    %v6662 = vrcp.pop %v5596
    %v6663 = vmul.f32 %v5596, %v6662
    %v6664 = vsub.f32 1.0, %v6663
    %v6665 = vmul.f32 %v6662, %v6664
    %v6666 = vadd.f32 %v6662, %v6665
    %vm6667 = vweird.f32 %v5596
    %vm6668 = vweird.f32 %v6662
    %vm6669 = vmor %vm6667, %vm6668
    %v6670 = vsel %vm6669, %v6662, %v6666
    %v6671 = vand.u32 2147483647, %v5596
    %vm6672 = vcmp.eq.f32.partialorder %v6671, 8.507059e+37
    %v6673 = vand.u32 %v5596, 2147483648
    %v6674 = vor.u32 1.1754944e-38, %v6673
    %v6675 = vsel %vm6672, %v6674, %v6670
    %v6676 = vmul.f32 %v4572, %v6675
    %v6677 = vrcp.pop %v5597
    %v6678 = vmul.f32 %v5597, %v6677
    %v6679 = vsub.f32 1.0, %v6678
    %v6680 = vmul.f32 %v6677, %v6679
    %v6681 = vadd.f32 %v6677, %v6680
    %vm6682 = vweird.f32 %v5597
    %vm6683 = vweird.f32 %v6677
    %vm6684 = vmor %vm6682, %vm6683
    %v6685 = vsel %vm6684, %v6677, %v6681
    %v6686 = vand.u32 2147483647, %v5597
    %vm6687 = vcmp.eq.f32.partialorder %v6686, 8.507059e+37
    %v6688 = vand.u32 %v5597, 2147483648
    %v6689 = vor.u32 1.1754944e-38, %v6688
    %v6690 = vsel %vm6687, %v6689, %v6685
    %v6691 = vmul.f32 %v4573, %v6690
    %v6692 = vrcp.pop %v5598
    %v6693 = vmul.f32 %v5598, %v6692
    %v6694 = vsub.f32 1.0, %v6693
    %v6695 = vmul.f32 %v6692, %v6694
    %v6696 = vadd.f32 %v6692, %v6695
    %vm6697 = vweird.f32 %v5598
    %vm6698 = vweird.f32 %v6692
    %vm6699 = vmor %vm6697, %vm6698
    %v6700 = vsel %vm6699, %v6692, %v6696
    %v6701 = vand.u32 2147483647, %v5598
    %vm6702 = vcmp.eq.f32.partialorder %v6701, 8.507059e+37
    %v6703 = vand.u32 %v5598, 2147483648
    %v6704 = vor.u32 1.1754944e-38, %v6703
    %v6705 = vsel %vm6702, %v6704, %v6700
    %v6706 = vmul.f32 %v4574, %v6705
    %v6707 = vrcp.pop %v5599
    %v6708 = vmul.f32 %v5599, %v6707
    %v6709 = vsub.f32 1.0, %v6708
    %v6710 = vmul.f32 %v6707, %v6709
    %v6711 = vadd.f32 %v6707, %v6710
    %vm6712 = vweird.f32 %v5599
    %vm6713 = vweird.f32 %v6707
    %vm6714 = vmor %vm6712, %vm6713
    %v6715 = vsel %vm6714, %v6707, %v6711
    %v6716 = vand.u32 2147483647, %v5599
    %vm6717 = vcmp.eq.f32.partialorder %v6716, 8.507059e+37
    %v6718 = vand.u32 %v5599, 2147483648
    %v6719 = vor.u32 1.1754944e-38, %v6718
    %v6720 = vsel %vm6717, %v6719, %v6715
    %v6721 = vmul.f32 %v4575, %v6720
    %v6722 = vrcp.pop %v5600
    %v6723 = vmul.f32 %v5600, %v6722
    %v6724 = vsub.f32 1.0, %v6723
    %v6725 = vmul.f32 %v6722, %v6724
    %v6726 = vadd.f32 %v6722, %v6725
    %vm6727 = vweird.f32 %v5600
    %vm6728 = vweird.f32 %v6722
    %vm6729 = vmor %vm6727, %vm6728
    %v6730 = vsel %vm6729, %v6722, %v6726
    %v6731 = vand.u32 2147483647, %v5600
    %vm6732 = vcmp.eq.f32.partialorder %v6731, 8.507059e+37
    %v6733 = vand.u32 %v5600, 2147483648
    %v6734 = vor.u32 1.1754944e-38, %v6733
    %v6735 = vsel %vm6732, %v6734, %v6730
    %v6736 = vmul.f32 %v4576, %v6735
    %v6737 = vrcp.pop %v5601
    %v6738 = vmul.f32 %v5601, %v6737
    %v6739 = vsub.f32 1.0, %v6738
    %v6740 = vmul.f32 %v6737, %v6739
    %v6741 = vadd.f32 %v6737, %v6740
    %vm6742 = vweird.f32 %v5601
    %vm6743 = vweird.f32 %v6737
    %vm6744 = vmor %vm6742, %vm6743
    %v6745 = vsel %vm6744, %v6737, %v6741
    %v6746 = vand.u32 2147483647, %v5601
    %vm6747 = vcmp.eq.f32.partialorder %v6746, 8.507059e+37
    %v6748 = vand.u32 %v5601, 2147483648
    %v6749 = vor.u32 1.1754944e-38, %v6748
    %v6750 = vsel %vm6747, %v6749, %v6745
    %v6751 = vmul.f32 %v4577, %v6750
    %v6752 = vrcp.pop %v5602
    %v6753 = vmul.f32 %v5602, %v6752
    %v6754 = vsub.f32 1.0, %v6753
    %v6755 = vmul.f32 %v6752, %v6754
    %v6756 = vadd.f32 %v6752, %v6755
    %vm6757 = vweird.f32 %v5602
    %vm6758 = vweird.f32 %v6752
    %vm6759 = vmor %vm6757, %vm6758
    %v6760 = vsel %vm6759, %v6752, %v6756
    %v6761 = vand.u32 2147483647, %v5602
    %vm6762 = vcmp.eq.f32.partialorder %v6761, 8.507059e+37
    %v6763 = vand.u32 %v5602, 2147483648
    %v6764 = vor.u32 1.1754944e-38, %v6763
    %v6765 = vsel %vm6762, %v6764, %v6760
    %v6766 = vmul.f32 %v4578, %v6765
    %v6767 = vrcp.pop %v5603
    %v6768 = vmul.f32 %v5603, %v6767
    %v6769 = vsub.f32 1.0, %v6768
    %v6770 = vmul.f32 %v6767, %v6769
    %v6771 = vadd.f32 %v6767, %v6770
    %vm6772 = vweird.f32 %v5603
    %vm6773 = vweird.f32 %v6767
    %vm6774 = vmor %vm6772, %vm6773
    %v6775 = vsel %vm6774, %v6767, %v6771
    %v6776 = vand.u32 2147483647, %v5603
    %vm6777 = vcmp.eq.f32.partialorder %v6776, 8.507059e+37
    %v6778 = vand.u32 %v5603, 2147483648
    %v6779 = vor.u32 1.1754944e-38, %v6778
    %v6780 = vsel %vm6777, %v6779, %v6775
    %v6781 = vmul.f32 %v4579, %v6780
    %v6782 = vrcp.pop %v5604
    %v6783 = vmul.f32 %v5604, %v6782
    %v6784 = vsub.f32 1.0, %v6783
    %v6785 = vmul.f32 %v6782, %v6784
    %v6786 = vadd.f32 %v6782, %v6785
    %vm6787 = vweird.f32 %v5604
    %vm6788 = vweird.f32 %v6782
    %vm6789 = vmor %vm6787, %vm6788
    %v6790 = vsel %vm6789, %v6782, %v6786
    %v6791 = vand.u32 2147483647, %v5604
    %vm6792 = vcmp.eq.f32.partialorder %v6791, 8.507059e+37
    %v6793 = vand.u32 %v5604, 2147483648
    %v6794 = vor.u32 1.1754944e-38, %v6793
    %v6795 = vsel %vm6792, %v6794, %v6790
    %v6796 = vmul.f32 %v4580, %v6795
    %v6797 = vrcp.pop %v5605
    %v6798 = vmul.f32 %v5605, %v6797
    %v6799 = vsub.f32 1.0, %v6798
    %v6800 = vmul.f32 %v6797, %v6799
    %v6801 = vadd.f32 %v6797, %v6800
    %vm6802 = vweird.f32 %v5605
    %vm6803 = vweird.f32 %v6797
    %vm6804 = vmor %vm6802, %vm6803
    %v6805 = vsel %vm6804, %v6797, %v6801
    %v6806 = vand.u32 2147483647, %v5605
    %vm6807 = vcmp.eq.f32.partialorder %v6806, 8.507059e+37
    %v6808 = vand.u32 %v5605, 2147483648
    %v6809 = vor.u32 1.1754944e-38, %v6808
    %v6810 = vsel %vm6807, %v6809, %v6805
    %v6811 = vmul.f32 %v4581, %v6810
    %v6812 = vrcp.pop %v5606
    %v6813 = vmul.f32 %v5606, %v6812
    %v6814 = vsub.f32 1.0, %v6813
    %v6815 = vmul.f32 %v6812, %v6814
    %v6816 = vadd.f32 %v6812, %v6815
    %vm6817 = vweird.f32 %v5606
    %vm6818 = vweird.f32 %v6812
    %vm6819 = vmor %vm6817, %vm6818
    %v6820 = vsel %vm6819, %v6812, %v6816
    %v6821 = vand.u32 2147483647, %v5606
    %vm6822 = vcmp.eq.f32.partialorder %v6821, 8.507059e+37
    %v6823 = vand.u32 %v5606, 2147483648
    %v6824 = vor.u32 1.1754944e-38, %v6823
    %v6825 = vsel %vm6822, %v6824, %v6820
    %v6826 = vmul.f32 %v4582, %v6825
    %v6827 = vrcp.pop %v5607
    %v6828 = vmul.f32 %v5607, %v6827
    %v6829 = vsub.f32 1.0, %v6828
    %v6830 = vmul.f32 %v6827, %v6829
    %v6831 = vadd.f32 %v6827, %v6830
    %vm6832 = vweird.f32 %v5607
    %vm6833 = vweird.f32 %v6827
    %vm6834 = vmor %vm6832, %vm6833
    %v6835 = vsel %vm6834, %v6827, %v6831
    %v6836 = vand.u32 2147483647, %v5607
    %vm6837 = vcmp.eq.f32.partialorder %v6836, 8.507059e+37
    %v6838 = vand.u32 %v5607, 2147483648
    %v6839 = vor.u32 1.1754944e-38, %v6838
    %v6840 = vsel %vm6837, %v6839, %v6835
    %v6841 = vmul.f32 %v4583, %v6840
    %v6842 = vrcp.pop %v5608
    %v6843 = vmul.f32 %v5608, %v6842
    %v6844 = vsub.f32 1.0, %v6843
    %v6845 = vmul.f32 %v6842, %v6844
    %v6846 = vadd.f32 %v6842, %v6845
    %vm6847 = vweird.f32 %v5608
    %vm6848 = vweird.f32 %v6842
    %vm6849 = vmor %vm6847, %vm6848
    %v6850 = vsel %vm6849, %v6842, %v6846
    %v6851 = vand.u32 2147483647, %v5608
    %vm6852 = vcmp.eq.f32.partialorder %v6851, 8.507059e+37
    %v6853 = vand.u32 %v5608, 2147483648
    %v6854 = vor.u32 1.1754944e-38, %v6853
    %v6855 = vsel %vm6852, %v6854, %v6850
    %v6856 = vmul.f32 %v4584, %v6855
    %v6857 = vrcp.pop %v5609
    %v6858 = vmul.f32 %v5609, %v6857
    %v6859 = vsub.f32 1.0, %v6858
    %v6860 = vmul.f32 %v6857, %v6859
    %v6861 = vadd.f32 %v6857, %v6860
    %vm6862 = vweird.f32 %v5609
    %vm6863 = vweird.f32 %v6857
    %vm6864 = vmor %vm6862, %vm6863
    %v6865 = vsel %vm6864, %v6857, %v6861
    %v6866 = vand.u32 2147483647, %v5609
    %vm6867 = vcmp.eq.f32.partialorder %v6866, 8.507059e+37
    %v6868 = vand.u32 %v5609, 2147483648
    %v6869 = vor.u32 1.1754944e-38, %v6868
    %v6870 = vsel %vm6867, %v6869, %v6865
    %v6871 = vmul.f32 %v4585, %v6870
    %v6872 = vrcp.pop %v5610
    %v6873 = vmul.f32 %v5610, %v6872
    %v6874 = vsub.f32 1.0, %v6873
    %v6875 = vmul.f32 %v6872, %v6874
    %v6876 = vadd.f32 %v6872, %v6875
    %vm6877 = vweird.f32 %v5610
    %vm6878 = vweird.f32 %v6872
    %vm6879 = vmor %vm6877, %vm6878
    %v6880 = vsel %vm6879, %v6872, %v6876
    %v6881 = vand.u32 2147483647, %v5610
    %vm6882 = vcmp.eq.f32.partialorder %v6881, 8.507059e+37
    %v6883 = vand.u32 %v5610, 2147483648
    %v6884 = vor.u32 1.1754944e-38, %v6883
    %v6885 = vsel %vm6882, %v6884, %v6880
    %v6886 = vmul.f32 %v4586, %v6885
    %v6887 = vrcp.pop %v5611
    %v6888 = vmul.f32 %v5611, %v6887
    %v6889 = vsub.f32 1.0, %v6888
    %v6890 = vmul.f32 %v6887, %v6889
    %v6891 = vadd.f32 %v6887, %v6890
    %vm6892 = vweird.f32 %v5611
    %vm6893 = vweird.f32 %v6887
    %vm6894 = vmor %vm6892, %vm6893
    %v6895 = vsel %vm6894, %v6887, %v6891
    %v6896 = vand.u32 2147483647, %v5611
    %vm6897 = vcmp.eq.f32.partialorder %v6896, 8.507059e+37
    %v6898 = vand.u32 %v5611, 2147483648
    %v6899 = vor.u32 1.1754944e-38, %v6898
    %v6900 = vsel %vm6897, %v6899, %v6895
    %v6901 = vmul.f32 %v4587, %v6900
    %v6902 = vrcp.pop %v5612
    %v6903 = vmul.f32 %v5612, %v6902
    %v6904 = vsub.f32 1.0, %v6903
    %v6905 = vmul.f32 %v6902, %v6904
    %v6906 = vadd.f32 %v6902, %v6905
    %vm6907 = vweird.f32 %v5612
    %vm6908 = vweird.f32 %v6902
    %vm6909 = vmor %vm6907, %vm6908
    %v6910 = vsel %vm6909, %v6902, %v6906
    %v6911 = vand.u32 2147483647, %v5612
    %vm6912 = vcmp.eq.f32.partialorder %v6911, 8.507059e+37
    %v6913 = vand.u32 %v5612, 2147483648
    %v6914 = vor.u32 1.1754944e-38, %v6913
    %v6915 = vsel %vm6912, %v6914, %v6910
    %v6916 = vmul.f32 %v4588, %v6915
    %v6917 = vrcp.pop %v5613
    %v6918 = vmul.f32 %v5613, %v6917
    %v6919 = vsub.f32 1.0, %v6918
    %v6920 = vmul.f32 %v6917, %v6919
    %v6921 = vadd.f32 %v6917, %v6920
    %vm6922 = vweird.f32 %v5613
    %vm6923 = vweird.f32 %v6917
    %vm6924 = vmor %vm6922, %vm6923
    %v6925 = vsel %vm6924, %v6917, %v6921
    %v6926 = vand.u32 2147483647, %v5613
    %vm6927 = vcmp.eq.f32.partialorder %v6926, 8.507059e+37
    %v6928 = vand.u32 %v5613, 2147483648
    %v6929 = vor.u32 1.1754944e-38, %v6928
    %v6930 = vsel %vm6927, %v6929, %v6925
    %v6931 = vmul.f32 %v4589, %v6930
    %v6932 = vrcp.pop %v5614
    %v6933 = vmul.f32 %v5614, %v6932
    %v6934 = vsub.f32 1.0, %v6933
    %v6935 = vmul.f32 %v6932, %v6934
    %v6936 = vadd.f32 %v6932, %v6935
    %vm6937 = vweird.f32 %v5614
    %vm6938 = vweird.f32 %v6932
    %vm6939 = vmor %vm6937, %vm6938
    %v6940 = vsel %vm6939, %v6932, %v6936
    %v6941 = vand.u32 2147483647, %v5614
    %vm6942 = vcmp.eq.f32.partialorder %v6941, 8.507059e+37
    %v6943 = vand.u32 %v5614, 2147483648
    %v6944 = vor.u32 1.1754944e-38, %v6943
    %v6945 = vsel %vm6942, %v6944, %v6940
    %v6946 = vmul.f32 %v4590, %v6945
    %v6947 = vrcp.pop %v5615
    %v6948 = vmul.f32 %v5615, %v6947
    %v6949 = vsub.f32 1.0, %v6948
    %v6950 = vmul.f32 %v6947, %v6949
    %v6951 = vadd.f32 %v6947, %v6950
    %vm6952 = vweird.f32 %v5615
    %vm6953 = vweird.f32 %v6947
    %vm6954 = vmor %vm6952, %vm6953
    %v6955 = vsel %vm6954, %v6947, %v6951
    %v6956 = vand.u32 2147483647, %v5615
    %vm6957 = vcmp.eq.f32.partialorder %v6956, 8.507059e+37
    %v6958 = vand.u32 %v5615, 2147483648
    %v6959 = vor.u32 1.1754944e-38, %v6958
    %v6960 = vsel %vm6957, %v6959, %v6955
    %v6961 = vmul.f32 %v4591, %v6960
    %v6962 = vrcp.pop %v5616
    %v6963 = vmul.f32 %v5616, %v6962
    %v6964 = vsub.f32 1.0, %v6963
    %v6965 = vmul.f32 %v6962, %v6964
    %v6966 = vadd.f32 %v6962, %v6965
    %vm6967 = vweird.f32 %v5616
    %vm6968 = vweird.f32 %v6962
    %vm6969 = vmor %vm6967, %vm6968
    %v6970 = vsel %vm6969, %v6962, %v6966
    %v6971 = vand.u32 2147483647, %v5616
    %vm6972 = vcmp.eq.f32.partialorder %v6971, 8.507059e+37
    %v6973 = vand.u32 %v5616, 2147483648
    %v6974 = vor.u32 1.1754944e-38, %v6973
    %v6975 = vsel %vm6972, %v6974, %v6970
    %v6976 = vmul.f32 %v4592, %v6975
    %v6977 = vrcp.pop %v5617
    %v6978 = vmul.f32 %v5617, %v6977
    %v6979 = vsub.f32 1.0, %v6978
    %v6980 = vmul.f32 %v6977, %v6979
    %v6981 = vadd.f32 %v6977, %v6980
    %vm6982 = vweird.f32 %v5617
    %vm6983 = vweird.f32 %v6977
    %vm6984 = vmor %vm6982, %vm6983
    %v6985 = vsel %vm6984, %v6977, %v6981
    %v6986 = vand.u32 2147483647, %v5617
    %vm6987 = vcmp.eq.f32.partialorder %v6986, 8.507059e+37
    %v6988 = vand.u32 %v5617, 2147483648
    %v6989 = vor.u32 1.1754944e-38, %v6988
    %v6990 = vsel %vm6987, %v6989, %v6985
    %v6991 = vmul.f32 %v4593, %v6990
    %v6992 = vrcp.pop %v5618
    %v6993 = vmul.f32 %v5618, %v6992
    %v6994 = vsub.f32 1.0, %v6993
    %v6995 = vmul.f32 %v6992, %v6994
    %v6996 = vadd.f32 %v6992, %v6995
    %vm6997 = vweird.f32 %v5618
    %vm6998 = vweird.f32 %v6992
    %vm6999 = vmor %vm6997, %vm6998
    %v7000 = vsel %vm6999, %v6992, %v6996
    %v7001 = vand.u32 2147483647, %v5618
    %vm7002 = vcmp.eq.f32.partialorder %v7001, 8.507059e+37
    %v7003 = vand.u32 %v5618, 2147483648
    %v7004 = vor.u32 1.1754944e-38, %v7003
    %v7005 = vsel %vm7002, %v7004, %v7000
    %v7006 = vmul.f32 %v4594, %v7005
    %v7007 = vrcp.pop %v5619
    %v7008 = vmul.f32 %v5619, %v7007
    %v7009 = vsub.f32 1.0, %v7008
    %v7010 = vmul.f32 %v7007, %v7009
    %v7011 = vadd.f32 %v7007, %v7010
    %vm7012 = vweird.f32 %v5619
    %vm7013 = vweird.f32 %v7007
    %vm7014 = vmor %vm7012, %vm7013
    %v7015 = vsel %vm7014, %v7007, %v7011
    %v7016 = vand.u32 2147483647, %v5619
    %vm7017 = vcmp.eq.f32.partialorder %v7016, 8.507059e+37
    %v7018 = vand.u32 %v5619, 2147483648
    %v7019 = vor.u32 1.1754944e-38, %v7018
    %v7020 = vsel %vm7017, %v7019, %v7015
    %v7021 = vmul.f32 %v4595, %v7020
    %v7022 = vrcp.pop %v5620
    %v7023 = vmul.f32 %v5620, %v7022
    %v7024 = vsub.f32 1.0, %v7023
    %v7025 = vmul.f32 %v7022, %v7024
    %v7026 = vadd.f32 %v7022, %v7025
    %vm7027 = vweird.f32 %v5620
    %vm7028 = vweird.f32 %v7022
    %vm7029 = vmor %vm7027, %vm7028
    %v7030 = vsel %vm7029, %v7022, %v7026
    %v7031 = vand.u32 2147483647, %v5620
    %vm7032 = vcmp.eq.f32.partialorder %v7031, 8.507059e+37
    %v7033 = vand.u32 %v5620, 2147483648
    %v7034 = vor.u32 1.1754944e-38, %v7033
    %v7035 = vsel %vm7032, %v7034, %v7030
    %v7036 = vmul.f32 %v4596, %v7035
    %v7037 = vrcp.pop %v5621
    %v7038 = vmul.f32 %v5621, %v7037
    %v7039 = vsub.f32 1.0, %v7038
    %v7040 = vmul.f32 %v7037, %v7039
    %v7041 = vadd.f32 %v7037, %v7040
    %vm7042 = vweird.f32 %v5621
    %vm7043 = vweird.f32 %v7037
    %vm7044 = vmor %vm7042, %vm7043
    %v7045 = vsel %vm7044, %v7037, %v7041
    %v7046 = vand.u32 2147483647, %v5621
    %vm7047 = vcmp.eq.f32.partialorder %v7046, 8.507059e+37
    %v7048 = vand.u32 %v5621, 2147483648
    %v7049 = vor.u32 1.1754944e-38, %v7048
    %v7050 = vsel %vm7047, %v7049, %v7045
    %v7051 = vmul.f32 %v4597, %v7050
    %v7052 = vrcp.pop %v5622
    %v7053 = vmul.f32 %v5622, %v7052
    %v7054 = vsub.f32 1.0, %v7053
    %v7055 = vmul.f32 %v7052, %v7054
    %v7056 = vadd.f32 %v7052, %v7055
    %vm7057 = vweird.f32 %v5622
    %vm7058 = vweird.f32 %v7052
    %vm7059 = vmor %vm7057, %vm7058
    %v7060 = vsel %vm7059, %v7052, %v7056
    %v7061 = vand.u32 2147483647, %v5622
    %vm7062 = vcmp.eq.f32.partialorder %v7061, 8.507059e+37
    %v7063 = vand.u32 %v5622, 2147483648
    %v7064 = vor.u32 1.1754944e-38, %v7063
    %v7065 = vsel %vm7062, %v7064, %v7060
    %v7066 = vmul.f32 %v4598, %v7065
    %v7067 = vrcp.pop %v5623
    %v7068 = vmul.f32 %v5623, %v7067
    %v7069 = vsub.f32 1.0, %v7068
    %v7070 = vmul.f32 %v7067, %v7069
    %v7071 = vadd.f32 %v7067, %v7070
    %vm7072 = vweird.f32 %v5623
    %vm7073 = vweird.f32 %v7067
    %vm7074 = vmor %vm7072, %vm7073
    %v7075 = vsel %vm7074, %v7067, %v7071
    %v7076 = vand.u32 2147483647, %v5623
    %vm7077 = vcmp.eq.f32.partialorder %v7076, 8.507059e+37
    %v7078 = vand.u32 %v5623, 2147483648
    %v7079 = vor.u32 1.1754944e-38, %v7078
    %v7080 = vsel %vm7077, %v7079, %v7075
    %v7081 = vmul.f32 %v4599, %v7080
    %v7082 = vrcp.pop %v5624
    %v7083 = vmul.f32 %v5624, %v7082
    %v7084 = vsub.f32 1.0, %v7083
    %v7085 = vmul.f32 %v7082, %v7084
    %v7086 = vadd.f32 %v7082, %v7085
    %vm7087 = vweird.f32 %v5624
    %vm7088 = vweird.f32 %v7082
    %vm7089 = vmor %vm7087, %vm7088
    %v7090 = vsel %vm7089, %v7082, %v7086
    %v7091 = vand.u32 2147483647, %v5624
    %vm7092 = vcmp.eq.f32.partialorder %v7091, 8.507059e+37
    %v7093 = vand.u32 %v5624, 2147483648
    %v7094 = vor.u32 1.1754944e-38, %v7093
    %v7095 = vsel %vm7092, %v7094, %v7090
    %v7096 = vmul.f32 %v4600, %v7095
    %v7097 = vrcp.pop %v5625
    %v7098 = vmul.f32 %v5625, %v7097
    %v7099 = vsub.f32 1.0, %v7098
    %v7100 = vmul.f32 %v7097, %v7099
    %v7101 = vadd.f32 %v7097, %v7100
    %vm7102 = vweird.f32 %v5625
    %vm7103 = vweird.f32 %v7097
    %vm7104 = vmor %vm7102, %vm7103
    %v7105 = vsel %vm7104, %v7097, %v7101
    %v7106 = vand.u32 2147483647, %v5625
    %vm7107 = vcmp.eq.f32.partialorder %v7106, 8.507059e+37
    %v7108 = vand.u32 %v5625, 2147483648
    %v7109 = vor.u32 1.1754944e-38, %v7108
    %v7110 = vsel %vm7107, %v7109, %v7105
    %v7111 = vmul.f32 %v4601, %v7110
    %v7112 = vrcp.pop %v5626
    %v7113 = vmul.f32 %v5626, %v7112
    %v7114 = vsub.f32 1.0, %v7113
    %v7115 = vmul.f32 %v7112, %v7114
    %v7116 = vadd.f32 %v7112, %v7115
    %vm7117 = vweird.f32 %v5626
    %vm7118 = vweird.f32 %v7112
    %vm7119 = vmor %vm7117, %vm7118
    %v7120 = vsel %vm7119, %v7112, %v7116
    %v7121 = vand.u32 2147483647, %v5626
    %vm7122 = vcmp.eq.f32.partialorder %v7121, 8.507059e+37
    %v7123 = vand.u32 %v5626, 2147483648
    %v7124 = vor.u32 1.1754944e-38, %v7123
    %v7125 = vsel %vm7122, %v7124, %v7120
    %v7126 = vmul.f32 %v4602, %v7125
    %v7127 = vrcp.pop %v5627
    %v7128 = vmul.f32 %v5627, %v7127
    %v7129 = vsub.f32 1.0, %v7128
    %v7130 = vmul.f32 %v7127, %v7129
    %v7131 = vadd.f32 %v7127, %v7130
    %vm7132 = vweird.f32 %v5627
    %vm7133 = vweird.f32 %v7127
    %vm7134 = vmor %vm7132, %vm7133
    %v7135 = vsel %vm7134, %v7127, %v7131
    %v7136 = vand.u32 2147483647, %v5627
    %vm7137 = vcmp.eq.f32.partialorder %v7136, 8.507059e+37
    %v7138 = vand.u32 %v5627, 2147483648
    %v7139 = vor.u32 1.1754944e-38, %v7138
    %v7140 = vsel %vm7137, %v7139, %v7135
    %v7141 = vmul.f32 %v4603, %v7140
    %v7142 = vrcp.pop %v5628
    %v7143 = vmul.f32 %v5628, %v7142
    %v7144 = vsub.f32 1.0, %v7143
    %v7145 = vmul.f32 %v7142, %v7144
    %v7146 = vadd.f32 %v7142, %v7145
    %vm7147 = vweird.f32 %v5628
    %vm7148 = vweird.f32 %v7142
    %vm7149 = vmor %vm7147, %vm7148
    %v7150 = vsel %vm7149, %v7142, %v7146
    %v7151 = vand.u32 2147483647, %v5628
    %vm7152 = vcmp.eq.f32.partialorder %v7151, 8.507059e+37
    %v7153 = vand.u32 %v5628, 2147483648
    %v7154 = vor.u32 1.1754944e-38, %v7153
    %v7155 = vsel %vm7152, %v7154, %v7150
    %v7156 = vmul.f32 %v4604, %v7155
    %v7157 = vrcp.pop %v5629
    %v7158 = vmul.f32 %v5629, %v7157
    %v7159 = vsub.f32 1.0, %v7158
    %v7160 = vmul.f32 %v7157, %v7159
    %v7161 = vadd.f32 %v7157, %v7160
    %vm7162 = vweird.f32 %v5629
    %vm7163 = vweird.f32 %v7157
    %vm7164 = vmor %vm7162, %vm7163
    %v7165 = vsel %vm7164, %v7157, %v7161
    %v7166 = vand.u32 2147483647, %v5629
    %vm7167 = vcmp.eq.f32.partialorder %v7166, 8.507059e+37
    %v7168 = vand.u32 %v5629, 2147483648
    %v7169 = vor.u32 1.1754944e-38, %v7168
    %v7170 = vsel %vm7167, %v7169, %v7165
    %v7171 = vmul.f32 %v4605, %v7170
    %v7172 = vrcp.pop %v5630
    %v7173 = vmul.f32 %v5630, %v7172
    %v7174 = vsub.f32 1.0, %v7173
    %v7175 = vmul.f32 %v7172, %v7174
    %v7176 = vadd.f32 %v7172, %v7175
    %vm7177 = vweird.f32 %v5630
    %vm7178 = vweird.f32 %v7172
    %vm7179 = vmor %vm7177, %vm7178
    %v7180 = vsel %vm7179, %v7172, %v7176
    %v7181 = vand.u32 2147483647, %v5630
    %vm7182 = vcmp.eq.f32.partialorder %v7181, 8.507059e+37
    %v7183 = vand.u32 %v5630, 2147483648
    %v7184 = vor.u32 1.1754944e-38, %v7183
    %v7185 = vsel %vm7182, %v7184, %v7180
    %v7186 = vmul.f32 %v4606, %v7185
    %v7187 = vrcp.pop %v5631
    %v7188 = vmul.f32 %v5631, %v7187
    %v7189 = vsub.f32 1.0, %v7188
    %v7190 = vmul.f32 %v7187, %v7189
    %v7191 = vadd.f32 %v7187, %v7190
    %vm7192 = vweird.f32 %v5631
    %vm7193 = vweird.f32 %v7187
    %vm7194 = vmor %vm7192, %vm7193
    %v7195 = vsel %vm7194, %v7187, %v7191
    %v7196 = vand.u32 2147483647, %v5631
    %vm7197 = vcmp.eq.f32.partialorder %v7196, 8.507059e+37
    %v7198 = vand.u32 %v5631, 2147483648
    %v7199 = vor.u32 1.1754944e-38, %v7198
    %v7200 = vsel %vm7197, %v7199, %v7195
    %v7201 = vmul.f32 %v4607, %v7200
    %v7202 = vrcp.pop %v5632
    %v7203 = vmul.f32 %v5632, %v7202
    %v7204 = vsub.f32 1.0, %v7203
    %v7205 = vmul.f32 %v7202, %v7204
    %v7206 = vadd.f32 %v7202, %v7205
    %vm7207 = vweird.f32 %v5632
    %vm7208 = vweird.f32 %v7202
    %vm7209 = vmor %vm7207, %vm7208
    %v7210 = vsel %vm7209, %v7202, %v7206
    %v7211 = vand.u32 2147483647, %v5632
    %vm7212 = vcmp.eq.f32.partialorder %v7211, 8.507059e+37
    %v7213 = vand.u32 %v5632, 2147483648
    %v7214 = vor.u32 1.1754944e-38, %v7213
    %v7215 = vsel %vm7212, %v7214, %v7210
    %v7216 = vmul.f32 %v4608, %v7215
    %v7217 = vrcp.pop %v5633
    %v7218 = vmul.f32 %v5633, %v7217
    %v7219 = vsub.f32 1.0, %v7218
    %v7220 = vmul.f32 %v7217, %v7219
    %v7221 = vadd.f32 %v7217, %v7220
    %vm7222 = vweird.f32 %v5633
    %vm7223 = vweird.f32 %v7217
    %vm7224 = vmor %vm7222, %vm7223
    %v7225 = vsel %vm7224, %v7217, %v7221
    %v7226 = vand.u32 2147483647, %v5633
    %vm7227 = vcmp.eq.f32.partialorder %v7226, 8.507059e+37
    %v7228 = vand.u32 %v5633, 2147483648
    %v7229 = vor.u32 1.1754944e-38, %v7228
    %v7230 = vsel %vm7227, %v7229, %v7225
    %v7231 = vmul.f32 %v4609, %v7230
    %v7232 = vrcp.pop %v5634
    %v7233 = vmul.f32 %v5634, %v7232
    %v7234 = vsub.f32 1.0, %v7233
    %v7235 = vmul.f32 %v7232, %v7234
    %v7236 = vadd.f32 %v7232, %v7235
    %vm7237 = vweird.f32 %v5634
    %vm7238 = vweird.f32 %v7232
    %vm7239 = vmor %vm7237, %vm7238
    %v7240 = vsel %vm7239, %v7232, %v7236
    %v7241 = vand.u32 2147483647, %v5634
    %vm7242 = vcmp.eq.f32.partialorder %v7241, 8.507059e+37
    %v7243 = vand.u32 %v5634, 2147483648
    %v7244 = vor.u32 1.1754944e-38, %v7243
    %v7245 = vsel %vm7242, %v7244, %v7240
    %v7246 = vmul.f32 %v4610, %v7245
    %v7247 = vrcp.pop %v5635
    %v7248 = vmul.f32 %v5635, %v7247
    %v7249 = vsub.f32 1.0, %v7248
    %v7250 = vmul.f32 %v7247, %v7249
    %v7251 = vadd.f32 %v7247, %v7250
    %vm7252 = vweird.f32 %v5635
    %vm7253 = vweird.f32 %v7247
    %vm7254 = vmor %vm7252, %vm7253
    %v7255 = vsel %vm7254, %v7247, %v7251
    %v7256 = vand.u32 2147483647, %v5635
    %vm7257 = vcmp.eq.f32.partialorder %v7256, 8.507059e+37
    %v7258 = vand.u32 %v5635, 2147483648
    %v7259 = vor.u32 1.1754944e-38, %v7258
    %v7260 = vsel %vm7257, %v7259, %v7255
    %v7261 = vmul.f32 %v4611, %v7260
    %v7262 = vrcp.pop %v5636
    %v7263 = vmul.f32 %v5636, %v7262
    %v7264 = vsub.f32 1.0, %v7263
    %v7265 = vmul.f32 %v7262, %v7264
    %v7266 = vadd.f32 %v7262, %v7265
    %vm7267 = vweird.f32 %v5636
    %vm7268 = vweird.f32 %v7262
    %vm7269 = vmor %vm7267, %vm7268
    %v7270 = vsel %vm7269, %v7262, %v7266
    %v7271 = vand.u32 2147483647, %v5636
    %vm7272 = vcmp.eq.f32.partialorder %v7271, 8.507059e+37
    %v7273 = vand.u32 %v5636, 2147483648
    %v7274 = vor.u32 1.1754944e-38, %v7273
    %v7275 = vsel %vm7272, %v7274, %v7270
    %v7276 = vmul.f32 %v4612, %v7275
    %v7277 = vrcp.pop %v5637
    %v7278 = vmul.f32 %v5637, %v7277
    %v7279 = vsub.f32 1.0, %v7278
    %v7280 = vmul.f32 %v7277, %v7279
    %v7281 = vadd.f32 %v7277, %v7280
    %vm7282 = vweird.f32 %v5637
    %vm7283 = vweird.f32 %v7277
    %vm7284 = vmor %vm7282, %vm7283
    %v7285 = vsel %vm7284, %v7277, %v7281
    %v7286 = vand.u32 2147483647, %v5637
    %vm7287 = vcmp.eq.f32.partialorder %v7286, 8.507059e+37
    %v7288 = vand.u32 %v5637, 2147483648
    %v7289 = vor.u32 1.1754944e-38, %v7288
    %v7290 = vsel %vm7287, %v7289, %v7285
    %v7291 = vmul.f32 %v4613, %v7290
    %v7292 = vrcp.pop %v5638
    %v7293 = vmul.f32 %v5638, %v7292
    %v7294 = vsub.f32 1.0, %v7293
    %v7295 = vmul.f32 %v7292, %v7294
    %v7296 = vadd.f32 %v7292, %v7295
    %vm7297 = vweird.f32 %v5638
    %vm7298 = vweird.f32 %v7292
    %vm7299 = vmor %vm7297, %vm7298
    %v7300 = vsel %vm7299, %v7292, %v7296
    %v7301 = vand.u32 2147483647, %v5638
    %vm7302 = vcmp.eq.f32.partialorder %v7301, 8.507059e+37
    %v7303 = vand.u32 %v5638, 2147483648
    %v7304 = vor.u32 1.1754944e-38, %v7303
    %v7305 = vsel %vm7302, %v7304, %v7300
    %v7306 = vmul.f32 %v4614, %v7305
    %v7307 = vrcp.pop %v5639
    %v7308 = vmul.f32 %v5639, %v7307
    %v7309 = vsub.f32 1.0, %v7308
    %v7310 = vmul.f32 %v7307, %v7309
    %v7311 = vadd.f32 %v7307, %v7310
    %vm7312 = vweird.f32 %v5639
    %vm7313 = vweird.f32 %v7307
    %vm7314 = vmor %vm7312, %vm7313
    %v7315 = vsel %vm7314, %v7307, %v7311
    %v7316 = vand.u32 2147483647, %v5639
    %vm7317 = vcmp.eq.f32.partialorder %v7316, 8.507059e+37
    %v7318 = vand.u32 %v5639, 2147483648
    %v7319 = vor.u32 1.1754944e-38, %v7318
    %v7320 = vsel %vm7317, %v7319, %v7315
    %v7321 = vmul.f32 %v4615, %v7320
    %v7322 = vrcp.pop %v5640
    %v7323 = vmul.f32 %v5640, %v7322
    %v7324 = vsub.f32 1.0, %v7323
    %v7325 = vmul.f32 %v7322, %v7324
    %v7326 = vadd.f32 %v7322, %v7325
    %vm7327 = vweird.f32 %v5640
    %vm7328 = vweird.f32 %v7322
    %vm7329 = vmor %vm7327, %vm7328
    %v7330 = vsel %vm7329, %v7322, %v7326
    %v7331 = vand.u32 2147483647, %v5640
    %vm7332 = vcmp.eq.f32.partialorder %v7331, 8.507059e+37
    %v7333 = vand.u32 %v5640, 2147483648
    %v7334 = vor.u32 1.1754944e-38, %v7333
    %v7335 = vsel %vm7332, %v7334, %v7330
    %v7336 = vmul.f32 %v4616, %v7335
    %v7337 = vrcp.pop %v5641
    %v7338 = vmul.f32 %v5641, %v7337
    %v7339 = vsub.f32 1.0, %v7338
    %v7340 = vmul.f32 %v7337, %v7339
    %v7341 = vadd.f32 %v7337, %v7340
    %vm7342 = vweird.f32 %v5641
    %vm7343 = vweird.f32 %v7337
    %vm7344 = vmor %vm7342, %vm7343
    %v7345 = vsel %vm7344, %v7337, %v7341
    %v7346 = vand.u32 2147483647, %v5641
    %vm7347 = vcmp.eq.f32.partialorder %v7346, 8.507059e+37
    %v7348 = vand.u32 %v5641, 2147483648
    %v7349 = vor.u32 1.1754944e-38, %v7348
    %v7350 = vsel %vm7347, %v7349, %v7345
    %v7351 = vmul.f32 %v4617, %v7350
    %v7352 = vrcp.pop %v5642
    %v7353 = vmul.f32 %v5642, %v7352
    %v7354 = vsub.f32 1.0, %v7353
    %v7355 = vmul.f32 %v7352, %v7354
    %v7356 = vadd.f32 %v7352, %v7355
    %vm7357 = vweird.f32 %v5642
    %vm7358 = vweird.f32 %v7352
    %vm7359 = vmor %vm7357, %vm7358
    %v7360 = vsel %vm7359, %v7352, %v7356
    %v7361 = vand.u32 2147483647, %v5642
    %vm7362 = vcmp.eq.f32.partialorder %v7361, 8.507059e+37
    %v7363 = vand.u32 %v5642, 2147483648
    %v7364 = vor.u32 1.1754944e-38, %v7363
    %v7365 = vsel %vm7362, %v7364, %v7360
    %v7366 = vmul.f32 %v4618, %v7365
    %v7367 = vrcp.pop %v5643
    %v7368 = vmul.f32 %v5643, %v7367
    %v7369 = vsub.f32 1.0, %v7368
    %v7370 = vmul.f32 %v7367, %v7369
    %v7371 = vadd.f32 %v7367, %v7370
    %vm7372 = vweird.f32 %v5643
    %vm7373 = vweird.f32 %v7367
    %vm7374 = vmor %vm7372, %vm7373
    %v7375 = vsel %vm7374, %v7367, %v7371
    %v7376 = vand.u32 2147483647, %v5643
    %vm7377 = vcmp.eq.f32.partialorder %v7376, 8.507059e+37
    %v7378 = vand.u32 %v5643, 2147483648
    %v7379 = vor.u32 1.1754944e-38, %v7378
    %v7380 = vsel %vm7377, %v7379, %v7375
    %v7381 = vmul.f32 %v4619, %v7380
    %v7382 = vrcp.pop %v5644
    %v7383 = vmul.f32 %v5644, %v7382
    %v7384 = vsub.f32 1.0, %v7383
    %v7385 = vmul.f32 %v7382, %v7384
    %v7386 = vadd.f32 %v7382, %v7385
    %vm7387 = vweird.f32 %v5644
    %vm7388 = vweird.f32 %v7382
    %vm7389 = vmor %vm7387, %vm7388
    %v7390 = vsel %vm7389, %v7382, %v7386
    %v7391 = vand.u32 2147483647, %v5644
    %vm7392 = vcmp.eq.f32.partialorder %v7391, 8.507059e+37
    %v7393 = vand.u32 %v5644, 2147483648
    %v7394 = vor.u32 1.1754944e-38, %v7393
    %v7395 = vsel %vm7392, %v7394, %v7390
    %v7396 = vmul.f32 %v4620, %v7395
    %v7397 = vrcp.pop %v5645
    %v7398 = vmul.f32 %v5645, %v7397
    %v7399 = vsub.f32 1.0, %v7398
    %v7400 = vmul.f32 %v7397, %v7399
    %v7401 = vadd.f32 %v7397, %v7400
    %vm7402 = vweird.f32 %v5645
    %vm7403 = vweird.f32 %v7397
    %vm7404 = vmor %vm7402, %vm7403
    %v7405 = vsel %vm7404, %v7397, %v7401
    %v7406 = vand.u32 2147483647, %v5645
    %vm7407 = vcmp.eq.f32.partialorder %v7406, 8.507059e+37
    %v7408 = vand.u32 %v5645, 2147483648
    %v7409 = vor.u32 1.1754944e-38, %v7408
    %v7410 = vsel %vm7407, %v7409, %v7405
    %v7411 = vmul.f32 %v4621, %v7410
    %v7412 = vrcp.pop %v5646
    %v7413 = vmul.f32 %v5646, %v7412
    %v7414 = vsub.f32 1.0, %v7413
    %v7415 = vmul.f32 %v7412, %v7414
    %v7416 = vadd.f32 %v7412, %v7415
    %vm7417 = vweird.f32 %v5646
    %vm7418 = vweird.f32 %v7412
    %vm7419 = vmor %vm7417, %vm7418
    %v7420 = vsel %vm7419, %v7412, %v7416
    %v7421 = vand.u32 2147483647, %v5646
    %vm7422 = vcmp.eq.f32.partialorder %v7421, 8.507059e+37
    %v7423 = vand.u32 %v5646, 2147483648
    %v7424 = vor.u32 1.1754944e-38, %v7423
    %v7425 = vsel %vm7422, %v7424, %v7420
    %v7426 = vmul.f32 %v4622, %v7425
    %v7427 = vrcp.pop %v5647
    %v7428 = vmul.f32 %v5647, %v7427
    %v7429 = vsub.f32 1.0, %v7428
    %v7430 = vmul.f32 %v7427, %v7429
    %v7431 = vadd.f32 %v7427, %v7430
    %vm7432 = vweird.f32 %v5647
    %vm7433 = vweird.f32 %v7427
    %vm7434 = vmor %vm7432, %vm7433
    %v7435 = vsel %vm7434, %v7427, %v7431
    %v7436 = vand.u32 2147483647, %v5647
    %vm7437 = vcmp.eq.f32.partialorder %v7436, 8.507059e+37
    %v7438 = vand.u32 %v5647, 2147483648
    %v7439 = vor.u32 1.1754944e-38, %v7438
    %v7440 = vsel %vm7437, %v7439, %v7435
    %v7441 = vmul.f32 %v4623, %v7440
    %v7442 = vrcp.pop %v5648
    %v7443 = vmul.f32 %v5648, %v7442
    %v7444 = vsub.f32 1.0, %v7443
    %v7445 = vmul.f32 %v7442, %v7444
    %v7446 = vadd.f32 %v7442, %v7445
    %vm7447 = vweird.f32 %v5648
    %vm7448 = vweird.f32 %v7442
    %vm7449 = vmor %vm7447, %vm7448
    %v7450 = vsel %vm7449, %v7442, %v7446
    %v7451 = vand.u32 2147483647, %v5648
    %vm7452 = vcmp.eq.f32.partialorder %v7451, 8.507059e+37
    %v7453 = vand.u32 %v5648, 2147483648
    %v7454 = vor.u32 1.1754944e-38, %v7453
    %v7455 = vsel %vm7452, %v7454, %v7450
    %v7456 = vmul.f32 %v4624, %v7455
    %v7457 = vrcp.pop %v5649
    %v7458 = vmul.f32 %v5649, %v7457
    %v7459 = vsub.f32 1.0, %v7458
    %v7460 = vmul.f32 %v7457, %v7459
    %v7461 = vadd.f32 %v7457, %v7460
    %vm7462 = vweird.f32 %v5649
    %vm7463 = vweird.f32 %v7457
    %vm7464 = vmor %vm7462, %vm7463
    %v7465 = vsel %vm7464, %v7457, %v7461
    %v7466 = vand.u32 2147483647, %v5649
    %vm7467 = vcmp.eq.f32.partialorder %v7466, 8.507059e+37
    %v7468 = vand.u32 %v5649, 2147483648
    %v7469 = vor.u32 1.1754944e-38, %v7468
    %v7470 = vsel %vm7467, %v7469, %v7465
    %v7471 = vmul.f32 %v4625, %v7470
    %v7472 = vrcp.pop %v5650
    %v7473 = vmul.f32 %v5650, %v7472
    %v7474 = vsub.f32 1.0, %v7473
    %v7475 = vmul.f32 %v7472, %v7474
    %v7476 = vadd.f32 %v7472, %v7475
    %vm7477 = vweird.f32 %v5650
    %vm7478 = vweird.f32 %v7472
    %vm7479 = vmor %vm7477, %vm7478
    %v7480 = vsel %vm7479, %v7472, %v7476
    %v7481 = vand.u32 2147483647, %v5650
    %vm7482 = vcmp.eq.f32.partialorder %v7481, 8.507059e+37
    %v7483 = vand.u32 %v5650, 2147483648
    %v7484 = vor.u32 1.1754944e-38, %v7483
    %v7485 = vsel %vm7482, %v7484, %v7480
    %v7486 = vmul.f32 %v4626, %v7485
    %v7487 = vrcp.pop %v5651
    %v7488 = vmul.f32 %v5651, %v7487
    %v7489 = vsub.f32 1.0, %v7488
    %v7490 = vmul.f32 %v7487, %v7489
    %v7491 = vadd.f32 %v7487, %v7490
    %vm7492 = vweird.f32 %v5651
    %vm7493 = vweird.f32 %v7487
    %vm7494 = vmor %vm7492, %vm7493
    %v7495 = vsel %vm7494, %v7487, %v7491
    %v7496 = vand.u32 2147483647, %v5651
    %vm7497 = vcmp.eq.f32.partialorder %v7496, 8.507059e+37
    %v7498 = vand.u32 %v5651, 2147483648
    %v7499 = vor.u32 1.1754944e-38, %v7498
    %v7500 = vsel %vm7497, %v7499, %v7495
    %v7501 = vmul.f32 %v4627, %v7500
    %v7502 = vrcp.pop %v5652
    %v7503 = vmul.f32 %v5652, %v7502
    %v7504 = vsub.f32 1.0, %v7503
    %v7505 = vmul.f32 %v7502, %v7504
    %v7506 = vadd.f32 %v7502, %v7505
    %vm7507 = vweird.f32 %v5652
    %vm7508 = vweird.f32 %v7502
    %vm7509 = vmor %vm7507, %vm7508
    %v7510 = vsel %vm7509, %v7502, %v7506
    %v7511 = vand.u32 2147483647, %v5652
    %vm7512 = vcmp.eq.f32.partialorder %v7511, 8.507059e+37
    %v7513 = vand.u32 %v5652, 2147483648
    %v7514 = vor.u32 1.1754944e-38, %v7513
    %v7515 = vsel %vm7512, %v7514, %v7510
    %v7516 = vmul.f32 %v4628, %v7515
    %v7517 = vrcp.pop %v5653
    %v7518 = vmul.f32 %v5653, %v7517
    %v7519 = vsub.f32 1.0, %v7518
    %v7520 = vmul.f32 %v7517, %v7519
    %v7521 = vadd.f32 %v7517, %v7520
    %vm7522 = vweird.f32 %v5653
    %vm7523 = vweird.f32 %v7517
    %vm7524 = vmor %vm7522, %vm7523
    %v7525 = vsel %vm7524, %v7517, %v7521
    %v7526 = vand.u32 2147483647, %v5653
    %vm7527 = vcmp.eq.f32.partialorder %v7526, 8.507059e+37
    %v7528 = vand.u32 %v5653, 2147483648
    %v7529 = vor.u32 1.1754944e-38, %v7528
    %v7530 = vsel %vm7527, %v7529, %v7525
    %v7531 = vmul.f32 %v4629, %v7530
    %v7532 = vrcp.pop %v5654
    %v7533 = vmul.f32 %v5654, %v7532
    %v7534 = vsub.f32 1.0, %v7533
    %v7535 = vmul.f32 %v7532, %v7534
    %v7536 = vadd.f32 %v7532, %v7535
    %vm7537 = vweird.f32 %v5654
    %vm7538 = vweird.f32 %v7532
    %vm7539 = vmor %vm7537, %vm7538
    %v7540 = vsel %vm7539, %v7532, %v7536
    %v7541 = vand.u32 2147483647, %v5654
    %vm7542 = vcmp.eq.f32.partialorder %v7541, 8.507059e+37
    %v7543 = vand.u32 %v5654, 2147483648
    %v7544 = vor.u32 1.1754944e-38, %v7543
    %v7545 = vsel %vm7542, %v7544, %v7540
    %v7546 = vmul.f32 %v4630, %v7545
    %v7547 = vrcp.pop %v5655
    %v7548 = vmul.f32 %v5655, %v7547
    %v7549 = vsub.f32 1.0, %v7548
    %v7550 = vmul.f32 %v7547, %v7549
    %v7551 = vadd.f32 %v7547, %v7550
    %vm7552 = vweird.f32 %v5655
    %vm7553 = vweird.f32 %v7547
    %vm7554 = vmor %vm7552, %vm7553
    %v7555 = vsel %vm7554, %v7547, %v7551
    %v7556 = vand.u32 2147483647, %v5655
    %vm7557 = vcmp.eq.f32.partialorder %v7556, 8.507059e+37
    %v7558 = vand.u32 %v5655, 2147483648
    %v7559 = vor.u32 1.1754944e-38, %v7558
    %v7560 = vsel %vm7557, %v7559, %v7555
    %v7561 = vmul.f32 %v4631, %v7560
    %v7562 = vrcp.pop %v5656
    %v7563 = vmul.f32 %v5656, %v7562
    %v7564 = vsub.f32 1.0, %v7563
    %v7565 = vmul.f32 %v7562, %v7564
    %v7566 = vadd.f32 %v7562, %v7565
    %vm7567 = vweird.f32 %v5656
    %vm7568 = vweird.f32 %v7562
    %vm7569 = vmor %vm7567, %vm7568
    %v7570 = vsel %vm7569, %v7562, %v7566
    %v7571 = vand.u32 2147483647, %v5656
    %vm7572 = vcmp.eq.f32.partialorder %v7571, 8.507059e+37
    %v7573 = vand.u32 %v5656, 2147483648
    %v7574 = vor.u32 1.1754944e-38, %v7573
    %v7575 = vsel %vm7572, %v7574, %v7570
    %v7576 = vmul.f32 %v4632, %v7575
    %7577 = vst [vmem:[#allocation2] sm:$0xff] %v5671
    %7578 = vst [vmem:[#allocation2 + $0x8] sm:$0xff] %v5686
    %7579 = vst [vmem:[#allocation2 + $0x10] sm:$0xff] %v5701
    %7580 = vst [vmem:[#allocation2 + $0x18] sm:$0xff] %v5716
    %7581 = vst [vmem:[#allocation2 + $0x20] sm:$0xff] %v5731
    %7582 = vst [vmem:[#allocation2 + $0x28] sm:$0xff] %v5746
    %7583 = vst [vmem:[#allocation2 + $0x30] sm:$0xff] %v5761
    %7584 = vst [vmem:[#allocation2 + $0x38] sm:$0xff] %v5776
    %7585 = vst [vmem:[#allocation2 + $0x40] sm:$0xff] %v5791
    %7586 = vst [vmem:[#allocation2 + $0x48] sm:$0xff] %v5806
    %7587 = vst [vmem:[#allocation2 + $0x50] sm:$0xff] %v5821
    %7588 = vst [vmem:[#allocation2 + $0x58] sm:$0xff] %v5836
    %7589 = vst [vmem:[#allocation2 + $0x60] sm:$0xff] %v5851
    %7590 = vst [vmem:[#allocation2 + $0x68] sm:$0xff] %v5866
    %7591 = vst [vmem:[#allocation2 + $0x70] sm:$0xff] %v5881
    %7592 = vst [vmem:[#allocation2 + $0x78] sm:$0xff] %v5896
    %7593 = vst [vmem:[#allocation2 + $0x80] sm:$0xff] %v5911
    %7594 = vst [vmem:[#allocation2 + $0x88] sm:$0xff] %v5926
    %7595 = vst [vmem:[#allocation2 + $0x90] sm:$0xff] %v5941
    %7596 = vst [vmem:[#allocation2 + $0x98] sm:$0xff] %v5956
    %7597 = vst [vmem:[#allocation2 + $0xa0] sm:$0xff] %v5971
    %7598 = vst [vmem:[#allocation2 + $0xa8] sm:$0xff] %v5986
    %7599 = vst [vmem:[#allocation2 + $0xb0] sm:$0xff] %v6001
    %7600 = vst [vmem:[#allocation2 + $0xb8] sm:$0xff] %v6016
    %7601 = vst [vmem:[#allocation2 + $0xc0] sm:$0xff] %v6031
    %7602 = vst [vmem:[#allocation2 + $0xc8] sm:$0xff] %v6046
    %7603 = vst [vmem:[#allocation2 + $0xd0] sm:$0xff] %v6061
    %7604 = vst [vmem:[#allocation2 + $0xd8] sm:$0xff] %v6076
    %7605 = vst [vmem:[#allocation2 + $0xe0] sm:$0xff] %v6091
    %7606 = vst [vmem:[#allocation2 + $0xe8] sm:$0xff] %v6106
    %7607 = vst [vmem:[#allocation2 + $0xf0] sm:$0xff] %v6121
    %7608 = vst [vmem:[#allocation2 + $0xf8] sm:$0xff] %v6136
    %7609 = vst [vmem:[#allocation2 + $0x100] sm:$0xff] %v6151
    %7610 = vst [vmem:[#allocation2 + $0x108] sm:$0xff] %v6166
    %7611 = vst [vmem:[#allocation2 + $0x110] sm:$0xff] %v6181
    %7612 = vst [vmem:[#allocation2 + $0x118] sm:$0xff] %v6196
    %7613 = vst [vmem:[#allocation2 + $0x120] sm:$0xff] %v6211
    %7614 = vst [vmem:[#allocation2 + $0x128] sm:$0xff] %v6226
    %7615 = vst [vmem:[#allocation2 + $0x130] sm:$0xff] %v6241
    %7616 = vst [vmem:[#allocation2 + $0x138] sm:$0xff] %v6256
    %7617 = vst [vmem:[#allocation2 + $0x140] sm:$0xff] %v6271
    %7618 = vst [vmem:[#allocation2 + $0x148] sm:$0xff] %v6286
    %7619 = vst [vmem:[#allocation2 + $0x150] sm:$0xff] %v6301
    %7620 = vst [vmem:[#allocation2 + $0x158] sm:$0xff] %v6316
    %7621 = vst [vmem:[#allocation2 + $0x160] sm:$0xff] %v6331
    %7622 = vst [vmem:[#allocation2 + $0x168] sm:$0xff] %v6346
    %7623 = vst [vmem:[#allocation2 + $0x170] sm:$0xff] %v6361
    %7624 = vst [vmem:[#allocation2 + $0x178] sm:$0xff] %v6376
    %7625 = vst [vmem:[#allocation2 + $0x180] sm:$0xff] %v6391
    %7626 = vst [vmem:[#allocation2 + $0x188] sm:$0xff] %v6406
    %7627 = vst [vmem:[#allocation2 + $0x190] sm:$0xff] %v6421
    %7628 = vst [vmem:[#allocation2 + $0x198] sm:$0xff] %v6436
    %7629 = vst [vmem:[#allocation2 + $0x1a0] sm:$0xff] %v6451
    %7630 = vst [vmem:[#allocation2 + $0x1a8] sm:$0xff] %v6466
    %7631 = vst [vmem:[#allocation2 + $0x1b0] sm:$0xff] %v6481
    %7632 = vst [vmem:[#allocation2 + $0x1b8] sm:$0xff] %v6496
    %7633 = vst [vmem:[#allocation2 + $0x1c0] sm:$0xff] %v6511
    %7634 = vst [vmem:[#allocation2 + $0x1c8] sm:$0xff] %v6526
    %7635 = vst [vmem:[#allocation2 + $0x1d0] sm:$0xff] %v6541
    %7636 = vst [vmem:[#allocation2 + $0x1d8] sm:$0xff] %v6556
    %7637 = vst [vmem:[#allocation2 + $0x1e0] sm:$0xff] %v6571
    %7638 = vst [vmem:[#allocation2 + $0x1e8] sm:$0xff] %v6586
    %7639 = vst [vmem:[#allocation2 + $0x1f0] sm:$0xff] %v6601
    %7640 = vst [vmem:[#allocation2 + $0x1f8] sm:$0xff] %v6616
    %7641 = vst [vmem:[#allocation2 + $0x200] sm:$0xff] %v6631
    %7642 = vst [vmem:[#allocation2 + $0x208] sm:$0xff] %v6646
    %7643 = vst [vmem:[#allocation2 + $0x210] sm:$0xff] %v6661
    %7644 = vst [vmem:[#allocation2 + $0x218] sm:$0xff] %v6676
    %7645 = vst [vmem:[#allocation2 + $0x220] sm:$0xff] %v6691
    %7646 = vst [vmem:[#allocation2 + $0x228] sm:$0xff] %v6706
    %7647 = vst [vmem:[#allocation2 + $0x230] sm:$0xff] %v6721
    %7648 = vst [vmem:[#allocation2 + $0x238] sm:$0xff] %v6736
    %7649 = vst [vmem:[#allocation2 + $0x240] sm:$0xff] %v6751
    %7650 = vst [vmem:[#allocation2 + $0x248] sm:$0xff] %v6766
    %7651 = vst [vmem:[#allocation2 + $0x250] sm:$0xff] %v6781
    %7652 = vst [vmem:[#allocation2 + $0x258] sm:$0xff] %v6796
    %7653 = vst [vmem:[#allocation2 + $0x260] sm:$0xff] %v6811
    %7654 = vst [vmem:[#allocation2 + $0x268] sm:$0xff] %v6826
    %7655 = vst [vmem:[#allocation2 + $0x270] sm:$0xff] %v6841
    %7656 = vst [vmem:[#allocation2 + $0x278] sm:$0xff] %v6856
    %7657 = vst [vmem:[#allocation2 + $0x280] sm:$0xff] %v6871
    %7658 = vst [vmem:[#allocation2 + $0x288] sm:$0xff] %v6886
    %7659 = vst [vmem:[#allocation2 + $0x290] sm:$0xff] %v6901
    %7660 = vst [vmem:[#allocation2 + $0x298] sm:$0xff] %v6916
    %7661 = vst [vmem:[#allocation2 + $0x2a0] sm:$0xff] %v6931
    %7662 = vst [vmem:[#allocation2 + $0x2a8] sm:$0xff] %v6946
    %7663 = vst [vmem:[#allocation2 + $0x2b0] sm:$0xff] %v6961
    %7664 = vst [vmem:[#allocation2 + $0x2b8] sm:$0xff] %v6976
    %7665 = vst [vmem:[#allocation2 + $0x2c0] sm:$0xff] %v6991
    %7666 = vst [vmem:[#allocation2 + $0x2c8] sm:$0xff] %v7006
    %7667 = vst [vmem:[#allocation2 + $0x2d0] sm:$0xff] %v7021
    %7668 = vst [vmem:[#allocation2 + $0x2d8] sm:$0xff] %v7036
    %7669 = vst [vmem:[#allocation2 + $0x2e0] sm:$0xff] %v7051
    %7670 = vst [vmem:[#allocation2 + $0x2e8] sm:$0xff] %v7066
    %7671 = vst [vmem:[#allocation2 + $0x2f0] sm:$0xff] %v7081
    %7672 = vst [vmem:[#allocation2 + $0x2f8] sm:$0xff] %v7096
    %7673 = vst [vmem:[#allocation2 + $0x300] sm:$0xff] %v7111
    %7674 = vst [vmem:[#allocation2 + $0x308] sm:$0xff] %v7126
    %7675 = vst [vmem:[#allocation2 + $0x310] sm:$0xff] %v7141
    %7676 = vst [vmem:[#allocation2 + $0x318] sm:$0xff] %v7156
    %7677 = vst [vmem:[#allocation2 + $0x320] sm:$0xff] %v7171
    %7678 = vst [vmem:[#allocation2 + $0x328] sm:$0xff] %v7186
    %7679 = vst [vmem:[#allocation2 + $0x330] sm:$0xff] %v7201
    %7680 = vst [vmem:[#allocation2 + $0x338] sm:$0xff] %v7216
    %7681 = vst [vmem:[#allocation2 + $0x340] sm:$0xff] %v7231
    %7682 = vst [vmem:[#allocation2 + $0x348] sm:$0xff] %v7246
    %7683 = vst [vmem:[#allocation2 + $0x350] sm:$0xff] %v7261
    %7684 = vst [vmem:[#allocation2 + $0x358] sm:$0xff] %v7276
    %7685 = vst [vmem:[#allocation2 + $0x360] sm:$0xff] %v7291
    %7686 = vst [vmem:[#allocation2 + $0x368] sm:$0xff] %v7306
    %7687 = vst [vmem:[#allocation2 + $0x370] sm:$0xff] %v7321
    %7688 = vst [vmem:[#allocation2 + $0x378] sm:$0xff] %v7336
    %7689 = vst [vmem:[#allocation2 + $0x380] sm:$0xff] %v7351
    %7690 = vst [vmem:[#allocation2 + $0x388] sm:$0xff] %v7366
    %7691 = vst [vmem:[#allocation2 + $0x390] sm:$0xff] %v7381
    %7692 = vst [vmem:[#allocation2 + $0x398] sm:$0xff] %v7396
    %7693 = vst [vmem:[#allocation2 + $0x3a0] sm:$0xff] %v7411
    %7694 = vst [vmem:[#allocation2 + $0x3a8] sm:$0xff] %v7426
    %7695 = vst [vmem:[#allocation2 + $0x3b0] sm:$0xff] %v7441
    %7696 = vst [vmem:[#allocation2 + $0x3b8] sm:$0xff] %v7456
    %7697 = vst [vmem:[#allocation2 + $0x3c0] sm:$0xff] %v7471
    %7698 = vst [vmem:[#allocation2 + $0x3c8] sm:$0xff] %v7486
    %7699 = vst [vmem:[#allocation2 + $0x3d0] sm:$0xff] %v7501
    %7700 = vst [vmem:[#allocation2 + $0x3d8] sm:$0xff] %v7516
    %7701 = vst [vmem:[#allocation2 + $0x3e0] sm:$0xff] %v7531
    %7702 = vst [vmem:[#allocation2 + $0x3e8] sm:$0xff] %v7546
    %7703 = vst [vmem:[#allocation2 + $0x3f0] sm:$0xff] %v7561
    %7704 = vst [vmem:[#allocation2 + $0x3f8] sm:$0xff] %v7576
    %v7705 = vlaneseq
    %v7706 = vand.u32 %v7705, 127
    %v7707 = vld [vmem:[%s2] sm:$0xff]
    loop: start=0, step=1, limit=8
    $region14: #{_device_stage.3} parent=1 // loop_pre_header
      _
    $region15: #{_device_stage.3} parent=1 // loop_header
      %s7709 = sphi 0, %s7713
      %p7710 = scmp.ge.s32.totalorder %s7709, 8
      %v7714 = vphi %v7707, %v7730
    $region16: #{_device_stage.3} parent=1 // loop_header_branch
      %7712 = sbr.rel (%p7710) target = $region20
    $region17: #{_device_stage.3} parent=1 // loop_body
      %s7715 = smul.u32 %s7709, 8
      %s7716 = scalar_lea.vmem [#allocation2], %s7715
      %v7717 = vld [vmem:[%s7716] sm:$0xff]
      %v7718 = vstv %s7709
      %vm7719 = vcmp.eq.s32.totalorder %v7706, %v7718
      %v7720 = vsel %vm7719, %v7714, 0.0
      %7721 = vmax.xlane.f32.xlu0 %v7720
      %v7722 = vpop.xlane.xlu0 %7721
      %vm7723 = vcmp.gt.f32.partialorder %v7717, 0.45
      %vm7724 = vcmp.gt.s32.totalorder %v7706, %v7718
      %vm7725 = vmand %vm7723, %vm7724
      %vm7726 = vcmp.gt.f32.partialorder %v7722, 0.5
      %v7727 = vsel %vm7726, 1, 0
      %vm7728 = vcmp.eq.s32.totalorder %v7727, 1
      %vm7729 = vmand %vm7725, %vm7728
      %v7730 = vsel %vm7729, 0.0, %v7714
    $region18: #{_device_stage.3} parent=1 // loop_footer
      %s7713 = sadd.s32 1, %s7709
    $region19: #{_device_stage.3} parent=1 // loop_footer_branch
      %7708 = sbr.rel target = $region15
    $region20: #{_device_stage.3} parent=1 // loop_exit
      _
    %7731 = vst [vmem:[#allocation3] sm:$0xff] %v7714
    // Predicated region
    $region21: #{_device_stage.3} parent=1 // pred_check
      _
    $region22: #{_device_stage.3} parent=1 // pred_check_branch
      %7733 = sbr.rel (0) target = $region24
    $region23: #{_device_stage.3} parent=1 // pred_region
      %7735 = vsyncadd [#allocation4], 0
      %s7737 = sshll.u32 [#allocation3], 4
      %s7738 = int_to_ptr.vmem [resolvable:$true] %s7737
      %s7739 = sshll.u32 %s3, 4
      %s7740 = int_to_ptr.hbm [resolvable:$true] %s7739
      %7742 = dma.vmem_to_hbm [thread:$0]  %s7738, 128, %s7740, [#allocation4]
    $region24: #{_device_stage.3} parent=1 // pred_fallthru
      _
    // Predicated region
    $region25: #{_device_stage.3} parent=1 // pred_check
      _
    $region26: #{_device_stage.3} parent=1 // pred_check_branch
      %7744 = sbr.rel (0) target = $region28
    $region27: #{_device_stage.3} parent=1 // pred_region
      %7746 = dma.done [#allocation4], 128
    $region28: #{_device_stage.3} parent=1 // pred_fallthru
      _
    %7747 = vsyncpa [#allocation4], 1

</llo_original>
